<compile_context>
chip_gen: v7x
topology: tpu7x:2x2x1
jax: 0.10.0
libtpu: 0.0.40
codegen_flags: <defaults>
</compile_context>

<pallas_src>
import functools

import jax
import jax.numpy as jnp
import numpy as np
from jax import lax
from jax.experimental import pallas as pl
from jax.experimental.pallas import tpu as pltpu

BN_EPS = 1e-5


# ---------------------------------------------------------------------------
# Pallas kernels
# ---------------------------------------------------------------------------
def conv_stats_kernel(pm_ref, w_ref, y_ref, sum_ref, ssq_ref):
    """Fused 3x3 conv for one image as a single im2col matmul + BN partials.

    pm_ref  : (1, H*W, 9*Cin) bf16  im2col patches of one image
    w_ref   : (9*Cin, Cout)   bf16  fused conv weight (tap-major, channel-minor)
    y_ref   : (1, H*W, Cout)  f32   conv output (pre-BN)
    sum_ref : (1, 1, Cout)    f32   per-channel partial sum
    ssq_ref : (1, 1, Cout)    f32   per-channel partial sum of squares
    """
    acc = jnp.dot(pm_ref[0], w_ref[...], preferred_element_type=jnp.float32)
    y_ref[0] = acc
    sum_ref[0] = jnp.sum(acc, axis=0, keepdims=True)
    ssq_ref[0] = jnp.sum(acc * acc, axis=0, keepdims=True)


def bn_relu_kernel(y_ref, scale_ref, shift_ref, o_ref):
    """Per-image affine normalize + ReLU: relu(y * scale + shift). All f32."""
    o_ref[0] = jnp.maximum(y_ref[0] * scale_ref[...] + shift_ref[...], 0.0)


# ---------------------------------------------------------------------------
# ConvBlock wrapper (NHWC in / NHWC out)
# ---------------------------------------------------------------------------
def conv_block(x_nhwc, w_oihw, bias, gamma, beta):
    """ConvBlock forward. x_nhwc: (N,H,W,Cin) f32 -> (N,H,W,Cout) f32.

    `bias` is accepted for parameter parity but unused: a per-channel constant
    added before train-mode BatchNorm is exactly cancelled by the mean
    subtraction, so skipping it is mathematically a no-op.
    """
    del bias
    N, H, W, Cin = x_nhwc.shape
    Cout = w_oihw.shape[0]
    HW = H * W
    K = 9 * Cin

    # --- wrapper-side im2col (XLA fuses pad + slice + concat); keeps the
    #     kernel a single big matmul with no in-kernel relayout copies. -------
    xp = jnp.pad(x_nhwc, ((0, 0), (1, 1), (1, 1), (0, 0)))
    cols = [xp[:, dy:dy + H, dx:dx + W, :] for dy in range(3) for dx in range(3)]
    pm = jnp.concatenate(cols, axis=-1).reshape(N, HW, K).astype(jnp.bfloat16)

    # fused weight laid out to match the patch column order: (dy, dx, cin)
    w2 = jnp.transpose(w_oihw, (2, 3, 1, 0)).reshape(K, Cout).astype(jnp.bfloat16)

    cparams = pltpu.CompilerParams(
        dimension_semantics=("parallel",),          # batch tiles -> 2 TCs on v7x
        vmem_limit_bytes=32 * 1024 * 1024,          # safe on v5e/v6e/v7x
    )

    # --- pass 1: conv + per-image BN partials, grid over batch ---------------
    y, psum, pssq = pl.pallas_call(
        conv_stats_kernel,
        grid=(N,),
        in_specs=[
            pl.BlockSpec((1, HW, K), lambda n: (n, 0, 0)),
            pl.BlockSpec((K, Cout), lambda n: (0, 0)),
        ],
        out_specs=(
            pl.BlockSpec((1, HW, Cout), lambda n: (n, 0, 0)),
            pl.BlockSpec((1, 1, Cout), lambda n: (n, 0, 0)),
            pl.BlockSpec((1, 1, Cout), lambda n: (n, 0, 0)),
        ),
        out_shape=(
            jax.ShapeDtypeStruct((N, HW, Cout), jnp.float32),
            jax.ShapeDtypeStruct((N, 1, Cout), jnp.float32),
            jax.ShapeDtypeStruct((N, 1, Cout), jnp.float32),
        ),
        compiler_params=cparams,
        cost_estimate=pl.CostEstimate(
            flops=2 * N * HW * K * Cout,
            transcendentals=0,
            bytes_accessed=pm.size * 2 + w2.size * 2 + N * HW * Cout * 4,
        ),
    )(pm, w2)

    # --- finish BN stats on tiny (N, 1, Cout) partials in plain JAX ----------
    cnt = jnp.float32(N * HW)
    mean = jnp.sum(psum, axis=0) / cnt                              # (1, Cout)
    var = jnp.maximum(jnp.sum(pssq, axis=0) / cnt - mean * mean, 0.0)
    inv_std = lax.rsqrt(var + BN_EPS)
    scale = gamma.reshape(1, Cout) * inv_std                        # (1, Cout)
    shift = beta.reshape(1, Cout) - mean * scale                    # (1, Cout)

    # --- pass 2: normalize + ReLU, grid over batch ----------------------------
    out = pl.pallas_call(
        bn_relu_kernel,
        grid=(N,),
        in_specs=[
            pl.BlockSpec((1, HW, Cout), lambda n: (n, 0, 0)),
            pl.BlockSpec((1, Cout), lambda n: (0, 0)),
            pl.BlockSpec((1, Cout), lambda n: (0, 0)),
        ],
        out_specs=pl.BlockSpec((1, HW, Cout), lambda n: (n, 0, 0)),
        out_shape=jax.ShapeDtypeStruct((N, HW, Cout), jnp.float32),
        compiler_params=cparams,
    )(y, scale, shift)

    return out.reshape(N, H, W, Cout)


# ---------------------------------------------------------------------------
# Plain-JAX glue (NHWC)  -- TODO(synk): not Pallas kernels
# ---------------------------------------------------------------------------
def max_pool_2x2(x):
    N, H, W, C = x.shape
    return x.reshape(N, H // 2, 2, W // 2, 2, C).max(axis=(2, 4))


def upsample_bilinear_2x(x):
    """nn.Upsample(scale_factor=2, mode='bilinear', align_corners=True)."""
    N, H, W, C = x.shape
    Ho, Wo = 2 * H, 2 * W

    def coords(n_in, n_out):
        t = jnp.arange(n_out, dtype=jnp.float32) * ((n_in - 1) / (n_out - 1))
        i0 = jnp.clip(jnp.floor(t).astype(jnp.int32), 0, n_in - 2)
        return i0, t - i0.astype(jnp.float32)

    h0, fh = coords(H, Ho)
    w0, fw = coords(W, Wo)
    xh = (x[:, h0, :, :] * (1.0 - fh)[None, :, None, None]
          + x[:, h0 + 1, :, :] * fh[None, :, None, None])
    return (xh[:, :, w0, :] * (1.0 - fw)[None, None, :, None]
            + xh[:, :, w0 + 1, :] * fw[None, None, :, None])


# ---------------------------------------------------------------------------
# SimpleDDPM forward (U-Net), parameterised by the ConvBlock implementation
# ---------------------------------------------------------------------------
def _forward(x_nchw, params, block_fn):
    x = jnp.transpose(x_nchw, (0, 2, 3, 1))                 # NCHW -> NHWC once
    enc1 = block_fn(x, *params["enc1"])
    x = max_pool_2x2(enc1)
    enc2 = block_fn(x, *params["enc2"])
    x = max_pool_2x2(enc2)
    enc3 = block_fn(x, *params["enc3"])
    x = max_pool_2x2(enc3)
    x = block_fn(x, *params["middle"])
    x = upsample_bilinear_2x(x)
    x = jnp.concatenate([x, enc3], axis=-1)                 # torch.cat(dim=1)
    x = block_fn(x, *params["dec3"])
    x = upsample_bilinear_2x(x)
    x = jnp.concatenate([x, enc2], axis=-1)
    x = block_fn(x, *params["dec2"])
    x = upsample_bilinear_2x(x)
    x = jnp.concatenate([x, enc1], axis=-1)
    x = block_fn(x, *params["dec1"])
    return jnp.transpose(x, (0, 3, 1, 2))                   # back to NCHW


@jax.jit
def ddpm_forward(x, params):
    return _forward(x, params, conv_block)


# ---------------------------------------------------------------------------
# Pure-JAX reference (same bf16 matmul-operand policy, f32 accumulation)
# ---------------------------------------------------------------------------
def ref_conv_block(x_nhwc, w_oihw, bias, gamma, beta, eps=BN_EPS):
    w_hwio = jnp.transpose(w_oihw, (2, 3, 1, 0))
    y = lax.conv_general_dilated(
        x_nhwc.astype(jnp.bfloat16), w_hwio.astype(jnp.bfloat16),
        window_strides=(1, 1), padding=((1, 1), (1, 1)),
        dimension_numbers=("NHWC", "HWIO", "NHWC"),
        preferred_element_type=jnp.float32)
    y = y + bias.reshape(1, 1, 1, -1)
    mean = jnp.mean(y, axis=(0, 1, 2), keepdims=True)
    var = jnp.mean((y - mean) ** 2, axis=(0, 1, 2), keepdims=True)
    y = (y - mean) * lax.rsqrt(var + eps)
    y = y * gamma.reshape(1, 1, 1, -1) + beta.reshape(1, 1, 1, -1)
    return jnp.maximum(y, 0.0)


@jax.jit
def ddpm_forward_ref(x, params):
    return _forward(x, params, ref_conv_block)


# ---------------------------------------------------------------------------
# Parameter init (PyTorch-style defaults, deterministic)
# ---------------------------------------------------------------------------
def init_convblock_params(key, cin, cout):
    kw, kb = jax.random.split(key)
    bound = 1.0 / np.sqrt(cin * 9)
    w = jax.random.uniform(kw, (cout, cin, 3, 3), jnp.float32, -bound, bound)
    b = jax.random.uniform(kb, (cout,), jnp.float32, -bound, bound)
    gamma = jnp.ones((cout,), jnp.float32)
    beta = jnp.zeros((cout,), jnp.float32)
    return (w, b, gamma, beta)


if __name__ == "__main__":
    # SimpleDDPM expects 1 input channel; 16x16 spatial is divisible by 8
    # (three 2x pools) so the U-Net skip connections line up.
    N, C0, H, W = 2, 1, 16, 16
    layer_specs = {
        "enc1": (1, 16), "enc2": (16, 32), "enc3": (32, 64),
        "middle": (64, 64), "dec3": (128, 32), "dec2": (64, 16),
        "dec1": (32, 1),
    }

    key = jax.random.PRNGKey(0)
    key, kx = jax.random.split(key)
    x = jax.random.normal(kx, (N, C0, H, W), jnp.float32)

    params = {}
    for name, (ci, co) in layer_specs.items():
        key, sub = jax.random.split(key)
        params[name] = init_convblock_params(sub, ci, co)

    out = ddpm_forward(x, params)
    out = jax.block_until_ready(out)
    assert out.shape == (N, 1, H, W)

    ref = jax.block_until_ready(ddpm_forward_ref(x, params))
    np.testing.assert_allclose(np.asarray(out), np.asarray(ref),
                               atol=5e-3, rtol=5e-3)

    print("KERNEL_OK")
</pallas_src>

<mosaic_0001>
module attributes {stable_mosaic.version = 11 : i64} {
  func.func @conv_stats_kernel(%arg0: i32, %arg1: memref<1x256x9xbf16, #tpu.memory_space<vmem>>, %arg2: memref<9x16xbf16, #tpu.memory_space<vmem>>, %arg3: memref<1x256x16xf32, #tpu.memory_space<vmem>>, %arg4: memref<1x1x16xf32, #tpu.memory_space<vmem>>, %arg5: memref<1x1x16xf32, #tpu.memory_space<vmem>>) attributes {dimension_semantics = [#tpu.dimension_semantics<parallel>], iteration_bounds = array<i64: 2>, scalar_prefetch = 0 : i64, scratch_operands = 0 : i64, tpu.core_type = #tpu.core_type<tc>, window_params = [{transform_indices = @transform_0, window_bounds = array<i64: 1, 256, 9>}, {pipeline_mode = #tpu.pipeline_mode<synchronous>, transform_indices = @transform_1, window_bounds = array<i64: 9, 16>}, {transform_indices = @transform_2, window_bounds = array<i64: 1, 256, 16>}, {transform_indices = @transform_3, window_bounds = array<i64: 1, 1, 16>}, {transform_indices = @transform_4, window_bounds = array<i64: 1, 1, 16>}]} {
    %c0 = arith.constant 0 : index
    %c0_0 = arith.constant 0 : index
    %c0_1 = arith.constant 0 : index
    %0 = vector.load %arg1[%c0, %c0_0, %c0_1] : memref<1x256x9xbf16, #tpu.memory_space<vmem>>, vector<1x256x9xbf16>
    %1 = vector.shape_cast %0 : vector<1x256x9xbf16> to vector<256x9xbf16>
    %c0_2 = arith.constant 0 : index
    %c0_3 = arith.constant 0 : index
    %2 = vector.load %arg2[%c0_2, %c0_3] : memref<9x16xbf16, #tpu.memory_space<vmem>>, vector<9x16xbf16>
    %cst = arith.constant dense<0.000000e+00> : vector<256x16xf32>
    %3 = tpu.matmul %1, %2, %cst {dimension_numbers = #tpu.dot_dimension_numbers<[1], [0], [0], [1], [0, 0, 1, 1], [], []>} : vector<256x9xbf16>, vector<9x16xbf16>, vector<256x16xf32> -> vector<256x16xf32>
    %c0_4 = arith.constant 0 : index
    %c0_5 = arith.constant 0 : index
    %c0_6 = arith.constant 0 : index
    %4 = vector.load %arg3[%c0_4, %c0_5, %c0_6] : memref<1x256x16xf32, #tpu.memory_space<vmem>>, vector<1x256x16xf32>
    %5 = vector.shape_cast %4 : vector<1x256x16xf32> to vector<256x16xf32>
    %6 = vector.shape_cast %3 : vector<256x16xf32> to vector<1x256x16xf32>
    tpu.vector_store %arg3[%c0_4, %c0_5, %c0_6], %6 {strides = array<i32>} : memref<1x256x16xf32, #tpu.memory_space<vmem>>, vector<1x256x16xf32>,
    %cst_7 = arith.constant dense<0.000000e+00> : vector<16xf32>
    %7 = vector.multi_reduction <add>, %3, %cst_7 [0] : vector<256x16xf32> to vector<16xf32>
    %8 = vector.shape_cast %7 : vector<16xf32> to vector<1x16xf32>
    %c0_8 = arith.constant 0 : index
    %c0_9 = arith.constant 0 : index
    %c0_10 = arith.constant 0 : index
    %9 = vector.load %arg4[%c0_8, %c0_9, %c0_10] : memref<1x1x16xf32, #tpu.memory_space<vmem>>, vector<1x1x16xf32>
    %10 = vector.shape_cast %9 : vector<1x1x16xf32> to vector<1x16xf32>
    %11 = vector.shape_cast %8 : vector<1x16xf32> to vector<1x1x16xf32>
    tpu.vector_store %arg4[%c0_8, %c0_9, %c0_10], %11 {strides = array<i32>} : memref<1x1x16xf32, #tpu.memory_space<vmem>>, vector<1x1x16xf32>,
    %12 = arith.mulf %3, %3 : vector<256x16xf32>
    %cst_11 = arith.constant dense<0.000000e+00> : vector<16xf32>
    %13 = vector.multi_reduction <add>, %12, %cst_11 [0] : vector<256x16xf32> to vector<16xf32>
    %14 = vector.shape_cast %13 : vector<16xf32> to vector<1x16xf32>
    %c0_12 = arith.constant 0 : index
    %c0_13 = arith.constant 0 : index
    %c0_14 = arith.constant 0 : index
    %15 = vector.load %arg5[%c0_12, %c0_13, %c0_14] : memref<1x1x16xf32, #tpu.memory_space<vmem>>, vector<1x1x16xf32>
    %16 = vector.shape_cast %15 : vector<1x1x16xf32> to vector<1x16xf32>
    %17 = vector.shape_cast %14 : vector<1x16xf32> to vector<1x1x16xf32>
    tpu.vector_store %arg5[%c0_12, %c0_13, %c0_14], %17 {strides = array<i32>} : memref<1x1x16xf32, #tpu.memory_space<vmem>>, vector<1x1x16xf32>,
    return
  }
  func.func @transform_0(%arg0: i32) -> (i32, i32, i32) {
    %c0_i32 = arith.constant 0 : i32
    %c0_i32_0 = arith.constant 0 : i32
    %c0_i32_1 = arith.constant 0 : i32
    return %arg0, %c0_i32, %c0_i32_0 : i32, i32, i32
  }
  func.func @transform_1(%arg0: i32) -> (i32, i32) {
    %c0_i32 = arith.constant 0 : i32
    %c0_i32_0 = arith.constant 0 : i32
    %c0_i32_1 = arith.constant 0 : i32
    return %c0_i32, %c0_i32_0 : i32, i32
  }
  func.func @transform_2(%arg0: i32) -> (i32, i32, i32) {
    %c0_i32 = arith.constant 0 : i32
    %c0_i32_0 = arith.constant 0 : i32
    %c0_i32_1 = arith.constant 0 : i32
    return %arg0, %c0_i32, %c0_i32_0 : i32, i32, i32
  }
  func.func @transform_3(%arg0: i32) -> (i32, i32, i32) {
    %c0_i32 = arith.constant 0 : i32
    %c0_i32_0 = arith.constant 0 : i32
    %c0_i32_1 = arith.constant 0 : i32
    return %arg0, %c0_i32, %c0_i32_0 : i32, i32, i32
  }
  func.func @transform_4(%arg0: i32) -> (i32, i32, i32) {
    %c0_i32 = arith.constant 0 : i32
    %c0_i32_0 = arith.constant 0 : i32
    %c0_i32_1 = arith.constant 0 : i32
    return %arg0, %c0_i32, %c0_i32_0 : i32, i32, i32
  }
}

module attributes {stable_mosaic.version = 11 : i64} {
  func.func @bn_relu_kernel(%arg0: i32, %arg1: memref<1x256x16xf32, #tpu.memory_space<vmem>>, %arg2: memref<1x16xf32, #tpu.memory_space<vmem>>, %arg3: memref<1x16xf32, #tpu.memory_space<vmem>>, %arg4: memref<1x256x16xf32, #tpu.memory_space<vmem>>) attributes {dimension_semantics = [#tpu.dimension_semantics<parallel>], iteration_bounds = array<i64: 2>, scalar_prefetch = 0 : i64, scratch_operands = 0 : i64, tpu.core_type = #tpu.core_type<tc>, window_params = [{transform_indices = @transform_0, window_bounds = array<i64: 1, 256, 16>}, {pipeline_mode = #tpu.pipeline_mode<synchronous>, transform_indices = @transform_1, window_bounds = array<i64: 1, 16>}, {pipeline_mode = #tpu.pipeline_mode<synchronous>, transform_indices = @transform_2, window_bounds = array<i64: 1, 16>}, {transform_indices = @transform_3, window_bounds = array<i64: 1, 256, 16>}]} {
    %c0 = arith.constant 0 : index
    %c0_0 = arith.constant 0 : index
    %c0_1 = arith.constant 0 : index
    %0 = vector.load %arg1[%c0, %c0_0, %c0_1] : memref<1x256x16xf32, #tpu.memory_space<vmem>>, vector<1x256x16xf32>
    %1 = vector.shape_cast %0 : vector<1x256x16xf32> to vector<256x16xf32>
    %c0_2 = arith.constant 0 : index
    %c0_3 = arith.constant 0 : index
    %2 = vector.load %arg2[%c0_2, %c0_3] : memref<1x16xf32, #tpu.memory_space<vmem>>, vector<1x16xf32>
    %3 = vector.broadcast %2 : vector<1x16xf32> to vector<256x16xf32>
    %4 = arith.mulf %1, %3 : vector<256x16xf32>
    %c0_4 = arith.constant 0 : index
    %c0_5 = arith.constant 0 : index
    %5 = vector.load %arg3[%c0_4, %c0_5] : memref<1x16xf32, #tpu.memory_space<vmem>>, vector<1x16xf32>
    %6 = vector.broadcast %5 : vector<1x16xf32> to vector<256x16xf32>
    %7 = arith.addf %4, %6 : vector<256x16xf32>
    %cst = arith.constant 0.000000e+00 : f32
    %8 = vector.broadcast %cst : f32 to vector<256x16xf32>
    %9 = arith.maximumf %7, %8 : vector<256x16xf32>
    %c0_6 = arith.constant 0 : index
    %c0_7 = arith.constant 0 : index
    %c0_8 = arith.constant 0 : index
    %10 = vector.load %arg4[%c0_6, %c0_7, %c0_8] : memref<1x256x16xf32, #tpu.memory_space<vmem>>, vector<1x256x16xf32>
    %11 = vector.shape_cast %10 : vector<1x256x16xf32> to vector<256x16xf32>
    %12 = vector.shape_cast %9 : vector<256x16xf32> to vector<1x256x16xf32>
    tpu.vector_store %arg4[%c0_6, %c0_7, %c0_8], %12 {strides = array<i32>} : memref<1x256x16xf32, #tpu.memory_space<vmem>>, vector<1x256x16xf32>,
    return
  }
  func.func @transform_0(%arg0: i32) -> (i32, i32, i32) {
    %c0_i32 = arith.constant 0 : i32
    %c0_i32_0 = arith.constant 0 : i32
    %c0_i32_1 = arith.constant 0 : i32
    return %arg0, %c0_i32, %c0_i32_0 : i32, i32, i32
  }
  func.func @transform_1(%arg0: i32) -> (i32, i32) {
    %c0_i32 = arith.constant 0 : i32
    %c0_i32_0 = arith.constant 0 : i32
    %c0_i32_1 = arith.constant 0 : i32
    return %c0_i32, %c0_i32_0 : i32, i32
  }
  func.func @transform_2(%arg0: i32) -> (i32, i32) {
    %c0_i32 = arith.constant 0 : i32
    %c0_i32_0 = arith.constant 0 : i32
    %c0_i32_1 = arith.constant 0 : i32
    return %c0_i32, %c0_i32_0 : i32, i32
  }
  func.func @transform_3(%arg0: i32) -> (i32, i32, i32) {
    %c0_i32 = arith.constant 0 : i32
    %c0_i32_0 = arith.constant 0 : i32
    %c0_i32_1 = arith.constant 0 : i32
    return %arg0, %c0_i32, %c0_i32_0 : i32, i32, i32
  }
}

module attributes {stable_mosaic.version = 11 : i64} {
  func.func @conv_stats_kernel(%arg0: i32, %arg1: memref<1x64x144xbf16, #tpu.memory_space<vmem>>, %arg2: memref<144x32xbf16, #tpu.memory_space<vmem>>, %arg3: memref<1x64x32xf32, #tpu.memory_space<vmem>>, %arg4: memref<1x1x32xf32, #tpu.memory_space<vmem>>, %arg5: memref<1x1x32xf32, #tpu.memory_space<vmem>>) attributes {dimension_semantics = [#tpu.dimension_semantics<parallel>], iteration_bounds = array<i64: 2>, scalar_prefetch = 0 : i64, scratch_operands = 0 : i64, tpu.core_type = #tpu.core_type<tc>, window_params = [{transform_indices = @transform_0, window_bounds = array<i64: 1, 64, 144>}, {pipeline_mode = #tpu.pipeline_mode<synchronous>, transform_indices = @transform_1, window_bounds = array<i64: 144, 32>}, {transform_indices = @transform_2, window_bounds = array<i64: 1, 64, 32>}, {transform_indices = @transform_3, window_bounds = array<i64: 1, 1, 32>}, {transform_indices = @transform_4, window_bounds = array<i64: 1, 1, 32>}]} {
    %c0 = arith.constant 0 : index
    %c0_0 = arith.constant 0 : index
    %c0_1 = arith.constant 0 : index
    %0 = vector.load %arg1[%c0, %c0_0, %c0_1] : memref<1x64x144xbf16, #tpu.memory_space<vmem>>, vector<1x64x144xbf16>
    %1 = vector.shape_cast %0 : vector<1x64x144xbf16> to vector<64x144xbf16>
    %c0_2 = arith.constant 0 : index
    %c0_3 = arith.constant 0 : index
    %2 = vector.load %arg2[%c0_2, %c0_3] : memref<144x32xbf16, #tpu.memory_space<vmem>>, vector<144x32xbf16>
    %cst = arith.constant dense<0.000000e+00> : vector<64x32xf32>
    %3 = tpu.matmul %1, %2, %cst {dimension_numbers = #tpu.dot_dimension_numbers<[1], [0], [0], [1], [0, 0, 1, 1], [], []>} : vector<64x144xbf16>, vector<144x32xbf16>, vector<64x32xf32> -> vector<64x32xf32>
    %c0_4 = arith.constant 0 : index
    %c0_5 = arith.constant 0 : index
    %c0_6 = arith.constant 0 : index
    %4 = vector.load %arg3[%c0_4, %c0_5, %c0_6] : memref<1x64x32xf32, #tpu.memory_space<vmem>>, vector<1x64x32xf32>
    %5 = vector.shape_cast %4 : vector<1x64x32xf32> to vector<64x32xf32>
    %6 = vector.shape_cast %3 : vector<64x32xf32> to vector<1x64x32xf32>
    tpu.vector_store %arg3[%c0_4, %c0_5, %c0_6], %6 {strides = array<i32>} : memref<1x64x32xf32, #tpu.memory_space<vmem>>, vector<1x64x32xf32>,
    %cst_7 = arith.constant dense<0.000000e+00> : vector<32xf32>
    %7 = vector.multi_reduction <add>, %3, %cst_7 [0] : vector<64x32xf32> to vector<32xf32>
    %8 = vector.shape_cast %7 : vector<32xf32> to vector<1x32xf32>
    %c0_8 = arith.constant 0 : index
    %c0_9 = arith.constant 0 : index
    %c0_10 = arith.constant 0 : index
    %9 = vector.load %arg4[%c0_8, %c0_9, %c0_10] : memref<1x1x32xf32, #tpu.memory_space<vmem>>, vector<1x1x32xf32>
    %10 = vector.shape_cast %9 : vector<1x1x32xf32> to vector<1x32xf32>
    %11 = vector.shape_cast %8 : vector<1x32xf32> to vector<1x1x32xf32>
    tpu.vector_store %arg4[%c0_8, %c0_9, %c0_10], %11 {strides = array<i32>} : memref<1x1x32xf32, #tpu.memory_space<vmem>>, vector<1x1x32xf32>,
    %12 = arith.mulf %3, %3 : vector<64x32xf32>
    %cst_11 = arith.constant dense<0.000000e+00> : vector<32xf32>
    %13 = vector.multi_reduction <add>, %12, %cst_11 [0] : vector<64x32xf32> to vector<32xf32>
    %14 = vector.shape_cast %13 : vector<32xf32> to vector<1x32xf32>
    %c0_12 = arith.constant 0 : index
    %c0_13 = arith.constant 0 : index
    %c0_14 = arith.constant 0 : index
    %15 = vector.load %arg5[%c0_12, %c0_13, %c0_14] : memref<1x1x32xf32, #tpu.memory_space<vmem>>, vector<1x1x32xf32>
    %16 = vector.shape_cast %15 : vector<1x1x32xf32> to vector<1x32xf32>
    %17 = vector.shape_cast %14 : vector<1x32xf32> to vector<1x1x32xf32>
    tpu.vector_store %arg5[%c0_12, %c0_13, %c0_14], %17 {strides = array<i32>} : memref<1x1x32xf32, #tpu.memory_space<vmem>>, vector<1x1x32xf32>,
    return
  }
  func.func @transform_0(%arg0: i32) -> (i32, i32, i32) {
    %c0_i32 = arith.constant 0 : i32
    %c0_i32_0 = arith.constant 0 : i32
    %c0_i32_1 = arith.constant 0 : i32
    return %arg0, %c0_i32, %c0_i32_0 : i32, i32, i32
  }
  func.func @transform_1(%arg0: i32) -> (i32, i32) {
    %c0_i32 = arith.constant 0 : i32
    %c0_i32_0 = arith.constant 0 : i32
    %c0_i32_1 = arith.constant 0 : i32
    return %c0_i32, %c0_i32_0 : i32, i32
  }
  func.func @transform_2(%arg0: i32) -> (i32, i32, i32) {
    %c0_i32 = arith.constant 0 : i32
    %c0_i32_0 = arith.constant 0 : i32
    %c0_i32_1 = arith.constant 0 : i32
    return %arg0, %c0_i32, %c0_i32_0 : i32, i32, i32
  }
  func.func @transform_3(%arg0: i32) -> (i32, i32, i32) {
    %c0_i32 = arith.constant 0 : i32
    %c0_i32_0 = arith.constant 0 : i32
    %c0_i32_1 = arith.constant 0 : i32
    return %arg0, %c0_i32, %c0_i32_0 : i32, i32, i32
  }
  func.func @transform_4(%arg0: i32) -> (i32, i32, i32) {
    %c0_i32 = arith.constant 0 : i32
    %c0_i32_0 = arith.constant 0 : i32
    %c0_i32_1 = arith.constant 0 : i32
    return %arg0, %c0_i32, %c0_i32_0 : i32, i32, i32
  }
}

module attributes {stable_mosaic.version = 11 : i64} {
  func.func @bn_relu_kernel(%arg0: i32, %arg1: memref<1x64x32xf32, #tpu.memory_space<vmem>>, %arg2: memref<1x32xf32, #tpu.memory_space<vmem>>, %arg3: memref<1x32xf32, #tpu.memory_space<vmem>>, %arg4: memref<1x64x32xf32, #tpu.memory_space<vmem>>) attributes {dimension_semantics = [#tpu.dimension_semantics<parallel>], iteration_bounds = array<i64: 2>, scalar_prefetch = 0 : i64, scratch_operands = 0 : i64, tpu.core_type = #tpu.core_type<tc>, window_params = [{transform_indices = @transform_0, window_bounds = array<i64: 1, 64, 32>}, {pipeline_mode = #tpu.pipeline_mode<synchronous>, transform_indices = @transform_1, window_bounds = array<i64: 1, 32>}, {pipeline_mode = #tpu.pipeline_mode<synchronous>, transform_indices = @transform_2, window_bounds = array<i64: 1, 32>}, {transform_indices = @transform_3, window_bounds = array<i64: 1, 64, 32>}]} {
    %c0 = arith.constant 0 : index
    %c0_0 = arith.constant 0 : index
    %c0_1 = arith.constant 0 : index
    %0 = vector.load %arg1[%c0, %c0_0, %c0_1] : memref<1x64x32xf32, #tpu.memory_space<vmem>>, vector<1x64x32xf32>
    %1 = vector.shape_cast %0 : vector<1x64x32xf32> to vector<64x32xf32>
    %c0_2 = arith.constant 0 : index
    %c0_3 = arith.constant 0 : index
    %2 = vector.load %arg2[%c0_2, %c0_3] : memref<1x32xf32, #tpu.memory_space<vmem>>, vector<1x32xf32>
    %3 = vector.broadcast %2 : vector<1x32xf32> to vector<64x32xf32>
    %4 = arith.mulf %1, %3 : vector<64x32xf32>
    %c0_4 = arith.constant 0 : index
    %c0_5 = arith.constant 0 : index
    %5 = vector.load %arg3[%c0_4, %c0_5] : memref<1x32xf32, #tpu.memory_space<vmem>>, vector<1x32xf32>
    %6 = vector.broadcast %5 : vector<1x32xf32> to vector<64x32xf32>
    %7 = arith.addf %4, %6 : vector<64x32xf32>
    %cst = arith.constant 0.000000e+00 : f32
    %8 = vector.broadcast %cst : f32 to vector<64x32xf32>
    %9 = arith.maximumf %7, %8 : vector<64x32xf32>
    %c0_6 = arith.constant 0 : index
    %c0_7 = arith.constant 0 : index
    %c0_8 = arith.constant 0 : index
    %10 = vector.load %arg4[%c0_6, %c0_7, %c0_8] : memref<1x64x32xf32, #tpu.memory_space<vmem>>, vector<1x64x32xf32>
    %11 = vector.shape_cast %10 : vector<1x64x32xf32> to vector<64x32xf32>
    %12 = vector.shape_cast %9 : vector<64x32xf32> to vector<1x64x32xf32>
    tpu.vector_store %arg4[%c0_6, %c0_7, %c0_8], %12 {strides = array<i32>} : memref<1x64x32xf32, #tpu.memory_space<vmem>>, vector<1x64x32xf32>,
    return
  }
  func.func @transform_0(%arg0: i32) -> (i32, i32, i32) {
    %c0_i32 = arith.constant 0 : i32
    %c0_i32_0 = arith.constant 0 : i32
    %c0_i32_1 = arith.constant 0 : i32
    return %arg0, %c0_i32, %c0_i32_0 : i32, i32, i32
  }
  func.func @transform_1(%arg0: i32) -> (i32, i32) {
    %c0_i32 = arith.constant 0 : i32
    %c0_i32_0 = arith.constant 0 : i32
    %c0_i32_1 = arith.constant 0 : i32
    return %c0_i32, %c0_i32_0 : i32, i32
  }
  func.func @transform_2(%arg0: i32) -> (i32, i32) {
    %c0_i32 = arith.constant 0 : i32
    %c0_i32_0 = arith.constant 0 : i32
    %c0_i32_1 = arith.constant 0 : i32
    return %c0_i32, %c0_i32_0 : i32, i32
  }
  func.func @transform_3(%arg0: i32) -> (i32, i32, i32) {
    %c0_i32 = arith.constant 0 : i32
    %c0_i32_0 = arith.constant 0 : i32
    %c0_i32_1 = arith.constant 0 : i32
    return %arg0, %c0_i32, %c0_i32_0 : i32, i32, i32
  }
}

module attributes {stable_mosaic.version = 11 : i64} {
  func.func @conv_stats_kernel(%arg0: i32, %arg1: memref<1x16x288xbf16, #tpu.memory_space<vmem>>, %arg2: memref<288x64xbf16, #tpu.memory_space<vmem>>, %arg3: memref<1x16x64xf32, #tpu.memory_space<vmem>>, %arg4: memref<1x1x64xf32, #tpu.memory_space<vmem>>, %arg5: memref<1x1x64xf32, #tpu.memory_space<vmem>>) attributes {dimension_semantics = [#tpu.dimension_semantics<parallel>], iteration_bounds = array<i64: 2>, scalar_prefetch = 0 : i64, scratch_operands = 0 : i64, tpu.core_type = #tpu.core_type<tc>, window_params = [{transform_indices = @transform_0, window_bounds = array<i64: 1, 16, 288>}, {pipeline_mode = #tpu.pipeline_mode<synchronous>, transform_indices = @transform_1, window_bounds = array<i64: 288, 64>}, {transform_indices = @transform_2, window_bounds = array<i64: 1, 16, 64>}, {transform_indices = @transform_3, window_bounds = array<i64: 1, 1, 64>}, {transform_indices = @transform_4, window_bounds = array<i64: 1, 1, 64>}]} {
    %c0 = arith.constant 0 : index
    %c0_0 = arith.constant 0 : index
    %c0_1 = arith.constant 0 : index
    %0 = vector.load %arg1[%c0, %c0_0, %c0_1] : memref<1x16x288xbf16, #tpu.memory_space<vmem>>, vector<1x16x288xbf16>
    %1 = vector.shape_cast %0 : vector<1x16x288xbf16> to vector<16x288xbf16>
    %c0_2 = arith.constant 0 : index
    %c0_3 = arith.constant 0 : index
    %2 = vector.load %arg2[%c0_2, %c0_3] : memref<288x64xbf16, #tpu.memory_space<vmem>>, vector<288x64xbf16>
    %cst = arith.constant dense<0.000000e+00> : vector<16x64xf32>
    %3 = tpu.matmul %1, %2, %cst {dimension_numbers = #tpu.dot_dimension_numbers<[1], [0], [0], [1], [0, 0, 1, 1], [], []>} : vector<16x288xbf16>, vector<288x64xbf16>, vector<16x64xf32> -> vector<16x64xf32>
    %c0_4 = arith.constant 0 : index
    %c0_5 = arith.constant 0 : index
    %c0_6 = arith.constant 0 : index
    %4 = vector.load %arg3[%c0_4, %c0_5, %c0_6] : memref<1x16x64xf32, #tpu.memory_space<vmem>>, vector<1x16x64xf32>
    %5 = vector.shape_cast %4 : vector<1x16x64xf32> to vector<16x64xf32>
    %6 = vector.shape_cast %3 : vector<16x64xf32> to vector<1x16x64xf32>
    tpu.vector_store %arg3[%c0_4, %c0_5, %c0_6], %6 {strides = array<i32>} : memref<1x16x64xf32, #tpu.memory_space<vmem>>, vector<1x16x64xf32>,
    %cst_7 = arith.constant dense<0.000000e+00> : vector<64xf32>
    %7 = vector.multi_reduction <add>, %3, %cst_7 [0] : vector<16x64xf32> to vector<64xf32>
    %8 = vector.shape_cast %7 : vector<64xf32> to vector<1x64xf32>
    %c0_8 = arith.constant 0 : index
    %c0_9 = arith.constant 0 : index
    %c0_10 = arith.constant 0 : index
    %9 = vector.load %arg4[%c0_8, %c0_9, %c0_10] : memref<1x1x64xf32, #tpu.memory_space<vmem>>, vector<1x1x64xf32>
    %10 = vector.shape_cast %9 : vector<1x1x64xf32> to vector<1x64xf32>
    %11 = vector.shape_cast %8 : vector<1x64xf32> to vector<1x1x64xf32>
    tpu.vector_store %arg4[%c0_8, %c0_9, %c0_10], %11 {strides = array<i32>} : memref<1x1x64xf32, #tpu.memory_space<vmem>>, vector<1x1x64xf32>,
    %12 = arith.mulf %3, %3 : vector<16x64xf32>
    %cst_11 = arith.constant dense<0.000000e+00> : vector<64xf32>
    %13 = vector.multi_reduction <add>, %12, %cst_11 [0] : vector<16x64xf32> to vector<64xf32>
    %14 = vector.shape_cast %13 : vector<64xf32> to vector<1x64xf32>
    %c0_12 = arith.constant 0 : index
    %c0_13 = arith.constant 0 : index
    %c0_14 = arith.constant 0 : index
    %15 = vector.load %arg5[%c0_12, %c0_13, %c0_14] : memref<1x1x64xf32, #tpu.memory_space<vmem>>, vector<1x1x64xf32>
    %16 = vector.shape_cast %15 : vector<1x1x64xf32> to vector<1x64xf32>
    %17 = vector.shape_cast %14 : vector<1x64xf32> to vector<1x1x64xf32>
    tpu.vector_store %arg5[%c0_12, %c0_13, %c0_14], %17 {strides = array<i32>} : memref<1x1x64xf32, #tpu.memory_space<vmem>>, vector<1x1x64xf32>,
    return
  }
  func.func @transform_0(%arg0: i32) -> (i32, i32, i32) {
    %c0_i32 = arith.constant 0 : i32
    %c0_i32_0 = arith.constant 0 : i32
    %c0_i32_1 = arith.constant 0 : i32
    return %arg0, %c0_i32, %c0_i32_0 : i32, i32, i32
  }
  func.func @transform_1(%arg0: i32) -> (i32, i32) {
    %c0_i32 = arith.constant 0 : i32
    %c0_i32_0 = arith.constant 0 : i32
    %c0_i32_1 = arith.constant 0 : i32
    return %c0_i32, %c0_i32_0 : i32, i32
  }
  func.func @transform_2(%arg0: i32) -> (i32, i32, i32) {
    %c0_i32 = arith.constant 0 : i32
    %c0_i32_0 = arith.constant 0 : i32
    %c0_i32_1 = arith.constant 0 : i32
    return %arg0, %c0_i32, %c0_i32_0 : i32, i32, i32
  }
  func.func @transform_3(%arg0: i32) -> (i32, i32, i32) {
    %c0_i32 = arith.constant 0 : i32
    %c0_i32_0 = arith.constant 0 : i32
    %c0_i32_1 = arith.constant 0 : i32
    return %arg0, %c0_i32, %c0_i32_0 : i32, i32, i32
  }
  func.func @transform_4(%arg0: i32) -> (i32, i32, i32) {
    %c0_i32 = arith.constant 0 : i32
    %c0_i32_0 = arith.constant 0 : i32
    %c0_i32_1 = arith.constant 0 : i32
    return %arg0, %c0_i32, %c0_i32_0 : i32, i32, i32
  }
}

module attributes {stable_mosaic.version = 11 : i64} {
  func.func @bn_relu_kernel(%arg0: i32, %arg1: memref<1x16x64xf32, #tpu.memory_space<vmem>>, %arg2: memref<1x64xf32, #tpu.memory_space<vmem>>, %arg3: memref<1x64xf32, #tpu.memory_space<vmem>>, %arg4: memref<1x16x64xf32, #tpu.memory_space<vmem>>) attributes {dimension_semantics = [#tpu.dimension_semantics<parallel>], iteration_bounds = array<i64: 2>, scalar_prefetch = 0 : i64, scratch_operands = 0 : i64, tpu.core_type = #tpu.core_type<tc>, window_params = [{transform_indices = @transform_0, window_bounds = array<i64: 1, 16, 64>}, {pipeline_mode = #tpu.pipeline_mode<synchronous>, transform_indices = @transform_1, window_bounds = array<i64: 1, 64>}, {pipeline_mode = #tpu.pipeline_mode<synchronous>, transform_indices = @transform_2, window_bounds = array<i64: 1, 64>}, {transform_indices = @transform_3, window_bounds = array<i64: 1, 16, 64>}]} {
    %c0 = arith.constant 0 : index
    %c0_0 = arith.constant 0 : index
    %c0_1 = arith.constant 0 : index
    %0 = vector.load %arg1[%c0, %c0_0, %c0_1] : memref<1x16x64xf32, #tpu.memory_space<vmem>>, vector<1x16x64xf32>
    %1 = vector.shape_cast %0 : vector<1x16x64xf32> to vector<16x64xf32>
    %c0_2 = arith.constant 0 : index
    %c0_3 = arith.constant 0 : index
    %2 = vector.load %arg2[%c0_2, %c0_3] : memref<1x64xf32, #tpu.memory_space<vmem>>, vector<1x64xf32>
    %3 = vector.broadcast %2 : vector<1x64xf32> to vector<16x64xf32>
    %4 = arith.mulf %1, %3 : vector<16x64xf32>
    %c0_4 = arith.constant 0 : index
    %c0_5 = arith.constant 0 : index
    %5 = vector.load %arg3[%c0_4, %c0_5] : memref<1x64xf32, #tpu.memory_space<vmem>>, vector<1x64xf32>
    %6 = vector.broadcast %5 : vector<1x64xf32> to vector<16x64xf32>
    %7 = arith.addf %4, %6 : vector<16x64xf32>
    %cst = arith.constant 0.000000e+00 : f32
    %8 = vector.broadcast %cst : f32 to vector<16x64xf32>
    %9 = arith.maximumf %7, %8 : vector<16x64xf32>
    %c0_6 = arith.constant 0 : index
    %c0_7 = arith.constant 0 : index
    %c0_8 = arith.constant 0 : index
    %10 = vector.load %arg4[%c0_6, %c0_7, %c0_8] : memref<1x16x64xf32, #tpu.memory_space<vmem>>, vector<1x16x64xf32>
    %11 = vector.shape_cast %10 : vector<1x16x64xf32> to vector<16x64xf32>
    %12 = vector.shape_cast %9 : vector<16x64xf32> to vector<1x16x64xf32>
    tpu.vector_store %arg4[%c0_6, %c0_7, %c0_8], %12 {strides = array<i32>} : memref<1x16x64xf32, #tpu.memory_space<vmem>>, vector<1x16x64xf32>,
    return
  }
  func.func @transform_0(%arg0: i32) -> (i32, i32, i32) {
    %c0_i32 = arith.constant 0 : i32
    %c0_i32_0 = arith.constant 0 : i32
    %c0_i32_1 = arith.constant 0 : i32
    return %arg0, %c0_i32, %c0_i32_0 : i32, i32, i32
  }
  func.func @transform_1(%arg0: i32) -> (i32, i32) {
    %c0_i32 = arith.constant 0 : i32
    %c0_i32_0 = arith.constant 0 : i32
    %c0_i32_1 = arith.constant 0 : i32
    return %c0_i32, %c0_i32_0 : i32, i32
  }
  func.func @transform_2(%arg0: i32) -> (i32, i32) {
    %c0_i32 = arith.constant 0 : i32
    %c0_i32_0 = arith.constant 0 : i32
    %c0_i32_1 = arith.constant 0 : i32
    return %c0_i32, %c0_i32_0 : i32, i32
  }
  func.func @transform_3(%arg0: i32) -> (i32, i32, i32) {
    %c0_i32 = arith.constant 0 : i32
    %c0_i32_0 = arith.constant 0 : i32
    %c0_i32_1 = arith.constant 0 : i32
    return %arg0, %c0_i32, %c0_i32_0 : i32, i32, i32
  }
}

module attributes {stable_mosaic.version = 11 : i64} {
  func.func @bn_relu_kernel(%arg0: i32, %arg1: memref<1x4x64xf32, #tpu.memory_space<vmem>>, %arg2: memref<1x64xf32, #tpu.memory_space<vmem>>, %arg3: memref<1x64xf32, #tpu.memory_space<vmem>>, %arg4: memref<1x4x64xf32, #tpu.memory_space<vmem>>) attributes {dimension_semantics = [#tpu.dimension_semantics<parallel>], iteration_bounds = array<i64: 2>, scalar_prefetch = 0 : i64, scratch_operands = 0 : i64, tpu.core_type = #tpu.core_type<tc>, window_params = [{transform_indices = @transform_0, window_bounds = array<i64: 1, 4, 64>}, {pipeline_mode = #tpu.pipeline_mode<synchronous>, transform_indices = @transform_1, window_bounds = array<i64: 1, 64>}, {pipeline_mode = #tpu.pipeline_mode<synchronous>, transform_indices = @transform_2, window_bounds = array<i64: 1, 64>}, {transform_indices = @transform_3, window_bounds = array<i64: 1, 4, 64>}]} {
    %c0 = arith.constant 0 : index
    %c0_0 = arith.constant 0 : index
    %c0_1 = arith.constant 0 : index
    %0 = vector.load %arg1[%c0, %c0_0, %c0_1] : memref<1x4x64xf32, #tpu.memory_space<vmem>>, vector<1x4x64xf32>
    %1 = vector.shape_cast %0 : vector<1x4x64xf32> to vector<4x64xf32>
    %c0_2 = arith.constant 0 : index
    %c0_3 = arith.constant 0 : index
    %2 = vector.load %arg2[%c0_2, %c0_3] : memref<1x64xf32, #tpu.memory_space<vmem>>, vector<1x64xf32>
    %3 = vector.broadcast %2 : vector<1x64xf32> to vector<4x64xf32>
    %4 = arith.mulf %1, %3 : vector<4x64xf32>
    %c0_4 = arith.constant 0 : index
    %c0_5 = arith.constant 0 : index
    %5 = vector.load %arg3[%c0_4, %c0_5] : memref<1x64xf32, #tpu.memory_space<vmem>>, vector<1x64xf32>
    %6 = vector.broadcast %5 : vector<1x64xf32> to vector<4x64xf32>
    %7 = arith.addf %4, %6 : vector<4x64xf32>
    %cst = arith.constant 0.000000e+00 : f32
    %8 = vector.broadcast %cst : f32 to vector<4x64xf32>
    %9 = arith.maximumf %7, %8 : vector<4x64xf32>
    %c0_6 = arith.constant 0 : index
    %c0_7 = arith.constant 0 : index
    %c0_8 = arith.constant 0 : index
    %10 = vector.load %arg4[%c0_6, %c0_7, %c0_8] : memref<1x4x64xf32, #tpu.memory_space<vmem>>, vector<1x4x64xf32>
    %11 = vector.shape_cast %10 : vector<1x4x64xf32> to vector<4x64xf32>
    %12 = vector.shape_cast %9 : vector<4x64xf32> to vector<1x4x64xf32>
    tpu.vector_store %arg4[%c0_6, %c0_7, %c0_8], %12 {strides = array<i32>} : memref<1x4x64xf32, #tpu.memory_space<vmem>>, vector<1x4x64xf32>,
    return
  }
  func.func @transform_0(%arg0: i32) -> (i32, i32, i32) {
    %c0_i32 = arith.constant 0 : i32
    %c0_i32_0 = arith.constant 0 : i32
    %c0_i32_1 = arith.constant 0 : i32
    return %arg0, %c0_i32, %c0_i32_0 : i32, i32, i32
  }
  func.func @transform_1(%arg0: i32) -> (i32, i32) {
    %c0_i32 = arith.constant 0 : i32
    %c0_i32_0 = arith.constant 0 : i32
    %c0_i32_1 = arith.constant 0 : i32
    return %c0_i32, %c0_i32_0 : i32, i32
  }
  func.func @transform_2(%arg0: i32) -> (i32, i32) {
    %c0_i32 = arith.constant 0 : i32
    %c0_i32_0 = arith.constant 0 : i32
    %c0_i32_1 = arith.constant 0 : i32
    return %c0_i32, %c0_i32_0 : i32, i32
  }
  func.func @transform_3(%arg0: i32) -> (i32, i32, i32) {
    %c0_i32 = arith.constant 0 : i32
    %c0_i32_0 = arith.constant 0 : i32
    %c0_i32_1 = arith.constant 0 : i32
    return %arg0, %c0_i32, %c0_i32_0 : i32, i32, i32
  }
}

module attributes {stable_mosaic.version = 11 : i64} {
  func.func @conv_stats_kernel(%arg0: i32, %arg1: memref<1x4x576xbf16, #tpu.memory_space<vmem>>, %arg2: memref<576x64xbf16, #tpu.memory_space<vmem>>, %arg3: memref<1x4x64xf32, #tpu.memory_space<vmem>>, %arg4: memref<1x1x64xf32, #tpu.memory_space<vmem>>, %arg5: memref<1x1x64xf32, #tpu.memory_space<vmem>>) attributes {dimension_semantics = [#tpu.dimension_semantics<parallel>], iteration_bounds = array<i64: 2>, scalar_prefetch = 0 : i64, scratch_operands = 0 : i64, tpu.core_type = #tpu.core_type<tc>, window_params = [{transform_indices = @transform_0, window_bounds = array<i64: 1, 4, 576>}, {pipeline_mode = #tpu.pipeline_mode<synchronous>, transform_indices = @transform_1, window_bounds = array<i64: 576, 64>}, {transform_indices = @transform_2, window_bounds = array<i64: 1, 4, 64>}, {transform_indices = @transform_3, window_bounds = array<i64: 1, 1, 64>}, {transform_indices = @transform_4, window_bounds = array<i64: 1, 1, 64>}]} {
    %c0 = arith.constant 0 : index
    %c0_0 = arith.constant 0 : index
    %c0_1 = arith.constant 0 : index
    %0 = vector.load %arg1[%c0, %c0_0, %c0_1] : memref<1x4x576xbf16, #tpu.memory_space<vmem>>, vector<1x4x576xbf16>
    %1 = vector.shape_cast %0 : vector<1x4x576xbf16> to vector<4x576xbf16>
    %c0_2 = arith.constant 0 : index
    %c0_3 = arith.constant 0 : index
    %2 = vector.load %arg2[%c0_2, %c0_3] : memref<576x64xbf16, #tpu.memory_space<vmem>>, vector<576x64xbf16>
    %cst = arith.constant dense<0.000000e+00> : vector<4x64xf32>
    %3 = tpu.matmul %1, %2, %cst {dimension_numbers = #tpu.dot_dimension_numbers<[1], [0], [0], [1], [0, 0, 1, 1], [], []>} : vector<4x576xbf16>, vector<576x64xbf16>, vector<4x64xf32> -> vector<4x64xf32>
    %c0_4 = arith.constant 0 : index
    %c0_5 = arith.constant 0 : index
    %c0_6 = arith.constant 0 : index
    %4 = vector.load %arg3[%c0_4, %c0_5, %c0_6] : memref<1x4x64xf32, #tpu.memory_space<vmem>>, vector<1x4x64xf32>
    %5 = vector.shape_cast %4 : vector<1x4x64xf32> to vector<4x64xf32>
    %6 = vector.shape_cast %3 : vector<4x64xf32> to vector<1x4x64xf32>
    tpu.vector_store %arg3[%c0_4, %c0_5, %c0_6], %6 {strides = array<i32>} : memref<1x4x64xf32, #tpu.memory_space<vmem>>, vector<1x4x64xf32>,
    %cst_7 = arith.constant dense<0.000000e+00> : vector<64xf32>
    %7 = vector.multi_reduction <add>, %3, %cst_7 [0] : vector<4x64xf32> to vector<64xf32>
    %8 = vector.shape_cast %7 : vector<64xf32> to vector<1x64xf32>
    %c0_8 = arith.constant 0 : index
    %c0_9 = arith.constant 0 : index
    %c0_10 = arith.constant 0 : index
    %9 = vector.load %arg4[%c0_8, %c0_9, %c0_10] : memref<1x1x64xf32, #tpu.memory_space<vmem>>, vector<1x1x64xf32>
    %10 = vector.shape_cast %9 : vector<1x1x64xf32> to vector<1x64xf32>
    %11 = vector.shape_cast %8 : vector<1x64xf32> to vector<1x1x64xf32>
    tpu.vector_store %arg4[%c0_8, %c0_9, %c0_10], %11 {strides = array<i32>} : memref<1x1x64xf32, #tpu.memory_space<vmem>>, vector<1x1x64xf32>,
    %12 = arith.mulf %3, %3 : vector<4x64xf32>
    %cst_11 = arith.constant dense<0.000000e+00> : vector<64xf32>
    %13 = vector.multi_reduction <add>, %12, %cst_11 [0] : vector<4x64xf32> to vector<64xf32>
    %14 = vector.shape_cast %13 : vector<64xf32> to vector<1x64xf32>
    %c0_12 = arith.constant 0 : index
    %c0_13 = arith.constant 0 : index
    %c0_14 = arith.constant 0 : index
    %15 = vector.load %arg5[%c0_12, %c0_13, %c0_14] : memref<1x1x64xf32, #tpu.memory_space<vmem>>, vector<1x1x64xf32>
    %16 = vector.shape_cast %15 : vector<1x1x64xf32> to vector<1x64xf32>
    %17 = vector.shape_cast %14 : vector<1x64xf32> to vector<1x1x64xf32>
    tpu.vector_store %arg5[%c0_12, %c0_13, %c0_14], %17 {strides = array<i32>} : memref<1x1x64xf32, #tpu.memory_space<vmem>>, vector<1x1x64xf32>,
    return
  }
  func.func @transform_0(%arg0: i32) -> (i32, i32, i32) {
    %c0_i32 = arith.constant 0 : i32
    %c0_i32_0 = arith.constant 0 : i32
    %c0_i32_1 = arith.constant 0 : i32
    return %arg0, %c0_i32, %c0_i32_0 : i32, i32, i32
  }
  func.func @transform_1(%arg0: i32) -> (i32, i32) {
    %c0_i32 = arith.constant 0 : i32
    %c0_i32_0 = arith.constant 0 : i32
    %c0_i32_1 = arith.constant 0 : i32
    return %c0_i32, %c0_i32_0 : i32, i32
  }
  func.func @transform_2(%arg0: i32) -> (i32, i32, i32) {
    %c0_i32 = arith.constant 0 : i32
    %c0_i32_0 = arith.constant 0 : i32
    %c0_i32_1 = arith.constant 0 : i32
    return %arg0, %c0_i32, %c0_i32_0 : i32, i32, i32
  }
  func.func @transform_3(%arg0: i32) -> (i32, i32, i32) {
    %c0_i32 = arith.constant 0 : i32
    %c0_i32_0 = arith.constant 0 : i32
    %c0_i32_1 = arith.constant 0 : i32
    return %arg0, %c0_i32, %c0_i32_0 : i32, i32, i32
  }
  func.func @transform_4(%arg0: i32) -> (i32, i32, i32) {
    %c0_i32 = arith.constant 0 : i32
    %c0_i32_0 = arith.constant 0 : i32
    %c0_i32_1 = arith.constant 0 : i32
    return %arg0, %c0_i32, %c0_i32_0 : i32, i32, i32
  }
}

module attributes {stable_mosaic.version = 11 : i64} {
  func.func @bn_relu_kernel(%arg0: i32, %arg1: memref<1x16x32xf32, #tpu.memory_space<vmem>>, %arg2: memref<1x32xf32, #tpu.memory_space<vmem>>, %arg3: memref<1x32xf32, #tpu.memory_space<vmem>>, %arg4: memref<1x16x32xf32, #tpu.memory_space<vmem>>) attributes {dimension_semantics = [#tpu.dimension_semantics<parallel>], iteration_bounds = array<i64: 2>, scalar_prefetch = 0 : i64, scratch_operands = 0 : i64, tpu.core_type = #tpu.core_type<tc>, window_params = [{transform_indices = @transform_0, window_bounds = array<i64: 1, 16, 32>}, {pipeline_mode = #tpu.pipeline_mode<synchronous>, transform_indices = @transform_1, window_bounds = array<i64: 1, 32>}, {pipeline_mode = #tpu.pipeline_mode<synchronous>, transform_indices = @transform_2, window_bounds = array<i64: 1, 32>}, {transform_indices = @transform_3, window_bounds = array<i64: 1, 16, 32>}]} {
    %c0 = arith.constant 0 : index
    %c0_0 = arith.constant 0 : index
    %c0_1 = arith.constant 0 : index
    %0 = vector.load %arg1[%c0, %c0_0, %c0_1] : memref<1x16x32xf32, #tpu.memory_space<vmem>>, vector<1x16x32xf32>
    %1 = vector.shape_cast %0 : vector<1x16x32xf32> to vector<16x32xf32>
    %c0_2 = arith.constant 0 : index
    %c0_3 = arith.constant 0 : index
    %2 = vector.load %arg2[%c0_2, %c0_3] : memref<1x32xf32, #tpu.memory_space<vmem>>, vector<1x32xf32>
    %3 = vector.broadcast %2 : vector<1x32xf32> to vector<16x32xf32>
    %4 = arith.mulf %1, %3 : vector<16x32xf32>
    %c0_4 = arith.constant 0 : index
    %c0_5 = arith.constant 0 : index
    %5 = vector.load %arg3[%c0_4, %c0_5] : memref<1x32xf32, #tpu.memory_space<vmem>>, vector<1x32xf32>
    %6 = vector.broadcast %5 : vector<1x32xf32> to vector<16x32xf32>
    %7 = arith.addf %4, %6 : vector<16x32xf32>
    %cst = arith.constant 0.000000e+00 : f32
    %8 = vector.broadcast %cst : f32 to vector<16x32xf32>
    %9 = arith.maximumf %7, %8 : vector<16x32xf32>
    %c0_6 = arith.constant 0 : index
    %c0_7 = arith.constant 0 : index
    %c0_8 = arith.constant 0 : index
    %10 = vector.load %arg4[%c0_6, %c0_7, %c0_8] : memref<1x16x32xf32, #tpu.memory_space<vmem>>, vector<1x16x32xf32>
    %11 = vector.shape_cast %10 : vector<1x16x32xf32> to vector<16x32xf32>
    %12 = vector.shape_cast %9 : vector<16x32xf32> to vector<1x16x32xf32>
    tpu.vector_store %arg4[%c0_6, %c0_7, %c0_8], %12 {strides = array<i32>} : memref<1x16x32xf32, #tpu.memory_space<vmem>>, vector<1x16x32xf32>,
    return
  }
  func.func @transform_0(%arg0: i32) -> (i32, i32, i32) {
    %c0_i32 = arith.constant 0 : i32
    %c0_i32_0 = arith.constant 0 : i32
    %c0_i32_1 = arith.constant 0 : i32
    return %arg0, %c0_i32, %c0_i32_0 : i32, i32, i32
  }
  func.func @transform_1(%arg0: i32) -> (i32, i32) {
    %c0_i32 = arith.constant 0 : i32
    %c0_i32_0 = arith.constant 0 : i32
    %c0_i32_1 = arith.constant 0 : i32
    return %c0_i32, %c0_i32_0 : i32, i32
  }
  func.func @transform_2(%arg0: i32) -> (i32, i32) {
    %c0_i32 = arith.constant 0 : i32
    %c0_i32_0 = arith.constant 0 : i32
    %c0_i32_1 = arith.constant 0 : i32
    return %c0_i32, %c0_i32_0 : i32, i32
  }
  func.func @transform_3(%arg0: i32) -> (i32, i32, i32) {
    %c0_i32 = arith.constant 0 : i32
    %c0_i32_0 = arith.constant 0 : i32
    %c0_i32_1 = arith.constant 0 : i32
    return %arg0, %c0_i32, %c0_i32_0 : i32, i32, i32
  }
}

module attributes {stable_mosaic.version = 11 : i64} {
  func.func @conv_stats_kernel(%arg0: i32, %arg1: memref<1x16x1152xbf16, #tpu.memory_space<vmem>>, %arg2: memref<1152x32xbf16, #tpu.memory_space<vmem>>, %arg3: memref<1x16x32xf32, #tpu.memory_space<vmem>>, %arg4: memref<1x1x32xf32, #tpu.memory_space<vmem>>, %arg5: memref<1x1x32xf32, #tpu.memory_space<vmem>>) attributes {dimension_semantics = [#tpu.dimension_semantics<parallel>], iteration_bounds = array<i64: 2>, scalar_prefetch = 0 : i64, scratch_operands = 0 : i64, tpu.core_type = #tpu.core_type<tc>, window_params = [{transform_indices = @transform_0, window_bounds = array<i64: 1, 16, 1152>}, {pipeline_mode = #tpu.pipeline_mode<synchronous>, transform_indices = @transform_1, window_bounds = array<i64: 1152, 32>}, {transform_indices = @transform_2, window_bounds = array<i64: 1, 16, 32>}, {transform_indices = @transform_3, window_bounds = array<i64: 1, 1, 32>}, {transform_indices = @transform_4, window_bounds = array<i64: 1, 1, 32>}]} {
    %c0 = arith.constant 0 : index
    %c0_0 = arith.constant 0 : index
    %c0_1 = arith.constant 0 : index
    %0 = vector.load %arg1[%c0, %c0_0, %c0_1] : memref<1x16x1152xbf16, #tpu.memory_space<vmem>>, vector<1x16x1152xbf16>
    %1 = vector.shape_cast %0 : vector<1x16x1152xbf16> to vector<16x1152xbf16>
    %c0_2 = arith.constant 0 : index
    %c0_3 = arith.constant 0 : index
    %2 = vector.load %arg2[%c0_2, %c0_3] : memref<1152x32xbf16, #tpu.memory_space<vmem>>, vector<1152x32xbf16>
    %cst = arith.constant dense<0.000000e+00> : vector<16x32xf32>
    %3 = tpu.matmul %1, %2, %cst {dimension_numbers = #tpu.dot_dimension_numbers<[1], [0], [0], [1], [0, 0, 1, 1], [], []>} : vector<16x1152xbf16>, vector<1152x32xbf16>, vector<16x32xf32> -> vector<16x32xf32>
    %c0_4 = arith.constant 0 : index
    %c0_5 = arith.constant 0 : index
    %c0_6 = arith.constant 0 : index
    %4 = vector.load %arg3[%c0_4, %c0_5, %c0_6] : memref<1x16x32xf32, #tpu.memory_space<vmem>>, vector<1x16x32xf32>
    %5 = vector.shape_cast %4 : vector<1x16x32xf32> to vector<16x32xf32>
    %6 = vector.shape_cast %3 : vector<16x32xf32> to vector<1x16x32xf32>
    tpu.vector_store %arg3[%c0_4, %c0_5, %c0_6], %6 {strides = array<i32>} : memref<1x16x32xf32, #tpu.memory_space<vmem>>, vector<1x16x32xf32>,
    %cst_7 = arith.constant dense<0.000000e+00> : vector<32xf32>
    %7 = vector.multi_reduction <add>, %3, %cst_7 [0] : vector<16x32xf32> to vector<32xf32>
    %8 = vector.shape_cast %7 : vector<32xf32> to vector<1x32xf32>
    %c0_8 = arith.constant 0 : index
    %c0_9 = arith.constant 0 : index
    %c0_10 = arith.constant 0 : index
    %9 = vector.load %arg4[%c0_8, %c0_9, %c0_10] : memref<1x1x32xf32, #tpu.memory_space<vmem>>, vector<1x1x32xf32>
    %10 = vector.shape_cast %9 : vector<1x1x32xf32> to vector<1x32xf32>
    %11 = vector.shape_cast %8 : vector<1x32xf32> to vector<1x1x32xf32>
    tpu.vector_store %arg4[%c0_8, %c0_9, %c0_10], %11 {strides = array<i32>} : memref<1x1x32xf32, #tpu.memory_space<vmem>>, vector<1x1x32xf32>,
    %12 = arith.mulf %3, %3 : vector<16x32xf32>
    %cst_11 = arith.constant dense<0.000000e+00> : vector<32xf32>
    %13 = vector.multi_reduction <add>, %12, %cst_11 [0] : vector<16x32xf32> to vector<32xf32>
    %14 = vector.shape_cast %13 : vector<32xf32> to vector<1x32xf32>
    %c0_12 = arith.constant 0 : index
    %c0_13 = arith.constant 0 : index
    %c0_14 = arith.constant 0 : index
    %15 = vector.load %arg5[%c0_12, %c0_13, %c0_14] : memref<1x1x32xf32, #tpu.memory_space<vmem>>, vector<1x1x32xf32>
    %16 = vector.shape_cast %15 : vector<1x1x32xf32> to vector<1x32xf32>
    %17 = vector.shape_cast %14 : vector<1x32xf32> to vector<1x1x32xf32>
    tpu.vector_store %arg5[%c0_12, %c0_13, %c0_14], %17 {strides = array<i32>} : memref<1x1x32xf32, #tpu.memory_space<vmem>>, vector<1x1x32xf32>,
    return
  }
  func.func @transform_0(%arg0: i32) -> (i32, i32, i32) {
    %c0_i32 = arith.constant 0 : i32
    %c0_i32_0 = arith.constant 0 : i32
    %c0_i32_1 = arith.constant 0 : i32
    return %arg0, %c0_i32, %c0_i32_0 : i32, i32, i32
  }
  func.func @transform_1(%arg0: i32) -> (i32, i32) {
    %c0_i32 = arith.constant 0 : i32
    %c0_i32_0 = arith.constant 0 : i32
    %c0_i32_1 = arith.constant 0 : i32
    return %c0_i32, %c0_i32_0 : i32, i32
  }
  func.func @transform_2(%arg0: i32) -> (i32, i32, i32) {
    %c0_i32 = arith.constant 0 : i32
    %c0_i32_0 = arith.constant 0 : i32
    %c0_i32_1 = arith.constant 0 : i32
    return %arg0, %c0_i32, %c0_i32_0 : i32, i32, i32
  }
  func.func @transform_3(%arg0: i32) -> (i32, i32, i32) {
    %c0_i32 = arith.constant 0 : i32
    %c0_i32_0 = arith.constant 0 : i32
    %c0_i32_1 = arith.constant 0 : i32
    return %arg0, %c0_i32, %c0_i32_0 : i32, i32, i32
  }
  func.func @transform_4(%arg0: i32) -> (i32, i32, i32) {
    %c0_i32 = arith.constant 0 : i32
    %c0_i32_0 = arith.constant 0 : i32
    %c0_i32_1 = arith.constant 0 : i32
    return %arg0, %c0_i32, %c0_i32_0 : i32, i32, i32
  }
}

module attributes {stable_mosaic.version = 11 : i64} {
  func.func @conv_stats_kernel(%arg0: i32, %arg1: memref<1x64x576xbf16, #tpu.memory_space<vmem>>, %arg2: memref<576x16xbf16, #tpu.memory_space<vmem>>, %arg3: memref<1x64x16xf32, #tpu.memory_space<vmem>>, %arg4: memref<1x1x16xf32, #tpu.memory_space<vmem>>, %arg5: memref<1x1x16xf32, #tpu.memory_space<vmem>>) attributes {dimension_semantics = [#tpu.dimension_semantics<parallel>], iteration_bounds = array<i64: 2>, scalar_prefetch = 0 : i64, scratch_operands = 0 : i64, tpu.core_type = #tpu.core_type<tc>, window_params = [{transform_indices = @transform_0, window_bounds = array<i64: 1, 64, 576>}, {pipeline_mode = #tpu.pipeline_mode<synchronous>, transform_indices = @transform_1, window_bounds = array<i64: 576, 16>}, {transform_indices = @transform_2, window_bounds = array<i64: 1, 64, 16>}, {transform_indices = @transform_3, window_bounds = array<i64: 1, 1, 16>}, {transform_indices = @transform_4, window_bounds = array<i64: 1, 1, 16>}]} {
    %c0 = arith.constant 0 : index
    %c0_0 = arith.constant 0 : index
    %c0_1 = arith.constant 0 : index
    %0 = vector.load %arg1[%c0, %c0_0, %c0_1] : memref<1x64x576xbf16, #tpu.memory_space<vmem>>, vector<1x64x576xbf16>
    %1 = vector.shape_cast %0 : vector<1x64x576xbf16> to vector<64x576xbf16>
    %c0_2 = arith.constant 0 : index
    %c0_3 = arith.constant 0 : index
    %2 = vector.load %arg2[%c0_2, %c0_3] : memref<576x16xbf16, #tpu.memory_space<vmem>>, vector<576x16xbf16>
    %cst = arith.constant dense<0.000000e+00> : vector<64x16xf32>
    %3 = tpu.matmul %1, %2, %cst {dimension_numbers = #tpu.dot_dimension_numbers<[1], [0], [0], [1], [0, 0, 1, 1], [], []>} : vector<64x576xbf16>, vector<576x16xbf16>, vector<64x16xf32> -> vector<64x16xf32>
    %c0_4 = arith.constant 0 : index
    %c0_5 = arith.constant 0 : index
    %c0_6 = arith.constant 0 : index
    %4 = vector.load %arg3[%c0_4, %c0_5, %c0_6] : memref<1x64x16xf32, #tpu.memory_space<vmem>>, vector<1x64x16xf32>
    %5 = vector.shape_cast %4 : vector<1x64x16xf32> to vector<64x16xf32>
    %6 = vector.shape_cast %3 : vector<64x16xf32> to vector<1x64x16xf32>
    tpu.vector_store %arg3[%c0_4, %c0_5, %c0_6], %6 {strides = array<i32>} : memref<1x64x16xf32, #tpu.memory_space<vmem>>, vector<1x64x16xf32>,
    %cst_7 = arith.constant dense<0.000000e+00> : vector<16xf32>
    %7 = vector.multi_reduction <add>, %3, %cst_7 [0] : vector<64x16xf32> to vector<16xf32>
    %8 = vector.shape_cast %7 : vector<16xf32> to vector<1x16xf32>
    %c0_8 = arith.constant 0 : index
    %c0_9 = arith.constant 0 : index
    %c0_10 = arith.constant 0 : index
    %9 = vector.load %arg4[%c0_8, %c0_9, %c0_10] : memref<1x1x16xf32, #tpu.memory_space<vmem>>, vector<1x1x16xf32>
    %10 = vector.shape_cast %9 : vector<1x1x16xf32> to vector<1x16xf32>
    %11 = vector.shape_cast %8 : vector<1x16xf32> to vector<1x1x16xf32>
    tpu.vector_store %arg4[%c0_8, %c0_9, %c0_10], %11 {strides = array<i32>} : memref<1x1x16xf32, #tpu.memory_space<vmem>>, vector<1x1x16xf32>,
    %12 = arith.mulf %3, %3 : vector<64x16xf32>
    %cst_11 = arith.constant dense<0.000000e+00> : vector<16xf32>
    %13 = vector.multi_reduction <add>, %12, %cst_11 [0] : vector<64x16xf32> to vector<16xf32>
    %14 = vector.shape_cast %13 : vector<16xf32> to vector<1x16xf32>
    %c0_12 = arith.constant 0 : index
    %c0_13 = arith.constant 0 : index
    %c0_14 = arith.constant 0 : index
    %15 = vector.load %arg5[%c0_12, %c0_13, %c0_14] : memref<1x1x16xf32, #tpu.memory_space<vmem>>, vector<1x1x16xf32>
    %16 = vector.shape_cast %15 : vector<1x1x16xf32> to vector<1x16xf32>
    %17 = vector.shape_cast %14 : vector<1x16xf32> to vector<1x1x16xf32>
    tpu.vector_store %arg5[%c0_12, %c0_13, %c0_14], %17 {strides = array<i32>} : memref<1x1x16xf32, #tpu.memory_space<vmem>>, vector<1x1x16xf32>,
    return
  }
  func.func @transform_0(%arg0: i32) -> (i32, i32, i32) {
    %c0_i32 = arith.constant 0 : i32
    %c0_i32_0 = arith.constant 0 : i32
    %c0_i32_1 = arith.constant 0 : i32
    return %arg0, %c0_i32, %c0_i32_0 : i32, i32, i32
  }
  func.func @transform_1(%arg0: i32) -> (i32, i32) {
    %c0_i32 = arith.constant 0 : i32
    %c0_i32_0 = arith.constant 0 : i32
    %c0_i32_1 = arith.constant 0 : i32
    return %c0_i32, %c0_i32_0 : i32, i32
  }
  func.func @transform_2(%arg0: i32) -> (i32, i32, i32) {
    %c0_i32 = arith.constant 0 : i32
    %c0_i32_0 = arith.constant 0 : i32
    %c0_i32_1 = arith.constant 0 : i32
    return %arg0, %c0_i32, %c0_i32_0 : i32, i32, i32
  }
  func.func @transform_3(%arg0: i32) -> (i32, i32, i32) {
    %c0_i32 = arith.constant 0 : i32
    %c0_i32_0 = arith.constant 0 : i32
    %c0_i32_1 = arith.constant 0 : i32
    return %arg0, %c0_i32, %c0_i32_0 : i32, i32, i32
  }
  func.func @transform_4(%arg0: i32) -> (i32, i32, i32) {
    %c0_i32 = arith.constant 0 : i32
    %c0_i32_0 = arith.constant 0 : i32
    %c0_i32_1 = arith.constant 0 : i32
    return %arg0, %c0_i32, %c0_i32_0 : i32, i32, i32
  }
}

module attributes {stable_mosaic.version = 11 : i64} {
  func.func @bn_relu_kernel(%arg0: i32, %arg1: memref<1x64x16xf32, #tpu.memory_space<vmem>>, %arg2: memref<1x16xf32, #tpu.memory_space<vmem>>, %arg3: memref<1x16xf32, #tpu.memory_space<vmem>>, %arg4: memref<1x64x16xf32, #tpu.memory_space<vmem>>) attributes {dimension_semantics = [#tpu.dimension_semantics<parallel>], iteration_bounds = array<i64: 2>, scalar_prefetch = 0 : i64, scratch_operands = 0 : i64, tpu.core_type = #tpu.core_type<tc>, window_params = [{transform_indices = @transform_0, window_bounds = array<i64: 1, 64, 16>}, {pipeline_mode = #tpu.pipeline_mode<synchronous>, transform_indices = @transform_1, window_bounds = array<i64: 1, 16>}, {pipeline_mode = #tpu.pipeline_mode<synchronous>, transform_indices = @transform_2, window_bounds = array<i64: 1, 16>}, {transform_indices = @transform_3, window_bounds = array<i64: 1, 64, 16>}]} {
    %c0 = arith.constant 0 : index
    %c0_0 = arith.constant 0 : index
    %c0_1 = arith.constant 0 : index
    %0 = vector.load %arg1[%c0, %c0_0, %c0_1] : memref<1x64x16xf32, #tpu.memory_space<vmem>>, vector<1x64x16xf32>
    %1 = vector.shape_cast %0 : vector<1x64x16xf32> to vector<64x16xf32>
    %c0_2 = arith.constant 0 : index
    %c0_3 = arith.constant 0 : index
    %2 = vector.load %arg2[%c0_2, %c0_3] : memref<1x16xf32, #tpu.memory_space<vmem>>, vector<1x16xf32>
    %3 = vector.broadcast %2 : vector<1x16xf32> to vector<64x16xf32>
    %4 = arith.mulf %1, %3 : vector<64x16xf32>
    %c0_4 = arith.constant 0 : index
    %c0_5 = arith.constant 0 : index
    %5 = vector.load %arg3[%c0_4, %c0_5] : memref<1x16xf32, #tpu.memory_space<vmem>>, vector<1x16xf32>
    %6 = vector.broadcast %5 : vector<1x16xf32> to vector<64x16xf32>
    %7 = arith.addf %4, %6 : vector<64x16xf32>
    %cst = arith.constant 0.000000e+00 : f32
    %8 = vector.broadcast %cst : f32 to vector<64x16xf32>
    %9 = arith.maximumf %7, %8 : vector<64x16xf32>
    %c0_6 = arith.constant 0 : index
    %c0_7 = arith.constant 0 : index
    %c0_8 = arith.constant 0 : index
    %10 = vector.load %arg4[%c0_6, %c0_7, %c0_8] : memref<1x64x16xf32, #tpu.memory_space<vmem>>, vector<1x64x16xf32>
    %11 = vector.shape_cast %10 : vector<1x64x16xf32> to vector<64x16xf32>
    %12 = vector.shape_cast %9 : vector<64x16xf32> to vector<1x64x16xf32>
    tpu.vector_store %arg4[%c0_6, %c0_7, %c0_8], %12 {strides = array<i32>} : memref<1x64x16xf32, #tpu.memory_space<vmem>>, vector<1x64x16xf32>,
    return
  }
  func.func @transform_0(%arg0: i32) -> (i32, i32, i32) {
    %c0_i32 = arith.constant 0 : i32
    %c0_i32_0 = arith.constant 0 : i32
    %c0_i32_1 = arith.constant 0 : i32
    return %arg0, %c0_i32, %c0_i32_0 : i32, i32, i32
  }
  func.func @transform_1(%arg0: i32) -> (i32, i32) {
    %c0_i32 = arith.constant 0 : i32
    %c0_i32_0 = arith.constant 0 : i32
    %c0_i32_1 = arith.constant 0 : i32
    return %c0_i32, %c0_i32_0 : i32, i32
  }
  func.func @transform_2(%arg0: i32) -> (i32, i32) {
    %c0_i32 = arith.constant 0 : i32
    %c0_i32_0 = arith.constant 0 : i32
    %c0_i32_1 = arith.constant 0 : i32
    return %c0_i32, %c0_i32_0 : i32, i32
  }
  func.func @transform_3(%arg0: i32) -> (i32, i32, i32) {
    %c0_i32 = arith.constant 0 : i32
    %c0_i32_0 = arith.constant 0 : i32
    %c0_i32_1 = arith.constant 0 : i32
    return %arg0, %c0_i32, %c0_i32_0 : i32, i32, i32
  }
}

module attributes {stable_mosaic.version = 11 : i64} {
  func.func @conv_stats_kernel(%arg0: i32, %arg1: memref<1x256x288xbf16, #tpu.memory_space<vmem>>, %arg2: memref<288x1xbf16, #tpu.memory_space<vmem>>, %arg3: memref<1x256x1xf32, #tpu.memory_space<vmem>>, %arg4: memref<1x1x1xf32, #tpu.memory_space<vmem>>, %arg5: memref<1x1x1xf32, #tpu.memory_space<vmem>>) attributes {dimension_semantics = [#tpu.dimension_semantics<parallel>], iteration_bounds = array<i64: 2>, scalar_prefetch = 0 : i64, scratch_operands = 0 : i64, tpu.core_type = #tpu.core_type<tc>, window_params = [{transform_indices = @transform_0, window_bounds = array<i64: 1, 256, 288>}, {pipeline_mode = #tpu.pipeline_mode<synchronous>, transform_indices = @transform_1, window_bounds = array<i64: 288, 1>}, {transform_indices = @transform_2, window_bounds = array<i64: 1, 256, 1>}, {transform_indices = @transform_3, window_bounds = array<i64: 1, 1, 1>}, {transform_indices = @transform_4, window_bounds = array<i64: 1, 1, 1>}]} {
    %c0 = arith.constant 0 : index
    %c0_0 = arith.constant 0 : index
    %c0_1 = arith.constant 0 : index
    %0 = vector.load %arg1[%c0, %c0_0, %c0_1] : memref<1x256x288xbf16, #tpu.memory_space<vmem>>, vector<1x256x288xbf16>
    %1 = vector.shape_cast %0 : vector<1x256x288xbf16> to vector<256x288xbf16>
    %c0_2 = arith.constant 0 : index
    %c0_3 = arith.constant 0 : index
    %2 = vector.load %arg2[%c0_2, %c0_3] : memref<288x1xbf16, #tpu.memory_space<vmem>>, vector<288x1xbf16>
    %cst = arith.constant dense<0.000000e+00> : vector<256x1xf32>
    %3 = tpu.matmul %1, %2, %cst {dimension_numbers = #tpu.dot_dimension_numbers<[1], [0], [0], [1], [0, 0, 1, 1], [], []>} : vector<256x288xbf16>, vector<288x1xbf16>, vector<256x1xf32> -> vector<256x1xf32>
    %c0_4 = arith.constant 0 : index
    %c0_5 = arith.constant 0 : index
    %c0_6 = arith.constant 0 : index
    %4 = vector.load %arg3[%c0_4, %c0_5, %c0_6] : memref<1x256x1xf32, #tpu.memory_space<vmem>>, vector<1x256x1xf32>
    %5 = vector.shape_cast %4 : vector<1x256x1xf32> to vector<256x1xf32>
    %6 = vector.shape_cast %3 : vector<256x1xf32> to vector<1x256x1xf32>
    tpu.vector_store %arg3[%c0_4, %c0_5, %c0_6], %6 {strides = array<i32>} : memref<1x256x1xf32, #tpu.memory_space<vmem>>, vector<1x256x1xf32>,
    %cst_7 = arith.constant dense<0.000000e+00> : vector<1xf32>
    %7 = vector.multi_reduction <add>, %3, %cst_7 [0] : vector<256x1xf32> to vector<1xf32>
    %8 = vector.shape_cast %7 : vector<1xf32> to vector<1x1xf32>
    %c0_8 = arith.constant 0 : index
    %c0_9 = arith.constant 0 : index
    %c0_10 = arith.constant 0 : index
    %9 = vector.load %arg4[%c0_8, %c0_9, %c0_10] : memref<1x1x1xf32, #tpu.memory_space<vmem>>, vector<1x1x1xf32>
    %10 = vector.shape_cast %9 : vector<1x1x1xf32> to vector<1x1xf32>
    %11 = vector.shape_cast %8 : vector<1x1xf32> to vector<1x1x1xf32>
    tpu.vector_store %arg4[%c0_8, %c0_9, %c0_10], %11 {strides = array<i32>} : memref<1x1x1xf32, #tpu.memory_space<vmem>>, vector<1x1x1xf32>,
    %12 = arith.mulf %3, %3 : vector<256x1xf32>
    %cst_11 = arith.constant dense<0.000000e+00> : vector<1xf32>
    %13 = vector.multi_reduction <add>, %12, %cst_11 [0] : vector<256x1xf32> to vector<1xf32>
    %14 = vector.shape_cast %13 : vector<1xf32> to vector<1x1xf32>
    %c0_12 = arith.constant 0 : index
    %c0_13 = arith.constant 0 : index
    %c0_14 = arith.constant 0 : index
    %15 = vector.load %arg5[%c0_12, %c0_13, %c0_14] : memref<1x1x1xf32, #tpu.memory_space<vmem>>, vector<1x1x1xf32>
    %16 = vector.shape_cast %15 : vector<1x1x1xf32> to vector<1x1xf32>
    %17 = vector.shape_cast %14 : vector<1x1xf32> to vector<1x1x1xf32>
    tpu.vector_store %arg5[%c0_12, %c0_13, %c0_14], %17 {strides = array<i32>} : memref<1x1x1xf32, #tpu.memory_space<vmem>>, vector<1x1x1xf32>,
    return
  }
  func.func @transform_0(%arg0: i32) -> (i32, i32, i32) {
    %c0_i32 = arith.constant 0 : i32
    %c0_i32_0 = arith.constant 0 : i32
    %c0_i32_1 = arith.constant 0 : i32
    return %arg0, %c0_i32, %c0_i32_0 : i32, i32, i32
  }
  func.func @transform_1(%arg0: i32) -> (i32, i32) {
    %c0_i32 = arith.constant 0 : i32
    %c0_i32_0 = arith.constant 0 : i32
    %c0_i32_1 = arith.constant 0 : i32
    return %c0_i32, %c0_i32_0 : i32, i32
  }
  func.func @transform_2(%arg0: i32) -> (i32, i32, i32) {
    %c0_i32 = arith.constant 0 : i32
    %c0_i32_0 = arith.constant 0 : i32
    %c0_i32_1 = arith.constant 0 : i32
    return %arg0, %c0_i32, %c0_i32_0 : i32, i32, i32
  }
  func.func @transform_3(%arg0: i32) -> (i32, i32, i32) {
    %c0_i32 = arith.constant 0 : i32
    %c0_i32_0 = arith.constant 0 : i32
    %c0_i32_1 = arith.constant 0 : i32
    return %arg0, %c0_i32, %c0_i32_0 : i32, i32, i32
  }
  func.func @transform_4(%arg0: i32) -> (i32, i32, i32) {
    %c0_i32 = arith.constant 0 : i32
    %c0_i32_0 = arith.constant 0 : i32
    %c0_i32_1 = arith.constant 0 : i32
    return %arg0, %c0_i32, %c0_i32_0 : i32, i32, i32
  }
}

module attributes {stable_mosaic.version = 11 : i64} {
  func.func @bn_relu_kernel(%arg0: i32, %arg1: memref<1x256x1xf32, #tpu.memory_space<vmem>>, %arg2: memref<1x1xf32, #tpu.memory_space<vmem>>, %arg3: memref<1x1xf32, #tpu.memory_space<vmem>>, %arg4: memref<1x256x1xf32, #tpu.memory_space<vmem>>) attributes {dimension_semantics = [#tpu.dimension_semantics<parallel>], iteration_bounds = array<i64: 2>, scalar_prefetch = 0 : i64, scratch_operands = 0 : i64, tpu.core_type = #tpu.core_type<tc>, window_params = [{transform_indices = @transform_0, window_bounds = array<i64: 1, 256, 1>}, {pipeline_mode = #tpu.pipeline_mode<synchronous>, transform_indices = @transform_1, window_bounds = array<i64: 1, 1>}, {pipeline_mode = #tpu.pipeline_mode<synchronous>, transform_indices = @transform_2, window_bounds = array<i64: 1, 1>}, {transform_indices = @transform_3, window_bounds = array<i64: 1, 256, 1>}]} {
    %c0 = arith.constant 0 : index
    %c0_0 = arith.constant 0 : index
    %c0_1 = arith.constant 0 : index
    %0 = vector.load %arg1[%c0, %c0_0, %c0_1] : memref<1x256x1xf32, #tpu.memory_space<vmem>>, vector<1x256x1xf32>
    %1 = vector.shape_cast %0 : vector<1x256x1xf32> to vector<256x1xf32>
    %c0_2 = arith.constant 0 : index
    %c0_3 = arith.constant 0 : index
    %2 = vector.load %arg2[%c0_2, %c0_3] : memref<1x1xf32, #tpu.memory_space<vmem>>, vector<1x1xf32>
    %3 = vector.broadcast %2 : vector<1x1xf32> to vector<256x1xf32>
    %4 = arith.mulf %1, %3 : vector<256x1xf32>
    %c0_4 = arith.constant 0 : index
    %c0_5 = arith.constant 0 : index
    %5 = vector.load %arg3[%c0_4, %c0_5] : memref<1x1xf32, #tpu.memory_space<vmem>>, vector<1x1xf32>
    %6 = vector.broadcast %5 : vector<1x1xf32> to vector<256x1xf32>
    %7 = arith.addf %4, %6 : vector<256x1xf32>
    %cst = arith.constant 0.000000e+00 : f32
    %8 = vector.broadcast %cst : f32 to vector<256x1xf32>
    %9 = arith.maximumf %7, %8 : vector<256x1xf32>
    %c0_6 = arith.constant 0 : index
    %c0_7 = arith.constant 0 : index
    %c0_8 = arith.constant 0 : index
    %10 = vector.load %arg4[%c0_6, %c0_7, %c0_8] : memref<1x256x1xf32, #tpu.memory_space<vmem>>, vector<1x256x1xf32>
    %11 = vector.shape_cast %10 : vector<1x256x1xf32> to vector<256x1xf32>
    %12 = vector.shape_cast %9 : vector<256x1xf32> to vector<1x256x1xf32>
    tpu.vector_store %arg4[%c0_6, %c0_7, %c0_8], %12 {strides = array<i32>} : memref<1x256x1xf32, #tpu.memory_space<vmem>>, vector<1x256x1xf32>,
    return
  }
  func.func @transform_0(%arg0: i32) -> (i32, i32, i32) {
    %c0_i32 = arith.constant 0 : i32
    %c0_i32_0 = arith.constant 0 : i32
    %c0_i32_1 = arith.constant 0 : i32
    return %arg0, %c0_i32, %c0_i32_0 : i32, i32, i32
  }
  func.func @transform_1(%arg0: i32) -> (i32, i32) {
    %c0_i32 = arith.constant 0 : i32
    %c0_i32_0 = arith.constant 0 : i32
    %c0_i32_1 = arith.constant 0 : i32
    return %c0_i32, %c0_i32_0 : i32, i32
  }
  func.func @transform_2(%arg0: i32) -> (i32, i32) {
    %c0_i32 = arith.constant 0 : i32
    %c0_i32_0 = arith.constant 0 : i32
    %c0_i32_1 = arith.constant 0 : i32
    return %c0_i32, %c0_i32_0 : i32, i32
  }
  func.func @transform_3(%arg0: i32) -> (i32, i32, i32) {
    %c0_i32 = arith.constant 0 : i32
    %c0_i32_0 = arith.constant 0 : i32
    %c0_i32_1 = arith.constant 0 : i32
    return %arg0, %c0_i32, %c0_i32_0 : i32, i32, i32
  }
}

</mosaic_0001>

<llo_original>
// kernel: ddpm_forward.15
$region0: #{ddpm_forward.15}
  #allocation0 [shape = 'u32[]', space=smem, size = 0x4, offset = 0x4, fixed_abs, tag = 'smem constant byte address 0x4 - core index']
  #allocation1 [shape = 'u32[144,128]{1,0:T(1,128)}', space=vmem, size = 0x12000, scoped, tag = 'internal scratch']
  %s0 = inlined_call_operand.vmem [shape: f32[2,256,16], index: 0, kind: input, shape index: {}]
  %s1 = inlined_call_operand.vmem [shape: f32[1,16], index: 1, kind: input, shape index: {}]
  %s2 = inlined_call_operand.vmem [shape: f32[1,16], index: 2, kind: input, shape index: {}]
  %s3 = inlined_call_operand.vmem [shape: f32[2,256,16], index: 3, kind: output, shape index: {}]
  %s4 = sld [smem:[#allocation0]]
  $region45: #{ddpm_forward.15} parent=0
    _
  %s6 = ssub.s32 1, %s4
  %s7 = scalar_select 0, %s6, %s4
  loop: start=0, step=1, limit=4
  $region2: #{ddpm_forward.15} parent=0 // loop_pre_header
    _
  $region3: #{ddpm_forward.15} parent=0 // loop_header
    %s9 = sphi 0, %s13
    %p10 = scmp.ge.s32.totalorder %s9, 4
    %s19 = sphi 0, %s21
    %s22 = sphi 0, %s19
    %s23 = sphi 0, %s22
    %s39 = sphi 0, %s23
    %s43 = sphi 0, %s43
    %s45 = sphi 0, %s43
    %s46 = sphi 0, %s45
    %s60 = sphi 0, %s46
    %s64 = sphi 0, %s64
    %s66 = sphi 0, %s64
    %s67 = sphi 0, %s66
    %s81 = sphi 0, %s67
    %s87 = sphi 0, %s89
    %s90 = sphi 0, %s87
    %s91 = sphi 0, %s90
    %s107 = sphi 0, %s91
  $region4: #{ddpm_forward.15} parent=0 // loop_header_branch
    %12 = sbr.rel (%p10) target = $region8
  $region5: #{ddpm_forward.15} parent=0 // loop_body
    %s14 = ssub.s32 %s9, 1
    %s15 = ssub.s32 %s9, 2
    %s16 = sadd.s32 %s9, 1
    %s17 = ssub.s32 %s9, %s16
    %p18 = scmp.eq.s32.totalorder %s17, 0
    %s20 = sadd.s32 %s19, 1
    %s21 = scalar_select %p18, %s19, %s20
    %p24 = pneg %p18
    %p25 = scmp.eq.s32.totalorder %s9, 1
    %p26 = por %p24, %p25
    %p27 = scmp.ne.s32.totalorder %s19, %s22
    %p28 = scmp.eq.s32.totalorder %s9, 0
    %p29 = por %p27, %p28
    %p30 = scmp.ne.s32.totalorder %s19, %s22
    %p31 = scmp.eq.s32.totalorder %s14, 1
    %p32 = por %p30, %p31
    %p33 = scmp.ne.s32.totalorder %s22, %s23
    %p34 = scmp.eq.s32.totalorder %s14, 0
    %p35 = por %p33, %p34
    %p36 = scmp.ne.s32.totalorder %s22, %s23
    %p37 = scmp.eq.s32.totalorder %s15, 1
    %p38 = por %p36, %p37
    %p40 = scmp.ne.s32.totalorder %s23, %s39
    %p41 = scmp.eq.s32.totalorder %s15, 0
    %p42 = por %p40, %p41
    %s44 = sadd.s32 %s43, 1
    %p47 = scmp.eq.s32.totalorder %s9, 1
    %p48 = scmp.ne.s32.totalorder %s43, %s45
    %p49 = scmp.eq.s32.totalorder %s9, 0
    %p50 = por %p48, %p49
    %p51 = scmp.ne.s32.totalorder %s43, %s45
    %p52 = scmp.eq.s32.totalorder %s14, 1
    %p53 = por %p51, %p52
    %p54 = scmp.ne.s32.totalorder %s45, %s46
    %p55 = scmp.eq.s32.totalorder %s14, 0
    %p56 = por %p54, %p55
    %p57 = scmp.ne.s32.totalorder %s45, %s46
    %p58 = scmp.eq.s32.totalorder %s15, 1
    %p59 = por %p57, %p58
    %p61 = scmp.ne.s32.totalorder %s46, %s60
    %p62 = scmp.eq.s32.totalorder %s15, 0
    %p63 = por %p61, %p62
    %s65 = sadd.s32 %s64, 1
    %p68 = scmp.eq.s32.totalorder %s9, 1
    %p69 = scmp.ne.s32.totalorder %s64, %s66
    %p70 = scmp.eq.s32.totalorder %s9, 0
    %p71 = por %p69, %p70
    %p72 = scmp.ne.s32.totalorder %s64, %s66
    %p73 = scmp.eq.s32.totalorder %s14, 1
    %p74 = por %p72, %p73
    %p75 = scmp.ne.s32.totalorder %s66, %s67
    %p76 = scmp.eq.s32.totalorder %s14, 0
    %p77 = por %p75, %p76
    %p78 = scmp.ne.s32.totalorder %s66, %s67
    %p79 = scmp.eq.s32.totalorder %s15, 1
    %p80 = por %p78, %p79
    %p82 = scmp.ne.s32.totalorder %s67, %s81
    %p83 = scmp.eq.s32.totalorder %s15, 0
    %p84 = por %p82, %p83
    %s85 = ssub.s32 %s9, %s16
    %p86 = scmp.eq.s32.totalorder %s85, 0
    %s88 = sadd.s32 %s87, 1
    %s89 = scalar_select %p86, %s87, %s88
    %p92 = pneg %p86
    %p93 = scmp.eq.s32.totalorder %s9, 1
    %p94 = por %p92, %p93
    %p95 = scmp.ne.s32.totalorder %s87, %s90
    %p96 = scmp.eq.s32.totalorder %s9, 0
    %p97 = por %p95, %p96
    %p98 = scmp.ne.s32.totalorder %s87, %s90
    %p99 = scmp.eq.s32.totalorder %s14, 1
    %p100 = por %p98, %p99
    %p101 = scmp.ne.s32.totalorder %s90, %s91
    %p102 = scmp.eq.s32.totalorder %s14, 0
    %p103 = por %p101, %p102
    %p104 = scmp.ne.s32.totalorder %s90, %s91
    %p105 = scmp.eq.s32.totalorder %s15, 1
    %p106 = por %p104, %p105
    %p108 = scmp.ne.s32.totalorder %s91, %s107
    %p109 = scmp.eq.s32.totalorder %s15, 0
    %p110 = por %p108, %p109
    %p111 = scmp.le.s32.totalorder 1, %s9
    %p112 = scmp.lt.s32.totalorder %s9, 3
    %p113 = pnand %p111, %p112
    %p114 = pneg %p113
    // Predicated region
    $region9: #{ddpm_forward.15} parent=5 // pred_check
      _
    $region10: #{ddpm_forward.15} parent=5 // pred_check_branch
      %116 = sbr.rel (%p113) target = $region12
    $region11: #{ddpm_forward.15} parent=5 // pred_region
      %s117 = ssub.s32 %s9, 1
      // Predicated region
      $region13: #{ddpm_forward.15} parent=11 // pred_check
        %p118 = pneg %p56
      $region14: #{ddpm_forward.15} parent=11 // pred_check_branch
        %120 = sbr.rel (%p118) target = $region16
      $region15: #{ddpm_forward.15} parent=11 // pred_region
        _
      $region16: #{ddpm_forward.15} parent=11 // pred_fallthru
        _
      // Predicated region
      $region17: #{ddpm_forward.15} parent=11 // pred_check
        %p121 = pneg %p77
      $region18: #{ddpm_forward.15} parent=11 // pred_check_branch
        %123 = sbr.rel (%p121) target = $region20
      $region19: #{ddpm_forward.15} parent=11 // pred_region
        _
      $region20: #{ddpm_forward.15} parent=11 // pred_fallthru
        _
    $region12: #{ddpm_forward.15} parent=5 // pred_fallthru
      _
    %p124 = scmp.lt.s32.totalorder %s9, 2
    // Predicated region
    $region21: #{ddpm_forward.15} parent=5 // pred_check
      %p125 = pneg %p124
    $region22: #{ddpm_forward.15} parent=5 // pred_check_branch
      %127 = sbr.rel (%p125) target = $region24
    $region23: #{ddpm_forward.15} parent=5 // pred_region
      // Predicated region
      $region25: #{ddpm_forward.15} parent=23 // pred_check
        %p128 = pneg %p29
      $region26: #{ddpm_forward.15} parent=23 // pred_check_branch
        %130 = sbr.rel (%p128) target = $region28
      $region27: #{ddpm_forward.15} parent=23 // pred_region
        %p131 = scmp.lt.s32.totalorder %s9, 1
        %s132 = scalar_select %p131, %s9, 1
        %s133 = smul.addr %s132, 32
        %s134 = smul.addr %s133, 8
        %s135 = scalar_lea.vmem %s0, %s134
      $region28: #{ddpm_forward.15} parent=23 // pred_fallthru
        _
    $region24: #{ddpm_forward.15} parent=5 // pred_fallthru
      _
    %p136 = scmp.le.s32.totalorder 1, %s9
    %p137 = scmp.lt.s32.totalorder %s9, 3
    %p138 = pnand %p136, %p137
    %p139 = pneg %p138
    // Predicated region
    $region29: #{ddpm_forward.15} parent=5 // pred_check
      _
    $region30: #{ddpm_forward.15} parent=5 // pred_check_branch
      %141 = sbr.rel (%p138) target = $region32
    $region31: #{ddpm_forward.15} parent=5 // pred_region
      %s142 = ssub.s32 %s9, 1
      %p143 = scmp.lt.s32.totalorder %s14, 1
      %s144 = scalar_select %p143, %s14, 1
      %s145 = smul.addr %s144, 32
      %s146 = smul.addr %s145, 8
      %s147 = scalar_lea.vmem %s0, %s146
      %p148 = pneg %p35
      %p149 = pneg %p32
      %p150 = pneg %p56
      %p151 = pneg %p53
      %p152 = pneg %p77
      %p153 = pneg %p74
      %p154 = pneg %p103
      %p155 = pneg %p100
      %p156 = scmp.lt.s32.totalorder %s14, 1
      %s157 = scalar_select %p156, %s14, 1
      %s158 = smul.addr %s157, 32
      %s159 = smul.addr %s158, 8
      %s160 = scalar_lea.vmem %s3, %s159
      %p161 = scmp.lt.s32.totalorder %s14, 1
      %s162 = scalar_select %p161, %s14, 1
      %s163 = smul.addr %s162, 32
      %s164 = smul.addr %s163, 8
      %s165 = scalar_lea.vmem %s0, %s164
      %p166 = scmp.lt.s32.totalorder %s14, 1
      %s167 = scalar_select %p166, %s14, 1
      %s168 = smul.addr %s167, 32
      %s169 = smul.addr %s168, 8
      %s170 = scalar_lea.vmem %s3, %s169
      %v171 = vld [vmem:[%s165] sm:$0xff]
      %v172 = vld [vmem:[%s165 + $0x8] sm:$0xff]
      %v173 = vld [vmem:[%s165 + $0x10] sm:$0xff]
      %v174 = vld [vmem:[%s165 + $0x18] sm:$0xff]
      %v175 = vld [vmem:[%s165 + $0x20] sm:$0xff]
      %v176 = vld [vmem:[%s165 + $0x28] sm:$0xff]
      %v177 = vld [vmem:[%s165 + $0x30] sm:$0xff]
      %v178 = vld [vmem:[%s165 + $0x38] sm:$0xff]
      %v179 = vld [vmem:[%s165 + $0x40] sm:$0xff]
      %v180 = vld [vmem:[%s165 + $0x48] sm:$0xff]
      %v181 = vld [vmem:[%s165 + $0x50] sm:$0xff]
      %v182 = vld [vmem:[%s165 + $0x58] sm:$0xff]
      %v183 = vld [vmem:[%s165 + $0x60] sm:$0xff]
      %v184 = vld [vmem:[%s165 + $0x68] sm:$0xff]
      %v185 = vld [vmem:[%s165 + $0x70] sm:$0xff]
      %v186 = vld [vmem:[%s165 + $0x78] sm:$0xff]
      %v187 = vld [vmem:[%s165 + $0x80] sm:$0xff]
      %v188 = vld [vmem:[%s165 + $0x88] sm:$0xff]
      %v189 = vld [vmem:[%s165 + $0x90] sm:$0xff]
      %v190 = vld [vmem:[%s165 + $0x98] sm:$0xff]
      %v191 = vld [vmem:[%s165 + $0xa0] sm:$0xff]
      %v192 = vld [vmem:[%s165 + $0xa8] sm:$0xff]
      %v193 = vld [vmem:[%s165 + $0xb0] sm:$0xff]
      %v194 = vld [vmem:[%s165 + $0xb8] sm:$0xff]
      %v195 = vld [vmem:[%s165 + $0xc0] sm:$0xff]
      %v196 = vld [vmem:[%s165 + $0xc8] sm:$0xff]
      %v197 = vld [vmem:[%s165 + $0xd0] sm:$0xff]
      %v198 = vld [vmem:[%s165 + $0xd8] sm:$0xff]
      %v199 = vld [vmem:[%s165 + $0xe0] sm:$0xff]
      %v200 = vld [vmem:[%s165 + $0xe8] sm:$0xff]
      %v201 = vld [vmem:[%s165 + $0xf0] sm:$0xff]
      %v202 = vld [vmem:[%s165 + $0xf8] sm:$0xff]
      %v203 = vld [vmem:[%s1] sm:$0x1]
      %v205 = vlaneseq
      %v206 = vshrl.u32 %v205, 7
      %v207 = vsub.s32 0, %v206
      %v208 = vrot.slane %v203, %v207
      %v210 = vmul.f32 %v171, %v208
      %v211 = vmul.f32 %v172, %v208
      %v212 = vmul.f32 %v173, %v208
      %v213 = vmul.f32 %v174, %v208
      %v214 = vmul.f32 %v175, %v208
      %v215 = vmul.f32 %v176, %v208
      %v216 = vmul.f32 %v177, %v208
      %v217 = vmul.f32 %v178, %v208
      %v218 = vmul.f32 %v179, %v208
      %v219 = vmul.f32 %v180, %v208
      %v220 = vmul.f32 %v181, %v208
      %v221 = vmul.f32 %v182, %v208
      %v222 = vmul.f32 %v183, %v208
      %v223 = vmul.f32 %v184, %v208
      %v224 = vmul.f32 %v185, %v208
      %v225 = vmul.f32 %v186, %v208
      %v226 = vmul.f32 %v187, %v208
      %v227 = vmul.f32 %v188, %v208
      %v228 = vmul.f32 %v189, %v208
      %v229 = vmul.f32 %v190, %v208
      %v230 = vmul.f32 %v191, %v208
      %v231 = vmul.f32 %v192, %v208
      %v232 = vmul.f32 %v193, %v208
      %v233 = vmul.f32 %v194, %v208
      %v234 = vmul.f32 %v195, %v208
      %v235 = vmul.f32 %v196, %v208
      %v236 = vmul.f32 %v197, %v208
      %v237 = vmul.f32 %v198, %v208
      %v238 = vmul.f32 %v199, %v208
      %v239 = vmul.f32 %v200, %v208
      %v240 = vmul.f32 %v201, %v208
      %v241 = vmul.f32 %v202, %v208
      %v242 = vld [vmem:[%s2] sm:$0x1]
      %v244 = vlaneseq
      %v245 = vshrl.u32 %v244, 7
      %v246 = vsub.s32 0, %v245
      %v247 = vrot.slane %v242, %v246
      %v249 = vadd.f32 %v210, %v247
      %v250 = vadd.f32 %v211, %v247
      %v251 = vadd.f32 %v212, %v247
      %v252 = vadd.f32 %v213, %v247
      %v253 = vadd.f32 %v214, %v247
      %v254 = vadd.f32 %v215, %v247
      %v255 = vadd.f32 %v216, %v247
      %v256 = vadd.f32 %v217, %v247
      %v257 = vadd.f32 %v218, %v247
      %v258 = vadd.f32 %v219, %v247
      %v259 = vadd.f32 %v220, %v247
      %v260 = vadd.f32 %v221, %v247
      %v261 = vadd.f32 %v222, %v247
      %v262 = vadd.f32 %v223, %v247
      %v263 = vadd.f32 %v224, %v247
      %v264 = vadd.f32 %v225, %v247
      %v265 = vadd.f32 %v226, %v247
      %v266 = vadd.f32 %v227, %v247
      %v267 = vadd.f32 %v228, %v247
      %v268 = vadd.f32 %v229, %v247
      %v269 = vadd.f32 %v230, %v247
      %v270 = vadd.f32 %v231, %v247
      %v271 = vadd.f32 %v232, %v247
      %v272 = vadd.f32 %v233, %v247
      %v273 = vadd.f32 %v234, %v247
      %v274 = vadd.f32 %v235, %v247
      %v275 = vadd.f32 %v236, %v247
      %v276 = vadd.f32 %v237, %v247
      %v277 = vadd.f32 %v238, %v247
      %v278 = vadd.f32 %v239, %v247
      %v279 = vadd.f32 %v240, %v247
      %v280 = vadd.f32 %v241, %v247
      %v281 = vmax.f32 %v249, 0.0
      %v282 = vmax.f32 %v250, 0.0
      %v283 = vmax.f32 %v251, 0.0
      %v284 = vmax.f32 %v252, 0.0
      %v285 = vmax.f32 %v253, 0.0
      %v286 = vmax.f32 %v254, 0.0
      %v287 = vmax.f32 %v255, 0.0
      %v288 = vmax.f32 %v256, 0.0
      %v289 = vmax.f32 %v257, 0.0
      %v290 = vmax.f32 %v258, 0.0
      %v291 = vmax.f32 %v259, 0.0
      %v292 = vmax.f32 %v260, 0.0
      %v293 = vmax.f32 %v261, 0.0
      %v294 = vmax.f32 %v262, 0.0
      %v295 = vmax.f32 %v263, 0.0
      %v296 = vmax.f32 %v264, 0.0
      %v297 = vmax.f32 %v265, 0.0
      %v298 = vmax.f32 %v266, 0.0
      %v299 = vmax.f32 %v267, 0.0
      %v300 = vmax.f32 %v268, 0.0
      %v301 = vmax.f32 %v269, 0.0
      %v302 = vmax.f32 %v270, 0.0
      %v303 = vmax.f32 %v271, 0.0
      %v304 = vmax.f32 %v272, 0.0
      %v305 = vmax.f32 %v273, 0.0
      %v306 = vmax.f32 %v274, 0.0
      %v307 = vmax.f32 %v275, 0.0
      %v308 = vmax.f32 %v276, 0.0
      %v309 = vmax.f32 %v277, 0.0
      %v310 = vmax.f32 %v278, 0.0
      %v311 = vmax.f32 %v279, 0.0
      %v312 = vmax.f32 %v280, 0.0
      %vm313 = vcmask 130048
      %314 = vst.msk [vmem:[%s170] sm:$0xff] %vm313, %v281
      %315 = vst.msk [vmem:[%s170 + $0x8] sm:$0xff] %vm313, %v282
      %316 = vst.msk [vmem:[%s170 + $0x10] sm:$0xff] %vm313, %v283
      %317 = vst.msk [vmem:[%s170 + $0x18] sm:$0xff] %vm313, %v284
      %318 = vst.msk [vmem:[%s170 + $0x20] sm:$0xff] %vm313, %v285
      %319 = vst.msk [vmem:[%s170 + $0x28] sm:$0xff] %vm313, %v286
      %320 = vst.msk [vmem:[%s170 + $0x30] sm:$0xff] %vm313, %v287
      %321 = vst.msk [vmem:[%s170 + $0x38] sm:$0xff] %vm313, %v288
      %322 = vst.msk [vmem:[%s170 + $0x40] sm:$0xff] %vm313, %v289
      %323 = vst.msk [vmem:[%s170 + $0x48] sm:$0xff] %vm313, %v290
      %324 = vst.msk [vmem:[%s170 + $0x50] sm:$0xff] %vm313, %v291
      %325 = vst.msk [vmem:[%s170 + $0x58] sm:$0xff] %vm313, %v292
      %326 = vst.msk [vmem:[%s170 + $0x60] sm:$0xff] %vm313, %v293
      %327 = vst.msk [vmem:[%s170 + $0x68] sm:$0xff] %vm313, %v294
      %328 = vst.msk [vmem:[%s170 + $0x70] sm:$0xff] %vm313, %v295
      %329 = vst.msk [vmem:[%s170 + $0x78] sm:$0xff] %vm313, %v296
      %330 = vst.msk [vmem:[%s170 + $0x80] sm:$0xff] %vm313, %v297
      %331 = vst.msk [vmem:[%s170 + $0x88] sm:$0xff] %vm313, %v298
      %332 = vst.msk [vmem:[%s170 + $0x90] sm:$0xff] %vm313, %v299
      %333 = vst.msk [vmem:[%s170 + $0x98] sm:$0xff] %vm313, %v300
      %334 = vst.msk [vmem:[%s170 + $0xa0] sm:$0xff] %vm313, %v301
      %335 = vst.msk [vmem:[%s170 + $0xa8] sm:$0xff] %vm313, %v302
      %336 = vst.msk [vmem:[%s170 + $0xb0] sm:$0xff] %vm313, %v303
      %337 = vst.msk [vmem:[%s170 + $0xb8] sm:$0xff] %vm313, %v304
      %338 = vst.msk [vmem:[%s170 + $0xc0] sm:$0xff] %vm313, %v305
      %339 = vst.msk [vmem:[%s170 + $0xc8] sm:$0xff] %vm313, %v306
      %340 = vst.msk [vmem:[%s170 + $0xd0] sm:$0xff] %vm313, %v307
      %341 = vst.msk [vmem:[%s170 + $0xd8] sm:$0xff] %vm313, %v308
      %342 = vst.msk [vmem:[%s170 + $0xe0] sm:$0xff] %vm313, %v309
      %343 = vst.msk [vmem:[%s170 + $0xe8] sm:$0xff] %vm313, %v310
      %344 = vst.msk [vmem:[%s170 + $0xf0] sm:$0xff] %vm313, %v311
      %345 = vst.msk [vmem:[%s170 + $0xf8] sm:$0xff] %vm313, %v312
      %p346 = scmp.lt.s32.totalorder %s14, 1
      %s347 = scalar_select %p346, %s14, 1
      %s348 = smul.addr %s347, 32
      %s349 = smul.addr %s348, 8
      %s350 = scalar_lea.vmem %s3, %s349
      // Predicated region
      $region33: #{ddpm_forward.15} parent=31 // pred_check
        %p351 = pneg %p100
      $region34: #{ddpm_forward.15} parent=31 // pred_check_branch
        %353 = sbr.rel (%p351) target = $region36
      $region35: #{ddpm_forward.15} parent=31 // pred_region
        _
      $region36: #{ddpm_forward.15} parent=31 // pred_fallthru
        _
    $region32: #{ddpm_forward.15} parent=5 // pred_fallthru
      _
    %p354 = scmp.le.s32.totalorder 2, %s9
    // Predicated region
    $region37: #{ddpm_forward.15} parent=5 // pred_check
      %p355 = pneg %p354
    $region38: #{ddpm_forward.15} parent=5 // pred_check_branch
      %357 = sbr.rel (%p355) target = $region40
    $region39: #{ddpm_forward.15} parent=5 // pred_region
      %s358 = ssub.s32 %s9, 2
      // Predicated region
      $region41: #{ddpm_forward.15} parent=39 // pred_check
        %p359 = pneg %p106
      $region42: #{ddpm_forward.15} parent=39 // pred_check_branch
        %361 = sbr.rel (%p359) target = $region44
      $region43: #{ddpm_forward.15} parent=39 // pred_region
        %p362 = scmp.lt.s32.totalorder %s15, 1
        %s363 = scalar_select %p362, %s15, 1
        %s364 = smul.addr %s363, 32
        %s365 = smul.addr %s364, 8
        %s366 = scalar_lea.vmem %s3, %s365
      $region44: #{ddpm_forward.15} parent=39 // pred_fallthru
        _
    $region40: #{ddpm_forward.15} parent=5 // pred_fallthru
      _
  $region6: #{ddpm_forward.15} parent=0 // loop_footer
    %s13 = sadd.s32 1, %s9
  $region7: #{ddpm_forward.15} parent=0 // loop_footer_branch
    %8 = sbr.rel target = $region3
  $region8: #{ddpm_forward.15} parent=0 // loop_exit
    _

// kernel: ddpm_forward.14
$region0: #{ddpm_forward.14}
  #allocation0 [shape = 'u32[]', space=smem, size = 0x4, offset = 0x4, fixed_abs, tag = 'smem constant byte address 0x4 - core index']
  #allocation1 [shape = 'u32[144,128]{1,0:T(1,128)}', space=vmem, size = 0x12000, scoped, tag = 'internal scratch']
  %s0 = inlined_call_operand.vmem [shape: bf16[2,256,9], index: 0, kind: input, shape index: {}]
  %s1 = inlined_call_operand.vmem [shape: bf16[9,16], index: 1, kind: input, shape index: {}]
  %s2 = inlined_call_operand.vmem [shape: f32[2,256,16], index: 2, kind: output, shape index: {0}]
  %s3 = inlined_call_operand.vmem [shape: f32[2,1,16], index: 3, kind: output, shape index: {1}]
  %s4 = inlined_call_operand.vmem [shape: f32[2,1,16], index: 4, kind: output, shape index: {2}]
  %5 = xla_tuple %s2, %s3, %s4
  %s6 = sld [smem:[#allocation0]]
  $region57: #{ddpm_forward.14} parent=0
    _
  %s8 = ssub.s32 1, %s6
  %s9 = scalar_select 0, %s8, %s6
  loop: start=0, step=1, limit=4
  $region2: #{ddpm_forward.14} parent=0 // loop_pre_header
    _
  $region3: #{ddpm_forward.14} parent=0 // loop_header
    %s11 = sphi 0, %s15
    %p12 = scmp.ge.s32.totalorder %s11, 4
    %s21 = sphi 0, %s23
    %s24 = sphi 0, %s21
    %s25 = sphi 0, %s24
    %s41 = sphi 0, %s25
    %s45 = sphi 0, %s45
    %s47 = sphi 0, %s45
    %s48 = sphi 0, %s47
    %s62 = sphi 0, %s48
    %s68 = sphi 0, %s70
    %s71 = sphi 0, %s68
    %s72 = sphi 0, %s71
    %s88 = sphi 0, %s72
    %s94 = sphi 0, %s96
    %s97 = sphi 0, %s94
    %s98 = sphi 0, %s97
    %s114 = sphi 0, %s98
    %s120 = sphi 0, %s122
    %s123 = sphi 0, %s120
    %s124 = sphi 0, %s123
    %s140 = sphi 0, %s124
  $region4: #{ddpm_forward.14} parent=0 // loop_header_branch
    %14 = sbr.rel (%p12) target = $region8
  $region5: #{ddpm_forward.14} parent=0 // loop_body
    %s16 = ssub.s32 %s11, 1
    %s17 = ssub.s32 %s11, 2
    %s18 = sadd.s32 %s11, 1
    %s19 = ssub.s32 %s11, %s18
    %p20 = scmp.eq.s32.totalorder %s19, 0
    %s22 = sadd.s32 %s21, 1
    %s23 = scalar_select %p20, %s21, %s22
    %p26 = pneg %p20
    %p27 = scmp.eq.s32.totalorder %s11, 1
    %p28 = por %p26, %p27
    %p29 = scmp.ne.s32.totalorder %s21, %s24
    %p30 = scmp.eq.s32.totalorder %s11, 0
    %p31 = por %p29, %p30
    %p32 = scmp.ne.s32.totalorder %s21, %s24
    %p33 = scmp.eq.s32.totalorder %s16, 1
    %p34 = por %p32, %p33
    %p35 = scmp.ne.s32.totalorder %s24, %s25
    %p36 = scmp.eq.s32.totalorder %s16, 0
    %p37 = por %p35, %p36
    %p38 = scmp.ne.s32.totalorder %s24, %s25
    %p39 = scmp.eq.s32.totalorder %s17, 1
    %p40 = por %p38, %p39
    %p42 = scmp.ne.s32.totalorder %s25, %s41
    %p43 = scmp.eq.s32.totalorder %s17, 0
    %p44 = por %p42, %p43
    %s46 = sadd.s32 %s45, 1
    %p49 = scmp.eq.s32.totalorder %s11, 1
    %p50 = scmp.ne.s32.totalorder %s45, %s47
    %p51 = scmp.eq.s32.totalorder %s11, 0
    %p52 = por %p50, %p51
    %p53 = scmp.ne.s32.totalorder %s45, %s47
    %p54 = scmp.eq.s32.totalorder %s16, 1
    %p55 = por %p53, %p54
    %p56 = scmp.ne.s32.totalorder %s47, %s48
    %p57 = scmp.eq.s32.totalorder %s16, 0
    %p58 = por %p56, %p57
    %p59 = scmp.ne.s32.totalorder %s47, %s48
    %p60 = scmp.eq.s32.totalorder %s17, 1
    %p61 = por %p59, %p60
    %p63 = scmp.ne.s32.totalorder %s48, %s62
    %p64 = scmp.eq.s32.totalorder %s17, 0
    %p65 = por %p63, %p64
    %s66 = ssub.s32 %s11, %s18
    %p67 = scmp.eq.s32.totalorder %s66, 0
    %s69 = sadd.s32 %s68, 1
    %s70 = scalar_select %p67, %s68, %s69
    %p73 = pneg %p67
    %p74 = scmp.eq.s32.totalorder %s11, 1
    %p75 = por %p73, %p74
    %p76 = scmp.ne.s32.totalorder %s68, %s71
    %p77 = scmp.eq.s32.totalorder %s11, 0
    %p78 = por %p76, %p77
    %p79 = scmp.ne.s32.totalorder %s68, %s71
    %p80 = scmp.eq.s32.totalorder %s16, 1
    %p81 = por %p79, %p80
    %p82 = scmp.ne.s32.totalorder %s71, %s72
    %p83 = scmp.eq.s32.totalorder %s16, 0
    %p84 = por %p82, %p83
    %p85 = scmp.ne.s32.totalorder %s71, %s72
    %p86 = scmp.eq.s32.totalorder %s17, 1
    %p87 = por %p85, %p86
    %p89 = scmp.ne.s32.totalorder %s72, %s88
    %p90 = scmp.eq.s32.totalorder %s17, 0
    %p91 = por %p89, %p90
    %s92 = ssub.s32 %s11, %s18
    %p93 = scmp.eq.s32.totalorder %s92, 0
    %s95 = sadd.s32 %s94, 1
    %s96 = scalar_select %p93, %s94, %s95
    %p99 = pneg %p93
    %p100 = scmp.eq.s32.totalorder %s11, 1
    %p101 = por %p99, %p100
    %p102 = scmp.ne.s32.totalorder %s94, %s97
    %p103 = scmp.eq.s32.totalorder %s11, 0
    %p104 = por %p102, %p103
    %p105 = scmp.ne.s32.totalorder %s94, %s97
    %p106 = scmp.eq.s32.totalorder %s16, 1
    %p107 = por %p105, %p106
    %p108 = scmp.ne.s32.totalorder %s97, %s98
    %p109 = scmp.eq.s32.totalorder %s16, 0
    %p110 = por %p108, %p109
    %p111 = scmp.ne.s32.totalorder %s97, %s98
    %p112 = scmp.eq.s32.totalorder %s17, 1
    %p113 = por %p111, %p112
    %p115 = scmp.ne.s32.totalorder %s98, %s114
    %p116 = scmp.eq.s32.totalorder %s17, 0
    %p117 = por %p115, %p116
    %s118 = ssub.s32 %s11, %s18
    %p119 = scmp.eq.s32.totalorder %s118, 0
    %s121 = sadd.s32 %s120, 1
    %s122 = scalar_select %p119, %s120, %s121
    %p125 = pneg %p119
    %p126 = scmp.eq.s32.totalorder %s11, 1
    %p127 = por %p125, %p126
    %p128 = scmp.ne.s32.totalorder %s120, %s123
    %p129 = scmp.eq.s32.totalorder %s11, 0
    %p130 = por %p128, %p129
    %p131 = scmp.ne.s32.totalorder %s120, %s123
    %p132 = scmp.eq.s32.totalorder %s16, 1
    %p133 = por %p131, %p132
    %p134 = scmp.ne.s32.totalorder %s123, %s124
    %p135 = scmp.eq.s32.totalorder %s16, 0
    %p136 = por %p134, %p135
    %p137 = scmp.ne.s32.totalorder %s123, %s124
    %p138 = scmp.eq.s32.totalorder %s17, 1
    %p139 = por %p137, %p138
    %p141 = scmp.ne.s32.totalorder %s124, %s140
    %p142 = scmp.eq.s32.totalorder %s17, 0
    %p143 = por %p141, %p142
    %p144 = scmp.le.s32.totalorder 1, %s11
    %p145 = scmp.lt.s32.totalorder %s11, 3
    %p146 = pnand %p144, %p145
    %p147 = pneg %p146
    // Predicated region
    $region9: #{ddpm_forward.14} parent=5 // pred_check
      _
    $region10: #{ddpm_forward.14} parent=5 // pred_check_branch
      %149 = sbr.rel (%p146) target = $region12
    $region11: #{ddpm_forward.14} parent=5 // pred_region
      %s150 = ssub.s32 %s11, 1
      // Predicated region
      $region13: #{ddpm_forward.14} parent=11 // pred_check
        %p151 = pneg %p58
      $region14: #{ddpm_forward.14} parent=11 // pred_check_branch
        %153 = sbr.rel (%p151) target = $region16
      $region15: #{ddpm_forward.14} parent=11 // pred_region
        _
      $region16: #{ddpm_forward.14} parent=11 // pred_fallthru
        _
    $region12: #{ddpm_forward.14} parent=5 // pred_fallthru
      _
    %p154 = scmp.lt.s32.totalorder %s11, 2
    // Predicated region
    $region17: #{ddpm_forward.14} parent=5 // pred_check
      %p155 = pneg %p154
    $region18: #{ddpm_forward.14} parent=5 // pred_check_branch
      %157 = sbr.rel (%p155) target = $region20
    $region19: #{ddpm_forward.14} parent=5 // pred_region
      // Predicated region
      $region21: #{ddpm_forward.14} parent=19 // pred_check
        %p158 = pneg %p31
      $region22: #{ddpm_forward.14} parent=19 // pred_check_branch
        %160 = sbr.rel (%p158) target = $region24
      $region23: #{ddpm_forward.14} parent=19 // pred_region
        %p161 = scmp.lt.s32.totalorder %s11, 1
        %s162 = scalar_select %p161, %s11, 1
        %s163 = smul.addr %s162, 32
        %s164 = smul.addr %s163, 4
        %s165 = scalar_lea.vmem %s0, %s164
      $region24: #{ddpm_forward.14} parent=19 // pred_fallthru
        _
    $region20: #{ddpm_forward.14} parent=5 // pred_fallthru
      _
    %p166 = scmp.le.s32.totalorder 1, %s11
    %p167 = scmp.lt.s32.totalorder %s11, 3
    %p168 = pnand %p166, %p167
    %p169 = pneg %p168
    // Predicated region
    $region25: #{ddpm_forward.14} parent=5 // pred_check
      _
    $region26: #{ddpm_forward.14} parent=5 // pred_check_branch
      %171 = sbr.rel (%p168) target = $region28
    $region27: #{ddpm_forward.14} parent=5 // pred_region
      %s172 = ssub.s32 %s11, 1
      %p173 = scmp.lt.s32.totalorder %s16, 1
      %s174 = scalar_select %p173, %s16, 1
      %s175 = smul.addr %s174, 32
      %s176 = smul.addr %s175, 4
      %s177 = scalar_lea.vmem %s0, %s176
      %p178 = pneg %p37
      %p179 = pneg %p34
      %p180 = pneg %p58
      %p181 = pneg %p55
      %p182 = pneg %p84
      %p183 = pneg %p81
      %p184 = scmp.lt.s32.totalorder %s16, 1
      %s185 = scalar_select %p184, %s16, 1
      %s186 = smul.addr %s185, 32
      %s187 = smul.addr %s186, 8
      %s188 = scalar_lea.vmem %s2, %s187
      %p189 = pneg %p110
      %p190 = pneg %p107
      %p191 = scmp.lt.s32.totalorder %s16, 1
      %s192 = scalar_select %p191, %s16, 1
      %s193 = scalar_lea.vmem %s3, %s192
      %p194 = pneg %p136
      %p195 = pneg %p133
      %p196 = scmp.lt.s32.totalorder %s16, 1
      %s197 = scalar_select %p196, %s16, 1
      %s198 = scalar_lea.vmem %s4, %s197
      %p199 = scmp.lt.s32.totalorder %s16, 1
      %s200 = scalar_select %p199, %s16, 1
      %s201 = smul.addr %s200, 32
      %s202 = smul.addr %s201, 4
      %s203 = scalar_lea.vmem %s0, %s202
      %p204 = scmp.lt.s32.totalorder %s16, 1
      %s205 = scalar_select %p204, %s16, 1
      %s206 = smul.addr %s205, 32
      %s207 = smul.addr %s206, 8
      %s208 = scalar_lea.vmem %s2, %s207
      %p209 = scmp.lt.s32.totalorder %s16, 1
      %s210 = scalar_select %p209, %s16, 1
      %s211 = scalar_lea.vmem %s3, %s210
      %p212 = scmp.lt.s32.totalorder %s16, 1
      %s213 = scalar_select %p212, %s16, 1
      %s214 = scalar_lea.vmem %s4, %s213
      %v216 = vld [vmem:[%s203] sm:$0xf]
      %v217 = vld [vmem:[%s203 + $0x4] sm:$0xf]
      %v218 = vld [vmem:[%s203 + $0x8] sm:$0xf]
      %v219 = vld [vmem:[%s203 + $0xc] sm:$0xf]
      %v220 = vld [vmem:[%s203 + $0x10] sm:$0xf]
      %v221 = vld [vmem:[%s203 + $0x14] sm:$0xf]
      %v222 = vld [vmem:[%s203 + $0x18] sm:$0xf]
      %v223 = vld [vmem:[%s203 + $0x1c] sm:$0xf]
      %v224 = vld [vmem:[%s203 + $0x20] sm:$0xf]
      %v225 = vld [vmem:[%s203 + $0x24] sm:$0xf]
      %v226 = vld [vmem:[%s203 + $0x28] sm:$0xf]
      %v227 = vld [vmem:[%s203 + $0x2c] sm:$0xf]
      %v228 = vld [vmem:[%s203 + $0x30] sm:$0xf]
      %v229 = vld [vmem:[%s203 + $0x34] sm:$0xf]
      %v230 = vld [vmem:[%s203 + $0x38] sm:$0xf]
      %v231 = vld [vmem:[%s203 + $0x3c] sm:$0xf]
      %v232 = vld [vmem:[%s203 + $0x40] sm:$0xf]
      %v233 = vld [vmem:[%s203 + $0x44] sm:$0xf]
      %v234 = vld [vmem:[%s203 + $0x48] sm:$0xf]
      %v235 = vld [vmem:[%s203 + $0x4c] sm:$0xf]
      %v236 = vld [vmem:[%s203 + $0x50] sm:$0xf]
      %v237 = vld [vmem:[%s203 + $0x54] sm:$0xf]
      %v238 = vld [vmem:[%s203 + $0x58] sm:$0xf]
      %v239 = vld [vmem:[%s203 + $0x5c] sm:$0xf]
      %v240 = vld [vmem:[%s203 + $0x60] sm:$0xf]
      %v241 = vld [vmem:[%s203 + $0x64] sm:$0xf]
      %v242 = vld [vmem:[%s203 + $0x68] sm:$0xf]
      %v243 = vld [vmem:[%s203 + $0x6c] sm:$0xf]
      %v244 = vld [vmem:[%s203 + $0x70] sm:$0xf]
      %v245 = vld [vmem:[%s203 + $0x74] sm:$0xf]
      %v246 = vld [vmem:[%s203 + $0x78] sm:$0xf]
      %v247 = vld [vmem:[%s203 + $0x7c] sm:$0xf]
      %v248 = vld [vmem:[%s1] sm:$0xf]
      %v249 = vld [vmem:[%s1 + $0x4] sm:$0x1]
      %v282 = vunpack.c.l.b16 %v216
      %v283 = vunpack.c.l.b16 %v217
      %v284 = vunpack.c.l.b16 %v218
      %v285 = vunpack.c.l.b16 %v219
      %v286 = vunpack.c.l.b16 %v220
      %v287 = vunpack.c.l.b16 %v221
      %v288 = vunpack.c.l.b16 %v222
      %v289 = vunpack.c.l.b16 %v223
      %v290 = vunpack.c.l.b16 %v224
      %v291 = vunpack.c.l.b16 %v225
      %v292 = vunpack.c.l.b16 %v226
      %v293 = vunpack.c.l.b16 %v227
      %v294 = vunpack.c.l.b16 %v228
      %v295 = vunpack.c.l.b16 %v229
      %v296 = vunpack.c.l.b16 %v230
      %v297 = vunpack.c.l.b16 %v231
      %v298 = vunpack.c.l.b16 %v232
      %v299 = vunpack.c.l.b16 %v233
      %v300 = vunpack.c.l.b16 %v234
      %v301 = vunpack.c.l.b16 %v235
      %v302 = vunpack.c.l.b16 %v236
      %v303 = vunpack.c.l.b16 %v237
      %v304 = vunpack.c.l.b16 %v238
      %v305 = vunpack.c.l.b16 %v239
      %v306 = vunpack.c.l.b16 %v240
      %v307 = vunpack.c.l.b16 %v241
      %v308 = vunpack.c.l.b16 %v242
      %v309 = vunpack.c.l.b16 %v243
      %v310 = vunpack.c.l.b16 %v244
      %v311 = vunpack.c.l.b16 %v245
      %v312 = vunpack.c.l.b16 %v246
      %v313 = vunpack.c.l.b16 %v247
      %v314 = vpack.c.b16 %v283, %v282
      %v315 = vpack.c.b16 %v285, %v284
      %v316 = vpack.c.b16 %v287, %v286
      %v317 = vpack.c.b16 %v289, %v288
      %v318 = vpack.c.b16 %v291, %v290
      %v319 = vpack.c.b16 %v293, %v292
      %v320 = vpack.c.b16 %v295, %v294
      %v321 = vpack.c.b16 %v297, %v296
      %v322 = vpack.c.b16 %v299, %v298
      %v323 = vpack.c.b16 %v301, %v300
      %v324 = vpack.c.b16 %v303, %v302
      %v325 = vpack.c.b16 %v305, %v304
      %v326 = vpack.c.b16 %v307, %v306
      %v327 = vpack.c.b16 %v309, %v308
      %v328 = vpack.c.b16 %v311, %v310
      %v329 = vpack.c.b16 %v313, %v312
      %v332 = vunpack.c.l.b16 %v248
      %v333 = vunpack.c.l.b16 %v249
      %v334 = vpack.c.b16 %v333, %v332
      %vm335 = vcmask 72704
      %v337 = vsel %vm335, %v314, 0
      %v340 = vsel %vm335, %v315, 0
      %v343 = vsel %vm335, %v316, 0
      %v346 = vsel %vm335, %v317, 0
      %v349 = vsel %vm335, %v318, 0
      %v352 = vsel %vm335, %v319, 0
      %v355 = vsel %vm335, %v320, 0
      %v358 = vsel %vm335, %v321, 0
      %v361 = vsel %vm335, %v322, 0
      %v364 = vsel %vm335, %v323, 0
      %v367 = vsel %vm335, %v324, 0
      %v370 = vsel %vm335, %v325, 0
      %v373 = vsel %vm335, %v326, 0
      %v376 = vsel %vm335, %v327, 0
      %v379 = vsel %vm335, %v328, 0
      %v382 = vsel %vm335, %v329, 0
      %vm384 = vcmask 1043456
      %vm385 = vcmask 1044480
      %v386 = vsel %vm384, 4294967295, 65535
      %v387 = vsel %vm385, %v386, 0
      %v389 = vand.u32 %v334, %v387
      %391 = vmatprep.subr.bf16.mxu0 0
      %392 = vmatpush1.bf16.msra.mxu0 %v389
      %393 = vmatprep.subr.bf16.mxu0 0
      %394 = vmatpush1.bf16.msra.mxu0 0
      %395 = vmatprep.subr.bf16.mxu0 0
      %396 = vmatpush1.bf16.msra.mxu0 0
      %397 = vmatprep.subr.bf16.mxu0 0
      %398 = vmatpush1.bf16.msra.mxu0 0
      %399 = vmatprep.subr.bf16.mxu0 0
      %400 = vmatpush1.bf16.msra.mxu0 0
      %401 = vmatprep.subr.bf16.mxu0 0
      %402 = vmatpush1.bf16.msra.mxu0 0
      %403 = vmatprep.subr.bf16.mxu0 0
      %404 = vmatpush1.bf16.msra.mxu0 0
      %405 = vmatprep.subr.bf16.mxu0 0
      %406 = vmatpush1.bf16.msra.mxu0 0
      %407 = vmatprep.subr.bf16.mxu0 0
      %408 = vmatpush1.bf16.msra.mxu0 0
      %409 = vmatprep.subr.bf16.mxu0 0
      %410 = vmatpush1.bf16.msra.mxu0 0
      %411 = vmatprep.subr.bf16.mxu0 0
      %412 = vmatpush1.bf16.msra.mxu0 0
      %413 = vmatprep.subr.bf16.mxu0 0
      %414 = vmatpush1.bf16.msra.mxu0 0
      %415 = vmatprep.subr.bf16.mxu0 0
      %416 = vmatpush1.bf16.msra.mxu0 0
      %417 = vmatprep.subr.bf16.mxu0 0
      %418 = vmatpush1.bf16.msra.mxu0 0
      %419 = vmatprep.subr.bf16.mxu0 0
      %420 = vmatpush1.bf16.msra.mxu0 0
      %421 = vmatprep.subr.bf16.mxu0 0
      %422 = vmatpush1.bf16.msra.mxu0 0
      %423 = vmatprep.mubr.bf16.mxu0 0
      %424 = vmatmul.mubr.bf16.gmra.mrb[0].mxu0 %v337
      %v425 = vpop.f32.mrb[0].mxu0
      %v426 = vadd.f32 0.0, %v425
      %v427 = vpop.f32.mrb[0].mxu0
      %v428 = vpop.f32.mrb[0].mxu0
      %v429 = vadd.f32 0.0, %v428
      %v430 = vpop.f32.mrb[0].mxu0
      %431 = vmatprep.mubr.bf16.mxu0 0
      %432 = vmatmul.mubr.bf16.gmra.mrb[0].mxu0 %v340
      %v433 = vpop.f32.mrb[0].mxu0
      %v434 = vadd.f32 0.0, %v433
      %v435 = vpop.f32.mrb[0].mxu0
      %v436 = vpop.f32.mrb[0].mxu0
      %v437 = vadd.f32 0.0, %v436
      %v438 = vpop.f32.mrb[0].mxu0
      %439 = vmatprep.mubr.bf16.mxu0 0
      %440 = vmatmul.mubr.bf16.gmra.mrb[0].mxu0 %v343
      %v441 = vpop.f32.mrb[0].mxu0
      %v442 = vadd.f32 0.0, %v441
      %v443 = vpop.f32.mrb[0].mxu0
      %v444 = vpop.f32.mrb[0].mxu0
      %v445 = vadd.f32 0.0, %v444
      %v446 = vpop.f32.mrb[0].mxu0
      %447 = vmatprep.mubr.bf16.mxu0 0
      %448 = vmatmul.mubr.bf16.gmra.mrb[0].mxu0 %v346
      %v449 = vpop.f32.mrb[0].mxu0
      %v450 = vadd.f32 0.0, %v449
      %v451 = vpop.f32.mrb[0].mxu0
      %v452 = vpop.f32.mrb[0].mxu0
      %v453 = vadd.f32 0.0, %v452
      %v454 = vpop.f32.mrb[0].mxu0
      %455 = vmatprep.mubr.bf16.mxu0 0
      %456 = vmatmul.mubr.bf16.gmra.mrb[0].mxu0 %v349
      %v457 = vpop.f32.mrb[0].mxu0
      %v458 = vadd.f32 0.0, %v457
      %v459 = vpop.f32.mrb[0].mxu0
      %v460 = vpop.f32.mrb[0].mxu0
      %v461 = vadd.f32 0.0, %v460
      %v462 = vpop.f32.mrb[0].mxu0
      %463 = vmatprep.mubr.bf16.mxu0 0
      %464 = vmatmul.mubr.bf16.gmra.mrb[0].mxu0 %v352
      %v465 = vpop.f32.mrb[0].mxu0
      %v466 = vadd.f32 0.0, %v465
      %v467 = vpop.f32.mrb[0].mxu0
      %v468 = vpop.f32.mrb[0].mxu0
      %v469 = vadd.f32 0.0, %v468
      %v470 = vpop.f32.mrb[0].mxu0
      %471 = vmatprep.mubr.bf16.mxu0 0
      %472 = vmatmul.mubr.bf16.gmra.mrb[0].mxu0 %v355
      %v473 = vpop.f32.mrb[0].mxu0
      %v474 = vadd.f32 0.0, %v473
      %v475 = vpop.f32.mrb[0].mxu0
      %v476 = vpop.f32.mrb[0].mxu0
      %v477 = vadd.f32 0.0, %v476
      %v478 = vpop.f32.mrb[0].mxu0
      %479 = vmatprep.mubr.bf16.mxu0 0
      %480 = vmatmul.mubr.bf16.gmra.mrb[0].mxu0 %v358
      %v481 = vpop.f32.mrb[0].mxu0
      %v482 = vadd.f32 0.0, %v481
      %v483 = vpop.f32.mrb[0].mxu0
      %v484 = vpop.f32.mrb[0].mxu0
      %v485 = vadd.f32 0.0, %v484
      %v486 = vpop.f32.mrb[0].mxu0
      %487 = vmatprep.mubr.bf16.mxu0 0
      %488 = vmatmul.mubr.bf16.gmra.mrb[0].mxu0 %v361
      %v489 = vpop.f32.mrb[0].mxu0
      %v490 = vadd.f32 0.0, %v489
      %v491 = vpop.f32.mrb[0].mxu0
      %v492 = vpop.f32.mrb[0].mxu0
      %v493 = vadd.f32 0.0, %v492
      %v494 = vpop.f32.mrb[0].mxu0
      %495 = vmatprep.mubr.bf16.mxu0 0
      %496 = vmatmul.mubr.bf16.gmra.mrb[0].mxu0 %v364
      %v497 = vpop.f32.mrb[0].mxu0
      %v498 = vadd.f32 0.0, %v497
      %v499 = vpop.f32.mrb[0].mxu0
      %v500 = vpop.f32.mrb[0].mxu0
      %v501 = vadd.f32 0.0, %v500
      %v502 = vpop.f32.mrb[0].mxu0
      %503 = vmatprep.mubr.bf16.mxu0 0
      %504 = vmatmul.mubr.bf16.gmra.mrb[0].mxu0 %v367
      %v505 = vpop.f32.mrb[0].mxu0
      %v506 = vadd.f32 0.0, %v505
      %v507 = vpop.f32.mrb[0].mxu0
      %v508 = vpop.f32.mrb[0].mxu0
      %v509 = vadd.f32 0.0, %v508
      %v510 = vpop.f32.mrb[0].mxu0
      %511 = vmatprep.mubr.bf16.mxu0 0
      %512 = vmatmul.mubr.bf16.gmra.mrb[0].mxu0 %v370
      %v513 = vpop.f32.mrb[0].mxu0
      %v514 = vadd.f32 0.0, %v513
      %v515 = vpop.f32.mrb[0].mxu0
      %v516 = vpop.f32.mrb[0].mxu0
      %v517 = vadd.f32 0.0, %v516
      %v518 = vpop.f32.mrb[0].mxu0
      %519 = vmatprep.mubr.bf16.mxu0 0
      %520 = vmatmul.mubr.bf16.gmra.mrb[0].mxu0 %v373
      %v521 = vpop.f32.mrb[0].mxu0
      %v522 = vadd.f32 0.0, %v521
      %v523 = vpop.f32.mrb[0].mxu0
      %v524 = vpop.f32.mrb[0].mxu0
      %v525 = vadd.f32 0.0, %v524
      %v526 = vpop.f32.mrb[0].mxu0
      %527 = vmatprep.mubr.bf16.mxu0 0
      %528 = vmatmul.mubr.bf16.gmra.mrb[0].mxu0 %v376
      %v529 = vpop.f32.mrb[0].mxu0
      %v530 = vadd.f32 0.0, %v529
      %v531 = vpop.f32.mrb[0].mxu0
      %v532 = vpop.f32.mrb[0].mxu0
      %v533 = vadd.f32 0.0, %v532
      %v534 = vpop.f32.mrb[0].mxu0
      %535 = vmatprep.mubr.bf16.mxu0 0
      %536 = vmatmul.mubr.bf16.gmra.mrb[0].mxu0 %v379
      %v537 = vpop.f32.mrb[0].mxu0
      %v538 = vadd.f32 0.0, %v537
      %v539 = vpop.f32.mrb[0].mxu0
      %v540 = vpop.f32.mrb[0].mxu0
      %v541 = vadd.f32 0.0, %v540
      %v542 = vpop.f32.mrb[0].mxu0
      %543 = vmatprep.mubr.bf16.mxu0 0
      %544 = vmatmul.mubr.bf16.gmra.mrb[0].mxu0 %v382
      %v545 = vpop.f32.mrb[0].mxu0
      %v546 = vadd.f32 0.0, %v545
      %v547 = vpop.f32.mrb[0].mxu0
      %v548 = vpop.f32.mrb[0].mxu0
      %v549 = vadd.f32 0.0, %v548
      %v550 = vpop.f32.mrb[0].mxu0
      %551 = vdwg.mxu0
      %vm552 = vcmask 130048
      %553 = vst.msk [vmem:[%s208] sm:$0xff] %vm552, %v426
      %554 = vst.msk [vmem:[%s208 + $0x8] sm:$0xff] %vm552, %v429
      %555 = vst.msk [vmem:[%s208 + $0x10] sm:$0xff] %vm552, %v434
      %556 = vst.msk [vmem:[%s208 + $0x18] sm:$0xff] %vm552, %v437
      %557 = vst.msk [vmem:[%s208 + $0x20] sm:$0xff] %vm552, %v442
      %558 = vst.msk [vmem:[%s208 + $0x28] sm:$0xff] %vm552, %v445
      %559 = vst.msk [vmem:[%s208 + $0x30] sm:$0xff] %vm552, %v450
      %560 = vst.msk [vmem:[%s208 + $0x38] sm:$0xff] %vm552, %v453
      %561 = vst.msk [vmem:[%s208 + $0x40] sm:$0xff] %vm552, %v458
      %562 = vst.msk [vmem:[%s208 + $0x48] sm:$0xff] %vm552, %v461
      %563 = vst.msk [vmem:[%s208 + $0x50] sm:$0xff] %vm552, %v466
      %564 = vst.msk [vmem:[%s208 + $0x58] sm:$0xff] %vm552, %v469
      %565 = vst.msk [vmem:[%s208 + $0x60] sm:$0xff] %vm552, %v474
      %566 = vst.msk [vmem:[%s208 + $0x68] sm:$0xff] %vm552, %v477
      %567 = vst.msk [vmem:[%s208 + $0x70] sm:$0xff] %vm552, %v482
      %568 = vst.msk [vmem:[%s208 + $0x78] sm:$0xff] %vm552, %v485
      %569 = vst.msk [vmem:[%s208 + $0x80] sm:$0xff] %vm552, %v490
      %570 = vst.msk [vmem:[%s208 + $0x88] sm:$0xff] %vm552, %v493
      %571 = vst.msk [vmem:[%s208 + $0x90] sm:$0xff] %vm552, %v498
      %572 = vst.msk [vmem:[%s208 + $0x98] sm:$0xff] %vm552, %v501
      %573 = vst.msk [vmem:[%s208 + $0xa0] sm:$0xff] %vm552, %v506
      %574 = vst.msk [vmem:[%s208 + $0xa8] sm:$0xff] %vm552, %v509
      %575 = vst.msk [vmem:[%s208 + $0xb0] sm:$0xff] %vm552, %v514
      %576 = vst.msk [vmem:[%s208 + $0xb8] sm:$0xff] %vm552, %v517
      %577 = vst.msk [vmem:[%s208 + $0xc0] sm:$0xff] %vm552, %v522
      %578 = vst.msk [vmem:[%s208 + $0xc8] sm:$0xff] %vm552, %v525
      %579 = vst.msk [vmem:[%s208 + $0xd0] sm:$0xff] %vm552, %v530
      %580 = vst.msk [vmem:[%s208 + $0xd8] sm:$0xff] %vm552, %v533
      %581 = vst.msk [vmem:[%s208 + $0xe0] sm:$0xff] %vm552, %v538
      %582 = vst.msk [vmem:[%s208 + $0xe8] sm:$0xff] %vm552, %v541
      %583 = vst.msk [vmem:[%s208 + $0xf0] sm:$0xff] %vm552, %v546
      %584 = vst.msk [vmem:[%s208 + $0xf8] sm:$0xff] %vm552, %v549
      %v585 = vsel %vm552, %v426, 0.0
      %v586 = vsel %vm552, %v429, 0.0
      %v587 = vadd.f32 %v585, %v586
      %v588 = vsel %vm552, %v434, 0.0
      %v589 = vadd.f32 %v587, %v588
      %v590 = vsel %vm552, %v437, 0.0
      %v591 = vadd.f32 %v589, %v590
      %v592 = vsel %vm552, %v442, 0.0
      %v593 = vadd.f32 %v591, %v592
      %v594 = vsel %vm552, %v445, 0.0
      %v595 = vadd.f32 %v593, %v594
      %v596 = vsel %vm552, %v450, 0.0
      %v597 = vadd.f32 %v595, %v596
      %v598 = vsel %vm552, %v453, 0.0
      %v599 = vadd.f32 %v597, %v598
      %v600 = vsel %vm552, %v458, 0.0
      %v601 = vadd.f32 %v599, %v600
      %v602 = vsel %vm552, %v461, 0.0
      %v603 = vadd.f32 %v601, %v602
      %v604 = vsel %vm552, %v466, 0.0
      %v605 = vadd.f32 %v603, %v604
      %v606 = vsel %vm552, %v469, 0.0
      %v607 = vadd.f32 %v605, %v606
      %v608 = vsel %vm552, %v474, 0.0
      %v609 = vadd.f32 %v607, %v608
      %v610 = vsel %vm552, %v477, 0.0
      %v611 = vadd.f32 %v609, %v610
      %v612 = vsel %vm552, %v482, 0.0
      %v613 = vadd.f32 %v611, %v612
      %v614 = vsel %vm552, %v485, 0.0
      %v615 = vadd.f32 %v613, %v614
      %v616 = vsel %vm552, %v490, 0.0
      %v617 = vadd.f32 %v615, %v616
      %v618 = vsel %vm552, %v493, 0.0
      %v619 = vadd.f32 %v617, %v618
      %v620 = vsel %vm552, %v498, 0.0
      %v621 = vadd.f32 %v619, %v620
      %v622 = vsel %vm552, %v501, 0.0
      %v623 = vadd.f32 %v621, %v622
      %v624 = vsel %vm552, %v506, 0.0
      %v625 = vadd.f32 %v623, %v624
      %v626 = vsel %vm552, %v509, 0.0
      %v627 = vadd.f32 %v625, %v626
      %v628 = vsel %vm552, %v514, 0.0
      %v629 = vadd.f32 %v627, %v628
      %v630 = vsel %vm552, %v517, 0.0
      %v631 = vadd.f32 %v629, %v630
      %v632 = vsel %vm552, %v522, 0.0
      %v633 = vadd.f32 %v631, %v632
      %v634 = vsel %vm552, %v525, 0.0
      %v635 = vadd.f32 %v633, %v634
      %v636 = vsel %vm552, %v530, 0.0
      %v637 = vadd.f32 %v635, %v636
      %v638 = vsel %vm552, %v533, 0.0
      %v639 = vadd.f32 %v637, %v638
      %v640 = vsel %vm552, %v538, 0.0
      %v641 = vadd.f32 %v639, %v640
      %v642 = vsel %vm552, %v541, 0.0
      %v643 = vadd.f32 %v641, %v642
      %v644 = vsel %vm552, %v546, 0.0
      %v645 = vadd.f32 %v643, %v644
      %v646 = vsel %vm552, %v549, 0.0
      %v647 = vadd.f32 %v645, %v646
      %v648 = vrot.slane %v647, 4
      %v649 = vadd.f32 %v647, %v648
      %v650 = vrot.slane %v649, 2
      %v651 = vadd.f32 %v649, %v650
      %v652 = vrot.slane %v651, 1
      %v653 = vadd.f32 %v651, %v652
      %vm654 = vcmask 122880
      %655 = vst.msk [vmem:[%s211] sm:$0x1] %vm654, %v653
      %v656 = vmul.f32 %v426, %v426
      %v657 = vmul.f32 %v429, %v429
      %v658 = vmul.f32 %v434, %v434
      %v659 = vmul.f32 %v437, %v437
      %v660 = vmul.f32 %v442, %v442
      %v661 = vmul.f32 %v445, %v445
      %v662 = vmul.f32 %v450, %v450
      %v663 = vmul.f32 %v453, %v453
      %v664 = vmul.f32 %v458, %v458
      %v665 = vmul.f32 %v461, %v461
      %v666 = vmul.f32 %v466, %v466
      %v667 = vmul.f32 %v469, %v469
      %v668 = vmul.f32 %v474, %v474
      %v669 = vmul.f32 %v477, %v477
      %v670 = vmul.f32 %v482, %v482
      %v671 = vmul.f32 %v485, %v485
      %v672 = vmul.f32 %v490, %v490
      %v673 = vmul.f32 %v493, %v493
      %v674 = vmul.f32 %v498, %v498
      %v675 = vmul.f32 %v501, %v501
      %v676 = vmul.f32 %v506, %v506
      %v677 = vmul.f32 %v509, %v509
      %v678 = vmul.f32 %v514, %v514
      %v679 = vmul.f32 %v517, %v517
      %v680 = vmul.f32 %v522, %v522
      %v681 = vmul.f32 %v525, %v525
      %v682 = vmul.f32 %v530, %v530
      %v683 = vmul.f32 %v533, %v533
      %v684 = vmul.f32 %v538, %v538
      %v685 = vmul.f32 %v541, %v541
      %v686 = vmul.f32 %v546, %v546
      %v687 = vmul.f32 %v549, %v549
      %v688 = vsel %vm552, %v656, 0.0
      %v689 = vsel %vm552, %v657, 0.0
      %v690 = vadd.f32 %v688, %v689
      %v691 = vsel %vm552, %v658, 0.0
      %v692 = vadd.f32 %v690, %v691
      %v693 = vsel %vm552, %v659, 0.0
      %v694 = vadd.f32 %v692, %v693
      %v695 = vsel %vm552, %v660, 0.0
      %v696 = vadd.f32 %v694, %v695
      %v697 = vsel %vm552, %v661, 0.0
      %v698 = vadd.f32 %v696, %v697
      %v699 = vsel %vm552, %v662, 0.0
      %v700 = vadd.f32 %v698, %v699
      %v701 = vsel %vm552, %v663, 0.0
      %v702 = vadd.f32 %v700, %v701
      %v703 = vsel %vm552, %v664, 0.0
      %v704 = vadd.f32 %v702, %v703
      %v705 = vsel %vm552, %v665, 0.0
      %v706 = vadd.f32 %v704, %v705
      %v707 = vsel %vm552, %v666, 0.0
      %v708 = vadd.f32 %v706, %v707
      %v709 = vsel %vm552, %v667, 0.0
      %v710 = vadd.f32 %v708, %v709
      %v711 = vsel %vm552, %v668, 0.0
      %v712 = vadd.f32 %v710, %v711
      %v713 = vsel %vm552, %v669, 0.0
      %v714 = vadd.f32 %v712, %v713
      %v715 = vsel %vm552, %v670, 0.0
      %v716 = vadd.f32 %v714, %v715
      %v717 = vsel %vm552, %v671, 0.0
      %v718 = vadd.f32 %v716, %v717
      %v719 = vsel %vm552, %v672, 0.0
      %v720 = vadd.f32 %v718, %v719
      %v721 = vsel %vm552, %v673, 0.0
      %v722 = vadd.f32 %v720, %v721
      %v723 = vsel %vm552, %v674, 0.0
      %v724 = vadd.f32 %v722, %v723
      %v725 = vsel %vm552, %v675, 0.0
      %v726 = vadd.f32 %v724, %v725
      %v727 = vsel %vm552, %v676, 0.0
      %v728 = vadd.f32 %v726, %v727
      %v729 = vsel %vm552, %v677, 0.0
      %v730 = vadd.f32 %v728, %v729
      %v731 = vsel %vm552, %v678, 0.0
      %v732 = vadd.f32 %v730, %v731
      %v733 = vsel %vm552, %v679, 0.0
      %v734 = vadd.f32 %v732, %v733
      %v735 = vsel %vm552, %v680, 0.0
      %v736 = vadd.f32 %v734, %v735
      %v737 = vsel %vm552, %v681, 0.0
      %v738 = vadd.f32 %v736, %v737
      %v739 = vsel %vm552, %v682, 0.0
      %v740 = vadd.f32 %v738, %v739
      %v741 = vsel %vm552, %v683, 0.0
      %v742 = vadd.f32 %v740, %v741
      %v743 = vsel %vm552, %v684, 0.0
      %v744 = vadd.f32 %v742, %v743
      %v745 = vsel %vm552, %v685, 0.0
      %v746 = vadd.f32 %v744, %v745
      %v747 = vsel %vm552, %v686, 0.0
      %v748 = vadd.f32 %v746, %v747
      %v749 = vsel %vm552, %v687, 0.0
      %v750 = vadd.f32 %v748, %v749
      %v751 = vrot.slane %v750, 4
      %v752 = vadd.f32 %v750, %v751
      %v753 = vrot.slane %v752, 2
      %v754 = vadd.f32 %v752, %v753
      %v755 = vrot.slane %v754, 1
      %v756 = vadd.f32 %v754, %v755
      %757 = vst.msk [vmem:[%s214] sm:$0x1] %vm654, %v756
      %p758 = scmp.lt.s32.totalorder %s16, 1
      %s759 = scalar_select %p758, %s16, 1
      %s760 = smul.addr %s759, 32
      %s761 = smul.addr %s760, 8
      %s762 = scalar_lea.vmem %s2, %s761
      %p763 = scmp.lt.s32.totalorder %s16, 1
      %s764 = scalar_select %p763, %s16, 1
      %s765 = scalar_lea.vmem %s3, %s764
      %p766 = scmp.lt.s32.totalorder %s16, 1
      %s767 = scalar_select %p766, %s16, 1
      %s768 = scalar_lea.vmem %s4, %s767
      // Predicated region
      $region29: #{ddpm_forward.14} parent=27 // pred_check
        %p769 = pneg %p81
      $region30: #{ddpm_forward.14} parent=27 // pred_check_branch
        %771 = sbr.rel (%p769) target = $region32
      $region31: #{ddpm_forward.14} parent=27 // pred_region
        _
      $region32: #{ddpm_forward.14} parent=27 // pred_fallthru
        _
      // Predicated region
      $region33: #{ddpm_forward.14} parent=27 // pred_check
        %p772 = pneg %p107
      $region34: #{ddpm_forward.14} parent=27 // pred_check_branch
        %774 = sbr.rel (%p772) target = $region36
      $region35: #{ddpm_forward.14} parent=27 // pred_region
        _
      $region36: #{ddpm_forward.14} parent=27 // pred_fallthru
        _
      // Predicated region
      $region37: #{ddpm_forward.14} parent=27 // pred_check
        %p775 = pneg %p133
      $region38: #{ddpm_forward.14} parent=27 // pred_check_branch
        %777 = sbr.rel (%p775) target = $region40
      $region39: #{ddpm_forward.14} parent=27 // pred_region
        _
      $region40: #{ddpm_forward.14} parent=27 // pred_fallthru
        _
    $region28: #{ddpm_forward.14} parent=5 // pred_fallthru
      _
    %p778 = scmp.le.s32.totalorder 2, %s11
    // Predicated region
    $region41: #{ddpm_forward.14} parent=5 // pred_check
      %p779 = pneg %p778
    $region42: #{ddpm_forward.14} parent=5 // pred_check_branch
      %781 = sbr.rel (%p779) target = $region44
    $region43: #{ddpm_forward.14} parent=5 // pred_region
      %s782 = ssub.s32 %s11, 2
      // Predicated region
      $region45: #{ddpm_forward.14} parent=43 // pred_check
        %p783 = pneg %p87
      $region46: #{ddpm_forward.14} parent=43 // pred_check_branch
        %785 = sbr.rel (%p783) target = $region48
      $region47: #{ddpm_forward.14} parent=43 // pred_region
        %p786 = scmp.lt.s32.totalorder %s17, 1
        %s787 = scalar_select %p786, %s17, 1
        %s788 = smul.addr %s787, 32
        %s789 = smul.addr %s788, 8
        %s790 = scalar_lea.vmem %s2, %s789
      $region48: #{ddpm_forward.14} parent=43 // pred_fallthru
        _
      // Predicated region
      $region49: #{ddpm_forward.14} parent=43 // pred_check
        %p791 = pneg %p113
      $region50: #{ddpm_forward.14} parent=43 // pred_check_branch
        %793 = sbr.rel (%p791) target = $region52
      $region51: #{ddpm_forward.14} parent=43 // pred_region
        %p794 = scmp.lt.s32.totalorder %s17, 1
        %s795 = scalar_select %p794, %s17, 1
        %s796 = scalar_lea.vmem %s3, %s795
      $region52: #{ddpm_forward.14} parent=43 // pred_fallthru
        _
      // Predicated region
      $region53: #{ddpm_forward.14} parent=43 // pred_check
        %p797 = pneg %p139
      $region54: #{ddpm_forward.14} parent=43 // pred_check_branch
        %799 = sbr.rel (%p797) target = $region56
      $region55: #{ddpm_forward.14} parent=43 // pred_region
        %p800 = scmp.lt.s32.totalorder %s17, 1
        %s801 = scalar_select %p800, %s17, 1
        %s802 = scalar_lea.vmem %s4, %s801
      $region56: #{ddpm_forward.14} parent=43 // pred_fallthru
        _
    $region44: #{ddpm_forward.14} parent=5 // pred_fallthru
      _
  $region6: #{ddpm_forward.14} parent=0 // loop_footer
    %s15 = sadd.s32 1, %s11
  $region7: #{ddpm_forward.14} parent=0 // loop_footer_branch
    %10 = sbr.rel target = $region3
  $region8: #{ddpm_forward.14} parent=0 // loop_exit
    _

// kernel: ddpm_forward.16
$region0: #{ddpm_forward.16}
  #allocation0 [shape = 'u32[]', space=smem, size = 0x4, offset = 0x4, fixed_abs, tag = 'smem constant byte address 0x4 - core index']
  #allocation1 [shape = 'u32[144,128]{1,0:T(1,128)}', space=vmem, size = 0x12000, scoped, tag = 'internal scratch']
  %s0 = inlined_call_operand.vmem [shape: bf16[2,64,144], index: 0, kind: input, shape index: {}]
  %s1 = inlined_call_operand.vmem [shape: bf16[144,32], index: 1, kind: input, shape index: {}]
  %s2 = inlined_call_operand.vmem [shape: f32[2,64,32], index: 2, kind: output, shape index: {0}]
  %s3 = inlined_call_operand.vmem [shape: f32[2,1,32], index: 3, kind: output, shape index: {1}]
  %s4 = inlined_call_operand.vmem [shape: f32[2,1,32], index: 4, kind: output, shape index: {2}]
  %5 = xla_tuple %s2, %s3, %s4
  %s6 = sld [smem:[#allocation0]]
  $region57: #{ddpm_forward.16} parent=0
    _
  %s8 = ssub.s32 1, %s6
  %s9 = scalar_select 0, %s8, %s6
  loop: start=0, step=1, limit=4
  $region2: #{ddpm_forward.16} parent=0 // loop_pre_header
    _
  $region3: #{ddpm_forward.16} parent=0 // loop_header
    %s11 = sphi 0, %s15
    %p12 = scmp.ge.s32.totalorder %s11, 4
    %s21 = sphi 0, %s23
    %s24 = sphi 0, %s21
    %s25 = sphi 0, %s24
    %s41 = sphi 0, %s25
    %s45 = sphi 0, %s45
    %s47 = sphi 0, %s45
    %s48 = sphi 0, %s47
    %s62 = sphi 0, %s48
    %s68 = sphi 0, %s70
    %s71 = sphi 0, %s68
    %s72 = sphi 0, %s71
    %s88 = sphi 0, %s72
    %s94 = sphi 0, %s96
    %s97 = sphi 0, %s94
    %s98 = sphi 0, %s97
    %s114 = sphi 0, %s98
    %s120 = sphi 0, %s122
    %s123 = sphi 0, %s120
    %s124 = sphi 0, %s123
    %s140 = sphi 0, %s124
  $region4: #{ddpm_forward.16} parent=0 // loop_header_branch
    %14 = sbr.rel (%p12) target = $region8
  $region5: #{ddpm_forward.16} parent=0 // loop_body
    %s16 = ssub.s32 %s11, 1
    %s17 = ssub.s32 %s11, 2
    %s18 = sadd.s32 %s11, 1
    %s19 = ssub.s32 %s11, %s18
    %p20 = scmp.eq.s32.totalorder %s19, 0
    %s22 = sadd.s32 %s21, 1
    %s23 = scalar_select %p20, %s21, %s22
    %p26 = pneg %p20
    %p27 = scmp.eq.s32.totalorder %s11, 1
    %p28 = por %p26, %p27
    %p29 = scmp.ne.s32.totalorder %s21, %s24
    %p30 = scmp.eq.s32.totalorder %s11, 0
    %p31 = por %p29, %p30
    %p32 = scmp.ne.s32.totalorder %s21, %s24
    %p33 = scmp.eq.s32.totalorder %s16, 1
    %p34 = por %p32, %p33
    %p35 = scmp.ne.s32.totalorder %s24, %s25
    %p36 = scmp.eq.s32.totalorder %s16, 0
    %p37 = por %p35, %p36
    %p38 = scmp.ne.s32.totalorder %s24, %s25
    %p39 = scmp.eq.s32.totalorder %s17, 1
    %p40 = por %p38, %p39
    %p42 = scmp.ne.s32.totalorder %s25, %s41
    %p43 = scmp.eq.s32.totalorder %s17, 0
    %p44 = por %p42, %p43
    %s46 = sadd.s32 %s45, 1
    %p49 = scmp.eq.s32.totalorder %s11, 1
    %p50 = scmp.ne.s32.totalorder %s45, %s47
    %p51 = scmp.eq.s32.totalorder %s11, 0
    %p52 = por %p50, %p51
    %p53 = scmp.ne.s32.totalorder %s45, %s47
    %p54 = scmp.eq.s32.totalorder %s16, 1
    %p55 = por %p53, %p54
    %p56 = scmp.ne.s32.totalorder %s47, %s48
    %p57 = scmp.eq.s32.totalorder %s16, 0
    %p58 = por %p56, %p57
    %p59 = scmp.ne.s32.totalorder %s47, %s48
    %p60 = scmp.eq.s32.totalorder %s17, 1
    %p61 = por %p59, %p60
    %p63 = scmp.ne.s32.totalorder %s48, %s62
    %p64 = scmp.eq.s32.totalorder %s17, 0
    %p65 = por %p63, %p64
    %s66 = ssub.s32 %s11, %s18
    %p67 = scmp.eq.s32.totalorder %s66, 0
    %s69 = sadd.s32 %s68, 1
    %s70 = scalar_select %p67, %s68, %s69
    %p73 = pneg %p67
    %p74 = scmp.eq.s32.totalorder %s11, 1
    %p75 = por %p73, %p74
    %p76 = scmp.ne.s32.totalorder %s68, %s71
    %p77 = scmp.eq.s32.totalorder %s11, 0
    %p78 = por %p76, %p77
    %p79 = scmp.ne.s32.totalorder %s68, %s71
    %p80 = scmp.eq.s32.totalorder %s16, 1
    %p81 = por %p79, %p80
    %p82 = scmp.ne.s32.totalorder %s71, %s72
    %p83 = scmp.eq.s32.totalorder %s16, 0
    %p84 = por %p82, %p83
    %p85 = scmp.ne.s32.totalorder %s71, %s72
    %p86 = scmp.eq.s32.totalorder %s17, 1
    %p87 = por %p85, %p86
    %p89 = scmp.ne.s32.totalorder %s72, %s88
    %p90 = scmp.eq.s32.totalorder %s17, 0
    %p91 = por %p89, %p90
    %s92 = ssub.s32 %s11, %s18
    %p93 = scmp.eq.s32.totalorder %s92, 0
    %s95 = sadd.s32 %s94, 1
    %s96 = scalar_select %p93, %s94, %s95
    %p99 = pneg %p93
    %p100 = scmp.eq.s32.totalorder %s11, 1
    %p101 = por %p99, %p100
    %p102 = scmp.ne.s32.totalorder %s94, %s97
    %p103 = scmp.eq.s32.totalorder %s11, 0
    %p104 = por %p102, %p103
    %p105 = scmp.ne.s32.totalorder %s94, %s97
    %p106 = scmp.eq.s32.totalorder %s16, 1
    %p107 = por %p105, %p106
    %p108 = scmp.ne.s32.totalorder %s97, %s98
    %p109 = scmp.eq.s32.totalorder %s16, 0
    %p110 = por %p108, %p109
    %p111 = scmp.ne.s32.totalorder %s97, %s98
    %p112 = scmp.eq.s32.totalorder %s17, 1
    %p113 = por %p111, %p112
    %p115 = scmp.ne.s32.totalorder %s98, %s114
    %p116 = scmp.eq.s32.totalorder %s17, 0
    %p117 = por %p115, %p116
    %s118 = ssub.s32 %s11, %s18
    %p119 = scmp.eq.s32.totalorder %s118, 0
    %s121 = sadd.s32 %s120, 1
    %s122 = scalar_select %p119, %s120, %s121
    %p125 = pneg %p119
    %p126 = scmp.eq.s32.totalorder %s11, 1
    %p127 = por %p125, %p126
    %p128 = scmp.ne.s32.totalorder %s120, %s123
    %p129 = scmp.eq.s32.totalorder %s11, 0
    %p130 = por %p128, %p129
    %p131 = scmp.ne.s32.totalorder %s120, %s123
    %p132 = scmp.eq.s32.totalorder %s16, 1
    %p133 = por %p131, %p132
    %p134 = scmp.ne.s32.totalorder %s123, %s124
    %p135 = scmp.eq.s32.totalorder %s16, 0
    %p136 = por %p134, %p135
    %p137 = scmp.ne.s32.totalorder %s123, %s124
    %p138 = scmp.eq.s32.totalorder %s17, 1
    %p139 = por %p137, %p138
    %p141 = scmp.ne.s32.totalorder %s124, %s140
    %p142 = scmp.eq.s32.totalorder %s17, 0
    %p143 = por %p141, %p142
    %p144 = scmp.le.s32.totalorder 1, %s11
    %p145 = scmp.lt.s32.totalorder %s11, 3
    %p146 = pnand %p144, %p145
    %p147 = pneg %p146
    // Predicated region
    $region9: #{ddpm_forward.16} parent=5 // pred_check
      _
    $region10: #{ddpm_forward.16} parent=5 // pred_check_branch
      %149 = sbr.rel (%p146) target = $region12
    $region11: #{ddpm_forward.16} parent=5 // pred_region
      %s150 = ssub.s32 %s11, 1
      // Predicated region
      $region13: #{ddpm_forward.16} parent=11 // pred_check
        %p151 = pneg %p58
      $region14: #{ddpm_forward.16} parent=11 // pred_check_branch
        %153 = sbr.rel (%p151) target = $region16
      $region15: #{ddpm_forward.16} parent=11 // pred_region
        _
      $region16: #{ddpm_forward.16} parent=11 // pred_fallthru
        _
    $region12: #{ddpm_forward.16} parent=5 // pred_fallthru
      _
    %p154 = scmp.lt.s32.totalorder %s11, 2
    // Predicated region
    $region17: #{ddpm_forward.16} parent=5 // pred_check
      %p155 = pneg %p154
    $region18: #{ddpm_forward.16} parent=5 // pred_check_branch
      %157 = sbr.rel (%p155) target = $region20
    $region19: #{ddpm_forward.16} parent=5 // pred_region
      // Predicated region
      $region21: #{ddpm_forward.16} parent=19 // pred_check
        %p158 = pneg %p31
      $region22: #{ddpm_forward.16} parent=19 // pred_check_branch
        %160 = sbr.rel (%p158) target = $region24
      $region23: #{ddpm_forward.16} parent=19 // pred_region
        %p161 = scmp.lt.s32.totalorder %s11, 1
        %s162 = scalar_select %p161, %s11, 1
        %s163 = smul.addr %s162, 16
        %s164 = smul.addr %s163, 4
        %s165 = scalar_lea.vmem %s0, %s164
      $region24: #{ddpm_forward.16} parent=19 // pred_fallthru
        _
    $region20: #{ddpm_forward.16} parent=5 // pred_fallthru
      _
    %p166 = scmp.le.s32.totalorder 1, %s11
    %p167 = scmp.lt.s32.totalorder %s11, 3
    %p168 = pnand %p166, %p167
    %p169 = pneg %p168
    // Predicated region
    $region25: #{ddpm_forward.16} parent=5 // pred_check
      _
    $region26: #{ddpm_forward.16} parent=5 // pred_check_branch
      %171 = sbr.rel (%p168) target = $region28
    $region27: #{ddpm_forward.16} parent=5 // pred_region
      %s172 = ssub.s32 %s11, 1
      %p173 = scmp.lt.s32.totalorder %s16, 1
      %s174 = scalar_select %p173, %s16, 1
      %s175 = smul.addr %s174, 16
      %s176 = smul.addr %s175, 4
      %s177 = scalar_lea.vmem %s0, %s176
      %p178 = pneg %p37
      %p179 = pneg %p34
      %p180 = pneg %p58
      %p181 = pneg %p55
      %p182 = pneg %p84
      %p183 = pneg %p81
      %p184 = scmp.lt.s32.totalorder %s16, 1
      %s185 = scalar_select %p184, %s16, 1
      %s186 = smul.addr %s185, 8
      %s187 = smul.addr %s186, 8
      %s188 = scalar_lea.vmem %s2, %s187
      %p189 = pneg %p110
      %p190 = pneg %p107
      %p191 = scmp.lt.s32.totalorder %s16, 1
      %s192 = scalar_select %p191, %s16, 1
      %s193 = scalar_lea.vmem %s3, %s192
      %p194 = pneg %p136
      %p195 = pneg %p133
      %p196 = scmp.lt.s32.totalorder %s16, 1
      %s197 = scalar_select %p196, %s16, 1
      %s198 = scalar_lea.vmem %s4, %s197
      %p199 = scmp.lt.s32.totalorder %s16, 1
      %s200 = scalar_select %p199, %s16, 1
      %s201 = smul.addr %s200, 16
      %s202 = smul.addr %s201, 4
      %s203 = scalar_lea.vmem %s0, %s202
      %p204 = scmp.lt.s32.totalorder %s16, 1
      %s205 = scalar_select %p204, %s16, 1
      %s206 = smul.addr %s205, 8
      %s207 = smul.addr %s206, 8
      %s208 = scalar_lea.vmem %s2, %s207
      %p209 = scmp.lt.s32.totalorder %s16, 1
      %s210 = scalar_select %p209, %s16, 1
      %s211 = scalar_lea.vmem %s3, %s210
      %p212 = scmp.lt.s32.totalorder %s16, 1
      %s213 = scalar_select %p212, %s16, 1
      %s214 = scalar_lea.vmem %s4, %s213
      %v216 = vld [vmem:[%s203] sm:$0xff]
      %v217 = vld [vmem:[%s203 + $0x8] sm:$0xff]
      %v218 = vld [vmem:[%s203 + $0x10] sm:$0xff]
      %v219 = vld [vmem:[%s203 + $0x18] sm:$0xff]
      %v220 = vld [vmem:[%s203 + $0x20] sm:$0xff]
      %v221 = vld [vmem:[%s203 + $0x28] sm:$0xff]
      %v222 = vld [vmem:[%s203 + $0x30] sm:$0xff]
      %v223 = vld [vmem:[%s203 + $0x38] sm:$0xff]
      %v224 = vld [vmem:[%s1] sm:$0xf]
      %v225 = vld [vmem:[%s1 + $0x4] sm:$0xf]
      %v226 = vld [vmem:[%s1 + $0x8] sm:$0xf]
      %v227 = vld [vmem:[%s1 + $0xc] sm:$0xf]
      %v228 = vld [vmem:[%s1 + $0x10] sm:$0xf]
      %v229 = vld [vmem:[%s1 + $0x14] sm:$0xf]
      %v230 = vld [vmem:[%s1 + $0x18] sm:$0xf]
      %v231 = vld [vmem:[%s1 + $0x1c] sm:$0xf]
      %v232 = vld [vmem:[%s1 + $0x20] sm:$0xf]
      %v233 = vld [vmem:[%s1 + $0x24] sm:$0xf]
      %v234 = vld [vmem:[%s1 + $0x28] sm:$0xf]
      %v235 = vld [vmem:[%s1 + $0x2c] sm:$0xf]
      %v236 = vld [vmem:[%s1 + $0x30] sm:$0xf]
      %v237 = vld [vmem:[%s1 + $0x34] sm:$0xf]
      %v238 = vld [vmem:[%s1 + $0x38] sm:$0xf]
      %v239 = vld [vmem:[%s1 + $0x3c] sm:$0xf]
      %v240 = vld [vmem:[%s1 + $0x40] sm:$0xf]
      %v241 = vld [vmem:[%s1 + $0x44] sm:$0xf]
      %v250 = vunpack.c.l.b16 %v216
      %v251 = vunpack.c.h.b16 %v216
      %v252 = vunpack.c.l.b16 %v217
      %v253 = vunpack.c.h.b16 %v217
      %v254 = vunpack.c.l.b16 %v218
      %v255 = vunpack.c.h.b16 %v218
      %v256 = vunpack.c.l.b16 %v219
      %v257 = vunpack.c.h.b16 %v219
      %v258 = vunpack.c.l.b16 %v220
      %v259 = vunpack.c.h.b16 %v220
      %v260 = vunpack.c.l.b16 %v221
      %v261 = vunpack.c.h.b16 %v221
      %v262 = vunpack.c.l.b16 %v222
      %v263 = vunpack.c.h.b16 %v222
      %v264 = vunpack.c.l.b16 %v223
      %v265 = vunpack.c.h.b16 %v223
      %v266 = vpack.c.b16 %v252, %v250
      %v267 = vpack.c.b16 %v253, %v251
      %v268 = vpack.c.b16 %v256, %v254
      %v269 = vpack.c.b16 %v257, %v255
      %v270 = vpack.c.b16 %v260, %v258
      %v271 = vpack.c.b16 %v261, %v259
      %v272 = vpack.c.b16 %v264, %v262
      %v273 = vpack.c.b16 %v265, %v263
      %v296 = vunpack.c.l.b16 %v224
      %v297 = vunpack.c.l.b16 %v225
      %v298 = vunpack.c.l.b16 %v226
      %v299 = vunpack.c.l.b16 %v227
      %v300 = vunpack.c.l.b16 %v228
      %v301 = vunpack.c.l.b16 %v229
      %v302 = vunpack.c.l.b16 %v230
      %v303 = vunpack.c.l.b16 %v231
      %v304 = vunpack.c.l.b16 %v232
      %v305 = vunpack.c.l.b16 %v233
      %v306 = vunpack.c.l.b16 %v234
      %v307 = vunpack.c.l.b16 %v235
      %v308 = vunpack.c.l.b16 %v236
      %v309 = vunpack.c.l.b16 %v237
      %v310 = vunpack.c.l.b16 %v238
      %v311 = vunpack.c.l.b16 %v239
      %v312 = vunpack.c.l.b16 %v240
      %v313 = vunpack.c.l.b16 %v241
      %v314 = vpack.c.b16 %v297, %v296
      %v315 = vpack.c.b16 %v299, %v298
      %v316 = vpack.c.b16 %v301, %v300
      %v317 = vpack.c.b16 %v303, %v302
      %v318 = vpack.c.b16 %v305, %v304
      %v319 = vpack.c.b16 %v307, %v306
      %v320 = vpack.c.b16 %v309, %v308
      %v321 = vpack.c.b16 %v311, %v310
      %v322 = vpack.c.b16 %v313, %v312
      %vm332 = vcmask 130048
      %v334 = vsel %vm332, %v267, 0
      %v337 = vsel %vm332, %v269, 0
      %v340 = vsel %vm332, %v271, 0
      %v343 = vsel %vm332, %v273, 0
      %345 = vmatprep.subr.bf16.mxu0 0
      %346 = vmatpush1.bf16.msra.mxu0 %v314
      %347 = vmatprep.subr.bf16.mxu0 0
      %348 = vmatpush1.bf16.msra.mxu0 %v315
      %349 = vmatprep.subr.bf16.mxu0 0
      %350 = vmatpush1.bf16.msra.mxu0 %v316
      %351 = vmatprep.subr.bf16.mxu0 0
      %352 = vmatpush1.bf16.msra.mxu0 %v317
      %353 = vmatprep.subr.bf16.mxu0 0
      %354 = vmatpush1.bf16.msra.mxu0 %v318
      %355 = vmatprep.subr.bf16.mxu0 0
      %356 = vmatpush1.bf16.msra.mxu0 %v319
      %357 = vmatprep.subr.bf16.mxu0 0
      %358 = vmatpush1.bf16.msra.mxu0 %v320
      %359 = vmatprep.subr.bf16.mxu0 0
      %360 = vmatpush1.bf16.msra.mxu0 %v321
      %361 = vmatprep.subr.bf16.mxu0 0
      %362 = vmatpush1.bf16.msra.mxu0 %v322
      %363 = vmatprep.subr.bf16.mxu0 0
      %364 = vmatpush1.bf16.msra.mxu0 0
      %365 = vmatprep.subr.bf16.mxu0 0
      %366 = vmatpush1.bf16.msra.mxu0 0
      %367 = vmatprep.subr.bf16.mxu0 0
      %368 = vmatpush1.bf16.msra.mxu0 0
      %369 = vmatprep.subr.bf16.mxu0 0
      %370 = vmatpush1.bf16.msra.mxu0 0
      %371 = vmatprep.subr.bf16.mxu0 0
      %372 = vmatpush1.bf16.msra.mxu0 0
      %373 = vmatprep.subr.bf16.mxu0 0
      %374 = vmatpush1.bf16.msra.mxu0 0
      %375 = vmatprep.subr.bf16.mxu0 0
      %376 = vmatpush1.bf16.msra.mxu0 0
      %377 = vmatprep.mubr.bf16.mxu0 %v334
      %378 = vmatmul.mubr.bf16.gmra.mrb[0].mxu0 %v266
      %v379 = vpop.f32.mrb[0].mxu0
      %v380 = vadd.f32 0.0, %v379
      %v381 = vpop.f32.mrb[0].mxu0
      %v382 = vpop.f32.mrb[0].mxu0
      %v383 = vadd.f32 0.0, %v382
      %v384 = vpop.f32.mrb[0].mxu0
      %385 = vmatprep.mubr.bf16.mxu0 %v337
      %386 = vmatmul.mubr.bf16.gmra.mrb[0].mxu0 %v268
      %v387 = vpop.f32.mrb[0].mxu0
      %v388 = vadd.f32 0.0, %v387
      %v389 = vpop.f32.mrb[0].mxu0
      %v390 = vpop.f32.mrb[0].mxu0
      %v391 = vadd.f32 0.0, %v390
      %v392 = vpop.f32.mrb[0].mxu0
      %393 = vmatprep.mubr.bf16.mxu0 %v340
      %394 = vmatmul.mubr.bf16.gmra.mrb[0].mxu0 %v270
      %v395 = vpop.f32.mrb[0].mxu0
      %v396 = vadd.f32 0.0, %v395
      %v397 = vpop.f32.mrb[0].mxu0
      %v398 = vpop.f32.mrb[0].mxu0
      %v399 = vadd.f32 0.0, %v398
      %v400 = vpop.f32.mrb[0].mxu0
      %401 = vmatprep.mubr.bf16.mxu0 %v343
      %402 = vmatmul.mubr.bf16.gmra.mrb[0].mxu0 %v272
      %v403 = vpop.f32.mrb[0].mxu0
      %v404 = vadd.f32 0.0, %v403
      %v405 = vpop.f32.mrb[0].mxu0
      %v406 = vpop.f32.mrb[0].mxu0
      %v407 = vadd.f32 0.0, %v406
      %v408 = vpop.f32.mrb[0].mxu0
      %409 = vdwg.mxu0
      %vm410 = vcmask 261120
      %411 = vst.msk [vmem:[%s208] sm:$0xff] %vm410, %v380
      %412 = vst.msk [vmem:[%s208 + $0x8] sm:$0xff] %vm410, %v383
      %413 = vst.msk [vmem:[%s208 + $0x10] sm:$0xff] %vm410, %v388
      %414 = vst.msk [vmem:[%s208 + $0x18] sm:$0xff] %vm410, %v391
      %415 = vst.msk [vmem:[%s208 + $0x20] sm:$0xff] %vm410, %v396
      %416 = vst.msk [vmem:[%s208 + $0x28] sm:$0xff] %vm410, %v399
      %417 = vst.msk [vmem:[%s208 + $0x30] sm:$0xff] %vm410, %v404
      %418 = vst.msk [vmem:[%s208 + $0x38] sm:$0xff] %vm410, %v407
      %v419 = vsel %vm410, %v380, 0.0
      %v420 = vsel %vm410, %v383, 0.0
      %v421 = vadd.f32 %v419, %v420
      %v422 = vsel %vm410, %v388, 0.0
      %v423 = vadd.f32 %v421, %v422
      %v424 = vsel %vm410, %v391, 0.0
      %v425 = vadd.f32 %v423, %v424
      %v426 = vsel %vm410, %v396, 0.0
      %v427 = vadd.f32 %v425, %v426
      %v428 = vsel %vm410, %v399, 0.0
      %v429 = vadd.f32 %v427, %v428
      %v430 = vsel %vm410, %v404, 0.0
      %v431 = vadd.f32 %v429, %v430
      %v432 = vsel %vm410, %v407, 0.0
      %v433 = vadd.f32 %v431, %v432
      %v434 = vrot.slane %v433, 4
      %v435 = vadd.f32 %v433, %v434
      %v436 = vrot.slane %v435, 2
      %v437 = vadd.f32 %v435, %v436
      %v438 = vrot.slane %v437, 1
      %v439 = vadd.f32 %v437, %v438
      %vm440 = vcmask 253952
      %441 = vst.msk [vmem:[%s211] sm:$0x1] %vm440, %v439
      %v442 = vmul.f32 %v380, %v380
      %v443 = vmul.f32 %v383, %v383
      %v444 = vmul.f32 %v388, %v388
      %v445 = vmul.f32 %v391, %v391
      %v446 = vmul.f32 %v396, %v396
      %v447 = vmul.f32 %v399, %v399
      %v448 = vmul.f32 %v404, %v404
      %v449 = vmul.f32 %v407, %v407
      %v450 = vsel %vm410, %v442, 0.0
      %v451 = vsel %vm410, %v443, 0.0
      %v452 = vadd.f32 %v450, %v451
      %v453 = vsel %vm410, %v444, 0.0
      %v454 = vadd.f32 %v452, %v453
      %v455 = vsel %vm410, %v445, 0.0
      %v456 = vadd.f32 %v454, %v455
      %v457 = vsel %vm410, %v446, 0.0
      %v458 = vadd.f32 %v456, %v457
      %v459 = vsel %vm410, %v447, 0.0
      %v460 = vadd.f32 %v458, %v459
      %v461 = vsel %vm410, %v448, 0.0
      %v462 = vadd.f32 %v460, %v461
      %v463 = vsel %vm410, %v449, 0.0
      %v464 = vadd.f32 %v462, %v463
      %v465 = vrot.slane %v464, 4
      %v466 = vadd.f32 %v464, %v465
      %v467 = vrot.slane %v466, 2
      %v468 = vadd.f32 %v466, %v467
      %v469 = vrot.slane %v468, 1
      %v470 = vadd.f32 %v468, %v469
      %471 = vst.msk [vmem:[%s214] sm:$0x1] %vm440, %v470
      %p472 = scmp.lt.s32.totalorder %s16, 1
      %s473 = scalar_select %p472, %s16, 1
      %s474 = smul.addr %s473, 8
      %s475 = smul.addr %s474, 8
      %s476 = scalar_lea.vmem %s2, %s475
      %p477 = scmp.lt.s32.totalorder %s16, 1
      %s478 = scalar_select %p477, %s16, 1
      %s479 = scalar_lea.vmem %s3, %s478
      %p480 = scmp.lt.s32.totalorder %s16, 1
      %s481 = scalar_select %p480, %s16, 1
      %s482 = scalar_lea.vmem %s4, %s481
      // Predicated region
      $region29: #{ddpm_forward.16} parent=27 // pred_check
        %p483 = pneg %p81
      $region30: #{ddpm_forward.16} parent=27 // pred_check_branch
        %485 = sbr.rel (%p483) target = $region32
      $region31: #{ddpm_forward.16} parent=27 // pred_region
        _
      $region32: #{ddpm_forward.16} parent=27 // pred_fallthru
        _
      // Predicated region
      $region33: #{ddpm_forward.16} parent=27 // pred_check
        %p486 = pneg %p107
      $region34: #{ddpm_forward.16} parent=27 // pred_check_branch
        %488 = sbr.rel (%p486) target = $region36
      $region35: #{ddpm_forward.16} parent=27 // pred_region
        _
      $region36: #{ddpm_forward.16} parent=27 // pred_fallthru
        _
      // Predicated region
      $region37: #{ddpm_forward.16} parent=27 // pred_check
        %p489 = pneg %p133
      $region38: #{ddpm_forward.16} parent=27 // pred_check_branch
        %491 = sbr.rel (%p489) target = $region40
      $region39: #{ddpm_forward.16} parent=27 // pred_region
        _
      $region40: #{ddpm_forward.16} parent=27 // pred_fallthru
        _
    $region28: #{ddpm_forward.16} parent=5 // pred_fallthru
      _
    %p492 = scmp.le.s32.totalorder 2, %s11
    // Predicated region
    $region41: #{ddpm_forward.16} parent=5 // pred_check
      %p493 = pneg %p492
    $region42: #{ddpm_forward.16} parent=5 // pred_check_branch
      %495 = sbr.rel (%p493) target = $region44
    $region43: #{ddpm_forward.16} parent=5 // pred_region
      %s496 = ssub.s32 %s11, 2
      // Predicated region
      $region45: #{ddpm_forward.16} parent=43 // pred_check
        %p497 = pneg %p87
      $region46: #{ddpm_forward.16} parent=43 // pred_check_branch
        %499 = sbr.rel (%p497) target = $region48
      $region47: #{ddpm_forward.16} parent=43 // pred_region
        %p500 = scmp.lt.s32.totalorder %s17, 1
        %s501 = scalar_select %p500, %s17, 1
        %s502 = smul.addr %s501, 8
        %s503 = smul.addr %s502, 8
        %s504 = scalar_lea.vmem %s2, %s503
      $region48: #{ddpm_forward.16} parent=43 // pred_fallthru
        _
      // Predicated region
      $region49: #{ddpm_forward.16} parent=43 // pred_check
        %p505 = pneg %p113
      $region50: #{ddpm_forward.16} parent=43 // pred_check_branch
        %507 = sbr.rel (%p505) target = $region52
      $region51: #{ddpm_forward.16} parent=43 // pred_region
        %p508 = scmp.lt.s32.totalorder %s17, 1
        %s509 = scalar_select %p508, %s17, 1
        %s510 = scalar_lea.vmem %s3, %s509
      $region52: #{ddpm_forward.16} parent=43 // pred_fallthru
        _
      // Predicated region
      $region53: #{ddpm_forward.16} parent=43 // pred_check
        %p511 = pneg %p139
      $region54: #{ddpm_forward.16} parent=43 // pred_check_branch
        %513 = sbr.rel (%p511) target = $region56
      $region55: #{ddpm_forward.16} parent=43 // pred_region
        %p514 = scmp.lt.s32.totalorder %s17, 1
        %s515 = scalar_select %p514, %s17, 1
        %s516 = scalar_lea.vmem %s4, %s515
      $region56: #{ddpm_forward.16} parent=43 // pred_fallthru
        _
    $region44: #{ddpm_forward.16} parent=5 // pred_fallthru
      _
  $region6: #{ddpm_forward.16} parent=0 // loop_footer
    %s15 = sadd.s32 1, %s11
  $region7: #{ddpm_forward.16} parent=0 // loop_footer_branch
    %10 = sbr.rel target = $region3
  $region8: #{ddpm_forward.16} parent=0 // loop_exit
    _

// kernel: ddpm_forward.17
$region0: #{ddpm_forward.17}
  #allocation0 [shape = 'u32[]', space=smem, size = 0x4, offset = 0x4, fixed_abs, tag = 'smem constant byte address 0x4 - core index']
  #allocation1 [shape = 'u32[144,128]{1,0:T(1,128)}', space=vmem, size = 0x12000, scoped, tag = 'internal scratch']
  %s0 = inlined_call_operand.vmem [shape: f32[2,64,32], index: 0, kind: input, shape index: {}]
  %s1 = inlined_call_operand.vmem [shape: f32[1,32], index: 1, kind: input, shape index: {}]
  %s2 = inlined_call_operand.vmem [shape: f32[1,32], index: 2, kind: input, shape index: {}]
  %s3 = inlined_call_operand.vmem [shape: f32[2,64,32], index: 3, kind: output, shape index: {}]
  %s4 = sld [smem:[#allocation0]]
  $region45: #{ddpm_forward.17} parent=0
    _
  %s6 = ssub.s32 1, %s4
  %s7 = scalar_select 0, %s6, %s4
  loop: start=0, step=1, limit=4
  $region2: #{ddpm_forward.17} parent=0 // loop_pre_header
    _
  $region3: #{ddpm_forward.17} parent=0 // loop_header
    %s9 = sphi 0, %s13
    %p10 = scmp.ge.s32.totalorder %s9, 4
    %s19 = sphi 0, %s21
    %s22 = sphi 0, %s19
    %s23 = sphi 0, %s22
    %s39 = sphi 0, %s23
    %s43 = sphi 0, %s43
    %s45 = sphi 0, %s43
    %s46 = sphi 0, %s45
    %s60 = sphi 0, %s46
    %s64 = sphi 0, %s64
    %s66 = sphi 0, %s64
    %s67 = sphi 0, %s66
    %s81 = sphi 0, %s67
    %s87 = sphi 0, %s89
    %s90 = sphi 0, %s87
    %s91 = sphi 0, %s90
    %s107 = sphi 0, %s91
  $region4: #{ddpm_forward.17} parent=0 // loop_header_branch
    %12 = sbr.rel (%p10) target = $region8
  $region5: #{ddpm_forward.17} parent=0 // loop_body
    %s14 = ssub.s32 %s9, 1
    %s15 = ssub.s32 %s9, 2
    %s16 = sadd.s32 %s9, 1
    %s17 = ssub.s32 %s9, %s16
    %p18 = scmp.eq.s32.totalorder %s17, 0
    %s20 = sadd.s32 %s19, 1
    %s21 = scalar_select %p18, %s19, %s20
    %p24 = pneg %p18
    %p25 = scmp.eq.s32.totalorder %s9, 1
    %p26 = por %p24, %p25
    %p27 = scmp.ne.s32.totalorder %s19, %s22
    %p28 = scmp.eq.s32.totalorder %s9, 0
    %p29 = por %p27, %p28
    %p30 = scmp.ne.s32.totalorder %s19, %s22
    %p31 = scmp.eq.s32.totalorder %s14, 1
    %p32 = por %p30, %p31
    %p33 = scmp.ne.s32.totalorder %s22, %s23
    %p34 = scmp.eq.s32.totalorder %s14, 0
    %p35 = por %p33, %p34
    %p36 = scmp.ne.s32.totalorder %s22, %s23
    %p37 = scmp.eq.s32.totalorder %s15, 1
    %p38 = por %p36, %p37
    %p40 = scmp.ne.s32.totalorder %s23, %s39
    %p41 = scmp.eq.s32.totalorder %s15, 0
    %p42 = por %p40, %p41
    %s44 = sadd.s32 %s43, 1
    %p47 = scmp.eq.s32.totalorder %s9, 1
    %p48 = scmp.ne.s32.totalorder %s43, %s45
    %p49 = scmp.eq.s32.totalorder %s9, 0
    %p50 = por %p48, %p49
    %p51 = scmp.ne.s32.totalorder %s43, %s45
    %p52 = scmp.eq.s32.totalorder %s14, 1
    %p53 = por %p51, %p52
    %p54 = scmp.ne.s32.totalorder %s45, %s46
    %p55 = scmp.eq.s32.totalorder %s14, 0
    %p56 = por %p54, %p55
    %p57 = scmp.ne.s32.totalorder %s45, %s46
    %p58 = scmp.eq.s32.totalorder %s15, 1
    %p59 = por %p57, %p58
    %p61 = scmp.ne.s32.totalorder %s46, %s60
    %p62 = scmp.eq.s32.totalorder %s15, 0
    %p63 = por %p61, %p62
    %s65 = sadd.s32 %s64, 1
    %p68 = scmp.eq.s32.totalorder %s9, 1
    %p69 = scmp.ne.s32.totalorder %s64, %s66
    %p70 = scmp.eq.s32.totalorder %s9, 0
    %p71 = por %p69, %p70
    %p72 = scmp.ne.s32.totalorder %s64, %s66
    %p73 = scmp.eq.s32.totalorder %s14, 1
    %p74 = por %p72, %p73
    %p75 = scmp.ne.s32.totalorder %s66, %s67
    %p76 = scmp.eq.s32.totalorder %s14, 0
    %p77 = por %p75, %p76
    %p78 = scmp.ne.s32.totalorder %s66, %s67
    %p79 = scmp.eq.s32.totalorder %s15, 1
    %p80 = por %p78, %p79
    %p82 = scmp.ne.s32.totalorder %s67, %s81
    %p83 = scmp.eq.s32.totalorder %s15, 0
    %p84 = por %p82, %p83
    %s85 = ssub.s32 %s9, %s16
    %p86 = scmp.eq.s32.totalorder %s85, 0
    %s88 = sadd.s32 %s87, 1
    %s89 = scalar_select %p86, %s87, %s88
    %p92 = pneg %p86
    %p93 = scmp.eq.s32.totalorder %s9, 1
    %p94 = por %p92, %p93
    %p95 = scmp.ne.s32.totalorder %s87, %s90
    %p96 = scmp.eq.s32.totalorder %s9, 0
    %p97 = por %p95, %p96
    %p98 = scmp.ne.s32.totalorder %s87, %s90
    %p99 = scmp.eq.s32.totalorder %s14, 1
    %p100 = por %p98, %p99
    %p101 = scmp.ne.s32.totalorder %s90, %s91
    %p102 = scmp.eq.s32.totalorder %s14, 0
    %p103 = por %p101, %p102
    %p104 = scmp.ne.s32.totalorder %s90, %s91
    %p105 = scmp.eq.s32.totalorder %s15, 1
    %p106 = por %p104, %p105
    %p108 = scmp.ne.s32.totalorder %s91, %s107
    %p109 = scmp.eq.s32.totalorder %s15, 0
    %p110 = por %p108, %p109
    %p111 = scmp.le.s32.totalorder 1, %s9
    %p112 = scmp.lt.s32.totalorder %s9, 3
    %p113 = pnand %p111, %p112
    %p114 = pneg %p113
    // Predicated region
    $region9: #{ddpm_forward.17} parent=5 // pred_check
      _
    $region10: #{ddpm_forward.17} parent=5 // pred_check_branch
      %116 = sbr.rel (%p113) target = $region12
    $region11: #{ddpm_forward.17} parent=5 // pred_region
      %s117 = ssub.s32 %s9, 1
      // Predicated region
      $region13: #{ddpm_forward.17} parent=11 // pred_check
        %p118 = pneg %p56
      $region14: #{ddpm_forward.17} parent=11 // pred_check_branch
        %120 = sbr.rel (%p118) target = $region16
      $region15: #{ddpm_forward.17} parent=11 // pred_region
        _
      $region16: #{ddpm_forward.17} parent=11 // pred_fallthru
        _
      // Predicated region
      $region17: #{ddpm_forward.17} parent=11 // pred_check
        %p121 = pneg %p77
      $region18: #{ddpm_forward.17} parent=11 // pred_check_branch
        %123 = sbr.rel (%p121) target = $region20
      $region19: #{ddpm_forward.17} parent=11 // pred_region
        _
      $region20: #{ddpm_forward.17} parent=11 // pred_fallthru
        _
    $region12: #{ddpm_forward.17} parent=5 // pred_fallthru
      _
    %p124 = scmp.lt.s32.totalorder %s9, 2
    // Predicated region
    $region21: #{ddpm_forward.17} parent=5 // pred_check
      %p125 = pneg %p124
    $region22: #{ddpm_forward.17} parent=5 // pred_check_branch
      %127 = sbr.rel (%p125) target = $region24
    $region23: #{ddpm_forward.17} parent=5 // pred_region
      // Predicated region
      $region25: #{ddpm_forward.17} parent=23 // pred_check
        %p128 = pneg %p29
      $region26: #{ddpm_forward.17} parent=23 // pred_check_branch
        %130 = sbr.rel (%p128) target = $region28
      $region27: #{ddpm_forward.17} parent=23 // pred_region
        %p131 = scmp.lt.s32.totalorder %s9, 1
        %s132 = scalar_select %p131, %s9, 1
        %s133 = smul.addr %s132, 8
        %s134 = smul.addr %s133, 8
        %s135 = scalar_lea.vmem %s0, %s134
      $region28: #{ddpm_forward.17} parent=23 // pred_fallthru
        _
    $region24: #{ddpm_forward.17} parent=5 // pred_fallthru
      _
    %p136 = scmp.le.s32.totalorder 1, %s9
    %p137 = scmp.lt.s32.totalorder %s9, 3
    %p138 = pnand %p136, %p137
    %p139 = pneg %p138
    // Predicated region
    $region29: #{ddpm_forward.17} parent=5 // pred_check
      _
    $region30: #{ddpm_forward.17} parent=5 // pred_check_branch
      %141 = sbr.rel (%p138) target = $region32
    $region31: #{ddpm_forward.17} parent=5 // pred_region
      %s142 = ssub.s32 %s9, 1
      %p143 = scmp.lt.s32.totalorder %s14, 1
      %s144 = scalar_select %p143, %s14, 1
      %s145 = smul.addr %s144, 8
      %s146 = smul.addr %s145, 8
      %s147 = scalar_lea.vmem %s0, %s146
      %p148 = pneg %p35
      %p149 = pneg %p32
      %p150 = pneg %p56
      %p151 = pneg %p53
      %p152 = pneg %p77
      %p153 = pneg %p74
      %p154 = pneg %p103
      %p155 = pneg %p100
      %p156 = scmp.lt.s32.totalorder %s14, 1
      %s157 = scalar_select %p156, %s14, 1
      %s158 = smul.addr %s157, 8
      %s159 = smul.addr %s158, 8
      %s160 = scalar_lea.vmem %s3, %s159
      %p161 = scmp.lt.s32.totalorder %s14, 1
      %s162 = scalar_select %p161, %s14, 1
      %s163 = smul.addr %s162, 8
      %s164 = smul.addr %s163, 8
      %s165 = scalar_lea.vmem %s0, %s164
      %p166 = scmp.lt.s32.totalorder %s14, 1
      %s167 = scalar_select %p166, %s14, 1
      %s168 = smul.addr %s167, 8
      %s169 = smul.addr %s168, 8
      %s170 = scalar_lea.vmem %s3, %s169
      %v171 = vld [vmem:[%s165] sm:$0xff]
      %v172 = vld [vmem:[%s165 + $0x8] sm:$0xff]
      %v173 = vld [vmem:[%s165 + $0x10] sm:$0xff]
      %v174 = vld [vmem:[%s165 + $0x18] sm:$0xff]
      %v175 = vld [vmem:[%s165 + $0x20] sm:$0xff]
      %v176 = vld [vmem:[%s165 + $0x28] sm:$0xff]
      %v177 = vld [vmem:[%s165 + $0x30] sm:$0xff]
      %v178 = vld [vmem:[%s165 + $0x38] sm:$0xff]
      %v179 = vld [vmem:[%s1] sm:$0x1]
      %v181 = vlaneseq
      %v182 = vshrl.u32 %v181, 7
      %v183 = vsub.s32 0, %v182
      %v184 = vrot.slane %v179, %v183
      %v186 = vmul.f32 %v171, %v184
      %v187 = vmul.f32 %v172, %v184
      %v188 = vmul.f32 %v173, %v184
      %v189 = vmul.f32 %v174, %v184
      %v190 = vmul.f32 %v175, %v184
      %v191 = vmul.f32 %v176, %v184
      %v192 = vmul.f32 %v177, %v184
      %v193 = vmul.f32 %v178, %v184
      %v194 = vld [vmem:[%s2] sm:$0x1]
      %v196 = vlaneseq
      %v197 = vshrl.u32 %v196, 7
      %v198 = vsub.s32 0, %v197
      %v199 = vrot.slane %v194, %v198
      %v201 = vadd.f32 %v186, %v199
      %v202 = vadd.f32 %v187, %v199
      %v203 = vadd.f32 %v188, %v199
      %v204 = vadd.f32 %v189, %v199
      %v205 = vadd.f32 %v190, %v199
      %v206 = vadd.f32 %v191, %v199
      %v207 = vadd.f32 %v192, %v199
      %v208 = vadd.f32 %v193, %v199
      %v209 = vmax.f32 %v201, 0.0
      %v210 = vmax.f32 %v202, 0.0
      %v211 = vmax.f32 %v203, 0.0
      %v212 = vmax.f32 %v204, 0.0
      %v213 = vmax.f32 %v205, 0.0
      %v214 = vmax.f32 %v206, 0.0
      %v215 = vmax.f32 %v207, 0.0
      %v216 = vmax.f32 %v208, 0.0
      %vm217 = vcmask 261120
      %218 = vst.msk [vmem:[%s170] sm:$0xff] %vm217, %v209
      %219 = vst.msk [vmem:[%s170 + $0x8] sm:$0xff] %vm217, %v210
      %220 = vst.msk [vmem:[%s170 + $0x10] sm:$0xff] %vm217, %v211
      %221 = vst.msk [vmem:[%s170 + $0x18] sm:$0xff] %vm217, %v212
      %222 = vst.msk [vmem:[%s170 + $0x20] sm:$0xff] %vm217, %v213
      %223 = vst.msk [vmem:[%s170 + $0x28] sm:$0xff] %vm217, %v214
      %224 = vst.msk [vmem:[%s170 + $0x30] sm:$0xff] %vm217, %v215
      %225 = vst.msk [vmem:[%s170 + $0x38] sm:$0xff] %vm217, %v216
      %p226 = scmp.lt.s32.totalorder %s14, 1
      %s227 = scalar_select %p226, %s14, 1
      %s228 = smul.addr %s227, 8
      %s229 = smul.addr %s228, 8
      %s230 = scalar_lea.vmem %s3, %s229
      // Predicated region
      $region33: #{ddpm_forward.17} parent=31 // pred_check
        %p231 = pneg %p100
      $region34: #{ddpm_forward.17} parent=31 // pred_check_branch
        %233 = sbr.rel (%p231) target = $region36
      $region35: #{ddpm_forward.17} parent=31 // pred_region
        _
      $region36: #{ddpm_forward.17} parent=31 // pred_fallthru
        _
    $region32: #{ddpm_forward.17} parent=5 // pred_fallthru
      _
    %p234 = scmp.le.s32.totalorder 2, %s9
    // Predicated region
    $region37: #{ddpm_forward.17} parent=5 // pred_check
      %p235 = pneg %p234
    $region38: #{ddpm_forward.17} parent=5 // pred_check_branch
      %237 = sbr.rel (%p235) target = $region40
    $region39: #{ddpm_forward.17} parent=5 // pred_region
      %s238 = ssub.s32 %s9, 2
      // Predicated region
      $region41: #{ddpm_forward.17} parent=39 // pred_check
        %p239 = pneg %p106
      $region42: #{ddpm_forward.17} parent=39 // pred_check_branch
        %241 = sbr.rel (%p239) target = $region44
      $region43: #{ddpm_forward.17} parent=39 // pred_region
        %p242 = scmp.lt.s32.totalorder %s15, 1
        %s243 = scalar_select %p242, %s15, 1
        %s244 = smul.addr %s243, 8
        %s245 = smul.addr %s244, 8
        %s246 = scalar_lea.vmem %s3, %s245
      $region44: #{ddpm_forward.17} parent=39 // pred_fallthru
        _
    $region40: #{ddpm_forward.17} parent=5 // pred_fallthru
      _
  $region6: #{ddpm_forward.17} parent=0 // loop_footer
    %s13 = sadd.s32 1, %s9
  $region7: #{ddpm_forward.17} parent=0 // loop_footer_branch
    %8 = sbr.rel target = $region3
  $region8: #{ddpm_forward.17} parent=0 // loop_exit
    _

// kernel: ddpm_forward.19
$region0: #{ddpm_forward.19}
  #allocation0 [shape = 'u32[]', space=smem, size = 0x4, offset = 0x4, fixed_abs, tag = 'smem constant byte address 0x4 - core index']
  #allocation1 [shape = 'u32[144,128]{1,0:T(1,128)}', space=vmem, size = 0x12000, scoped, tag = 'internal scratch']
  %s0 = inlined_call_operand.vmem [shape: f32[2,16,64], index: 0, kind: input, shape index: {}]
  %s1 = inlined_call_operand.vmem [shape: f32[1,64], index: 1, kind: input, shape index: {}]
  %s2 = inlined_call_operand.vmem [shape: f32[1,64], index: 2, kind: input, shape index: {}]
  %s3 = inlined_call_operand.vmem [shape: f32[2,16,64], index: 3, kind: output, shape index: {}]
  %s4 = sld [smem:[#allocation0]]
  $region45: #{ddpm_forward.19} parent=0
    _
  %s6 = ssub.s32 1, %s4
  %s7 = scalar_select 0, %s6, %s4
  loop: start=0, step=1, limit=4
  $region2: #{ddpm_forward.19} parent=0 // loop_pre_header
    _
  $region3: #{ddpm_forward.19} parent=0 // loop_header
    %s9 = sphi 0, %s13
    %p10 = scmp.ge.s32.totalorder %s9, 4
    %s19 = sphi 0, %s21
    %s22 = sphi 0, %s19
    %s23 = sphi 0, %s22
    %s39 = sphi 0, %s23
    %s43 = sphi 0, %s43
    %s45 = sphi 0, %s43
    %s46 = sphi 0, %s45
    %s60 = sphi 0, %s46
    %s64 = sphi 0, %s64
    %s66 = sphi 0, %s64
    %s67 = sphi 0, %s66
    %s81 = sphi 0, %s67
    %s87 = sphi 0, %s89
    %s90 = sphi 0, %s87
    %s91 = sphi 0, %s90
    %s107 = sphi 0, %s91
  $region4: #{ddpm_forward.19} parent=0 // loop_header_branch
    %12 = sbr.rel (%p10) target = $region8
  $region5: #{ddpm_forward.19} parent=0 // loop_body
    %s14 = ssub.s32 %s9, 1
    %s15 = ssub.s32 %s9, 2
    %s16 = sadd.s32 %s9, 1
    %s17 = ssub.s32 %s9, %s16
    %p18 = scmp.eq.s32.totalorder %s17, 0
    %s20 = sadd.s32 %s19, 1
    %s21 = scalar_select %p18, %s19, %s20
    %p24 = pneg %p18
    %p25 = scmp.eq.s32.totalorder %s9, 1
    %p26 = por %p24, %p25
    %p27 = scmp.ne.s32.totalorder %s19, %s22
    %p28 = scmp.eq.s32.totalorder %s9, 0
    %p29 = por %p27, %p28
    %p30 = scmp.ne.s32.totalorder %s19, %s22
    %p31 = scmp.eq.s32.totalorder %s14, 1
    %p32 = por %p30, %p31
    %p33 = scmp.ne.s32.totalorder %s22, %s23
    %p34 = scmp.eq.s32.totalorder %s14, 0
    %p35 = por %p33, %p34
    %p36 = scmp.ne.s32.totalorder %s22, %s23
    %p37 = scmp.eq.s32.totalorder %s15, 1
    %p38 = por %p36, %p37
    %p40 = scmp.ne.s32.totalorder %s23, %s39
    %p41 = scmp.eq.s32.totalorder %s15, 0
    %p42 = por %p40, %p41
    %s44 = sadd.s32 %s43, 1
    %p47 = scmp.eq.s32.totalorder %s9, 1
    %p48 = scmp.ne.s32.totalorder %s43, %s45
    %p49 = scmp.eq.s32.totalorder %s9, 0
    %p50 = por %p48, %p49
    %p51 = scmp.ne.s32.totalorder %s43, %s45
    %p52 = scmp.eq.s32.totalorder %s14, 1
    %p53 = por %p51, %p52
    %p54 = scmp.ne.s32.totalorder %s45, %s46
    %p55 = scmp.eq.s32.totalorder %s14, 0
    %p56 = por %p54, %p55
    %p57 = scmp.ne.s32.totalorder %s45, %s46
    %p58 = scmp.eq.s32.totalorder %s15, 1
    %p59 = por %p57, %p58
    %p61 = scmp.ne.s32.totalorder %s46, %s60
    %p62 = scmp.eq.s32.totalorder %s15, 0
    %p63 = por %p61, %p62
    %s65 = sadd.s32 %s64, 1
    %p68 = scmp.eq.s32.totalorder %s9, 1
    %p69 = scmp.ne.s32.totalorder %s64, %s66
    %p70 = scmp.eq.s32.totalorder %s9, 0
    %p71 = por %p69, %p70
    %p72 = scmp.ne.s32.totalorder %s64, %s66
    %p73 = scmp.eq.s32.totalorder %s14, 1
    %p74 = por %p72, %p73
    %p75 = scmp.ne.s32.totalorder %s66, %s67
    %p76 = scmp.eq.s32.totalorder %s14, 0
    %p77 = por %p75, %p76
    %p78 = scmp.ne.s32.totalorder %s66, %s67
    %p79 = scmp.eq.s32.totalorder %s15, 1
    %p80 = por %p78, %p79
    %p82 = scmp.ne.s32.totalorder %s67, %s81
    %p83 = scmp.eq.s32.totalorder %s15, 0
    %p84 = por %p82, %p83
    %s85 = ssub.s32 %s9, %s16
    %p86 = scmp.eq.s32.totalorder %s85, 0
    %s88 = sadd.s32 %s87, 1
    %s89 = scalar_select %p86, %s87, %s88
    %p92 = pneg %p86
    %p93 = scmp.eq.s32.totalorder %s9, 1
    %p94 = por %p92, %p93
    %p95 = scmp.ne.s32.totalorder %s87, %s90
    %p96 = scmp.eq.s32.totalorder %s9, 0
    %p97 = por %p95, %p96
    %p98 = scmp.ne.s32.totalorder %s87, %s90
    %p99 = scmp.eq.s32.totalorder %s14, 1
    %p100 = por %p98, %p99
    %p101 = scmp.ne.s32.totalorder %s90, %s91
    %p102 = scmp.eq.s32.totalorder %s14, 0
    %p103 = por %p101, %p102
    %p104 = scmp.ne.s32.totalorder %s90, %s91
    %p105 = scmp.eq.s32.totalorder %s15, 1
    %p106 = por %p104, %p105
    %p108 = scmp.ne.s32.totalorder %s91, %s107
    %p109 = scmp.eq.s32.totalorder %s15, 0
    %p110 = por %p108, %p109
    %p111 = scmp.le.s32.totalorder 1, %s9
    %p112 = scmp.lt.s32.totalorder %s9, 3
    %p113 = pnand %p111, %p112
    %p114 = pneg %p113
    // Predicated region
    $region9: #{ddpm_forward.19} parent=5 // pred_check
      _
    $region10: #{ddpm_forward.19} parent=5 // pred_check_branch
      %116 = sbr.rel (%p113) target = $region12
    $region11: #{ddpm_forward.19} parent=5 // pred_region
      %s117 = ssub.s32 %s9, 1
      // Predicated region
      $region13: #{ddpm_forward.19} parent=11 // pred_check
        %p118 = pneg %p56
      $region14: #{ddpm_forward.19} parent=11 // pred_check_branch
        %120 = sbr.rel (%p118) target = $region16
      $region15: #{ddpm_forward.19} parent=11 // pred_region
        _
      $region16: #{ddpm_forward.19} parent=11 // pred_fallthru
        _
      // Predicated region
      $region17: #{ddpm_forward.19} parent=11 // pred_check
        %p121 = pneg %p77
      $region18: #{ddpm_forward.19} parent=11 // pred_check_branch
        %123 = sbr.rel (%p121) target = $region20
      $region19: #{ddpm_forward.19} parent=11 // pred_region
        _
      $region20: #{ddpm_forward.19} parent=11 // pred_fallthru
        _
    $region12: #{ddpm_forward.19} parent=5 // pred_fallthru
      _
    %p124 = scmp.lt.s32.totalorder %s9, 2
    // Predicated region
    $region21: #{ddpm_forward.19} parent=5 // pred_check
      %p125 = pneg %p124
    $region22: #{ddpm_forward.19} parent=5 // pred_check_branch
      %127 = sbr.rel (%p125) target = $region24
    $region23: #{ddpm_forward.19} parent=5 // pred_region
      // Predicated region
      $region25: #{ddpm_forward.19} parent=23 // pred_check
        %p128 = pneg %p29
      $region26: #{ddpm_forward.19} parent=23 // pred_check_branch
        %130 = sbr.rel (%p128) target = $region28
      $region27: #{ddpm_forward.19} parent=23 // pred_region
        %p131 = scmp.lt.s32.totalorder %s9, 1
        %s132 = scalar_select %p131, %s9, 1
        %s133 = smul.addr %s132, 2
        %s134 = smul.addr %s133, 8
        %s135 = scalar_lea.vmem %s0, %s134
      $region28: #{ddpm_forward.19} parent=23 // pred_fallthru
        _
    $region24: #{ddpm_forward.19} parent=5 // pred_fallthru
      _
    %p136 = scmp.le.s32.totalorder 1, %s9
    %p137 = scmp.lt.s32.totalorder %s9, 3
    %p138 = pnand %p136, %p137
    %p139 = pneg %p138
    // Predicated region
    $region29: #{ddpm_forward.19} parent=5 // pred_check
      _
    $region30: #{ddpm_forward.19} parent=5 // pred_check_branch
      %141 = sbr.rel (%p138) target = $region32
    $region31: #{ddpm_forward.19} parent=5 // pred_region
      %s142 = ssub.s32 %s9, 1
      %p143 = scmp.lt.s32.totalorder %s14, 1
      %s144 = scalar_select %p143, %s14, 1
      %s145 = smul.addr %s144, 2
      %s146 = smul.addr %s145, 8
      %s147 = scalar_lea.vmem %s0, %s146
      %p148 = pneg %p35
      %p149 = pneg %p32
      %p150 = pneg %p56
      %p151 = pneg %p53
      %p152 = pneg %p77
      %p153 = pneg %p74
      %p154 = pneg %p103
      %p155 = pneg %p100
      %p156 = scmp.lt.s32.totalorder %s14, 1
      %s157 = scalar_select %p156, %s14, 1
      %s158 = smul.addr %s157, 2
      %s159 = smul.addr %s158, 8
      %s160 = scalar_lea.vmem %s3, %s159
      %p161 = scmp.lt.s32.totalorder %s14, 1
      %s162 = scalar_select %p161, %s14, 1
      %s163 = smul.addr %s162, 2
      %s164 = smul.addr %s163, 8
      %s165 = scalar_lea.vmem %s0, %s164
      %p166 = scmp.lt.s32.totalorder %s14, 1
      %s167 = scalar_select %p166, %s14, 1
      %s168 = smul.addr %s167, 2
      %s169 = smul.addr %s168, 8
      %s170 = scalar_lea.vmem %s3, %s169
      %v171 = vld [vmem:[%s165] sm:$0xff]
      %v172 = vld [vmem:[%s165 + $0x8] sm:$0xff]
      %v173 = vld [vmem:[%s1] sm:$0x1]
      %v175 = vlaneseq
      %v176 = vshrl.u32 %v175, 7
      %v177 = vsub.s32 0, %v176
      %v178 = vrot.slane %v173, %v177
      %v180 = vmul.f32 %v171, %v178
      %v181 = vmul.f32 %v172, %v178
      %v182 = vld [vmem:[%s2] sm:$0x1]
      %v184 = vlaneseq
      %v185 = vshrl.u32 %v184, 7
      %v186 = vsub.s32 0, %v185
      %v187 = vrot.slane %v182, %v186
      %v189 = vadd.f32 %v180, %v187
      %v190 = vadd.f32 %v181, %v187
      %v191 = vmax.f32 %v189, 0.0
      %v192 = vmax.f32 %v190, 0.0
      %vm193 = vcmask 523264
      %194 = vst.msk [vmem:[%s170] sm:$0xff] %vm193, %v191
      %195 = vst.msk [vmem:[%s170 + $0x8] sm:$0xff] %vm193, %v192
      %p196 = scmp.lt.s32.totalorder %s14, 1
      %s197 = scalar_select %p196, %s14, 1
      %s198 = smul.addr %s197, 2
      %s199 = smul.addr %s198, 8
      %s200 = scalar_lea.vmem %s3, %s199
      // Predicated region
      $region33: #{ddpm_forward.19} parent=31 // pred_check
        %p201 = pneg %p100
      $region34: #{ddpm_forward.19} parent=31 // pred_check_branch
        %203 = sbr.rel (%p201) target = $region36
      $region35: #{ddpm_forward.19} parent=31 // pred_region
        _
      $region36: #{ddpm_forward.19} parent=31 // pred_fallthru
        _
    $region32: #{ddpm_forward.19} parent=5 // pred_fallthru
      _
    %p204 = scmp.le.s32.totalorder 2, %s9
    // Predicated region
    $region37: #{ddpm_forward.19} parent=5 // pred_check
      %p205 = pneg %p204
    $region38: #{ddpm_forward.19} parent=5 // pred_check_branch
      %207 = sbr.rel (%p205) target = $region40
    $region39: #{ddpm_forward.19} parent=5 // pred_region
      %s208 = ssub.s32 %s9, 2
      // Predicated region
      $region41: #{ddpm_forward.19} parent=39 // pred_check
        %p209 = pneg %p106
      $region42: #{ddpm_forward.19} parent=39 // pred_check_branch
        %211 = sbr.rel (%p209) target = $region44
      $region43: #{ddpm_forward.19} parent=39 // pred_region
        %p212 = scmp.lt.s32.totalorder %s15, 1
        %s213 = scalar_select %p212, %s15, 1
        %s214 = smul.addr %s213, 2
        %s215 = smul.addr %s214, 8
        %s216 = scalar_lea.vmem %s3, %s215
      $region44: #{ddpm_forward.19} parent=39 // pred_fallthru
        _
    $region40: #{ddpm_forward.19} parent=5 // pred_fallthru
      _
  $region6: #{ddpm_forward.19} parent=0 // loop_footer
    %s13 = sadd.s32 1, %s9
  $region7: #{ddpm_forward.19} parent=0 // loop_footer_branch
    %8 = sbr.rel target = $region3
  $region8: #{ddpm_forward.19} parent=0 // loop_exit
    _

// kernel: ddpm_forward.18
$region0: #{ddpm_forward.18}
  #allocation0 [shape = 'u32[]', space=smem, size = 0x4, offset = 0x4, fixed_abs, tag = 'smem constant byte address 0x4 - core index']
  #allocation1 [shape = 'u32[144,128]{1,0:T(1,128)}', space=vmem, size = 0x12000, scoped, tag = 'internal scratch']
  %s0 = inlined_call_operand.vmem [shape: bf16[2,16,288], index: 0, kind: input, shape index: {}]
  %s1 = inlined_call_operand.vmem [shape: bf16[288,64], index: 1, kind: input, shape index: {}]
  %s2 = inlined_call_operand.vmem [shape: f32[2,16,64], index: 2, kind: output, shape index: {0}]
  %s3 = inlined_call_operand.vmem [shape: f32[2,1,64], index: 3, kind: output, shape index: {1}]
  %s4 = inlined_call_operand.vmem [shape: f32[2,1,64], index: 4, kind: output, shape index: {2}]
  %5 = xla_tuple %s2, %s3, %s4
  %s6 = sld [smem:[#allocation0]]
  $region57: #{ddpm_forward.18} parent=0
    _
  %s8 = ssub.s32 1, %s6
  %s9 = scalar_select 0, %s8, %s6
  loop: start=0, step=1, limit=4
  $region2: #{ddpm_forward.18} parent=0 // loop_pre_header
    _
  $region3: #{ddpm_forward.18} parent=0 // loop_header
    %s11 = sphi 0, %s15
    %p12 = scmp.ge.s32.totalorder %s11, 4
    %s21 = sphi 0, %s23
    %s24 = sphi 0, %s21
    %s25 = sphi 0, %s24
    %s41 = sphi 0, %s25
    %s45 = sphi 0, %s45
    %s47 = sphi 0, %s45
    %s48 = sphi 0, %s47
    %s62 = sphi 0, %s48
    %s68 = sphi 0, %s70
    %s71 = sphi 0, %s68
    %s72 = sphi 0, %s71
    %s88 = sphi 0, %s72
    %s94 = sphi 0, %s96
    %s97 = sphi 0, %s94
    %s98 = sphi 0, %s97
    %s114 = sphi 0, %s98
    %s120 = sphi 0, %s122
    %s123 = sphi 0, %s120
    %s124 = sphi 0, %s123
    %s140 = sphi 0, %s124
  $region4: #{ddpm_forward.18} parent=0 // loop_header_branch
    %14 = sbr.rel (%p12) target = $region8
  $region5: #{ddpm_forward.18} parent=0 // loop_body
    %s16 = ssub.s32 %s11, 1
    %s17 = ssub.s32 %s11, 2
    %s18 = sadd.s32 %s11, 1
    %s19 = ssub.s32 %s11, %s18
    %p20 = scmp.eq.s32.totalorder %s19, 0
    %s22 = sadd.s32 %s21, 1
    %s23 = scalar_select %p20, %s21, %s22
    %p26 = pneg %p20
    %p27 = scmp.eq.s32.totalorder %s11, 1
    %p28 = por %p26, %p27
    %p29 = scmp.ne.s32.totalorder %s21, %s24
    %p30 = scmp.eq.s32.totalorder %s11, 0
    %p31 = por %p29, %p30
    %p32 = scmp.ne.s32.totalorder %s21, %s24
    %p33 = scmp.eq.s32.totalorder %s16, 1
    %p34 = por %p32, %p33
    %p35 = scmp.ne.s32.totalorder %s24, %s25
    %p36 = scmp.eq.s32.totalorder %s16, 0
    %p37 = por %p35, %p36
    %p38 = scmp.ne.s32.totalorder %s24, %s25
    %p39 = scmp.eq.s32.totalorder %s17, 1
    %p40 = por %p38, %p39
    %p42 = scmp.ne.s32.totalorder %s25, %s41
    %p43 = scmp.eq.s32.totalorder %s17, 0
    %p44 = por %p42, %p43
    %s46 = sadd.s32 %s45, 1
    %p49 = scmp.eq.s32.totalorder %s11, 1
    %p50 = scmp.ne.s32.totalorder %s45, %s47
    %p51 = scmp.eq.s32.totalorder %s11, 0
    %p52 = por %p50, %p51
    %p53 = scmp.ne.s32.totalorder %s45, %s47
    %p54 = scmp.eq.s32.totalorder %s16, 1
    %p55 = por %p53, %p54
    %p56 = scmp.ne.s32.totalorder %s47, %s48
    %p57 = scmp.eq.s32.totalorder %s16, 0
    %p58 = por %p56, %p57
    %p59 = scmp.ne.s32.totalorder %s47, %s48
    %p60 = scmp.eq.s32.totalorder %s17, 1
    %p61 = por %p59, %p60
    %p63 = scmp.ne.s32.totalorder %s48, %s62
    %p64 = scmp.eq.s32.totalorder %s17, 0
    %p65 = por %p63, %p64
    %s66 = ssub.s32 %s11, %s18
    %p67 = scmp.eq.s32.totalorder %s66, 0
    %s69 = sadd.s32 %s68, 1
    %s70 = scalar_select %p67, %s68, %s69
    %p73 = pneg %p67
    %p74 = scmp.eq.s32.totalorder %s11, 1
    %p75 = por %p73, %p74
    %p76 = scmp.ne.s32.totalorder %s68, %s71
    %p77 = scmp.eq.s32.totalorder %s11, 0
    %p78 = por %p76, %p77
    %p79 = scmp.ne.s32.totalorder %s68, %s71
    %p80 = scmp.eq.s32.totalorder %s16, 1
    %p81 = por %p79, %p80
    %p82 = scmp.ne.s32.totalorder %s71, %s72
    %p83 = scmp.eq.s32.totalorder %s16, 0
    %p84 = por %p82, %p83
    %p85 = scmp.ne.s32.totalorder %s71, %s72
    %p86 = scmp.eq.s32.totalorder %s17, 1
    %p87 = por %p85, %p86
    %p89 = scmp.ne.s32.totalorder %s72, %s88
    %p90 = scmp.eq.s32.totalorder %s17, 0
    %p91 = por %p89, %p90
    %s92 = ssub.s32 %s11, %s18
    %p93 = scmp.eq.s32.totalorder %s92, 0
    %s95 = sadd.s32 %s94, 1
    %s96 = scalar_select %p93, %s94, %s95
    %p99 = pneg %p93
    %p100 = scmp.eq.s32.totalorder %s11, 1
    %p101 = por %p99, %p100
    %p102 = scmp.ne.s32.totalorder %s94, %s97
    %p103 = scmp.eq.s32.totalorder %s11, 0
    %p104 = por %p102, %p103
    %p105 = scmp.ne.s32.totalorder %s94, %s97
    %p106 = scmp.eq.s32.totalorder %s16, 1
    %p107 = por %p105, %p106
    %p108 = scmp.ne.s32.totalorder %s97, %s98
    %p109 = scmp.eq.s32.totalorder %s16, 0
    %p110 = por %p108, %p109
    %p111 = scmp.ne.s32.totalorder %s97, %s98
    %p112 = scmp.eq.s32.totalorder %s17, 1
    %p113 = por %p111, %p112
    %p115 = scmp.ne.s32.totalorder %s98, %s114
    %p116 = scmp.eq.s32.totalorder %s17, 0
    %p117 = por %p115, %p116
    %s118 = ssub.s32 %s11, %s18
    %p119 = scmp.eq.s32.totalorder %s118, 0
    %s121 = sadd.s32 %s120, 1
    %s122 = scalar_select %p119, %s120, %s121
    %p125 = pneg %p119
    %p126 = scmp.eq.s32.totalorder %s11, 1
    %p127 = por %p125, %p126
    %p128 = scmp.ne.s32.totalorder %s120, %s123
    %p129 = scmp.eq.s32.totalorder %s11, 0
    %p130 = por %p128, %p129
    %p131 = scmp.ne.s32.totalorder %s120, %s123
    %p132 = scmp.eq.s32.totalorder %s16, 1
    %p133 = por %p131, %p132
    %p134 = scmp.ne.s32.totalorder %s123, %s124
    %p135 = scmp.eq.s32.totalorder %s16, 0
    %p136 = por %p134, %p135
    %p137 = scmp.ne.s32.totalorder %s123, %s124
    %p138 = scmp.eq.s32.totalorder %s17, 1
    %p139 = por %p137, %p138
    %p141 = scmp.ne.s32.totalorder %s124, %s140
    %p142 = scmp.eq.s32.totalorder %s17, 0
    %p143 = por %p141, %p142
    %p144 = scmp.le.s32.totalorder 1, %s11
    %p145 = scmp.lt.s32.totalorder %s11, 3
    %p146 = pnand %p144, %p145
    %p147 = pneg %p146
    // Predicated region
    $region9: #{ddpm_forward.18} parent=5 // pred_check
      _
    $region10: #{ddpm_forward.18} parent=5 // pred_check_branch
      %149 = sbr.rel (%p146) target = $region12
    $region11: #{ddpm_forward.18} parent=5 // pred_region
      %s150 = ssub.s32 %s11, 1
      // Predicated region
      $region13: #{ddpm_forward.18} parent=11 // pred_check
        %p151 = pneg %p58
      $region14: #{ddpm_forward.18} parent=11 // pred_check_branch
        %153 = sbr.rel (%p151) target = $region16
      $region15: #{ddpm_forward.18} parent=11 // pred_region
        _
      $region16: #{ddpm_forward.18} parent=11 // pred_fallthru
        _
    $region12: #{ddpm_forward.18} parent=5 // pred_fallthru
      _
    %p154 = scmp.lt.s32.totalorder %s11, 2
    // Predicated region
    $region17: #{ddpm_forward.18} parent=5 // pred_check
      %p155 = pneg %p154
    $region18: #{ddpm_forward.18} parent=5 // pred_check_branch
      %157 = sbr.rel (%p155) target = $region20
    $region19: #{ddpm_forward.18} parent=5 // pred_region
      // Predicated region
      $region21: #{ddpm_forward.18} parent=19 // pred_check
        %p158 = pneg %p31
      $region22: #{ddpm_forward.18} parent=19 // pred_check_branch
        %160 = sbr.rel (%p158) target = $region24
      $region23: #{ddpm_forward.18} parent=19 // pred_region
        %p161 = scmp.lt.s32.totalorder %s11, 1
        %s162 = scalar_select %p161, %s11, 1
        %s163 = smul.addr %s162, 6
        %s164 = smul.addr %s163, 4
        %s165 = scalar_lea.vmem %s0, %s164
      $region24: #{ddpm_forward.18} parent=19 // pred_fallthru
        _
    $region20: #{ddpm_forward.18} parent=5 // pred_fallthru
      _
    %p166 = scmp.le.s32.totalorder 1, %s11
    %p167 = scmp.lt.s32.totalorder %s11, 3
    %p168 = pnand %p166, %p167
    %p169 = pneg %p168
    // Predicated region
    $region25: #{ddpm_forward.18} parent=5 // pred_check
      _
    $region26: #{ddpm_forward.18} parent=5 // pred_check_branch
      %171 = sbr.rel (%p168) target = $region28
    $region27: #{ddpm_forward.18} parent=5 // pred_region
      %s172 = ssub.s32 %s11, 1
      %p173 = scmp.lt.s32.totalorder %s16, 1
      %s174 = scalar_select %p173, %s16, 1
      %s175 = smul.addr %s174, 6
      %s176 = smul.addr %s175, 4
      %s177 = scalar_lea.vmem %s0, %s176
      %p178 = pneg %p37
      %p179 = pneg %p34
      %p180 = pneg %p58
      %p181 = pneg %p55
      %p182 = pneg %p84
      %p183 = pneg %p81
      %p184 = scmp.lt.s32.totalorder %s16, 1
      %s185 = scalar_select %p184, %s16, 1
      %s186 = smul.addr %s185, 2
      %s187 = smul.addr %s186, 8
      %s188 = scalar_lea.vmem %s2, %s187
      %p189 = pneg %p110
      %p190 = pneg %p107
      %p191 = scmp.lt.s32.totalorder %s16, 1
      %s192 = scalar_select %p191, %s16, 1
      %s193 = scalar_lea.vmem %s3, %s192
      %p194 = pneg %p136
      %p195 = pneg %p133
      %p196 = scmp.lt.s32.totalorder %s16, 1
      %s197 = scalar_select %p196, %s16, 1
      %s198 = scalar_lea.vmem %s4, %s197
      %p199 = scmp.lt.s32.totalorder %s16, 1
      %s200 = scalar_select %p199, %s16, 1
      %s201 = smul.addr %s200, 6
      %s202 = smul.addr %s201, 4
      %s203 = scalar_lea.vmem %s0, %s202
      %p204 = scmp.lt.s32.totalorder %s16, 1
      %s205 = scalar_select %p204, %s16, 1
      %s206 = smul.addr %s205, 2
      %s207 = smul.addr %s206, 8
      %s208 = scalar_lea.vmem %s2, %s207
      %p209 = scmp.lt.s32.totalorder %s16, 1
      %s210 = scalar_select %p209, %s16, 1
      %s211 = scalar_lea.vmem %s3, %s210
      %p212 = scmp.lt.s32.totalorder %s16, 1
      %s213 = scalar_select %p212, %s16, 1
      %s214 = scalar_lea.vmem %s4, %s213
      %v216 = vld [vmem:[%s203] sm:$0xff]
      %v217 = vld [vmem:[%s203 + $0x8] sm:$0xf]
      %v218 = vld [vmem:[%s203 + $0xc] sm:$0xff]
      %v219 = vld [vmem:[%s203 + $0x14] sm:$0xf]
      %v220 = vld [vmem:[%s1] sm:$0xf]
      %v221 = vld [vmem:[%s1 + $0x4] sm:$0xf]
      %v222 = vld [vmem:[%s1 + $0x8] sm:$0xf]
      %v223 = vld [vmem:[%s1 + $0xc] sm:$0xf]
      %v224 = vld [vmem:[%s1 + $0x10] sm:$0xf]
      %v225 = vld [vmem:[%s1 + $0x14] sm:$0xf]
      %v226 = vld [vmem:[%s1 + $0x18] sm:$0xf]
      %v227 = vld [vmem:[%s1 + $0x1c] sm:$0xf]
      %v228 = vld [vmem:[%s1 + $0x20] sm:$0xf]
      %v229 = vld [vmem:[%s1 + $0x24] sm:$0xf]
      %v230 = vld [vmem:[%s1 + $0x28] sm:$0xf]
      %v231 = vld [vmem:[%s1 + $0x2c] sm:$0xf]
      %v232 = vld [vmem:[%s1 + $0x30] sm:$0xf]
      %v233 = vld [vmem:[%s1 + $0x34] sm:$0xf]
      %v234 = vld [vmem:[%s1 + $0x38] sm:$0xf]
      %v235 = vld [vmem:[%s1 + $0x3c] sm:$0xf]
      %v236 = vld [vmem:[%s1 + $0x40] sm:$0xf]
      %v237 = vld [vmem:[%s1 + $0x44] sm:$0xf]
      %v238 = vld [vmem:[%s1 + $0x48] sm:$0xf]
      %v239 = vld [vmem:[%s1 + $0x4c] sm:$0xf]
      %v240 = vld [vmem:[%s1 + $0x50] sm:$0xf]
      %v241 = vld [vmem:[%s1 + $0x54] sm:$0xf]
      %v242 = vld [vmem:[%s1 + $0x58] sm:$0xf]
      %v243 = vld [vmem:[%s1 + $0x5c] sm:$0xf]
      %v244 = vld [vmem:[%s1 + $0x60] sm:$0xf]
      %v245 = vld [vmem:[%s1 + $0x64] sm:$0xf]
      %v246 = vld [vmem:[%s1 + $0x68] sm:$0xf]
      %v247 = vld [vmem:[%s1 + $0x6c] sm:$0xf]
      %v248 = vld [vmem:[%s1 + $0x70] sm:$0xf]
      %v249 = vld [vmem:[%s1 + $0x74] sm:$0xf]
      %v250 = vld [vmem:[%s1 + $0x78] sm:$0xf]
      %v251 = vld [vmem:[%s1 + $0x7c] sm:$0xf]
      %v252 = vld [vmem:[%s1 + $0x80] sm:$0xf]
      %v253 = vld [vmem:[%s1 + $0x84] sm:$0xf]
      %v254 = vld [vmem:[%s1 + $0x88] sm:$0xf]
      %v255 = vld [vmem:[%s1 + $0x8c] sm:$0xf]
      %v260 = vunpack.c.l.b16 %v216
      %v261 = vunpack.c.h.b16 %v216
      %v262 = vunpack.c.l.b16 %v217
      %v263 = vunpack.c.l.b16 %v218
      %v264 = vunpack.c.h.b16 %v218
      %v265 = vunpack.c.l.b16 %v219
      %v266 = vpack.c.b16 %v263, %v260
      %v267 = vpack.c.b16 %v264, %v261
      %v268 = vpack.c.b16 %v265, %v262
      %v307 = vunpack.c.l.b16 %v220
      %v308 = vunpack.c.l.b16 %v221
      %v309 = vunpack.c.l.b16 %v222
      %v310 = vunpack.c.l.b16 %v223
      %v311 = vunpack.c.l.b16 %v224
      %v312 = vunpack.c.l.b16 %v225
      %v313 = vunpack.c.l.b16 %v226
      %v314 = vunpack.c.l.b16 %v227
      %v315 = vunpack.c.l.b16 %v228
      %v316 = vunpack.c.l.b16 %v229
      %v317 = vunpack.c.l.b16 %v230
      %v318 = vunpack.c.l.b16 %v231
      %v319 = vunpack.c.l.b16 %v232
      %v320 = vunpack.c.l.b16 %v233
      %v321 = vunpack.c.l.b16 %v234
      %v322 = vunpack.c.l.b16 %v235
      %v323 = vunpack.c.l.b16 %v236
      %v324 = vunpack.c.l.b16 %v237
      %v325 = vunpack.c.l.b16 %v238
      %v326 = vunpack.c.l.b16 %v239
      %v327 = vunpack.c.l.b16 %v240
      %v328 = vunpack.c.l.b16 %v241
      %v329 = vunpack.c.l.b16 %v242
      %v330 = vunpack.c.l.b16 %v243
      %v331 = vunpack.c.l.b16 %v244
      %v332 = vunpack.c.l.b16 %v245
      %v333 = vunpack.c.l.b16 %v246
      %v334 = vunpack.c.l.b16 %v247
      %v335 = vunpack.c.l.b16 %v248
      %v336 = vunpack.c.l.b16 %v249
      %v337 = vunpack.c.l.b16 %v250
      %v338 = vunpack.c.l.b16 %v251
      %v339 = vunpack.c.l.b16 %v252
      %v340 = vunpack.c.l.b16 %v253
      %v341 = vunpack.c.l.b16 %v254
      %v342 = vunpack.c.l.b16 %v255
      %v343 = vpack.c.b16 %v308, %v307
      %v344 = vpack.c.b16 %v310, %v309
      %v345 = vpack.c.b16 %v312, %v311
      %v346 = vpack.c.b16 %v314, %v313
      %v347 = vpack.c.b16 %v316, %v315
      %v348 = vpack.c.b16 %v318, %v317
      %v349 = vpack.c.b16 %v320, %v319
      %v350 = vpack.c.b16 %v322, %v321
      %v351 = vpack.c.b16 %v324, %v323
      %v352 = vpack.c.b16 %v326, %v325
      %v353 = vpack.c.b16 %v328, %v327
      %v354 = vpack.c.b16 %v330, %v329
      %v355 = vpack.c.b16 %v332, %v331
      %v356 = vpack.c.b16 %v334, %v333
      %v357 = vpack.c.b16 %v336, %v335
      %v358 = vpack.c.b16 %v338, %v337
      %v359 = vpack.c.b16 %v340, %v339
      %v360 = vpack.c.b16 %v342, %v341
      %vm379 = vcmask 261120
      %v381 = vsel %vm379, %v268, 0
      %383 = vmatprep.subr.bf16.mxu0 0
      %384 = vmatpush1.bf16.msra.mxu0 %v343
      %385 = vmatprep.subr.bf16.mxu0 0
      %386 = vmatpush1.bf16.msra.mxu0 %v344
      %387 = vmatprep.subr.bf16.mxu0 0
      %388 = vmatpush1.bf16.msra.mxu0 %v345
      %389 = vmatprep.subr.bf16.mxu0 0
      %390 = vmatpush1.bf16.msra.mxu0 %v346
      %391 = vmatprep.subr.bf16.mxu0 0
      %392 = vmatpush1.bf16.msra.mxu0 %v347
      %393 = vmatprep.subr.bf16.mxu0 0
      %394 = vmatpush1.bf16.msra.mxu0 %v348
      %395 = vmatprep.subr.bf16.mxu0 0
      %396 = vmatpush1.bf16.msra.mxu0 %v349
      %397 = vmatprep.subr.bf16.mxu0 0
      %398 = vmatpush1.bf16.msra.mxu0 %v350
      %399 = vmatprep.subr.bf16.mxu0 0
      %400 = vmatpush1.bf16.msra.mxu0 %v351
      %401 = vmatprep.subr.bf16.mxu0 0
      %402 = vmatpush1.bf16.msra.mxu0 %v352
      %403 = vmatprep.subr.bf16.mxu0 0
      %404 = vmatpush1.bf16.msra.mxu0 %v353
      %405 = vmatprep.subr.bf16.mxu0 0
      %406 = vmatpush1.bf16.msra.mxu0 %v354
      %407 = vmatprep.subr.bf16.mxu0 0
      %408 = vmatpush1.bf16.msra.mxu0 %v355
      %409 = vmatprep.subr.bf16.mxu0 0
      %410 = vmatpush1.bf16.msra.mxu0 %v356
      %411 = vmatprep.subr.bf16.mxu0 0
      %412 = vmatpush1.bf16.msra.mxu0 %v357
      %413 = vmatprep.subr.bf16.mxu0 0
      %414 = vmatpush1.bf16.msra.mxu0 %v358
      %415 = vmatprep.mubr.bf16.mxu0 %v267
      %416 = vmatmul.mubr.bf16.gmra.mrb[0].mxu0 %v266
      %v417 = vpop.f32.mrb[0].mxu0
      %v418 = vadd.f32 0.0, %v417
      %v419 = vpop.f32.mrb[0].mxu0
      %v420 = vpop.f32.mrb[0].mxu0
      %v421 = vadd.f32 0.0, %v420
      %v422 = vpop.f32.mrb[0].mxu0
      %423 = vdwg.mxu0
      %424 = vmatprep.subr.bf16.mxu0 0
      %425 = vmatpush1.bf16.msra.mxu0 %v359
      %426 = vmatprep.subr.bf16.mxu0 0
      %427 = vmatpush1.bf16.msra.mxu0 %v360
      %428 = vmatprep.subr.bf16.mxu0 0
      %429 = vmatpush1.bf16.msra.mxu0 0
      %430 = vmatprep.subr.bf16.mxu0 0
      %431 = vmatpush1.bf16.msra.mxu0 0
      %432 = vmatprep.subr.bf16.mxu0 0
      %433 = vmatpush1.bf16.msra.mxu0 0
      %434 = vmatprep.subr.bf16.mxu0 0
      %435 = vmatpush1.bf16.msra.mxu0 0
      %436 = vmatprep.subr.bf16.mxu0 0
      %437 = vmatpush1.bf16.msra.mxu0 0
      %438 = vmatprep.subr.bf16.mxu0 0
      %439 = vmatpush1.bf16.msra.mxu0 0
      %440 = vmatprep.subr.bf16.mxu0 0
      %441 = vmatpush1.bf16.msra.mxu0 0
      %442 = vmatprep.subr.bf16.mxu0 0
      %443 = vmatpush1.bf16.msra.mxu0 0
      %444 = vmatprep.subr.bf16.mxu0 0
      %445 = vmatpush1.bf16.msra.mxu0 0
      %446 = vmatprep.subr.bf16.mxu0 0
      %447 = vmatpush1.bf16.msra.mxu0 0
      %448 = vmatprep.subr.bf16.mxu0 0
      %449 = vmatpush1.bf16.msra.mxu0 0
      %450 = vmatprep.subr.bf16.mxu0 0
      %451 = vmatpush1.bf16.msra.mxu0 0
      %452 = vmatprep.subr.bf16.mxu0 0
      %453 = vmatpush1.bf16.msra.mxu0 0
      %454 = vmatprep.subr.bf16.mxu0 0
      %455 = vmatpush1.bf16.msra.mxu0 0
      %456 = vmatprep.mubr.bf16.mxu0 0
      %457 = vmatmul.mubr.bf16.gmra.mrb[0].mxu0 %v381
      %v458 = vpop.f32.mrb[0].mxu0
      %v459 = vadd.f32 %v418, %v458
      %v460 = vpop.f32.mrb[0].mxu0
      %v461 = vpop.f32.mrb[0].mxu0
      %v462 = vadd.f32 %v421, %v461
      %v463 = vpop.f32.mrb[0].mxu0
      %464 = vdwg.mxu0
      %vm465 = vcmask 523264
      %466 = vst.msk [vmem:[%s208] sm:$0xff] %vm465, %v459
      %467 = vst.msk [vmem:[%s208 + $0x8] sm:$0xff] %vm465, %v462
      %v468 = vsel %vm465, %v459, 0.0
      %v469 = vsel %vm465, %v462, 0.0
      %v470 = vadd.f32 %v468, %v469
      %v471 = vrot.slane %v470, 4
      %v472 = vadd.f32 %v470, %v471
      %v473 = vrot.slane %v472, 2
      %v474 = vadd.f32 %v472, %v473
      %v475 = vrot.slane %v474, 1
      %v476 = vadd.f32 %v474, %v475
      %vm477 = vcmask 516096
      %478 = vst.msk [vmem:[%s211] sm:$0x1] %vm477, %v476
      %v479 = vmul.f32 %v459, %v459
      %v480 = vmul.f32 %v462, %v462
      %v481 = vsel %vm465, %v479, 0.0
      %v482 = vsel %vm465, %v480, 0.0
      %v483 = vadd.f32 %v481, %v482
      %v484 = vrot.slane %v483, 4
      %v485 = vadd.f32 %v483, %v484
      %v486 = vrot.slane %v485, 2
      %v487 = vadd.f32 %v485, %v486
      %v488 = vrot.slane %v487, 1
      %v489 = vadd.f32 %v487, %v488
      %490 = vst.msk [vmem:[%s214] sm:$0x1] %vm477, %v489
      %p491 = scmp.lt.s32.totalorder %s16, 1
      %s492 = scalar_select %p491, %s16, 1
      %s493 = smul.addr %s492, 2
      %s494 = smul.addr %s493, 8
      %s495 = scalar_lea.vmem %s2, %s494
      %p496 = scmp.lt.s32.totalorder %s16, 1
      %s497 = scalar_select %p496, %s16, 1
      %s498 = scalar_lea.vmem %s3, %s497
      %p499 = scmp.lt.s32.totalorder %s16, 1
      %s500 = scalar_select %p499, %s16, 1
      %s501 = scalar_lea.vmem %s4, %s500
      // Predicated region
      $region29: #{ddpm_forward.18} parent=27 // pred_check
        %p502 = pneg %p81
      $region30: #{ddpm_forward.18} parent=27 // pred_check_branch
        %504 = sbr.rel (%p502) target = $region32
      $region31: #{ddpm_forward.18} parent=27 // pred_region
        _
      $region32: #{ddpm_forward.18} parent=27 // pred_fallthru
        _
      // Predicated region
      $region33: #{ddpm_forward.18} parent=27 // pred_check
        %p505 = pneg %p107
      $region34: #{ddpm_forward.18} parent=27 // pred_check_branch
        %507 = sbr.rel (%p505) target = $region36
      $region35: #{ddpm_forward.18} parent=27 // pred_region
        _
      $region36: #{ddpm_forward.18} parent=27 // pred_fallthru
        _
      // Predicated region
      $region37: #{ddpm_forward.18} parent=27 // pred_check
        %p508 = pneg %p133
      $region38: #{ddpm_forward.18} parent=27 // pred_check_branch
        %510 = sbr.rel (%p508) target = $region40
      $region39: #{ddpm_forward.18} parent=27 // pred_region
        _
      $region40: #{ddpm_forward.18} parent=27 // pred_fallthru
        _
    $region28: #{ddpm_forward.18} parent=5 // pred_fallthru
      _
    %p511 = scmp.le.s32.totalorder 2, %s11
    // Predicated region
    $region41: #{ddpm_forward.18} parent=5 // pred_check
      %p512 = pneg %p511
    $region42: #{ddpm_forward.18} parent=5 // pred_check_branch
      %514 = sbr.rel (%p512) target = $region44
    $region43: #{ddpm_forward.18} parent=5 // pred_region
      %s515 = ssub.s32 %s11, 2
      // Predicated region
      $region45: #{ddpm_forward.18} parent=43 // pred_check
        %p516 = pneg %p87
      $region46: #{ddpm_forward.18} parent=43 // pred_check_branch
        %518 = sbr.rel (%p516) target = $region48
      $region47: #{ddpm_forward.18} parent=43 // pred_region
        %p519 = scmp.lt.s32.totalorder %s17, 1
        %s520 = scalar_select %p519, %s17, 1
        %s521 = smul.addr %s520, 2
        %s522 = smul.addr %s521, 8
        %s523 = scalar_lea.vmem %s2, %s522
      $region48: #{ddpm_forward.18} parent=43 // pred_fallthru
        _
      // Predicated region
      $region49: #{ddpm_forward.18} parent=43 // pred_check
        %p524 = pneg %p113
      $region50: #{ddpm_forward.18} parent=43 // pred_check_branch
        %526 = sbr.rel (%p524) target = $region52
      $region51: #{ddpm_forward.18} parent=43 // pred_region
        %p527 = scmp.lt.s32.totalorder %s17, 1
        %s528 = scalar_select %p527, %s17, 1
        %s529 = scalar_lea.vmem %s3, %s528
      $region52: #{ddpm_forward.18} parent=43 // pred_fallthru
        _
      // Predicated region
      $region53: #{ddpm_forward.18} parent=43 // pred_check
        %p530 = pneg %p139
      $region54: #{ddpm_forward.18} parent=43 // pred_check_branch
        %532 = sbr.rel (%p530) target = $region56
      $region55: #{ddpm_forward.18} parent=43 // pred_region
        %p533 = scmp.lt.s32.totalorder %s17, 1
        %s534 = scalar_select %p533, %s17, 1
        %s535 = scalar_lea.vmem %s4, %s534
      $region56: #{ddpm_forward.18} parent=43 // pred_fallthru
        _
    $region44: #{ddpm_forward.18} parent=5 // pred_fallthru
      _
  $region6: #{ddpm_forward.18} parent=0 // loop_footer
    %s15 = sadd.s32 1, %s11
  $region7: #{ddpm_forward.18} parent=0 // loop_footer_branch
    %10 = sbr.rel target = $region3
  $region8: #{ddpm_forward.18} parent=0 // loop_exit
    _

// kernel: ddpm_forward.21
$region0: #{ddpm_forward.21}
  #allocation0 [shape = 'u32[]', space=smem, size = 0x4, offset = 0x4, fixed_abs, tag = 'smem constant byte address 0x4 - core index']
  #allocation1 [shape = 'u32[144,128]{1,0:T(1,128)}', space=vmem, size = 0x12000, scoped, tag = 'internal scratch']
  %s0 = inlined_call_operand.vmem [shape: f32[2,4,64], index: 0, kind: input, shape index: {}]
  %s1 = inlined_call_operand.vmem [shape: f32[1,64], index: 1, kind: input, shape index: {}]
  %s2 = inlined_call_operand.vmem [shape: f32[1,64], index: 2, kind: input, shape index: {}]
  %s3 = inlined_call_operand.vmem [shape: f32[2,4,64], index: 3, kind: output, shape index: {}]
  %s4 = sld [smem:[#allocation0]]
  $region45: #{ddpm_forward.21} parent=0
    _
  %s6 = ssub.s32 1, %s4
  %s7 = scalar_select 0, %s6, %s4
  loop: start=0, step=1, limit=4
  $region2: #{ddpm_forward.21} parent=0 // loop_pre_header
    _
  $region3: #{ddpm_forward.21} parent=0 // loop_header
    %s9 = sphi 0, %s13
    %p10 = scmp.ge.s32.totalorder %s9, 4
    %s19 = sphi 0, %s21
    %s22 = sphi 0, %s19
    %s23 = sphi 0, %s22
    %s39 = sphi 0, %s23
    %s43 = sphi 0, %s43
    %s45 = sphi 0, %s43
    %s46 = sphi 0, %s45
    %s60 = sphi 0, %s46
    %s64 = sphi 0, %s64
    %s66 = sphi 0, %s64
    %s67 = sphi 0, %s66
    %s81 = sphi 0, %s67
    %s87 = sphi 0, %s89
    %s90 = sphi 0, %s87
    %s91 = sphi 0, %s90
    %s107 = sphi 0, %s91
  $region4: #{ddpm_forward.21} parent=0 // loop_header_branch
    %12 = sbr.rel (%p10) target = $region8
  $region5: #{ddpm_forward.21} parent=0 // loop_body
    %s14 = ssub.s32 %s9, 1
    %s15 = ssub.s32 %s9, 2
    %s16 = sadd.s32 %s9, 1
    %s17 = ssub.s32 %s9, %s16
    %p18 = scmp.eq.s32.totalorder %s17, 0
    %s20 = sadd.s32 %s19, 1
    %s21 = scalar_select %p18, %s19, %s20
    %p24 = pneg %p18
    %p25 = scmp.eq.s32.totalorder %s9, 1
    %p26 = por %p24, %p25
    %p27 = scmp.ne.s32.totalorder %s19, %s22
    %p28 = scmp.eq.s32.totalorder %s9, 0
    %p29 = por %p27, %p28
    %p30 = scmp.ne.s32.totalorder %s19, %s22
    %p31 = scmp.eq.s32.totalorder %s14, 1
    %p32 = por %p30, %p31
    %p33 = scmp.ne.s32.totalorder %s22, %s23
    %p34 = scmp.eq.s32.totalorder %s14, 0
    %p35 = por %p33, %p34
    %p36 = scmp.ne.s32.totalorder %s22, %s23
    %p37 = scmp.eq.s32.totalorder %s15, 1
    %p38 = por %p36, %p37
    %p40 = scmp.ne.s32.totalorder %s23, %s39
    %p41 = scmp.eq.s32.totalorder %s15, 0
    %p42 = por %p40, %p41
    %s44 = sadd.s32 %s43, 1
    %p47 = scmp.eq.s32.totalorder %s9, 1
    %p48 = scmp.ne.s32.totalorder %s43, %s45
    %p49 = scmp.eq.s32.totalorder %s9, 0
    %p50 = por %p48, %p49
    %p51 = scmp.ne.s32.totalorder %s43, %s45
    %p52 = scmp.eq.s32.totalorder %s14, 1
    %p53 = por %p51, %p52
    %p54 = scmp.ne.s32.totalorder %s45, %s46
    %p55 = scmp.eq.s32.totalorder %s14, 0
    %p56 = por %p54, %p55
    %p57 = scmp.ne.s32.totalorder %s45, %s46
    %p58 = scmp.eq.s32.totalorder %s15, 1
    %p59 = por %p57, %p58
    %p61 = scmp.ne.s32.totalorder %s46, %s60
    %p62 = scmp.eq.s32.totalorder %s15, 0
    %p63 = por %p61, %p62
    %s65 = sadd.s32 %s64, 1
    %p68 = scmp.eq.s32.totalorder %s9, 1
    %p69 = scmp.ne.s32.totalorder %s64, %s66
    %p70 = scmp.eq.s32.totalorder %s9, 0
    %p71 = por %p69, %p70
    %p72 = scmp.ne.s32.totalorder %s64, %s66
    %p73 = scmp.eq.s32.totalorder %s14, 1
    %p74 = por %p72, %p73
    %p75 = scmp.ne.s32.totalorder %s66, %s67
    %p76 = scmp.eq.s32.totalorder %s14, 0
    %p77 = por %p75, %p76
    %p78 = scmp.ne.s32.totalorder %s66, %s67
    %p79 = scmp.eq.s32.totalorder %s15, 1
    %p80 = por %p78, %p79
    %p82 = scmp.ne.s32.totalorder %s67, %s81
    %p83 = scmp.eq.s32.totalorder %s15, 0
    %p84 = por %p82, %p83
    %s85 = ssub.s32 %s9, %s16
    %p86 = scmp.eq.s32.totalorder %s85, 0
    %s88 = sadd.s32 %s87, 1
    %s89 = scalar_select %p86, %s87, %s88
    %p92 = pneg %p86
    %p93 = scmp.eq.s32.totalorder %s9, 1
    %p94 = por %p92, %p93
    %p95 = scmp.ne.s32.totalorder %s87, %s90
    %p96 = scmp.eq.s32.totalorder %s9, 0
    %p97 = por %p95, %p96
    %p98 = scmp.ne.s32.totalorder %s87, %s90
    %p99 = scmp.eq.s32.totalorder %s14, 1
    %p100 = por %p98, %p99
    %p101 = scmp.ne.s32.totalorder %s90, %s91
    %p102 = scmp.eq.s32.totalorder %s14, 0
    %p103 = por %p101, %p102
    %p104 = scmp.ne.s32.totalorder %s90, %s91
    %p105 = scmp.eq.s32.totalorder %s15, 1
    %p106 = por %p104, %p105
    %p108 = scmp.ne.s32.totalorder %s91, %s107
    %p109 = scmp.eq.s32.totalorder %s15, 0
    %p110 = por %p108, %p109
    %p111 = scmp.le.s32.totalorder 1, %s9
    %p112 = scmp.lt.s32.totalorder %s9, 3
    %p113 = pnand %p111, %p112
    %p114 = pneg %p113
    // Predicated region
    $region9: #{ddpm_forward.21} parent=5 // pred_check
      _
    $region10: #{ddpm_forward.21} parent=5 // pred_check_branch
      %116 = sbr.rel (%p113) target = $region12
    $region11: #{ddpm_forward.21} parent=5 // pred_region
      %s117 = ssub.s32 %s9, 1
      // Predicated region
      $region13: #{ddpm_forward.21} parent=11 // pred_check
        %p118 = pneg %p56
      $region14: #{ddpm_forward.21} parent=11 // pred_check_branch
        %120 = sbr.rel (%p118) target = $region16
      $region15: #{ddpm_forward.21} parent=11 // pred_region
        _
      $region16: #{ddpm_forward.21} parent=11 // pred_fallthru
        _
      // Predicated region
      $region17: #{ddpm_forward.21} parent=11 // pred_check
        %p121 = pneg %p77
      $region18: #{ddpm_forward.21} parent=11 // pred_check_branch
        %123 = sbr.rel (%p121) target = $region20
      $region19: #{ddpm_forward.21} parent=11 // pred_region
        _
      $region20: #{ddpm_forward.21} parent=11 // pred_fallthru
        _
    $region12: #{ddpm_forward.21} parent=5 // pred_fallthru
      _
    %p124 = scmp.lt.s32.totalorder %s9, 2
    // Predicated region
    $region21: #{ddpm_forward.21} parent=5 // pred_check
      %p125 = pneg %p124
    $region22: #{ddpm_forward.21} parent=5 // pred_check_branch
      %127 = sbr.rel (%p125) target = $region24
    $region23: #{ddpm_forward.21} parent=5 // pred_region
      // Predicated region
      $region25: #{ddpm_forward.21} parent=23 // pred_check
        %p128 = pneg %p29
      $region26: #{ddpm_forward.21} parent=23 // pred_check_branch
        %130 = sbr.rel (%p128) target = $region28
      $region27: #{ddpm_forward.21} parent=23 // pred_region
        %p131 = scmp.lt.s32.totalorder %s9, 1
        %s132 = scalar_select %p131, %s9, 1
        %s133 = smul.addr %s132, 4
        %s134 = scalar_lea.vmem %s0, %s133
      $region28: #{ddpm_forward.21} parent=23 // pred_fallthru
        _
    $region24: #{ddpm_forward.21} parent=5 // pred_fallthru
      _
    %p135 = scmp.le.s32.totalorder 1, %s9
    %p136 = scmp.lt.s32.totalorder %s9, 3
    %p137 = pnand %p135, %p136
    %p138 = pneg %p137
    // Predicated region
    $region29: #{ddpm_forward.21} parent=5 // pred_check
      _
    $region30: #{ddpm_forward.21} parent=5 // pred_check_branch
      %140 = sbr.rel (%p137) target = $region32
    $region31: #{ddpm_forward.21} parent=5 // pred_region
      %s141 = ssub.s32 %s9, 1
      %p142 = scmp.lt.s32.totalorder %s14, 1
      %s143 = scalar_select %p142, %s14, 1
      %s144 = smul.addr %s143, 4
      %s145 = scalar_lea.vmem %s0, %s144
      %p146 = pneg %p35
      %p147 = pneg %p32
      %p148 = pneg %p56
      %p149 = pneg %p53
      %p150 = pneg %p77
      %p151 = pneg %p74
      %p152 = pneg %p103
      %p153 = pneg %p100
      %p154 = scmp.lt.s32.totalorder %s14, 1
      %s155 = scalar_select %p154, %s14, 1
      %s156 = smul.addr %s155, 4
      %s157 = scalar_lea.vmem %s3, %s156
      %p158 = scmp.lt.s32.totalorder %s14, 1
      %s159 = scalar_select %p158, %s14, 1
      %s160 = smul.addr %s159, 4
      %s161 = scalar_lea.vmem %s0, %s160
      %p162 = scmp.lt.s32.totalorder %s14, 1
      %s163 = scalar_select %p162, %s14, 1
      %s164 = smul.addr %s163, 4
      %s165 = scalar_lea.vmem %s3, %s164
      %v166 = vld [vmem:[%s161] sm:$0xf]
      %v167 = vld [vmem:[%s1] sm:$0x1]
      %v169 = vlaneseq
      %v170 = vshrl.u32 %v169, 7
      %v171 = vsub.s32 0, %v170
      %v172 = vrot.slane %v167, %v171
      %v174 = vmul.f32 %v166, %v172
      %v175 = vld [vmem:[%s2] sm:$0x1]
      %v177 = vlaneseq
      %v178 = vshrl.u32 %v177, 7
      %v179 = vsub.s32 0, %v178
      %v180 = vrot.slane %v175, %v179
      %v182 = vadd.f32 %v174, %v180
      %v183 = vmax.f32 %v182, 0.0
      %vm184 = vcmask 519168
      %185 = vst.msk [vmem:[%s165] sm:$0xf] %vm184, %v183
      %p186 = scmp.lt.s32.totalorder %s14, 1
      %s187 = scalar_select %p186, %s14, 1
      %s188 = smul.addr %s187, 4
      %s189 = scalar_lea.vmem %s3, %s188
      // Predicated region
      $region33: #{ddpm_forward.21} parent=31 // pred_check
        %p190 = pneg %p100
      $region34: #{ddpm_forward.21} parent=31 // pred_check_branch
        %192 = sbr.rel (%p190) target = $region36
      $region35: #{ddpm_forward.21} parent=31 // pred_region
        _
      $region36: #{ddpm_forward.21} parent=31 // pred_fallthru
        _
    $region32: #{ddpm_forward.21} parent=5 // pred_fallthru
      _
    %p193 = scmp.le.s32.totalorder 2, %s9
    // Predicated region
    $region37: #{ddpm_forward.21} parent=5 // pred_check
      %p194 = pneg %p193
    $region38: #{ddpm_forward.21} parent=5 // pred_check_branch
      %196 = sbr.rel (%p194) target = $region40
    $region39: #{ddpm_forward.21} parent=5 // pred_region
      %s197 = ssub.s32 %s9, 2
      // Predicated region
      $region41: #{ddpm_forward.21} parent=39 // pred_check
        %p198 = pneg %p106
      $region42: #{ddpm_forward.21} parent=39 // pred_check_branch
        %200 = sbr.rel (%p198) target = $region44
      $region43: #{ddpm_forward.21} parent=39 // pred_region
        %p201 = scmp.lt.s32.totalorder %s15, 1
        %s202 = scalar_select %p201, %s15, 1
        %s203 = smul.addr %s202, 4
        %s204 = scalar_lea.vmem %s3, %s203
      $region44: #{ddpm_forward.21} parent=39 // pred_fallthru
        _
    $region40: #{ddpm_forward.21} parent=5 // pred_fallthru
      _
  $region6: #{ddpm_forward.21} parent=0 // loop_footer
    %s13 = sadd.s32 1, %s9
  $region7: #{ddpm_forward.21} parent=0 // loop_footer_branch
    %8 = sbr.rel target = $region3
  $region8: #{ddpm_forward.21} parent=0 // loop_exit
    _

// kernel: ddpm_forward.20
$region0: #{ddpm_forward.20}
  #allocation0 [shape = 'u32[]', space=smem, size = 0x4, offset = 0x4, fixed_abs, tag = 'smem constant byte address 0x4 - core index']
  #allocation1 [shape = 'u32[144,128]{1,0:T(1,128)}', space=vmem, size = 0x12000, scoped, tag = 'internal scratch']
  %s0 = inlined_call_operand.vmem [shape: bf16[2,4,576], index: 0, kind: input, shape index: {}]
  %s1 = inlined_call_operand.vmem [shape: bf16[576,64], index: 1, kind: input, shape index: {}]
  %s2 = inlined_call_operand.vmem [shape: f32[2,4,64], index: 2, kind: output, shape index: {0}]
  %s3 = inlined_call_operand.vmem [shape: f32[2,1,64], index: 3, kind: output, shape index: {1}]
  %s4 = inlined_call_operand.vmem [shape: f32[2,1,64], index: 4, kind: output, shape index: {2}]
  %5 = xla_tuple %s2, %s3, %s4
  %s6 = sld [smem:[#allocation0]]
  $region57: #{ddpm_forward.20} parent=0
    _
  %s8 = ssub.s32 1, %s6
  %s9 = scalar_select 0, %s8, %s6
  loop: start=0, step=1, limit=4
  $region2: #{ddpm_forward.20} parent=0 // loop_pre_header
    _
  $region3: #{ddpm_forward.20} parent=0 // loop_header
    %s11 = sphi 0, %s15
    %p12 = scmp.ge.s32.totalorder %s11, 4
    %s21 = sphi 0, %s23
    %s24 = sphi 0, %s21
    %s25 = sphi 0, %s24
    %s41 = sphi 0, %s25
    %s45 = sphi 0, %s45
    %s47 = sphi 0, %s45
    %s48 = sphi 0, %s47
    %s62 = sphi 0, %s48
    %s68 = sphi 0, %s70
    %s71 = sphi 0, %s68
    %s72 = sphi 0, %s71
    %s88 = sphi 0, %s72
    %s94 = sphi 0, %s96
    %s97 = sphi 0, %s94
    %s98 = sphi 0, %s97
    %s114 = sphi 0, %s98
    %s120 = sphi 0, %s122
    %s123 = sphi 0, %s120
    %s124 = sphi 0, %s123
    %s140 = sphi 0, %s124
  $region4: #{ddpm_forward.20} parent=0 // loop_header_branch
    %14 = sbr.rel (%p12) target = $region8
  $region5: #{ddpm_forward.20} parent=0 // loop_body
    %s16 = ssub.s32 %s11, 1
    %s17 = ssub.s32 %s11, 2
    %s18 = sadd.s32 %s11, 1
    %s19 = ssub.s32 %s11, %s18
    %p20 = scmp.eq.s32.totalorder %s19, 0
    %s22 = sadd.s32 %s21, 1
    %s23 = scalar_select %p20, %s21, %s22
    %p26 = pneg %p20
    %p27 = scmp.eq.s32.totalorder %s11, 1
    %p28 = por %p26, %p27
    %p29 = scmp.ne.s32.totalorder %s21, %s24
    %p30 = scmp.eq.s32.totalorder %s11, 0
    %p31 = por %p29, %p30
    %p32 = scmp.ne.s32.totalorder %s21, %s24
    %p33 = scmp.eq.s32.totalorder %s16, 1
    %p34 = por %p32, %p33
    %p35 = scmp.ne.s32.totalorder %s24, %s25
    %p36 = scmp.eq.s32.totalorder %s16, 0
    %p37 = por %p35, %p36
    %p38 = scmp.ne.s32.totalorder %s24, %s25
    %p39 = scmp.eq.s32.totalorder %s17, 1
    %p40 = por %p38, %p39
    %p42 = scmp.ne.s32.totalorder %s25, %s41
    %p43 = scmp.eq.s32.totalorder %s17, 0
    %p44 = por %p42, %p43
    %s46 = sadd.s32 %s45, 1
    %p49 = scmp.eq.s32.totalorder %s11, 1
    %p50 = scmp.ne.s32.totalorder %s45, %s47
    %p51 = scmp.eq.s32.totalorder %s11, 0
    %p52 = por %p50, %p51
    %p53 = scmp.ne.s32.totalorder %s45, %s47
    %p54 = scmp.eq.s32.totalorder %s16, 1
    %p55 = por %p53, %p54
    %p56 = scmp.ne.s32.totalorder %s47, %s48
    %p57 = scmp.eq.s32.totalorder %s16, 0
    %p58 = por %p56, %p57
    %p59 = scmp.ne.s32.totalorder %s47, %s48
    %p60 = scmp.eq.s32.totalorder %s17, 1
    %p61 = por %p59, %p60
    %p63 = scmp.ne.s32.totalorder %s48, %s62
    %p64 = scmp.eq.s32.totalorder %s17, 0
    %p65 = por %p63, %p64
    %s66 = ssub.s32 %s11, %s18
    %p67 = scmp.eq.s32.totalorder %s66, 0
    %s69 = sadd.s32 %s68, 1
    %s70 = scalar_select %p67, %s68, %s69
    %p73 = pneg %p67
    %p74 = scmp.eq.s32.totalorder %s11, 1
    %p75 = por %p73, %p74
    %p76 = scmp.ne.s32.totalorder %s68, %s71
    %p77 = scmp.eq.s32.totalorder %s11, 0
    %p78 = por %p76, %p77
    %p79 = scmp.ne.s32.totalorder %s68, %s71
    %p80 = scmp.eq.s32.totalorder %s16, 1
    %p81 = por %p79, %p80
    %p82 = scmp.ne.s32.totalorder %s71, %s72
    %p83 = scmp.eq.s32.totalorder %s16, 0
    %p84 = por %p82, %p83
    %p85 = scmp.ne.s32.totalorder %s71, %s72
    %p86 = scmp.eq.s32.totalorder %s17, 1
    %p87 = por %p85, %p86
    %p89 = scmp.ne.s32.totalorder %s72, %s88
    %p90 = scmp.eq.s32.totalorder %s17, 0
    %p91 = por %p89, %p90
    %s92 = ssub.s32 %s11, %s18
    %p93 = scmp.eq.s32.totalorder %s92, 0
    %s95 = sadd.s32 %s94, 1
    %s96 = scalar_select %p93, %s94, %s95
    %p99 = pneg %p93
    %p100 = scmp.eq.s32.totalorder %s11, 1
    %p101 = por %p99, %p100
    %p102 = scmp.ne.s32.totalorder %s94, %s97
    %p103 = scmp.eq.s32.totalorder %s11, 0
    %p104 = por %p102, %p103
    %p105 = scmp.ne.s32.totalorder %s94, %s97
    %p106 = scmp.eq.s32.totalorder %s16, 1
    %p107 = por %p105, %p106
    %p108 = scmp.ne.s32.totalorder %s97, %s98
    %p109 = scmp.eq.s32.totalorder %s16, 0
    %p110 = por %p108, %p109
    %p111 = scmp.ne.s32.totalorder %s97, %s98
    %p112 = scmp.eq.s32.totalorder %s17, 1
    %p113 = por %p111, %p112
    %p115 = scmp.ne.s32.totalorder %s98, %s114
    %p116 = scmp.eq.s32.totalorder %s17, 0
    %p117 = por %p115, %p116
    %s118 = ssub.s32 %s11, %s18
    %p119 = scmp.eq.s32.totalorder %s118, 0
    %s121 = sadd.s32 %s120, 1
    %s122 = scalar_select %p119, %s120, %s121
    %p125 = pneg %p119
    %p126 = scmp.eq.s32.totalorder %s11, 1
    %p127 = por %p125, %p126
    %p128 = scmp.ne.s32.totalorder %s120, %s123
    %p129 = scmp.eq.s32.totalorder %s11, 0
    %p130 = por %p128, %p129
    %p131 = scmp.ne.s32.totalorder %s120, %s123
    %p132 = scmp.eq.s32.totalorder %s16, 1
    %p133 = por %p131, %p132
    %p134 = scmp.ne.s32.totalorder %s123, %s124
    %p135 = scmp.eq.s32.totalorder %s16, 0
    %p136 = por %p134, %p135
    %p137 = scmp.ne.s32.totalorder %s123, %s124
    %p138 = scmp.eq.s32.totalorder %s17, 1
    %p139 = por %p137, %p138
    %p141 = scmp.ne.s32.totalorder %s124, %s140
    %p142 = scmp.eq.s32.totalorder %s17, 0
    %p143 = por %p141, %p142
    %p144 = scmp.le.s32.totalorder 1, %s11
    %p145 = scmp.lt.s32.totalorder %s11, 3
    %p146 = pnand %p144, %p145
    %p147 = pneg %p146
    // Predicated region
    $region9: #{ddpm_forward.20} parent=5 // pred_check
      _
    $region10: #{ddpm_forward.20} parent=5 // pred_check_branch
      %149 = sbr.rel (%p146) target = $region12
    $region11: #{ddpm_forward.20} parent=5 // pred_region
      %s150 = ssub.s32 %s11, 1
      // Predicated region
      $region13: #{ddpm_forward.20} parent=11 // pred_check
        %p151 = pneg %p58
      $region14: #{ddpm_forward.20} parent=11 // pred_check_branch
        %153 = sbr.rel (%p151) target = $region16
      $region15: #{ddpm_forward.20} parent=11 // pred_region
        _
      $region16: #{ddpm_forward.20} parent=11 // pred_fallthru
        _
    $region12: #{ddpm_forward.20} parent=5 // pred_fallthru
      _
    %p154 = scmp.lt.s32.totalorder %s11, 2
    // Predicated region
    $region17: #{ddpm_forward.20} parent=5 // pred_check
      %p155 = pneg %p154
    $region18: #{ddpm_forward.20} parent=5 // pred_check_branch
      %157 = sbr.rel (%p155) target = $region20
    $region19: #{ddpm_forward.20} parent=5 // pred_region
      // Predicated region
      $region21: #{ddpm_forward.20} parent=19 // pred_check
        %p158 = pneg %p31
      $region22: #{ddpm_forward.20} parent=19 // pred_check_branch
        %160 = sbr.rel (%p158) target = $region24
      $region23: #{ddpm_forward.20} parent=19 // pred_region
        %p161 = scmp.lt.s32.totalorder %s11, 1
        %s162 = scalar_select %p161, %s11, 1
        %s163 = smul.addr %s162, 5
        %s164 = smul.addr %s163, 2
        %s165 = scalar_lea.vmem %s0, %s164
      $region24: #{ddpm_forward.20} parent=19 // pred_fallthru
        _
    $region20: #{ddpm_forward.20} parent=5 // pred_fallthru
      _
    %p166 = scmp.le.s32.totalorder 1, %s11
    %p167 = scmp.lt.s32.totalorder %s11, 3
    %p168 = pnand %p166, %p167
    %p169 = pneg %p168
    // Predicated region
    $region25: #{ddpm_forward.20} parent=5 // pred_check
      _
    $region26: #{ddpm_forward.20} parent=5 // pred_check_branch
      %171 = sbr.rel (%p168) target = $region28
    $region27: #{ddpm_forward.20} parent=5 // pred_region
      %s172 = ssub.s32 %s11, 1
      %p173 = scmp.lt.s32.totalorder %s16, 1
      %s174 = scalar_select %p173, %s16, 1
      %s175 = smul.addr %s174, 5
      %s176 = smul.addr %s175, 2
      %s177 = scalar_lea.vmem %s0, %s176
      %p178 = pneg %p37
      %p179 = pneg %p34
      %p180 = pneg %p58
      %p181 = pneg %p55
      %p182 = pneg %p84
      %p183 = pneg %p81
      %p184 = scmp.lt.s32.totalorder %s16, 1
      %s185 = scalar_select %p184, %s16, 1
      %s186 = smul.addr %s185, 4
      %s187 = scalar_lea.vmem %s2, %s186
      %p188 = pneg %p110
      %p189 = pneg %p107
      %p190 = scmp.lt.s32.totalorder %s16, 1
      %s191 = scalar_select %p190, %s16, 1
      %s192 = scalar_lea.vmem %s3, %s191
      %p193 = pneg %p136
      %p194 = pneg %p133
      %p195 = scmp.lt.s32.totalorder %s16, 1
      %s196 = scalar_select %p195, %s16, 1
      %s197 = scalar_lea.vmem %s4, %s196
      %p198 = scmp.lt.s32.totalorder %s16, 1
      %s199 = scalar_select %p198, %s16, 1
      %s200 = smul.addr %s199, 5
      %s201 = smul.addr %s200, 2
      %s202 = scalar_lea.vmem %s0, %s201
      %p203 = scmp.lt.s32.totalorder %s16, 1
      %s204 = scalar_select %p203, %s16, 1
      %s205 = smul.addr %s204, 4
      %s206 = scalar_lea.vmem %s2, %s205
      %p207 = scmp.lt.s32.totalorder %s16, 1
      %s208 = scalar_select %p207, %s16, 1
      %s209 = scalar_lea.vmem %s3, %s208
      %p210 = scmp.lt.s32.totalorder %s16, 1
      %s211 = scalar_select %p210, %s16, 1
      %s212 = scalar_lea.vmem %s4, %s211
      %v214 = vld [vmem:[%s202] sm:$0xff]
      %v215 = vld [vmem:[%s202 + $0x8] sm:$0x3]
      %v216 = vld [vmem:[%s1] sm:$0xf]
      %v217 = vld [vmem:[%s1 + $0x4] sm:$0xf]
      %v218 = vld [vmem:[%s1 + $0x8] sm:$0xf]
      %v219 = vld [vmem:[%s1 + $0xc] sm:$0xf]
      %v220 = vld [vmem:[%s1 + $0x10] sm:$0xf]
      %v221 = vld [vmem:[%s1 + $0x14] sm:$0xf]
      %v222 = vld [vmem:[%s1 + $0x18] sm:$0xf]
      %v223 = vld [vmem:[%s1 + $0x1c] sm:$0xf]
      %v224 = vld [vmem:[%s1 + $0x20] sm:$0xf]
      %v225 = vld [vmem:[%s1 + $0x24] sm:$0xf]
      %v226 = vld [vmem:[%s1 + $0x28] sm:$0xf]
      %v227 = vld [vmem:[%s1 + $0x2c] sm:$0xf]
      %v228 = vld [vmem:[%s1 + $0x30] sm:$0xf]
      %v229 = vld [vmem:[%s1 + $0x34] sm:$0xf]
      %v230 = vld [vmem:[%s1 + $0x38] sm:$0xf]
      %v231 = vld [vmem:[%s1 + $0x3c] sm:$0xf]
      %v232 = vld [vmem:[%s1 + $0x40] sm:$0xf]
      %v233 = vld [vmem:[%s1 + $0x44] sm:$0xf]
      %v234 = vld [vmem:[%s1 + $0x48] sm:$0xf]
      %v235 = vld [vmem:[%s1 + $0x4c] sm:$0xf]
      %v236 = vld [vmem:[%s1 + $0x50] sm:$0xf]
      %v237 = vld [vmem:[%s1 + $0x54] sm:$0xf]
      %v238 = vld [vmem:[%s1 + $0x58] sm:$0xf]
      %v239 = vld [vmem:[%s1 + $0x5c] sm:$0xf]
      %v240 = vld [vmem:[%s1 + $0x60] sm:$0xf]
      %v241 = vld [vmem:[%s1 + $0x64] sm:$0xf]
      %v242 = vld [vmem:[%s1 + $0x68] sm:$0xf]
      %v243 = vld [vmem:[%s1 + $0x6c] sm:$0xf]
      %v244 = vld [vmem:[%s1 + $0x70] sm:$0xf]
      %v245 = vld [vmem:[%s1 + $0x74] sm:$0xf]
      %v246 = vld [vmem:[%s1 + $0x78] sm:$0xf]
      %v247 = vld [vmem:[%s1 + $0x7c] sm:$0xf]
      %v248 = vld [vmem:[%s1 + $0x80] sm:$0xf]
      %v249 = vld [vmem:[%s1 + $0x84] sm:$0xf]
      %v250 = vld [vmem:[%s1 + $0x88] sm:$0xf]
      %v251 = vld [vmem:[%s1 + $0x8c] sm:$0xf]
      %v252 = vld [vmem:[%s1 + $0x90] sm:$0xf]
      %v253 = vld [vmem:[%s1 + $0x94] sm:$0xf]
      %v254 = vld [vmem:[%s1 + $0x98] sm:$0xf]
      %v255 = vld [vmem:[%s1 + $0x9c] sm:$0xf]
      %v256 = vld [vmem:[%s1 + $0xa0] sm:$0xf]
      %v257 = vld [vmem:[%s1 + $0xa4] sm:$0xf]
      %v258 = vld [vmem:[%s1 + $0xa8] sm:$0xf]
      %v259 = vld [vmem:[%s1 + $0xac] sm:$0xf]
      %v260 = vld [vmem:[%s1 + $0xb0] sm:$0xf]
      %v261 = vld [vmem:[%s1 + $0xb4] sm:$0xf]
      %v262 = vld [vmem:[%s1 + $0xb8] sm:$0xf]
      %v263 = vld [vmem:[%s1 + $0xbc] sm:$0xf]
      %v264 = vld [vmem:[%s1 + $0xc0] sm:$0xf]
      %v265 = vld [vmem:[%s1 + $0xc4] sm:$0xf]
      %v266 = vld [vmem:[%s1 + $0xc8] sm:$0xf]
      %v267 = vld [vmem:[%s1 + $0xcc] sm:$0xf]
      %v268 = vld [vmem:[%s1 + $0xd0] sm:$0xf]
      %v269 = vld [vmem:[%s1 + $0xd4] sm:$0xf]
      %v270 = vld [vmem:[%s1 + $0xd8] sm:$0xf]
      %v271 = vld [vmem:[%s1 + $0xdc] sm:$0xf]
      %v272 = vld [vmem:[%s1 + $0xe0] sm:$0xf]
      %v273 = vld [vmem:[%s1 + $0xe4] sm:$0xf]
      %v274 = vld [vmem:[%s1 + $0xe8] sm:$0xf]
      %v275 = vld [vmem:[%s1 + $0xec] sm:$0xf]
      %v276 = vld [vmem:[%s1 + $0xf0] sm:$0xf]
      %v277 = vld [vmem:[%s1 + $0xf4] sm:$0xf]
      %v278 = vld [vmem:[%s1 + $0xf8] sm:$0xf]
      %v279 = vld [vmem:[%s1 + $0xfc] sm:$0xf]
      %v280 = vld [vmem:[%s1 + $0x100] sm:$0xf]
      %v281 = vld [vmem:[%s1 + $0x104] sm:$0xf]
      %v282 = vld [vmem:[%s1 + $0x108] sm:$0xf]
      %v283 = vld [vmem:[%s1 + $0x10c] sm:$0xf]
      %v284 = vld [vmem:[%s1 + $0x110] sm:$0xf]
      %v285 = vld [vmem:[%s1 + $0x114] sm:$0xf]
      %v286 = vld [vmem:[%s1 + $0x118] sm:$0xf]
      %v287 = vld [vmem:[%s1 + $0x11c] sm:$0xf]
      %v290 = vcombine.high %v214, %v214
      %v292 = vunpack.c.l.s4 1983009808
      %v293 = vunpack.c.0.s8 %v292
      %v294 = vlaneseq
      %v295 = vshrl.u32 %v294, 7
      %v296 = vsub.s32 %v293, %v295
      %v297 = vrot.slane %v214, %v296
      %v299 = vunpack.c.l.s4 1983009808
      %v300 = vunpack.c.0.s8 %v299
      %v301 = vlaneseq
      %v302 = vshrl.u32 %v301, 7
      %v303 = vsub.s32 %v300, %v302
      %v304 = vrot.slane %v290, %v303
      %v305 = vcombine.high %v297, %v297
      %v306 = vcombine.high %v304, %v304
      %v308 = vunpack.c.l.s4 1983009808
      %v309 = vunpack.c.0.s8 %v308
      %v310 = vlaneseq
      %v311 = vshrl.u32 %v310, 7
      %v312 = vsub.s32 %v309, %v311
      %v313 = vrot.slane %v215, %v312
      %v390 = vunpack.c.l.b16 %v216
      %v391 = vunpack.c.l.b16 %v217
      %v392 = vunpack.c.l.b16 %v218
      %v393 = vunpack.c.l.b16 %v219
      %v394 = vunpack.c.l.b16 %v220
      %v395 = vunpack.c.l.b16 %v221
      %v396 = vunpack.c.l.b16 %v222
      %v397 = vunpack.c.l.b16 %v223
      %v398 = vunpack.c.l.b16 %v224
      %v399 = vunpack.c.l.b16 %v225
      %v400 = vunpack.c.l.b16 %v226
      %v401 = vunpack.c.l.b16 %v227
      %v402 = vunpack.c.l.b16 %v228
      %v403 = vunpack.c.l.b16 %v229
      %v404 = vunpack.c.l.b16 %v230
      %v405 = vunpack.c.l.b16 %v231
      %v406 = vunpack.c.l.b16 %v232
      %v407 = vunpack.c.l.b16 %v233
      %v408 = vunpack.c.l.b16 %v234
      %v409 = vunpack.c.l.b16 %v235
      %v410 = vunpack.c.l.b16 %v236
      %v411 = vunpack.c.l.b16 %v237
      %v412 = vunpack.c.l.b16 %v238
      %v413 = vunpack.c.l.b16 %v239
      %v414 = vunpack.c.l.b16 %v240
      %v415 = vunpack.c.l.b16 %v241
      %v416 = vunpack.c.l.b16 %v242
      %v417 = vunpack.c.l.b16 %v243
      %v418 = vunpack.c.l.b16 %v244
      %v419 = vunpack.c.l.b16 %v245
      %v420 = vunpack.c.l.b16 %v246
      %v421 = vunpack.c.l.b16 %v247
      %v422 = vunpack.c.l.b16 %v248
      %v423 = vunpack.c.l.b16 %v249
      %v424 = vunpack.c.l.b16 %v250
      %v425 = vunpack.c.l.b16 %v251
      %v426 = vunpack.c.l.b16 %v252
      %v427 = vunpack.c.l.b16 %v253
      %v428 = vunpack.c.l.b16 %v254
      %v429 = vunpack.c.l.b16 %v255
      %v430 = vunpack.c.l.b16 %v256
      %v431 = vunpack.c.l.b16 %v257
      %v432 = vunpack.c.l.b16 %v258
      %v433 = vunpack.c.l.b16 %v259
      %v434 = vunpack.c.l.b16 %v260
      %v435 = vunpack.c.l.b16 %v261
      %v436 = vunpack.c.l.b16 %v262
      %v437 = vunpack.c.l.b16 %v263
      %v438 = vunpack.c.l.b16 %v264
      %v439 = vunpack.c.l.b16 %v265
      %v440 = vunpack.c.l.b16 %v266
      %v441 = vunpack.c.l.b16 %v267
      %v442 = vunpack.c.l.b16 %v268
      %v443 = vunpack.c.l.b16 %v269
      %v444 = vunpack.c.l.b16 %v270
      %v445 = vunpack.c.l.b16 %v271
      %v446 = vunpack.c.l.b16 %v272
      %v447 = vunpack.c.l.b16 %v273
      %v448 = vunpack.c.l.b16 %v274
      %v449 = vunpack.c.l.b16 %v275
      %v450 = vunpack.c.l.b16 %v276
      %v451 = vunpack.c.l.b16 %v277
      %v452 = vunpack.c.l.b16 %v278
      %v453 = vunpack.c.l.b16 %v279
      %v454 = vunpack.c.l.b16 %v280
      %v455 = vunpack.c.l.b16 %v281
      %v456 = vunpack.c.l.b16 %v282
      %v457 = vunpack.c.l.b16 %v283
      %v458 = vunpack.c.l.b16 %v284
      %v459 = vunpack.c.l.b16 %v285
      %v460 = vunpack.c.l.b16 %v286
      %v461 = vunpack.c.l.b16 %v287
      %v462 = vpack.c.b16 %v391, %v390
      %v463 = vpack.c.b16 %v393, %v392
      %v464 = vpack.c.b16 %v395, %v394
      %v465 = vpack.c.b16 %v397, %v396
      %v466 = vpack.c.b16 %v399, %v398
      %v467 = vpack.c.b16 %v401, %v400
      %v468 = vpack.c.b16 %v403, %v402
      %v469 = vpack.c.b16 %v405, %v404
      %v470 = vpack.c.b16 %v407, %v406
      %v471 = vpack.c.b16 %v409, %v408
      %v472 = vpack.c.b16 %v411, %v410
      %v473 = vpack.c.b16 %v413, %v412
      %v474 = vpack.c.b16 %v415, %v414
      %v475 = vpack.c.b16 %v417, %v416
      %v476 = vpack.c.b16 %v419, %v418
      %v477 = vpack.c.b16 %v421, %v420
      %v478 = vpack.c.b16 %v423, %v422
      %v479 = vpack.c.b16 %v425, %v424
      %v480 = vpack.c.b16 %v427, %v426
      %v481 = vpack.c.b16 %v429, %v428
      %v482 = vpack.c.b16 %v431, %v430
      %v483 = vpack.c.b16 %v433, %v432
      %v484 = vpack.c.b16 %v435, %v434
      %v485 = vpack.c.b16 %v437, %v436
      %v486 = vpack.c.b16 %v439, %v438
      %v487 = vpack.c.b16 %v441, %v440
      %v488 = vpack.c.b16 %v443, %v442
      %v489 = vpack.c.b16 %v445, %v444
      %v490 = vpack.c.b16 %v447, %v446
      %v491 = vpack.c.b16 %v449, %v448
      %v492 = vpack.c.b16 %v451, %v450
      %v493 = vpack.c.b16 %v453, %v452
      %v494 = vpack.c.b16 %v455, %v454
      %v495 = vpack.c.b16 %v457, %v456
      %v496 = vpack.c.b16 %v459, %v458
      %v497 = vpack.c.b16 %v461, %v460
      %vm534 = vcmask 523264
      %v536 = vsel %vm534, %v313, 0
      %538 = vmatprep.subr.bf16.mxu0 0
      %539 = vmatpush1.bf16.msra.mxu0 %v462
      %540 = vmatprep.subr.bf16.mxu0 0
      %541 = vmatpush1.bf16.msra.mxu0 %v463
      %542 = vmatprep.subr.bf16.mxu0 0
      %543 = vmatpush1.bf16.msra.mxu0 %v464
      %544 = vmatprep.subr.bf16.mxu0 0
      %545 = vmatpush1.bf16.msra.mxu0 %v465
      %546 = vmatprep.subr.bf16.mxu0 0
      %547 = vmatpush1.bf16.msra.mxu0 %v466
      %548 = vmatprep.subr.bf16.mxu0 0
      %549 = vmatpush1.bf16.msra.mxu0 %v467
      %550 = vmatprep.subr.bf16.mxu0 0
      %551 = vmatpush1.bf16.msra.mxu0 %v468
      %552 = vmatprep.subr.bf16.mxu0 0
      %553 = vmatpush1.bf16.msra.mxu0 %v469
      %554 = vmatprep.subr.bf16.mxu0 0
      %555 = vmatpush1.bf16.msra.mxu0 %v470
      %556 = vmatprep.subr.bf16.mxu0 0
      %557 = vmatpush1.bf16.msra.mxu0 %v471
      %558 = vmatprep.subr.bf16.mxu0 0
      %559 = vmatpush1.bf16.msra.mxu0 %v472
      %560 = vmatprep.subr.bf16.mxu0 0
      %561 = vmatpush1.bf16.msra.mxu0 %v473
      %562 = vmatprep.subr.bf16.mxu0 0
      %563 = vmatpush1.bf16.msra.mxu0 %v474
      %564 = vmatprep.subr.bf16.mxu0 0
      %565 = vmatpush1.bf16.msra.mxu0 %v475
      %566 = vmatprep.subr.bf16.mxu0 0
      %567 = vmatpush1.bf16.msra.mxu0 %v476
      %568 = vmatprep.subr.bf16.mxu0 0
      %569 = vmatpush1.bf16.msra.mxu0 %v477
      %570 = vmatprep.mubr.bf16.mxu0 %v305
      %571 = vmatmul.mubr.bf16.gmra.mrb[0].mxu0 %v297
      %v572 = vpop.f32.mrb[0].mxu0
      %v573 = vadd.f32 0.0, %v572
      %v574 = vpop.f32.mrb[0].mxu0
      %v575 = vpop.f32.mrb[0].mxu0
      %v576 = vpop.f32.mrb[0].mxu0
      %577 = vdwg.mxu0
      %578 = vmatprep.subr.bf16.mxu0 0
      %579 = vmatpush1.bf16.msra.mxu0 %v478
      %580 = vmatprep.subr.bf16.mxu0 0
      %581 = vmatpush1.bf16.msra.mxu0 %v479
      %582 = vmatprep.subr.bf16.mxu0 0
      %583 = vmatpush1.bf16.msra.mxu0 %v480
      %584 = vmatprep.subr.bf16.mxu0 0
      %585 = vmatpush1.bf16.msra.mxu0 %v481
      %586 = vmatprep.subr.bf16.mxu0 0
      %587 = vmatpush1.bf16.msra.mxu0 %v482
      %588 = vmatprep.subr.bf16.mxu0 0
      %589 = vmatpush1.bf16.msra.mxu0 %v483
      %590 = vmatprep.subr.bf16.mxu0 0
      %591 = vmatpush1.bf16.msra.mxu0 %v484
      %592 = vmatprep.subr.bf16.mxu0 0
      %593 = vmatpush1.bf16.msra.mxu0 %v485
      %594 = vmatprep.subr.bf16.mxu0 0
      %595 = vmatpush1.bf16.msra.mxu0 %v486
      %596 = vmatprep.subr.bf16.mxu0 0
      %597 = vmatpush1.bf16.msra.mxu0 %v487
      %598 = vmatprep.subr.bf16.mxu0 0
      %599 = vmatpush1.bf16.msra.mxu0 %v488
      %600 = vmatprep.subr.bf16.mxu0 0
      %601 = vmatpush1.bf16.msra.mxu0 %v489
      %602 = vmatprep.subr.bf16.mxu0 0
      %603 = vmatpush1.bf16.msra.mxu0 %v490
      %604 = vmatprep.subr.bf16.mxu0 0
      %605 = vmatpush1.bf16.msra.mxu0 %v491
      %606 = vmatprep.subr.bf16.mxu0 0
      %607 = vmatpush1.bf16.msra.mxu0 %v492
      %608 = vmatprep.subr.bf16.mxu0 0
      %609 = vmatpush1.bf16.msra.mxu0 %v493
      %610 = vmatprep.mubr.bf16.mxu0 %v306
      %611 = vmatmul.mubr.bf16.gmra.mrb[0].mxu0 %v304
      %v612 = vpop.f32.mrb[0].mxu0
      %v613 = vadd.f32 %v573, %v612
      %v614 = vpop.f32.mrb[0].mxu0
      %v615 = vpop.f32.mrb[0].mxu0
      %v616 = vpop.f32.mrb[0].mxu0
      %617 = vdwg.mxu0
      %618 = vmatprep.subr.bf16.mxu0 0
      %619 = vmatpush1.bf16.msra.mxu0 %v494
      %620 = vmatprep.subr.bf16.mxu0 0
      %621 = vmatpush1.bf16.msra.mxu0 %v495
      %622 = vmatprep.subr.bf16.mxu0 0
      %623 = vmatpush1.bf16.msra.mxu0 %v496
      %624 = vmatprep.subr.bf16.mxu0 0
      %625 = vmatpush1.bf16.msra.mxu0 %v497
      %626 = vmatprep.subr.bf16.mxu0 0
      %627 = vmatpush1.bf16.msra.mxu0 0
      %628 = vmatprep.subr.bf16.mxu0 0
      %629 = vmatpush1.bf16.msra.mxu0 0
      %630 = vmatprep.subr.bf16.mxu0 0
      %631 = vmatpush1.bf16.msra.mxu0 0
      %632 = vmatprep.subr.bf16.mxu0 0
      %633 = vmatpush1.bf16.msra.mxu0 0
      %634 = vmatprep.subr.bf16.mxu0 0
      %635 = vmatpush1.bf16.msra.mxu0 0
      %636 = vmatprep.subr.bf16.mxu0 0
      %637 = vmatpush1.bf16.msra.mxu0 0
      %638 = vmatprep.subr.bf16.mxu0 0
      %639 = vmatpush1.bf16.msra.mxu0 0
      %640 = vmatprep.subr.bf16.mxu0 0
      %641 = vmatpush1.bf16.msra.mxu0 0
      %642 = vmatprep.subr.bf16.mxu0 0
      %643 = vmatpush1.bf16.msra.mxu0 0
      %644 = vmatprep.subr.bf16.mxu0 0
      %645 = vmatpush1.bf16.msra.mxu0 0
      %646 = vmatprep.subr.bf16.mxu0 0
      %647 = vmatpush1.bf16.msra.mxu0 0
      %648 = vmatprep.subr.bf16.mxu0 0
      %649 = vmatpush1.bf16.msra.mxu0 0
      %650 = vmatprep.mubr.bf16.mxu0 0
      %651 = vmatmul.mubr.bf16.gmra.mrb[0].mxu0 %v536
      %v652 = vpop.f32.mrb[0].mxu0
      %v653 = vadd.f32 %v613, %v652
      %v654 = vpop.f32.mrb[0].mxu0
      %v655 = vpop.f32.mrb[0].mxu0
      %v656 = vpop.f32.mrb[0].mxu0
      %657 = vdwg.mxu0
      %vm658 = vcmask 519168
      %659 = vst.msk [vmem:[%s206] sm:$0xf] %vm658, %v653
      %v660 = vsel %vm658, %v653, 0.0
      %v661 = vrot.slane %v660, 4
      %v662 = vadd.f32 %v660, %v661
      %v663 = vrot.slane %v662, 2
      %v664 = vadd.f32 %v662, %v663
      %v665 = vrot.slane %v664, 1
      %v666 = vadd.f32 %v664, %v665
      %vm667 = vcmask 516096
      %668 = vst.msk [vmem:[%s209] sm:$0x1] %vm667, %v666
      %v669 = vmul.f32 %v653, %v653
      %v670 = vsel %vm658, %v669, 0.0
      %v671 = vrot.slane %v670, 4
      %v672 = vadd.f32 %v670, %v671
      %v673 = vrot.slane %v672, 2
      %v674 = vadd.f32 %v672, %v673
      %v675 = vrot.slane %v674, 1
      %v676 = vadd.f32 %v674, %v675
      %677 = vst.msk [vmem:[%s212] sm:$0x1] %vm667, %v676
      %p678 = scmp.lt.s32.totalorder %s16, 1
      %s679 = scalar_select %p678, %s16, 1
      %s680 = smul.addr %s679, 4
      %s681 = scalar_lea.vmem %s2, %s680
      %p682 = scmp.lt.s32.totalorder %s16, 1
      %s683 = scalar_select %p682, %s16, 1
      %s684 = scalar_lea.vmem %s3, %s683
      %p685 = scmp.lt.s32.totalorder %s16, 1
      %s686 = scalar_select %p685, %s16, 1
      %s687 = scalar_lea.vmem %s4, %s686
      // Predicated region
      $region29: #{ddpm_forward.20} parent=27 // pred_check
        %p688 = pneg %p81
      $region30: #{ddpm_forward.20} parent=27 // pred_check_branch
        %690 = sbr.rel (%p688) target = $region32
      $region31: #{ddpm_forward.20} parent=27 // pred_region
        _
      $region32: #{ddpm_forward.20} parent=27 // pred_fallthru
        _
      // Predicated region
      $region33: #{ddpm_forward.20} parent=27 // pred_check
        %p691 = pneg %p107
      $region34: #{ddpm_forward.20} parent=27 // pred_check_branch
        %693 = sbr.rel (%p691) target = $region36
      $region35: #{ddpm_forward.20} parent=27 // pred_region
        _
      $region36: #{ddpm_forward.20} parent=27 // pred_fallthru
        _
      // Predicated region
      $region37: #{ddpm_forward.20} parent=27 // pred_check
        %p694 = pneg %p133
      $region38: #{ddpm_forward.20} parent=27 // pred_check_branch
        %696 = sbr.rel (%p694) target = $region40
      $region39: #{ddpm_forward.20} parent=27 // pred_region
        _
      $region40: #{ddpm_forward.20} parent=27 // pred_fallthru
        _
    $region28: #{ddpm_forward.20} parent=5 // pred_fallthru
      _
    %p697 = scmp.le.s32.totalorder 2, %s11
    // Predicated region
    $region41: #{ddpm_forward.20} parent=5 // pred_check
      %p698 = pneg %p697
    $region42: #{ddpm_forward.20} parent=5 // pred_check_branch
      %700 = sbr.rel (%p698) target = $region44
    $region43: #{ddpm_forward.20} parent=5 // pred_region
      %s701 = ssub.s32 %s11, 2
      // Predicated region
      $region45: #{ddpm_forward.20} parent=43 // pred_check
        %p702 = pneg %p87
      $region46: #{ddpm_forward.20} parent=43 // pred_check_branch
        %704 = sbr.rel (%p702) target = $region48
      $region47: #{ddpm_forward.20} parent=43 // pred_region
        %p705 = scmp.lt.s32.totalorder %s17, 1
        %s706 = scalar_select %p705, %s17, 1
        %s707 = smul.addr %s706, 4
        %s708 = scalar_lea.vmem %s2, %s707
      $region48: #{ddpm_forward.20} parent=43 // pred_fallthru
        _
      // Predicated region
      $region49: #{ddpm_forward.20} parent=43 // pred_check
        %p709 = pneg %p113
      $region50: #{ddpm_forward.20} parent=43 // pred_check_branch
        %711 = sbr.rel (%p709) target = $region52
      $region51: #{ddpm_forward.20} parent=43 // pred_region
        %p712 = scmp.lt.s32.totalorder %s17, 1
        %s713 = scalar_select %p712, %s17, 1
        %s714 = scalar_lea.vmem %s3, %s713
      $region52: #{ddpm_forward.20} parent=43 // pred_fallthru
        _
      // Predicated region
      $region53: #{ddpm_forward.20} parent=43 // pred_check
        %p715 = pneg %p139
      $region54: #{ddpm_forward.20} parent=43 // pred_check_branch
        %717 = sbr.rel (%p715) target = $region56
      $region55: #{ddpm_forward.20} parent=43 // pred_region
        %p718 = scmp.lt.s32.totalorder %s17, 1
        %s719 = scalar_select %p718, %s17, 1
        %s720 = scalar_lea.vmem %s4, %s719
      $region56: #{ddpm_forward.20} parent=43 // pred_fallthru
        _
    $region44: #{ddpm_forward.20} parent=5 // pred_fallthru
      _
  $region6: #{ddpm_forward.20} parent=0 // loop_footer
    %s15 = sadd.s32 1, %s11
  $region7: #{ddpm_forward.20} parent=0 // loop_footer_branch
    %10 = sbr.rel target = $region3
  $region8: #{ddpm_forward.20} parent=0 // loop_exit
    _

// kernel: ddpm_forward.23
$region0: #{ddpm_forward.23}
  #allocation0 [shape = 'u32[]', space=smem, size = 0x4, offset = 0x4, fixed_abs, tag = 'smem constant byte address 0x4 - core index']
  #allocation1 [shape = 'u32[144,128]{1,0:T(1,128)}', space=vmem, size = 0x12000, scoped, tag = 'internal scratch']
  %s0 = inlined_call_operand.vmem [shape: f32[2,16,32], index: 0, kind: input, shape index: {}]
  %s1 = inlined_call_operand.vmem [shape: f32[1,32], index: 1, kind: input, shape index: {}]
  %s2 = inlined_call_operand.vmem [shape: f32[1,32], index: 2, kind: input, shape index: {}]
  %s3 = inlined_call_operand.vmem [shape: f32[2,16,32], index: 3, kind: output, shape index: {}]
  %s4 = sld [smem:[#allocation0]]
  $region45: #{ddpm_forward.23} parent=0
    _
  %s6 = ssub.s32 1, %s4
  %s7 = scalar_select 0, %s6, %s4
  loop: start=0, step=1, limit=4
  $region2: #{ddpm_forward.23} parent=0 // loop_pre_header
    _
  $region3: #{ddpm_forward.23} parent=0 // loop_header
    %s9 = sphi 0, %s13
    %p10 = scmp.ge.s32.totalorder %s9, 4
    %s19 = sphi 0, %s21
    %s22 = sphi 0, %s19
    %s23 = sphi 0, %s22
    %s39 = sphi 0, %s23
    %s43 = sphi 0, %s43
    %s45 = sphi 0, %s43
    %s46 = sphi 0, %s45
    %s60 = sphi 0, %s46
    %s64 = sphi 0, %s64
    %s66 = sphi 0, %s64
    %s67 = sphi 0, %s66
    %s81 = sphi 0, %s67
    %s87 = sphi 0, %s89
    %s90 = sphi 0, %s87
    %s91 = sphi 0, %s90
    %s107 = sphi 0, %s91
  $region4: #{ddpm_forward.23} parent=0 // loop_header_branch
    %12 = sbr.rel (%p10) target = $region8
  $region5: #{ddpm_forward.23} parent=0 // loop_body
    %s14 = ssub.s32 %s9, 1
    %s15 = ssub.s32 %s9, 2
    %s16 = sadd.s32 %s9, 1
    %s17 = ssub.s32 %s9, %s16
    %p18 = scmp.eq.s32.totalorder %s17, 0
    %s20 = sadd.s32 %s19, 1
    %s21 = scalar_select %p18, %s19, %s20
    %p24 = pneg %p18
    %p25 = scmp.eq.s32.totalorder %s9, 1
    %p26 = por %p24, %p25
    %p27 = scmp.ne.s32.totalorder %s19, %s22
    %p28 = scmp.eq.s32.totalorder %s9, 0
    %p29 = por %p27, %p28
    %p30 = scmp.ne.s32.totalorder %s19, %s22
    %p31 = scmp.eq.s32.totalorder %s14, 1
    %p32 = por %p30, %p31
    %p33 = scmp.ne.s32.totalorder %s22, %s23
    %p34 = scmp.eq.s32.totalorder %s14, 0
    %p35 = por %p33, %p34
    %p36 = scmp.ne.s32.totalorder %s22, %s23
    %p37 = scmp.eq.s32.totalorder %s15, 1
    %p38 = por %p36, %p37
    %p40 = scmp.ne.s32.totalorder %s23, %s39
    %p41 = scmp.eq.s32.totalorder %s15, 0
    %p42 = por %p40, %p41
    %s44 = sadd.s32 %s43, 1
    %p47 = scmp.eq.s32.totalorder %s9, 1
    %p48 = scmp.ne.s32.totalorder %s43, %s45
    %p49 = scmp.eq.s32.totalorder %s9, 0
    %p50 = por %p48, %p49
    %p51 = scmp.ne.s32.totalorder %s43, %s45
    %p52 = scmp.eq.s32.totalorder %s14, 1
    %p53 = por %p51, %p52
    %p54 = scmp.ne.s32.totalorder %s45, %s46
    %p55 = scmp.eq.s32.totalorder %s14, 0
    %p56 = por %p54, %p55
    %p57 = scmp.ne.s32.totalorder %s45, %s46
    %p58 = scmp.eq.s32.totalorder %s15, 1
    %p59 = por %p57, %p58
    %p61 = scmp.ne.s32.totalorder %s46, %s60
    %p62 = scmp.eq.s32.totalorder %s15, 0
    %p63 = por %p61, %p62
    %s65 = sadd.s32 %s64, 1
    %p68 = scmp.eq.s32.totalorder %s9, 1
    %p69 = scmp.ne.s32.totalorder %s64, %s66
    %p70 = scmp.eq.s32.totalorder %s9, 0
    %p71 = por %p69, %p70
    %p72 = scmp.ne.s32.totalorder %s64, %s66
    %p73 = scmp.eq.s32.totalorder %s14, 1
    %p74 = por %p72, %p73
    %p75 = scmp.ne.s32.totalorder %s66, %s67
    %p76 = scmp.eq.s32.totalorder %s14, 0
    %p77 = por %p75, %p76
    %p78 = scmp.ne.s32.totalorder %s66, %s67
    %p79 = scmp.eq.s32.totalorder %s15, 1
    %p80 = por %p78, %p79
    %p82 = scmp.ne.s32.totalorder %s67, %s81
    %p83 = scmp.eq.s32.totalorder %s15, 0
    %p84 = por %p82, %p83
    %s85 = ssub.s32 %s9, %s16
    %p86 = scmp.eq.s32.totalorder %s85, 0
    %s88 = sadd.s32 %s87, 1
    %s89 = scalar_select %p86, %s87, %s88
    %p92 = pneg %p86
    %p93 = scmp.eq.s32.totalorder %s9, 1
    %p94 = por %p92, %p93
    %p95 = scmp.ne.s32.totalorder %s87, %s90
    %p96 = scmp.eq.s32.totalorder %s9, 0
    %p97 = por %p95, %p96
    %p98 = scmp.ne.s32.totalorder %s87, %s90
    %p99 = scmp.eq.s32.totalorder %s14, 1
    %p100 = por %p98, %p99
    %p101 = scmp.ne.s32.totalorder %s90, %s91
    %p102 = scmp.eq.s32.totalorder %s14, 0
    %p103 = por %p101, %p102
    %p104 = scmp.ne.s32.totalorder %s90, %s91
    %p105 = scmp.eq.s32.totalorder %s15, 1
    %p106 = por %p104, %p105
    %p108 = scmp.ne.s32.totalorder %s91, %s107
    %p109 = scmp.eq.s32.totalorder %s15, 0
    %p110 = por %p108, %p109
    %p111 = scmp.le.s32.totalorder 1, %s9
    %p112 = scmp.lt.s32.totalorder %s9, 3
    %p113 = pnand %p111, %p112
    %p114 = pneg %p113
    // Predicated region
    $region9: #{ddpm_forward.23} parent=5 // pred_check
      _
    $region10: #{ddpm_forward.23} parent=5 // pred_check_branch
      %116 = sbr.rel (%p113) target = $region12
    $region11: #{ddpm_forward.23} parent=5 // pred_region
      %s117 = ssub.s32 %s9, 1
      // Predicated region
      $region13: #{ddpm_forward.23} parent=11 // pred_check
        %p118 = pneg %p56
      $region14: #{ddpm_forward.23} parent=11 // pred_check_branch
        %120 = sbr.rel (%p118) target = $region16
      $region15: #{ddpm_forward.23} parent=11 // pred_region
        _
      $region16: #{ddpm_forward.23} parent=11 // pred_fallthru
        _
      // Predicated region
      $region17: #{ddpm_forward.23} parent=11 // pred_check
        %p121 = pneg %p77
      $region18: #{ddpm_forward.23} parent=11 // pred_check_branch
        %123 = sbr.rel (%p121) target = $region20
      $region19: #{ddpm_forward.23} parent=11 // pred_region
        _
      $region20: #{ddpm_forward.23} parent=11 // pred_fallthru
        _
    $region12: #{ddpm_forward.23} parent=5 // pred_fallthru
      _
    %p124 = scmp.lt.s32.totalorder %s9, 2
    // Predicated region
    $region21: #{ddpm_forward.23} parent=5 // pred_check
      %p125 = pneg %p124
    $region22: #{ddpm_forward.23} parent=5 // pred_check_branch
      %127 = sbr.rel (%p125) target = $region24
    $region23: #{ddpm_forward.23} parent=5 // pred_region
      // Predicated region
      $region25: #{ddpm_forward.23} parent=23 // pred_check
        %p128 = pneg %p29
      $region26: #{ddpm_forward.23} parent=23 // pred_check_branch
        %130 = sbr.rel (%p128) target = $region28
      $region27: #{ddpm_forward.23} parent=23 // pred_region
        %p131 = scmp.lt.s32.totalorder %s9, 1
        %s132 = scalar_select %p131, %s9, 1
        %s133 = smul.addr %s132, 2
        %s134 = smul.addr %s133, 8
        %s135 = scalar_lea.vmem %s0, %s134
      $region28: #{ddpm_forward.23} parent=23 // pred_fallthru
        _
    $region24: #{ddpm_forward.23} parent=5 // pred_fallthru
      _
    %p136 = scmp.le.s32.totalorder 1, %s9
    %p137 = scmp.lt.s32.totalorder %s9, 3
    %p138 = pnand %p136, %p137
    %p139 = pneg %p138
    // Predicated region
    $region29: #{ddpm_forward.23} parent=5 // pred_check
      _
    $region30: #{ddpm_forward.23} parent=5 // pred_check_branch
      %141 = sbr.rel (%p138) target = $region32
    $region31: #{ddpm_forward.23} parent=5 // pred_region
      %s142 = ssub.s32 %s9, 1
      %p143 = scmp.lt.s32.totalorder %s14, 1
      %s144 = scalar_select %p143, %s14, 1
      %s145 = smul.addr %s144, 2
      %s146 = smul.addr %s145, 8
      %s147 = scalar_lea.vmem %s0, %s146
      %p148 = pneg %p35
      %p149 = pneg %p32
      %p150 = pneg %p56
      %p151 = pneg %p53
      %p152 = pneg %p77
      %p153 = pneg %p74
      %p154 = pneg %p103
      %p155 = pneg %p100
      %p156 = scmp.lt.s32.totalorder %s14, 1
      %s157 = scalar_select %p156, %s14, 1
      %s158 = smul.addr %s157, 2
      %s159 = smul.addr %s158, 8
      %s160 = scalar_lea.vmem %s3, %s159
      %p161 = scmp.lt.s32.totalorder %s14, 1
      %s162 = scalar_select %p161, %s14, 1
      %s163 = smul.addr %s162, 2
      %s164 = smul.addr %s163, 8
      %s165 = scalar_lea.vmem %s0, %s164
      %p166 = scmp.lt.s32.totalorder %s14, 1
      %s167 = scalar_select %p166, %s14, 1
      %s168 = smul.addr %s167, 2
      %s169 = smul.addr %s168, 8
      %s170 = scalar_lea.vmem %s3, %s169
      %v171 = vld [vmem:[%s165] sm:$0xff]
      %v172 = vld [vmem:[%s165 + $0x8] sm:$0xff]
      %v173 = vld [vmem:[%s1] sm:$0x1]
      %v175 = vlaneseq
      %v176 = vshrl.u32 %v175, 7
      %v177 = vsub.s32 0, %v176
      %v178 = vrot.slane %v173, %v177
      %v180 = vmul.f32 %v171, %v178
      %v181 = vmul.f32 %v172, %v178
      %v182 = vld [vmem:[%s2] sm:$0x1]
      %v184 = vlaneseq
      %v185 = vshrl.u32 %v184, 7
      %v186 = vsub.s32 0, %v185
      %v187 = vrot.slane %v182, %v186
      %v189 = vadd.f32 %v180, %v187
      %v190 = vadd.f32 %v181, %v187
      %v191 = vmax.f32 %v189, 0.0
      %v192 = vmax.f32 %v190, 0.0
      %vm193 = vcmask 261120
      %194 = vst.msk [vmem:[%s170] sm:$0xff] %vm193, %v191
      %195 = vst.msk [vmem:[%s170 + $0x8] sm:$0xff] %vm193, %v192
      %p196 = scmp.lt.s32.totalorder %s14, 1
      %s197 = scalar_select %p196, %s14, 1
      %s198 = smul.addr %s197, 2
      %s199 = smul.addr %s198, 8
      %s200 = scalar_lea.vmem %s3, %s199
      // Predicated region
      $region33: #{ddpm_forward.23} parent=31 // pred_check
        %p201 = pneg %p100
      $region34: #{ddpm_forward.23} parent=31 // pred_check_branch
        %203 = sbr.rel (%p201) target = $region36
      $region35: #{ddpm_forward.23} parent=31 // pred_region
        _
      $region36: #{ddpm_forward.23} parent=31 // pred_fallthru
        _
    $region32: #{ddpm_forward.23} parent=5 // pred_fallthru
      _
    %p204 = scmp.le.s32.totalorder 2, %s9
    // Predicated region
    $region37: #{ddpm_forward.23} parent=5 // pred_check
      %p205 = pneg %p204
    $region38: #{ddpm_forward.23} parent=5 // pred_check_branch
      %207 = sbr.rel (%p205) target = $region40
    $region39: #{ddpm_forward.23} parent=5 // pred_region
      %s208 = ssub.s32 %s9, 2
      // Predicated region
      $region41: #{ddpm_forward.23} parent=39 // pred_check
        %p209 = pneg %p106
      $region42: #{ddpm_forward.23} parent=39 // pred_check_branch
        %211 = sbr.rel (%p209) target = $region44
      $region43: #{ddpm_forward.23} parent=39 // pred_region
        %p212 = scmp.lt.s32.totalorder %s15, 1
        %s213 = scalar_select %p212, %s15, 1
        %s214 = smul.addr %s213, 2
        %s215 = smul.addr %s214, 8
        %s216 = scalar_lea.vmem %s3, %s215
      $region44: #{ddpm_forward.23} parent=39 // pred_fallthru
        _
    $region40: #{ddpm_forward.23} parent=5 // pred_fallthru
      _
  $region6: #{ddpm_forward.23} parent=0 // loop_footer
    %s13 = sadd.s32 1, %s9
  $region7: #{ddpm_forward.23} parent=0 // loop_footer_branch
    %8 = sbr.rel target = $region3
  $region8: #{ddpm_forward.23} parent=0 // loop_exit
    _

// kernel: ddpm_forward.22
$region0: #{ddpm_forward.22}
  #allocation0 [shape = 'u32[]', space=smem, size = 0x4, offset = 0x4, fixed_abs, tag = 'smem constant byte address 0x4 - core index']
  #allocation1 [shape = 'u32[144,128]{1,0:T(1,128)}', space=vmem, size = 0x12000, scoped, tag = 'internal scratch']
  %s0 = inlined_call_operand.vmem [shape: bf16[2,16,1152], index: 0, kind: input, shape index: {}]
  %s1 = inlined_call_operand.vmem [shape: bf16[1152,32], index: 1, kind: input, shape index: {}]
  %s2 = inlined_call_operand.vmem [shape: f32[2,16,32], index: 2, kind: output, shape index: {0}]
  %s3 = inlined_call_operand.vmem [shape: f32[2,1,32], index: 3, kind: output, shape index: {1}]
  %s4 = inlined_call_operand.vmem [shape: f32[2,1,32], index: 4, kind: output, shape index: {2}]
  %5 = xla_tuple %s2, %s3, %s4
  %s6 = sld [smem:[#allocation0]]
  $region57: #{ddpm_forward.22} parent=0
    _
  %s8 = ssub.s32 1, %s6
  %s9 = scalar_select 0, %s8, %s6
  loop: start=0, step=1, limit=4
  $region2: #{ddpm_forward.22} parent=0 // loop_pre_header
    _
  $region3: #{ddpm_forward.22} parent=0 // loop_header
    %s11 = sphi 0, %s15
    %p12 = scmp.ge.s32.totalorder %s11, 4
    %s21 = sphi 0, %s23
    %s24 = sphi 0, %s21
    %s25 = sphi 0, %s24
    %s41 = sphi 0, %s25
    %s45 = sphi 0, %s45
    %s47 = sphi 0, %s45
    %s48 = sphi 0, %s47
    %s62 = sphi 0, %s48
    %s68 = sphi 0, %s70
    %s71 = sphi 0, %s68
    %s72 = sphi 0, %s71
    %s88 = sphi 0, %s72
    %s94 = sphi 0, %s96
    %s97 = sphi 0, %s94
    %s98 = sphi 0, %s97
    %s114 = sphi 0, %s98
    %s120 = sphi 0, %s122
    %s123 = sphi 0, %s120
    %s124 = sphi 0, %s123
    %s140 = sphi 0, %s124
  $region4: #{ddpm_forward.22} parent=0 // loop_header_branch
    %14 = sbr.rel (%p12) target = $region8
  $region5: #{ddpm_forward.22} parent=0 // loop_body
    %s16 = ssub.s32 %s11, 1
    %s17 = ssub.s32 %s11, 2
    %s18 = sadd.s32 %s11, 1
    %s19 = ssub.s32 %s11, %s18
    %p20 = scmp.eq.s32.totalorder %s19, 0
    %s22 = sadd.s32 %s21, 1
    %s23 = scalar_select %p20, %s21, %s22
    %p26 = pneg %p20
    %p27 = scmp.eq.s32.totalorder %s11, 1
    %p28 = por %p26, %p27
    %p29 = scmp.ne.s32.totalorder %s21, %s24
    %p30 = scmp.eq.s32.totalorder %s11, 0
    %p31 = por %p29, %p30
    %p32 = scmp.ne.s32.totalorder %s21, %s24
    %p33 = scmp.eq.s32.totalorder %s16, 1
    %p34 = por %p32, %p33
    %p35 = scmp.ne.s32.totalorder %s24, %s25
    %p36 = scmp.eq.s32.totalorder %s16, 0
    %p37 = por %p35, %p36
    %p38 = scmp.ne.s32.totalorder %s24, %s25
    %p39 = scmp.eq.s32.totalorder %s17, 1
    %p40 = por %p38, %p39
    %p42 = scmp.ne.s32.totalorder %s25, %s41
    %p43 = scmp.eq.s32.totalorder %s17, 0
    %p44 = por %p42, %p43
    %s46 = sadd.s32 %s45, 1
    %p49 = scmp.eq.s32.totalorder %s11, 1
    %p50 = scmp.ne.s32.totalorder %s45, %s47
    %p51 = scmp.eq.s32.totalorder %s11, 0
    %p52 = por %p50, %p51
    %p53 = scmp.ne.s32.totalorder %s45, %s47
    %p54 = scmp.eq.s32.totalorder %s16, 1
    %p55 = por %p53, %p54
    %p56 = scmp.ne.s32.totalorder %s47, %s48
    %p57 = scmp.eq.s32.totalorder %s16, 0
    %p58 = por %p56, %p57
    %p59 = scmp.ne.s32.totalorder %s47, %s48
    %p60 = scmp.eq.s32.totalorder %s17, 1
    %p61 = por %p59, %p60
    %p63 = scmp.ne.s32.totalorder %s48, %s62
    %p64 = scmp.eq.s32.totalorder %s17, 0
    %p65 = por %p63, %p64
    %s66 = ssub.s32 %s11, %s18
    %p67 = scmp.eq.s32.totalorder %s66, 0
    %s69 = sadd.s32 %s68, 1
    %s70 = scalar_select %p67, %s68, %s69
    %p73 = pneg %p67
    %p74 = scmp.eq.s32.totalorder %s11, 1
    %p75 = por %p73, %p74
    %p76 = scmp.ne.s32.totalorder %s68, %s71
    %p77 = scmp.eq.s32.totalorder %s11, 0
    %p78 = por %p76, %p77
    %p79 = scmp.ne.s32.totalorder %s68, %s71
    %p80 = scmp.eq.s32.totalorder %s16, 1
    %p81 = por %p79, %p80
    %p82 = scmp.ne.s32.totalorder %s71, %s72
    %p83 = scmp.eq.s32.totalorder %s16, 0
    %p84 = por %p82, %p83
    %p85 = scmp.ne.s32.totalorder %s71, %s72
    %p86 = scmp.eq.s32.totalorder %s17, 1
    %p87 = por %p85, %p86
    %p89 = scmp.ne.s32.totalorder %s72, %s88
    %p90 = scmp.eq.s32.totalorder %s17, 0
    %p91 = por %p89, %p90
    %s92 = ssub.s32 %s11, %s18
    %p93 = scmp.eq.s32.totalorder %s92, 0
    %s95 = sadd.s32 %s94, 1
    %s96 = scalar_select %p93, %s94, %s95
    %p99 = pneg %p93
    %p100 = scmp.eq.s32.totalorder %s11, 1
    %p101 = por %p99, %p100
    %p102 = scmp.ne.s32.totalorder %s94, %s97
    %p103 = scmp.eq.s32.totalorder %s11, 0
    %p104 = por %p102, %p103
    %p105 = scmp.ne.s32.totalorder %s94, %s97
    %p106 = scmp.eq.s32.totalorder %s16, 1
    %p107 = por %p105, %p106
    %p108 = scmp.ne.s32.totalorder %s97, %s98
    %p109 = scmp.eq.s32.totalorder %s16, 0
    %p110 = por %p108, %p109
    %p111 = scmp.ne.s32.totalorder %s97, %s98
    %p112 = scmp.eq.s32.totalorder %s17, 1
    %p113 = por %p111, %p112
    %p115 = scmp.ne.s32.totalorder %s98, %s114
    %p116 = scmp.eq.s32.totalorder %s17, 0
    %p117 = por %p115, %p116
    %s118 = ssub.s32 %s11, %s18
    %p119 = scmp.eq.s32.totalorder %s118, 0
    %s121 = sadd.s32 %s120, 1
    %s122 = scalar_select %p119, %s120, %s121
    %p125 = pneg %p119
    %p126 = scmp.eq.s32.totalorder %s11, 1
    %p127 = por %p125, %p126
    %p128 = scmp.ne.s32.totalorder %s120, %s123
    %p129 = scmp.eq.s32.totalorder %s11, 0
    %p130 = por %p128, %p129
    %p131 = scmp.ne.s32.totalorder %s120, %s123
    %p132 = scmp.eq.s32.totalorder %s16, 1
    %p133 = por %p131, %p132
    %p134 = scmp.ne.s32.totalorder %s123, %s124
    %p135 = scmp.eq.s32.totalorder %s16, 0
    %p136 = por %p134, %p135
    %p137 = scmp.ne.s32.totalorder %s123, %s124
    %p138 = scmp.eq.s32.totalorder %s17, 1
    %p139 = por %p137, %p138
    %p141 = scmp.ne.s32.totalorder %s124, %s140
    %p142 = scmp.eq.s32.totalorder %s17, 0
    %p143 = por %p141, %p142
    %p144 = scmp.le.s32.totalorder 1, %s11
    %p145 = scmp.lt.s32.totalorder %s11, 3
    %p146 = pnand %p144, %p145
    %p147 = pneg %p146
    // Predicated region
    $region9: #{ddpm_forward.22} parent=5 // pred_check
      _
    $region10: #{ddpm_forward.22} parent=5 // pred_check_branch
      %149 = sbr.rel (%p146) target = $region12
    $region11: #{ddpm_forward.22} parent=5 // pred_region
      %s150 = ssub.s32 %s11, 1
      // Predicated region
      $region13: #{ddpm_forward.22} parent=11 // pred_check
        %p151 = pneg %p58
      $region14: #{ddpm_forward.22} parent=11 // pred_check_branch
        %153 = sbr.rel (%p151) target = $region16
      $region15: #{ddpm_forward.22} parent=11 // pred_region
        _
      $region16: #{ddpm_forward.22} parent=11 // pred_fallthru
        _
    $region12: #{ddpm_forward.22} parent=5 // pred_fallthru
      _
    %p154 = scmp.lt.s32.totalorder %s11, 2
    // Predicated region
    $region17: #{ddpm_forward.22} parent=5 // pred_check
      %p155 = pneg %p154
    $region18: #{ddpm_forward.22} parent=5 // pred_check_branch
      %157 = sbr.rel (%p155) target = $region20
    $region19: #{ddpm_forward.22} parent=5 // pred_region
      // Predicated region
      $region21: #{ddpm_forward.22} parent=19 // pred_check
        %p158 = pneg %p31
      $region22: #{ddpm_forward.22} parent=19 // pred_check_branch
        %160 = sbr.rel (%p158) target = $region24
      $region23: #{ddpm_forward.22} parent=19 // pred_region
        %p161 = scmp.lt.s32.totalorder %s11, 1
        %s162 = scalar_select %p161, %s11, 1
        %s163 = smul.addr %s162, 18
        %s164 = smul.addr %s163, 4
        %s165 = scalar_lea.vmem %s0, %s164
      $region24: #{ddpm_forward.22} parent=19 // pred_fallthru
        _
    $region20: #{ddpm_forward.22} parent=5 // pred_fallthru
      _
    %p166 = scmp.le.s32.totalorder 1, %s11
    %p167 = scmp.lt.s32.totalorder %s11, 3
    %p168 = pnand %p166, %p167
    %p169 = pneg %p168
    // Predicated region
    $region25: #{ddpm_forward.22} parent=5 // pred_check
      _
    $region26: #{ddpm_forward.22} parent=5 // pred_check_branch
      %171 = sbr.rel (%p168) target = $region28
    $region27: #{ddpm_forward.22} parent=5 // pred_region
      %s172 = ssub.s32 %s11, 1
      %p173 = scmp.lt.s32.totalorder %s16, 1
      %s174 = scalar_select %p173, %s16, 1
      %s175 = smul.addr %s174, 18
      %s176 = smul.addr %s175, 4
      %s177 = scalar_lea.vmem %s0, %s176
      %p178 = pneg %p37
      %p179 = pneg %p34
      %p180 = pneg %p58
      %p181 = pneg %p55
      %p182 = pneg %p84
      %p183 = pneg %p81
      %p184 = scmp.lt.s32.totalorder %s16, 1
      %s185 = scalar_select %p184, %s16, 1
      %s186 = smul.addr %s185, 2
      %s187 = smul.addr %s186, 8
      %s188 = scalar_lea.vmem %s2, %s187
      %p189 = pneg %p110
      %p190 = pneg %p107
      %p191 = scmp.lt.s32.totalorder %s16, 1
      %s192 = scalar_select %p191, %s16, 1
      %s193 = scalar_lea.vmem %s3, %s192
      %p194 = pneg %p136
      %p195 = pneg %p133
      %p196 = scmp.lt.s32.totalorder %s16, 1
      %s197 = scalar_select %p196, %s16, 1
      %s198 = scalar_lea.vmem %s4, %s197
      %p199 = scmp.lt.s32.totalorder %s16, 1
      %s200 = scalar_select %p199, %s16, 1
      %s201 = smul.addr %s200, 18
      %s202 = smul.addr %s201, 4
      %s203 = scalar_lea.vmem %s0, %s202
      %p204 = scmp.lt.s32.totalorder %s16, 1
      %s205 = scalar_select %p204, %s16, 1
      %s206 = smul.addr %s205, 2
      %s207 = smul.addr %s206, 8
      %s208 = scalar_lea.vmem %s2, %s207
      %p209 = scmp.lt.s32.totalorder %s16, 1
      %s210 = scalar_select %p209, %s16, 1
      %s211 = scalar_lea.vmem %s3, %s210
      %p212 = scmp.lt.s32.totalorder %s16, 1
      %s213 = scalar_select %p212, %s16, 1
      %s214 = scalar_lea.vmem %s4, %s213
      %v216 = vld [vmem:[%s203] sm:$0xff]
      %v217 = vld [vmem:[%s203 + $0x8] sm:$0xff]
      %v218 = vld [vmem:[%s203 + $0x10] sm:$0xff]
      %v219 = vld [vmem:[%s203 + $0x18] sm:$0xff]
      %v220 = vld [vmem:[%s203 + $0x20] sm:$0xf]
      %v221 = vld [vmem:[%s203 + $0x24] sm:$0xff]
      %v222 = vld [vmem:[%s203 + $0x2c] sm:$0xff]
      %v223 = vld [vmem:[%s203 + $0x34] sm:$0xff]
      %v224 = vld [vmem:[%s203 + $0x3c] sm:$0xff]
      %v225 = vld [vmem:[%s203 + $0x44] sm:$0xf]
      %v226 = vld [vmem:[%s1] sm:$0xf]
      %v227 = vld [vmem:[%s1 + $0x4] sm:$0xf]
      %v228 = vld [vmem:[%s1 + $0x8] sm:$0xf]
      %v229 = vld [vmem:[%s1 + $0xc] sm:$0xf]
      %v230 = vld [vmem:[%s1 + $0x10] sm:$0xf]
      %v231 = vld [vmem:[%s1 + $0x14] sm:$0xf]
      %v232 = vld [vmem:[%s1 + $0x18] sm:$0xf]
      %v233 = vld [vmem:[%s1 + $0x1c] sm:$0xf]
      %v234 = vld [vmem:[%s1 + $0x20] sm:$0xf]
      %v235 = vld [vmem:[%s1 + $0x24] sm:$0xf]
      %v236 = vld [vmem:[%s1 + $0x28] sm:$0xf]
      %v237 = vld [vmem:[%s1 + $0x2c] sm:$0xf]
      %v238 = vld [vmem:[%s1 + $0x30] sm:$0xf]
      %v239 = vld [vmem:[%s1 + $0x34] sm:$0xf]
      %v240 = vld [vmem:[%s1 + $0x38] sm:$0xf]
      %v241 = vld [vmem:[%s1 + $0x3c] sm:$0xf]
      %v242 = vld [vmem:[%s1 + $0x40] sm:$0xf]
      %v243 = vld [vmem:[%s1 + $0x44] sm:$0xf]
      %v244 = vld [vmem:[%s1 + $0x48] sm:$0xf]
      %v245 = vld [vmem:[%s1 + $0x4c] sm:$0xf]
      %v246 = vld [vmem:[%s1 + $0x50] sm:$0xf]
      %v247 = vld [vmem:[%s1 + $0x54] sm:$0xf]
      %v248 = vld [vmem:[%s1 + $0x58] sm:$0xf]
      %v249 = vld [vmem:[%s1 + $0x5c] sm:$0xf]
      %v250 = vld [vmem:[%s1 + $0x60] sm:$0xf]
      %v251 = vld [vmem:[%s1 + $0x64] sm:$0xf]
      %v252 = vld [vmem:[%s1 + $0x68] sm:$0xf]
      %v253 = vld [vmem:[%s1 + $0x6c] sm:$0xf]
      %v254 = vld [vmem:[%s1 + $0x70] sm:$0xf]
      %v255 = vld [vmem:[%s1 + $0x74] sm:$0xf]
      %v256 = vld [vmem:[%s1 + $0x78] sm:$0xf]
      %v257 = vld [vmem:[%s1 + $0x7c] sm:$0xf]
      %v258 = vld [vmem:[%s1 + $0x80] sm:$0xf]
      %v259 = vld [vmem:[%s1 + $0x84] sm:$0xf]
      %v260 = vld [vmem:[%s1 + $0x88] sm:$0xf]
      %v261 = vld [vmem:[%s1 + $0x8c] sm:$0xf]
      %v262 = vld [vmem:[%s1 + $0x90] sm:$0xf]
      %v263 = vld [vmem:[%s1 + $0x94] sm:$0xf]
      %v264 = vld [vmem:[%s1 + $0x98] sm:$0xf]
      %v265 = vld [vmem:[%s1 + $0x9c] sm:$0xf]
      %v266 = vld [vmem:[%s1 + $0xa0] sm:$0xf]
      %v267 = vld [vmem:[%s1 + $0xa4] sm:$0xf]
      %v268 = vld [vmem:[%s1 + $0xa8] sm:$0xf]
      %v269 = vld [vmem:[%s1 + $0xac] sm:$0xf]
      %v270 = vld [vmem:[%s1 + $0xb0] sm:$0xf]
      %v271 = vld [vmem:[%s1 + $0xb4] sm:$0xf]
      %v272 = vld [vmem:[%s1 + $0xb8] sm:$0xf]
      %v273 = vld [vmem:[%s1 + $0xbc] sm:$0xf]
      %v274 = vld [vmem:[%s1 + $0xc0] sm:$0xf]
      %v275 = vld [vmem:[%s1 + $0xc4] sm:$0xf]
      %v276 = vld [vmem:[%s1 + $0xc8] sm:$0xf]
      %v277 = vld [vmem:[%s1 + $0xcc] sm:$0xf]
      %v278 = vld [vmem:[%s1 + $0xd0] sm:$0xf]
      %v279 = vld [vmem:[%s1 + $0xd4] sm:$0xf]
      %v280 = vld [vmem:[%s1 + $0xd8] sm:$0xf]
      %v281 = vld [vmem:[%s1 + $0xdc] sm:$0xf]
      %v282 = vld [vmem:[%s1 + $0xe0] sm:$0xf]
      %v283 = vld [vmem:[%s1 + $0xe4] sm:$0xf]
      %v284 = vld [vmem:[%s1 + $0xe8] sm:$0xf]
      %v285 = vld [vmem:[%s1 + $0xec] sm:$0xf]
      %v286 = vld [vmem:[%s1 + $0xf0] sm:$0xf]
      %v287 = vld [vmem:[%s1 + $0xf4] sm:$0xf]
      %v288 = vld [vmem:[%s1 + $0xf8] sm:$0xf]
      %v289 = vld [vmem:[%s1 + $0xfc] sm:$0xf]
      %v290 = vld [vmem:[%s1 + $0x100] sm:$0xf]
      %v291 = vld [vmem:[%s1 + $0x104] sm:$0xf]
      %v292 = vld [vmem:[%s1 + $0x108] sm:$0xf]
      %v293 = vld [vmem:[%s1 + $0x10c] sm:$0xf]
      %v294 = vld [vmem:[%s1 + $0x110] sm:$0xf]
      %v295 = vld [vmem:[%s1 + $0x114] sm:$0xf]
      %v296 = vld [vmem:[%s1 + $0x118] sm:$0xf]
      %v297 = vld [vmem:[%s1 + $0x11c] sm:$0xf]
      %v298 = vld [vmem:[%s1 + $0x120] sm:$0xf]
      %v299 = vld [vmem:[%s1 + $0x124] sm:$0xf]
      %v300 = vld [vmem:[%s1 + $0x128] sm:$0xf]
      %v301 = vld [vmem:[%s1 + $0x12c] sm:$0xf]
      %v302 = vld [vmem:[%s1 + $0x130] sm:$0xf]
      %v303 = vld [vmem:[%s1 + $0x134] sm:$0xf]
      %v304 = vld [vmem:[%s1 + $0x138] sm:$0xf]
      %v305 = vld [vmem:[%s1 + $0x13c] sm:$0xf]
      %v306 = vld [vmem:[%s1 + $0x140] sm:$0xf]
      %v307 = vld [vmem:[%s1 + $0x144] sm:$0xf]
      %v308 = vld [vmem:[%s1 + $0x148] sm:$0xf]
      %v309 = vld [vmem:[%s1 + $0x14c] sm:$0xf]
      %v310 = vld [vmem:[%s1 + $0x150] sm:$0xf]
      %v311 = vld [vmem:[%s1 + $0x154] sm:$0xf]
      %v312 = vld [vmem:[%s1 + $0x158] sm:$0xf]
      %v313 = vld [vmem:[%s1 + $0x15c] sm:$0xf]
      %v314 = vld [vmem:[%s1 + $0x160] sm:$0xf]
      %v315 = vld [vmem:[%s1 + $0x164] sm:$0xf]
      %v316 = vld [vmem:[%s1 + $0x168] sm:$0xf]
      %v317 = vld [vmem:[%s1 + $0x16c] sm:$0xf]
      %v318 = vld [vmem:[%s1 + $0x170] sm:$0xf]
      %v319 = vld [vmem:[%s1 + $0x174] sm:$0xf]
      %v320 = vld [vmem:[%s1 + $0x178] sm:$0xf]
      %v321 = vld [vmem:[%s1 + $0x17c] sm:$0xf]
      %v322 = vld [vmem:[%s1 + $0x180] sm:$0xf]
      %v323 = vld [vmem:[%s1 + $0x184] sm:$0xf]
      %v324 = vld [vmem:[%s1 + $0x188] sm:$0xf]
      %v325 = vld [vmem:[%s1 + $0x18c] sm:$0xf]
      %v326 = vld [vmem:[%s1 + $0x190] sm:$0xf]
      %v327 = vld [vmem:[%s1 + $0x194] sm:$0xf]
      %v328 = vld [vmem:[%s1 + $0x198] sm:$0xf]
      %v329 = vld [vmem:[%s1 + $0x19c] sm:$0xf]
      %v330 = vld [vmem:[%s1 + $0x1a0] sm:$0xf]
      %v331 = vld [vmem:[%s1 + $0x1a4] sm:$0xf]
      %v332 = vld [vmem:[%s1 + $0x1a8] sm:$0xf]
      %v333 = vld [vmem:[%s1 + $0x1ac] sm:$0xf]
      %v334 = vld [vmem:[%s1 + $0x1b0] sm:$0xf]
      %v335 = vld [vmem:[%s1 + $0x1b4] sm:$0xf]
      %v336 = vld [vmem:[%s1 + $0x1b8] sm:$0xf]
      %v337 = vld [vmem:[%s1 + $0x1bc] sm:$0xf]
      %v338 = vld [vmem:[%s1 + $0x1c0] sm:$0xf]
      %v339 = vld [vmem:[%s1 + $0x1c4] sm:$0xf]
      %v340 = vld [vmem:[%s1 + $0x1c8] sm:$0xf]
      %v341 = vld [vmem:[%s1 + $0x1cc] sm:$0xf]
      %v342 = vld [vmem:[%s1 + $0x1d0] sm:$0xf]
      %v343 = vld [vmem:[%s1 + $0x1d4] sm:$0xf]
      %v344 = vld [vmem:[%s1 + $0x1d8] sm:$0xf]
      %v345 = vld [vmem:[%s1 + $0x1dc] sm:$0xf]
      %v346 = vld [vmem:[%s1 + $0x1e0] sm:$0xf]
      %v347 = vld [vmem:[%s1 + $0x1e4] sm:$0xf]
      %v348 = vld [vmem:[%s1 + $0x1e8] sm:$0xf]
      %v349 = vld [vmem:[%s1 + $0x1ec] sm:$0xf]
      %v350 = vld [vmem:[%s1 + $0x1f0] sm:$0xf]
      %v351 = vld [vmem:[%s1 + $0x1f4] sm:$0xf]
      %v352 = vld [vmem:[%s1 + $0x1f8] sm:$0xf]
      %v353 = vld [vmem:[%s1 + $0x1fc] sm:$0xf]
      %v354 = vld [vmem:[%s1 + $0x200] sm:$0xf]
      %v355 = vld [vmem:[%s1 + $0x204] sm:$0xf]
      %v356 = vld [vmem:[%s1 + $0x208] sm:$0xf]
      %v357 = vld [vmem:[%s1 + $0x20c] sm:$0xf]
      %v358 = vld [vmem:[%s1 + $0x210] sm:$0xf]
      %v359 = vld [vmem:[%s1 + $0x214] sm:$0xf]
      %v360 = vld [vmem:[%s1 + $0x218] sm:$0xf]
      %v361 = vld [vmem:[%s1 + $0x21c] sm:$0xf]
      %v362 = vld [vmem:[%s1 + $0x220] sm:$0xf]
      %v363 = vld [vmem:[%s1 + $0x224] sm:$0xf]
      %v364 = vld [vmem:[%s1 + $0x228] sm:$0xf]
      %v365 = vld [vmem:[%s1 + $0x22c] sm:$0xf]
      %v366 = vld [vmem:[%s1 + $0x230] sm:$0xf]
      %v367 = vld [vmem:[%s1 + $0x234] sm:$0xf]
      %v368 = vld [vmem:[%s1 + $0x238] sm:$0xf]
      %v369 = vld [vmem:[%s1 + $0x23c] sm:$0xf]
      %v380 = vunpack.c.l.b16 %v216
      %v381 = vunpack.c.h.b16 %v216
      %v382 = vunpack.c.l.b16 %v217
      %v383 = vunpack.c.h.b16 %v217
      %v384 = vunpack.c.l.b16 %v218
      %v385 = vunpack.c.h.b16 %v218
      %v386 = vunpack.c.l.b16 %v219
      %v387 = vunpack.c.h.b16 %v219
      %v388 = vunpack.c.l.b16 %v220
      %v389 = vunpack.c.l.b16 %v221
      %v390 = vunpack.c.h.b16 %v221
      %v391 = vunpack.c.l.b16 %v222
      %v392 = vunpack.c.h.b16 %v222
      %v393 = vunpack.c.l.b16 %v223
      %v394 = vunpack.c.h.b16 %v223
      %v395 = vunpack.c.l.b16 %v224
      %v396 = vunpack.c.h.b16 %v224
      %v397 = vunpack.c.l.b16 %v225
      %v398 = vpack.c.b16 %v389, %v380
      %v399 = vpack.c.b16 %v390, %v381
      %v400 = vpack.c.b16 %v391, %v382
      %v401 = vpack.c.b16 %v392, %v383
      %v402 = vpack.c.b16 %v393, %v384
      %v403 = vpack.c.b16 %v394, %v385
      %v404 = vpack.c.b16 %v395, %v386
      %v405 = vpack.c.b16 %v396, %v387
      %v406 = vpack.c.b16 %v397, %v388
      %v560 = vunpack.c.l.b16 %v226
      %v561 = vunpack.c.l.b16 %v227
      %v562 = vunpack.c.l.b16 %v228
      %v563 = vunpack.c.l.b16 %v229
      %v564 = vunpack.c.l.b16 %v230
      %v565 = vunpack.c.l.b16 %v231
      %v566 = vunpack.c.l.b16 %v232
      %v567 = vunpack.c.l.b16 %v233
      %v568 = vunpack.c.l.b16 %v234
      %v569 = vunpack.c.l.b16 %v235
      %v570 = vunpack.c.l.b16 %v236
      %v571 = vunpack.c.l.b16 %v237
      %v572 = vunpack.c.l.b16 %v238
      %v573 = vunpack.c.l.b16 %v239
      %v574 = vunpack.c.l.b16 %v240
      %v575 = vunpack.c.l.b16 %v241
      %v576 = vunpack.c.l.b16 %v242
      %v577 = vunpack.c.l.b16 %v243
      %v578 = vunpack.c.l.b16 %v244
      %v579 = vunpack.c.l.b16 %v245
      %v580 = vunpack.c.l.b16 %v246
      %v581 = vunpack.c.l.b16 %v247
      %v582 = vunpack.c.l.b16 %v248
      %v583 = vunpack.c.l.b16 %v249
      %v584 = vunpack.c.l.b16 %v250
      %v585 = vunpack.c.l.b16 %v251
      %v586 = vunpack.c.l.b16 %v252
      %v587 = vunpack.c.l.b16 %v253
      %v588 = vunpack.c.l.b16 %v254
      %v589 = vunpack.c.l.b16 %v255
      %v590 = vunpack.c.l.b16 %v256
      %v591 = vunpack.c.l.b16 %v257
      %v592 = vunpack.c.l.b16 %v258
      %v593 = vunpack.c.l.b16 %v259
      %v594 = vunpack.c.l.b16 %v260
      %v595 = vunpack.c.l.b16 %v261
      %v596 = vunpack.c.l.b16 %v262
      %v597 = vunpack.c.l.b16 %v263
      %v598 = vunpack.c.l.b16 %v264
      %v599 = vunpack.c.l.b16 %v265
      %v600 = vunpack.c.l.b16 %v266
      %v601 = vunpack.c.l.b16 %v267
      %v602 = vunpack.c.l.b16 %v268
      %v603 = vunpack.c.l.b16 %v269
      %v604 = vunpack.c.l.b16 %v270
      %v605 = vunpack.c.l.b16 %v271
      %v606 = vunpack.c.l.b16 %v272
      %v607 = vunpack.c.l.b16 %v273
      %v608 = vunpack.c.l.b16 %v274
      %v609 = vunpack.c.l.b16 %v275
      %v610 = vunpack.c.l.b16 %v276
      %v611 = vunpack.c.l.b16 %v277
      %v612 = vunpack.c.l.b16 %v278
      %v613 = vunpack.c.l.b16 %v279
      %v614 = vunpack.c.l.b16 %v280
      %v615 = vunpack.c.l.b16 %v281
      %v616 = vunpack.c.l.b16 %v282
      %v617 = vunpack.c.l.b16 %v283
      %v618 = vunpack.c.l.b16 %v284
      %v619 = vunpack.c.l.b16 %v285
      %v620 = vunpack.c.l.b16 %v286
      %v621 = vunpack.c.l.b16 %v287
      %v622 = vunpack.c.l.b16 %v288
      %v623 = vunpack.c.l.b16 %v289
      %v624 = vunpack.c.l.b16 %v290
      %v625 = vunpack.c.l.b16 %v291
      %v626 = vunpack.c.l.b16 %v292
      %v627 = vunpack.c.l.b16 %v293
      %v628 = vunpack.c.l.b16 %v294
      %v629 = vunpack.c.l.b16 %v295
      %v630 = vunpack.c.l.b16 %v296
      %v631 = vunpack.c.l.b16 %v297
      %v632 = vunpack.c.l.b16 %v298
      %v633 = vunpack.c.l.b16 %v299
      %v634 = vunpack.c.l.b16 %v300
      %v635 = vunpack.c.l.b16 %v301
      %v636 = vunpack.c.l.b16 %v302
      %v637 = vunpack.c.l.b16 %v303
      %v638 = vunpack.c.l.b16 %v304
      %v639 = vunpack.c.l.b16 %v305
      %v640 = vunpack.c.l.b16 %v306
      %v641 = vunpack.c.l.b16 %v307
      %v642 = vunpack.c.l.b16 %v308
      %v643 = vunpack.c.l.b16 %v309
      %v644 = vunpack.c.l.b16 %v310
      %v645 = vunpack.c.l.b16 %v311
      %v646 = vunpack.c.l.b16 %v312
      %v647 = vunpack.c.l.b16 %v313
      %v648 = vunpack.c.l.b16 %v314
      %v649 = vunpack.c.l.b16 %v315
      %v650 = vunpack.c.l.b16 %v316
      %v651 = vunpack.c.l.b16 %v317
      %v652 = vunpack.c.l.b16 %v318
      %v653 = vunpack.c.l.b16 %v319
      %v654 = vunpack.c.l.b16 %v320
      %v655 = vunpack.c.l.b16 %v321
      %v656 = vunpack.c.l.b16 %v322
      %v657 = vunpack.c.l.b16 %v323
      %v658 = vunpack.c.l.b16 %v324
      %v659 = vunpack.c.l.b16 %v325
      %v660 = vunpack.c.l.b16 %v326
      %v661 = vunpack.c.l.b16 %v327
      %v662 = vunpack.c.l.b16 %v328
      %v663 = vunpack.c.l.b16 %v329
      %v664 = vunpack.c.l.b16 %v330
      %v665 = vunpack.c.l.b16 %v331
      %v666 = vunpack.c.l.b16 %v332
      %v667 = vunpack.c.l.b16 %v333
      %v668 = vunpack.c.l.b16 %v334
      %v669 = vunpack.c.l.b16 %v335
      %v670 = vunpack.c.l.b16 %v336
      %v671 = vunpack.c.l.b16 %v337
      %v672 = vunpack.c.l.b16 %v338
      %v673 = vunpack.c.l.b16 %v339
      %v674 = vunpack.c.l.b16 %v340
      %v675 = vunpack.c.l.b16 %v341
      %v676 = vunpack.c.l.b16 %v342
      %v677 = vunpack.c.l.b16 %v343
      %v678 = vunpack.c.l.b16 %v344
      %v679 = vunpack.c.l.b16 %v345
      %v680 = vunpack.c.l.b16 %v346
      %v681 = vunpack.c.l.b16 %v347
      %v682 = vunpack.c.l.b16 %v348
      %v683 = vunpack.c.l.b16 %v349
      %v684 = vunpack.c.l.b16 %v350
      %v685 = vunpack.c.l.b16 %v351
      %v686 = vunpack.c.l.b16 %v352
      %v687 = vunpack.c.l.b16 %v353
      %v688 = vunpack.c.l.b16 %v354
      %v689 = vunpack.c.l.b16 %v355
      %v690 = vunpack.c.l.b16 %v356
      %v691 = vunpack.c.l.b16 %v357
      %v692 = vunpack.c.l.b16 %v358
      %v693 = vunpack.c.l.b16 %v359
      %v694 = vunpack.c.l.b16 %v360
      %v695 = vunpack.c.l.b16 %v361
      %v696 = vunpack.c.l.b16 %v362
      %v697 = vunpack.c.l.b16 %v363
      %v698 = vunpack.c.l.b16 %v364
      %v699 = vunpack.c.l.b16 %v365
      %v700 = vunpack.c.l.b16 %v366
      %v701 = vunpack.c.l.b16 %v367
      %v702 = vunpack.c.l.b16 %v368
      %v703 = vunpack.c.l.b16 %v369
      %v704 = vpack.c.b16 %v561, %v560
      %v705 = vpack.c.b16 %v563, %v562
      %v706 = vpack.c.b16 %v565, %v564
      %v707 = vpack.c.b16 %v567, %v566
      %v708 = vpack.c.b16 %v569, %v568
      %v709 = vpack.c.b16 %v571, %v570
      %v710 = vpack.c.b16 %v573, %v572
      %v711 = vpack.c.b16 %v575, %v574
      %v712 = vpack.c.b16 %v577, %v576
      %v713 = vpack.c.b16 %v579, %v578
      %v714 = vpack.c.b16 %v581, %v580
      %v715 = vpack.c.b16 %v583, %v582
      %v716 = vpack.c.b16 %v585, %v584
      %v717 = vpack.c.b16 %v587, %v586
      %v718 = vpack.c.b16 %v589, %v588
      %v719 = vpack.c.b16 %v591, %v590
      %v720 = vpack.c.b16 %v593, %v592
      %v721 = vpack.c.b16 %v595, %v594
      %v722 = vpack.c.b16 %v597, %v596
      %v723 = vpack.c.b16 %v599, %v598
      %v724 = vpack.c.b16 %v601, %v600
      %v725 = vpack.c.b16 %v603, %v602
      %v726 = vpack.c.b16 %v605, %v604
      %v727 = vpack.c.b16 %v607, %v606
      %v728 = vpack.c.b16 %v609, %v608
      %v729 = vpack.c.b16 %v611, %v610
      %v730 = vpack.c.b16 %v613, %v612
      %v731 = vpack.c.b16 %v615, %v614
      %v732 = vpack.c.b16 %v617, %v616
      %v733 = vpack.c.b16 %v619, %v618
      %v734 = vpack.c.b16 %v621, %v620
      %v735 = vpack.c.b16 %v623, %v622
      %v736 = vpack.c.b16 %v625, %v624
      %v737 = vpack.c.b16 %v627, %v626
      %v738 = vpack.c.b16 %v629, %v628
      %v739 = vpack.c.b16 %v631, %v630
      %v740 = vpack.c.b16 %v633, %v632
      %v741 = vpack.c.b16 %v635, %v634
      %v742 = vpack.c.b16 %v637, %v636
      %v743 = vpack.c.b16 %v639, %v638
      %v744 = vpack.c.b16 %v641, %v640
      %v745 = vpack.c.b16 %v643, %v642
      %v746 = vpack.c.b16 %v645, %v644
      %v747 = vpack.c.b16 %v647, %v646
      %v748 = vpack.c.b16 %v649, %v648
      %v749 = vpack.c.b16 %v651, %v650
      %v750 = vpack.c.b16 %v653, %v652
      %v751 = vpack.c.b16 %v655, %v654
      %v752 = vpack.c.b16 %v657, %v656
      %v753 = vpack.c.b16 %v659, %v658
      %v754 = vpack.c.b16 %v661, %v660
      %v755 = vpack.c.b16 %v663, %v662
      %v756 = vpack.c.b16 %v665, %v664
      %v757 = vpack.c.b16 %v667, %v666
      %v758 = vpack.c.b16 %v669, %v668
      %v759 = vpack.c.b16 %v671, %v670
      %v760 = vpack.c.b16 %v673, %v672
      %v761 = vpack.c.b16 %v675, %v674
      %v762 = vpack.c.b16 %v677, %v676
      %v763 = vpack.c.b16 %v679, %v678
      %v764 = vpack.c.b16 %v681, %v680
      %v765 = vpack.c.b16 %v683, %v682
      %v766 = vpack.c.b16 %v685, %v684
      %v767 = vpack.c.b16 %v687, %v686
      %v768 = vpack.c.b16 %v689, %v688
      %v769 = vpack.c.b16 %v691, %v690
      %v770 = vpack.c.b16 %v693, %v692
      %v771 = vpack.c.b16 %v695, %v694
      %v772 = vpack.c.b16 %v697, %v696
      %v773 = vpack.c.b16 %v699, %v698
      %v774 = vpack.c.b16 %v701, %v700
      %v775 = vpack.c.b16 %v703, %v702
      %848 = vmatprep.subr.bf16.mxu0 0
      %849 = vmatpush1.bf16.msra.mxu0 %v704
      %850 = vmatprep.subr.bf16.mxu0 0
      %851 = vmatpush1.bf16.msra.mxu0 %v705
      %852 = vmatprep.subr.bf16.mxu0 0
      %853 = vmatpush1.bf16.msra.mxu0 %v706
      %854 = vmatprep.subr.bf16.mxu0 0
      %855 = vmatpush1.bf16.msra.mxu0 %v707
      %856 = vmatprep.subr.bf16.mxu0 0
      %857 = vmatpush1.bf16.msra.mxu0 %v708
      %858 = vmatprep.subr.bf16.mxu0 0
      %859 = vmatpush1.bf16.msra.mxu0 %v709
      %860 = vmatprep.subr.bf16.mxu0 0
      %861 = vmatpush1.bf16.msra.mxu0 %v710
      %862 = vmatprep.subr.bf16.mxu0 0
      %863 = vmatpush1.bf16.msra.mxu0 %v711
      %864 = vmatprep.subr.bf16.mxu0 0
      %865 = vmatpush1.bf16.msra.mxu0 %v712
      %866 = vmatprep.subr.bf16.mxu0 0
      %867 = vmatpush1.bf16.msra.mxu0 %v713
      %868 = vmatprep.subr.bf16.mxu0 0
      %869 = vmatpush1.bf16.msra.mxu0 %v714
      %870 = vmatprep.subr.bf16.mxu0 0
      %871 = vmatpush1.bf16.msra.mxu0 %v715
      %872 = vmatprep.subr.bf16.mxu0 0
      %873 = vmatpush1.bf16.msra.mxu0 %v716
      %874 = vmatprep.subr.bf16.mxu0 0
      %875 = vmatpush1.bf16.msra.mxu0 %v717
      %876 = vmatprep.subr.bf16.mxu0 0
      %877 = vmatpush1.bf16.msra.mxu0 %v718
      %878 = vmatprep.subr.bf16.mxu0 0
      %879 = vmatpush1.bf16.msra.mxu0 %v719
      %880 = vmatprep.mubr.bf16.mxu0 %v399
      %881 = vmatmul.mubr.bf16.gmra.mrb[0].mxu0 %v398
      %v882 = vpop.f32.mrb[0].mxu0
      %v883 = vadd.f32 0.0, %v882
      %v884 = vpop.f32.mrb[0].mxu0
      %v885 = vpop.f32.mrb[0].mxu0
      %v886 = vadd.f32 0.0, %v885
      %v887 = vpop.f32.mrb[0].mxu0
      %888 = vdwg.mxu0
      %889 = vmatprep.subr.bf16.mxu0 0
      %890 = vmatpush1.bf16.msra.mxu0 %v720
      %891 = vmatprep.subr.bf16.mxu0 0
      %892 = vmatpush1.bf16.msra.mxu0 %v721
      %893 = vmatprep.subr.bf16.mxu0 0
      %894 = vmatpush1.bf16.msra.mxu0 %v722
      %895 = vmatprep.subr.bf16.mxu0 0
      %896 = vmatpush1.bf16.msra.mxu0 %v723
      %897 = vmatprep.subr.bf16.mxu0 0
      %898 = vmatpush1.bf16.msra.mxu0 %v724
      %899 = vmatprep.subr.bf16.mxu0 0
      %900 = vmatpush1.bf16.msra.mxu0 %v725
      %901 = vmatprep.subr.bf16.mxu0 0
      %902 = vmatpush1.bf16.msra.mxu0 %v726
      %903 = vmatprep.subr.bf16.mxu0 0
      %904 = vmatpush1.bf16.msra.mxu0 %v727
      %905 = vmatprep.subr.bf16.mxu0 0
      %906 = vmatpush1.bf16.msra.mxu0 %v728
      %907 = vmatprep.subr.bf16.mxu0 0
      %908 = vmatpush1.bf16.msra.mxu0 %v729
      %909 = vmatprep.subr.bf16.mxu0 0
      %910 = vmatpush1.bf16.msra.mxu0 %v730
      %911 = vmatprep.subr.bf16.mxu0 0
      %912 = vmatpush1.bf16.msra.mxu0 %v731
      %913 = vmatprep.subr.bf16.mxu0 0
      %914 = vmatpush1.bf16.msra.mxu0 %v732
      %915 = vmatprep.subr.bf16.mxu0 0
      %916 = vmatpush1.bf16.msra.mxu0 %v733
      %917 = vmatprep.subr.bf16.mxu0 0
      %918 = vmatpush1.bf16.msra.mxu0 %v734
      %919 = vmatprep.subr.bf16.mxu0 0
      %920 = vmatpush1.bf16.msra.mxu0 %v735
      %921 = vmatprep.mubr.bf16.mxu0 %v401
      %922 = vmatmul.mubr.bf16.gmra.mrb[0].mxu0 %v400
      %v923 = vpop.f32.mrb[0].mxu0
      %v924 = vadd.f32 %v883, %v923
      %v925 = vpop.f32.mrb[0].mxu0
      %v926 = vpop.f32.mrb[0].mxu0
      %v927 = vadd.f32 %v886, %v926
      %v928 = vpop.f32.mrb[0].mxu0
      %929 = vdwg.mxu0
      %930 = vmatprep.subr.bf16.mxu0 0
      %931 = vmatpush1.bf16.msra.mxu0 %v736
      %932 = vmatprep.subr.bf16.mxu0 0
      %933 = vmatpush1.bf16.msra.mxu0 %v737
      %934 = vmatprep.subr.bf16.mxu0 0
      %935 = vmatpush1.bf16.msra.mxu0 %v738
      %936 = vmatprep.subr.bf16.mxu0 0
      %937 = vmatpush1.bf16.msra.mxu0 %v739
      %938 = vmatprep.subr.bf16.mxu0 0
      %939 = vmatpush1.bf16.msra.mxu0 %v740
      %940 = vmatprep.subr.bf16.mxu0 0
      %941 = vmatpush1.bf16.msra.mxu0 %v741
      %942 = vmatprep.subr.bf16.mxu0 0
      %943 = vmatpush1.bf16.msra.mxu0 %v742
      %944 = vmatprep.subr.bf16.mxu0 0
      %945 = vmatpush1.bf16.msra.mxu0 %v743
      %946 = vmatprep.subr.bf16.mxu0 0
      %947 = vmatpush1.bf16.msra.mxu0 %v744
      %948 = vmatprep.subr.bf16.mxu0 0
      %949 = vmatpush1.bf16.msra.mxu0 %v745
      %950 = vmatprep.subr.bf16.mxu0 0
      %951 = vmatpush1.bf16.msra.mxu0 %v746
      %952 = vmatprep.subr.bf16.mxu0 0
      %953 = vmatpush1.bf16.msra.mxu0 %v747
      %954 = vmatprep.subr.bf16.mxu0 0
      %955 = vmatpush1.bf16.msra.mxu0 %v748
      %956 = vmatprep.subr.bf16.mxu0 0
      %957 = vmatpush1.bf16.msra.mxu0 %v749
      %958 = vmatprep.subr.bf16.mxu0 0
      %959 = vmatpush1.bf16.msra.mxu0 %v750
      %960 = vmatprep.subr.bf16.mxu0 0
      %961 = vmatpush1.bf16.msra.mxu0 %v751
      %962 = vmatprep.mubr.bf16.mxu0 %v403
      %963 = vmatmul.mubr.bf16.gmra.mrb[0].mxu0 %v402
      %v964 = vpop.f32.mrb[0].mxu0
      %v965 = vadd.f32 %v924, %v964
      %v966 = vpop.f32.mrb[0].mxu0
      %v967 = vpop.f32.mrb[0].mxu0
      %v968 = vadd.f32 %v927, %v967
      %v969 = vpop.f32.mrb[0].mxu0
      %970 = vdwg.mxu0
      %971 = vmatprep.subr.bf16.mxu0 0
      %972 = vmatpush1.bf16.msra.mxu0 %v752
      %973 = vmatprep.subr.bf16.mxu0 0
      %974 = vmatpush1.bf16.msra.mxu0 %v753
      %975 = vmatprep.subr.bf16.mxu0 0
      %976 = vmatpush1.bf16.msra.mxu0 %v754
      %977 = vmatprep.subr.bf16.mxu0 0
      %978 = vmatpush1.bf16.msra.mxu0 %v755
      %979 = vmatprep.subr.bf16.mxu0 0
      %980 = vmatpush1.bf16.msra.mxu0 %v756
      %981 = vmatprep.subr.bf16.mxu0 0
      %982 = vmatpush1.bf16.msra.mxu0 %v757
      %983 = vmatprep.subr.bf16.mxu0 0
      %984 = vmatpush1.bf16.msra.mxu0 %v758
      %985 = vmatprep.subr.bf16.mxu0 0
      %986 = vmatpush1.bf16.msra.mxu0 %v759
      %987 = vmatprep.subr.bf16.mxu0 0
      %988 = vmatpush1.bf16.msra.mxu0 %v760
      %989 = vmatprep.subr.bf16.mxu0 0
      %990 = vmatpush1.bf16.msra.mxu0 %v761
      %991 = vmatprep.subr.bf16.mxu0 0
      %992 = vmatpush1.bf16.msra.mxu0 %v762
      %993 = vmatprep.subr.bf16.mxu0 0
      %994 = vmatpush1.bf16.msra.mxu0 %v763
      %995 = vmatprep.subr.bf16.mxu0 0
      %996 = vmatpush1.bf16.msra.mxu0 %v764
      %997 = vmatprep.subr.bf16.mxu0 0
      %998 = vmatpush1.bf16.msra.mxu0 %v765
      %999 = vmatprep.subr.bf16.mxu0 0
      %1000 = vmatpush1.bf16.msra.mxu0 %v766
      %1001 = vmatprep.subr.bf16.mxu0 0
      %1002 = vmatpush1.bf16.msra.mxu0 %v767
      %1003 = vmatprep.mubr.bf16.mxu0 %v405
      %1004 = vmatmul.mubr.bf16.gmra.mrb[0].mxu0 %v404
      %v1005 = vpop.f32.mrb[0].mxu0
      %v1006 = vadd.f32 %v965, %v1005
      %v1007 = vpop.f32.mrb[0].mxu0
      %v1008 = vpop.f32.mrb[0].mxu0
      %v1009 = vadd.f32 %v968, %v1008
      %v1010 = vpop.f32.mrb[0].mxu0
      %1011 = vdwg.mxu0
      %1012 = vmatprep.subr.bf16.mxu0 0
      %1013 = vmatpush1.bf16.msra.mxu0 %v768
      %1014 = vmatprep.subr.bf16.mxu0 0
      %1015 = vmatpush1.bf16.msra.mxu0 %v769
      %1016 = vmatprep.subr.bf16.mxu0 0
      %1017 = vmatpush1.bf16.msra.mxu0 %v770
      %1018 = vmatprep.subr.bf16.mxu0 0
      %1019 = vmatpush1.bf16.msra.mxu0 %v771
      %1020 = vmatprep.subr.bf16.mxu0 0
      %1021 = vmatpush1.bf16.msra.mxu0 %v772
      %1022 = vmatprep.subr.bf16.mxu0 0
      %1023 = vmatpush1.bf16.msra.mxu0 %v773
      %1024 = vmatprep.subr.bf16.mxu0 0
      %1025 = vmatpush1.bf16.msra.mxu0 %v774
      %1026 = vmatprep.subr.bf16.mxu0 0
      %1027 = vmatpush1.bf16.msra.mxu0 %v775
      %1028 = vmatprep.subr.bf16.mxu0 0
      %1029 = vmatpush1.bf16.msra.mxu0 0
      %1030 = vmatprep.subr.bf16.mxu0 0
      %1031 = vmatpush1.bf16.msra.mxu0 0
      %1032 = vmatprep.subr.bf16.mxu0 0
      %1033 = vmatpush1.bf16.msra.mxu0 0
      %1034 = vmatprep.subr.bf16.mxu0 0
      %1035 = vmatpush1.bf16.msra.mxu0 0
      %1036 = vmatprep.subr.bf16.mxu0 0
      %1037 = vmatpush1.bf16.msra.mxu0 0
      %1038 = vmatprep.subr.bf16.mxu0 0
      %1039 = vmatpush1.bf16.msra.mxu0 0
      %1040 = vmatprep.subr.bf16.mxu0 0
      %1041 = vmatpush1.bf16.msra.mxu0 0
      %1042 = vmatprep.subr.bf16.mxu0 0
      %1043 = vmatpush1.bf16.msra.mxu0 0
      %1044 = vmatprep.mubr.bf16.mxu0 0
      %1045 = vmatmul.mubr.bf16.gmra.mrb[0].mxu0 %v406
      %v1046 = vpop.f32.mrb[0].mxu0
      %v1047 = vadd.f32 %v1006, %v1046
      %v1048 = vpop.f32.mrb[0].mxu0
      %v1049 = vpop.f32.mrb[0].mxu0
      %v1050 = vadd.f32 %v1009, %v1049
      %v1051 = vpop.f32.mrb[0].mxu0
      %1052 = vdwg.mxu0
      %vm1053 = vcmask 261120
      %1054 = vst.msk [vmem:[%s208] sm:$0xff] %vm1053, %v1047
      %1055 = vst.msk [vmem:[%s208 + $0x8] sm:$0xff] %vm1053, %v1050
      %v1056 = vsel %vm1053, %v1047, 0.0
      %v1057 = vsel %vm1053, %v1050, 0.0
      %v1058 = vadd.f32 %v1056, %v1057
      %v1059 = vrot.slane %v1058, 4
      %v1060 = vadd.f32 %v1058, %v1059
      %v1061 = vrot.slane %v1060, 2
      %v1062 = vadd.f32 %v1060, %v1061
      %v1063 = vrot.slane %v1062, 1
      %v1064 = vadd.f32 %v1062, %v1063
      %vm1065 = vcmask 253952
      %1066 = vst.msk [vmem:[%s211] sm:$0x1] %vm1065, %v1064
      %v1067 = vmul.f32 %v1047, %v1047
      %v1068 = vmul.f32 %v1050, %v1050
      %v1069 = vsel %vm1053, %v1067, 0.0
      %v1070 = vsel %vm1053, %v1068, 0.0
      %v1071 = vadd.f32 %v1069, %v1070
      %v1072 = vrot.slane %v1071, 4
      %v1073 = vadd.f32 %v1071, %v1072
      %v1074 = vrot.slane %v1073, 2
      %v1075 = vadd.f32 %v1073, %v1074
      %v1076 = vrot.slane %v1075, 1
      %v1077 = vadd.f32 %v1075, %v1076
      %1078 = vst.msk [vmem:[%s214] sm:$0x1] %vm1065, %v1077
      %p1079 = scmp.lt.s32.totalorder %s16, 1
      %s1080 = scalar_select %p1079, %s16, 1
      %s1081 = smul.addr %s1080, 2
      %s1082 = smul.addr %s1081, 8
      %s1083 = scalar_lea.vmem %s2, %s1082
      %p1084 = scmp.lt.s32.totalorder %s16, 1
      %s1085 = scalar_select %p1084, %s16, 1
      %s1086 = scalar_lea.vmem %s3, %s1085
      %p1087 = scmp.lt.s32.totalorder %s16, 1
      %s1088 = scalar_select %p1087, %s16, 1
      %s1089 = scalar_lea.vmem %s4, %s1088
      // Predicated region
      $region29: #{ddpm_forward.22} parent=27 // pred_check
        %p1090 = pneg %p81
      $region30: #{ddpm_forward.22} parent=27 // pred_check_branch
        %1092 = sbr.rel (%p1090) target = $region32
      $region31: #{ddpm_forward.22} parent=27 // pred_region
        _
      $region32: #{ddpm_forward.22} parent=27 // pred_fallthru
        _
      // Predicated region
      $region33: #{ddpm_forward.22} parent=27 // pred_check
        %p1093 = pneg %p107
      $region34: #{ddpm_forward.22} parent=27 // pred_check_branch
        %1095 = sbr.rel (%p1093) target = $region36
      $region35: #{ddpm_forward.22} parent=27 // pred_region
        _
      $region36: #{ddpm_forward.22} parent=27 // pred_fallthru
        _
      // Predicated region
      $region37: #{ddpm_forward.22} parent=27 // pred_check
        %p1096 = pneg %p133
      $region38: #{ddpm_forward.22} parent=27 // pred_check_branch
        %1098 = sbr.rel (%p1096) target = $region40
      $region39: #{ddpm_forward.22} parent=27 // pred_region
        _
      $region40: #{ddpm_forward.22} parent=27 // pred_fallthru
        _
    $region28: #{ddpm_forward.22} parent=5 // pred_fallthru
      _
    %p1099 = scmp.le.s32.totalorder 2, %s11
    // Predicated region
    $region41: #{ddpm_forward.22} parent=5 // pred_check
      %p1100 = pneg %p1099
    $region42: #{ddpm_forward.22} parent=5 // pred_check_branch
      %1102 = sbr.rel (%p1100) target = $region44
    $region43: #{ddpm_forward.22} parent=5 // pred_region
      %s1103 = ssub.s32 %s11, 2
      // Predicated region
      $region45: #{ddpm_forward.22} parent=43 // pred_check
        %p1104 = pneg %p87
      $region46: #{ddpm_forward.22} parent=43 // pred_check_branch
        %1106 = sbr.rel (%p1104) target = $region48
      $region47: #{ddpm_forward.22} parent=43 // pred_region
        %p1107 = scmp.lt.s32.totalorder %s17, 1
        %s1108 = scalar_select %p1107, %s17, 1
        %s1109 = smul.addr %s1108, 2
        %s1110 = smul.addr %s1109, 8
        %s1111 = scalar_lea.vmem %s2, %s1110
      $region48: #{ddpm_forward.22} parent=43 // pred_fallthru
        _
      // Predicated region
      $region49: #{ddpm_forward.22} parent=43 // pred_check
        %p1112 = pneg %p113
      $region50: #{ddpm_forward.22} parent=43 // pred_check_branch
        %1114 = sbr.rel (%p1112) target = $region52
      $region51: #{ddpm_forward.22} parent=43 // pred_region
        %p1115 = scmp.lt.s32.totalorder %s17, 1
        %s1116 = scalar_select %p1115, %s17, 1
        %s1117 = scalar_lea.vmem %s3, %s1116
      $region52: #{ddpm_forward.22} parent=43 // pred_fallthru
        _
      // Predicated region
      $region53: #{ddpm_forward.22} parent=43 // pred_check
        %p1118 = pneg %p139
      $region54: #{ddpm_forward.22} parent=43 // pred_check_branch
        %1120 = sbr.rel (%p1118) target = $region56
      $region55: #{ddpm_forward.22} parent=43 // pred_region
        %p1121 = scmp.lt.s32.totalorder %s17, 1
        %s1122 = scalar_select %p1121, %s17, 1
        %s1123 = scalar_lea.vmem %s4, %s1122
      $region56: #{ddpm_forward.22} parent=43 // pred_fallthru
        _
    $region44: #{ddpm_forward.22} parent=5 // pred_fallthru
      _
  $region6: #{ddpm_forward.22} parent=0 // loop_footer
    %s15 = sadd.s32 1, %s11
  $region7: #{ddpm_forward.22} parent=0 // loop_footer_branch
    %10 = sbr.rel target = $region3
  $region8: #{ddpm_forward.22} parent=0 // loop_exit
    _

// kernel: ddpm_forward.25
$region0: #{ddpm_forward.25}
  #allocation0 [shape = 'u32[]', space=smem, size = 0x4, offset = 0x4, fixed_abs, tag = 'smem constant byte address 0x4 - core index']
  #allocation1 [shape = 'u32[144,128]{1,0:T(1,128)}', space=vmem, size = 0x12000, scoped, tag = 'internal scratch']
  %s0 = inlined_call_operand.vmem [shape: f32[2,64,16], index: 0, kind: input, shape index: {}]
  %s1 = inlined_call_operand.vmem [shape: f32[1,16], index: 1, kind: input, shape index: {}]
  %s2 = inlined_call_operand.vmem [shape: f32[1,16], index: 2, kind: input, shape index: {}]
  %s3 = inlined_call_operand.vmem [shape: f32[2,64,16], index: 3, kind: output, shape index: {}]
  %s4 = sld [smem:[#allocation0]]
  $region45: #{ddpm_forward.25} parent=0
    _
  %s6 = ssub.s32 1, %s4
  %s7 = scalar_select 0, %s6, %s4
  loop: start=0, step=1, limit=4
  $region2: #{ddpm_forward.25} parent=0 // loop_pre_header
    _
  $region3: #{ddpm_forward.25} parent=0 // loop_header
    %s9 = sphi 0, %s13
    %p10 = scmp.ge.s32.totalorder %s9, 4
    %s19 = sphi 0, %s21
    %s22 = sphi 0, %s19
    %s23 = sphi 0, %s22
    %s39 = sphi 0, %s23
    %s43 = sphi 0, %s43
    %s45 = sphi 0, %s43
    %s46 = sphi 0, %s45
    %s60 = sphi 0, %s46
    %s64 = sphi 0, %s64
    %s66 = sphi 0, %s64
    %s67 = sphi 0, %s66
    %s81 = sphi 0, %s67
    %s87 = sphi 0, %s89
    %s90 = sphi 0, %s87
    %s91 = sphi 0, %s90
    %s107 = sphi 0, %s91
  $region4: #{ddpm_forward.25} parent=0 // loop_header_branch
    %12 = sbr.rel (%p10) target = $region8
  $region5: #{ddpm_forward.25} parent=0 // loop_body
    %s14 = ssub.s32 %s9, 1
    %s15 = ssub.s32 %s9, 2
    %s16 = sadd.s32 %s9, 1
    %s17 = ssub.s32 %s9, %s16
    %p18 = scmp.eq.s32.totalorder %s17, 0
    %s20 = sadd.s32 %s19, 1
    %s21 = scalar_select %p18, %s19, %s20
    %p24 = pneg %p18
    %p25 = scmp.eq.s32.totalorder %s9, 1
    %p26 = por %p24, %p25
    %p27 = scmp.ne.s32.totalorder %s19, %s22
    %p28 = scmp.eq.s32.totalorder %s9, 0
    %p29 = por %p27, %p28
    %p30 = scmp.ne.s32.totalorder %s19, %s22
    %p31 = scmp.eq.s32.totalorder %s14, 1
    %p32 = por %p30, %p31
    %p33 = scmp.ne.s32.totalorder %s22, %s23
    %p34 = scmp.eq.s32.totalorder %s14, 0
    %p35 = por %p33, %p34
    %p36 = scmp.ne.s32.totalorder %s22, %s23
    %p37 = scmp.eq.s32.totalorder %s15, 1
    %p38 = por %p36, %p37
    %p40 = scmp.ne.s32.totalorder %s23, %s39
    %p41 = scmp.eq.s32.totalorder %s15, 0
    %p42 = por %p40, %p41
    %s44 = sadd.s32 %s43, 1
    %p47 = scmp.eq.s32.totalorder %s9, 1
    %p48 = scmp.ne.s32.totalorder %s43, %s45
    %p49 = scmp.eq.s32.totalorder %s9, 0
    %p50 = por %p48, %p49
    %p51 = scmp.ne.s32.totalorder %s43, %s45
    %p52 = scmp.eq.s32.totalorder %s14, 1
    %p53 = por %p51, %p52
    %p54 = scmp.ne.s32.totalorder %s45, %s46
    %p55 = scmp.eq.s32.totalorder %s14, 0
    %p56 = por %p54, %p55
    %p57 = scmp.ne.s32.totalorder %s45, %s46
    %p58 = scmp.eq.s32.totalorder %s15, 1
    %p59 = por %p57, %p58
    %p61 = scmp.ne.s32.totalorder %s46, %s60
    %p62 = scmp.eq.s32.totalorder %s15, 0
    %p63 = por %p61, %p62
    %s65 = sadd.s32 %s64, 1
    %p68 = scmp.eq.s32.totalorder %s9, 1
    %p69 = scmp.ne.s32.totalorder %s64, %s66
    %p70 = scmp.eq.s32.totalorder %s9, 0
    %p71 = por %p69, %p70
    %p72 = scmp.ne.s32.totalorder %s64, %s66
    %p73 = scmp.eq.s32.totalorder %s14, 1
    %p74 = por %p72, %p73
    %p75 = scmp.ne.s32.totalorder %s66, %s67
    %p76 = scmp.eq.s32.totalorder %s14, 0
    %p77 = por %p75, %p76
    %p78 = scmp.ne.s32.totalorder %s66, %s67
    %p79 = scmp.eq.s32.totalorder %s15, 1
    %p80 = por %p78, %p79
    %p82 = scmp.ne.s32.totalorder %s67, %s81
    %p83 = scmp.eq.s32.totalorder %s15, 0
    %p84 = por %p82, %p83
    %s85 = ssub.s32 %s9, %s16
    %p86 = scmp.eq.s32.totalorder %s85, 0
    %s88 = sadd.s32 %s87, 1
    %s89 = scalar_select %p86, %s87, %s88
    %p92 = pneg %p86
    %p93 = scmp.eq.s32.totalorder %s9, 1
    %p94 = por %p92, %p93
    %p95 = scmp.ne.s32.totalorder %s87, %s90
    %p96 = scmp.eq.s32.totalorder %s9, 0
    %p97 = por %p95, %p96
    %p98 = scmp.ne.s32.totalorder %s87, %s90
    %p99 = scmp.eq.s32.totalorder %s14, 1
    %p100 = por %p98, %p99
    %p101 = scmp.ne.s32.totalorder %s90, %s91
    %p102 = scmp.eq.s32.totalorder %s14, 0
    %p103 = por %p101, %p102
    %p104 = scmp.ne.s32.totalorder %s90, %s91
    %p105 = scmp.eq.s32.totalorder %s15, 1
    %p106 = por %p104, %p105
    %p108 = scmp.ne.s32.totalorder %s91, %s107
    %p109 = scmp.eq.s32.totalorder %s15, 0
    %p110 = por %p108, %p109
    %p111 = scmp.le.s32.totalorder 1, %s9
    %p112 = scmp.lt.s32.totalorder %s9, 3
    %p113 = pnand %p111, %p112
    %p114 = pneg %p113
    // Predicated region
    $region9: #{ddpm_forward.25} parent=5 // pred_check
      _
    $region10: #{ddpm_forward.25} parent=5 // pred_check_branch
      %116 = sbr.rel (%p113) target = $region12
    $region11: #{ddpm_forward.25} parent=5 // pred_region
      %s117 = ssub.s32 %s9, 1
      // Predicated region
      $region13: #{ddpm_forward.25} parent=11 // pred_check
        %p118 = pneg %p56
      $region14: #{ddpm_forward.25} parent=11 // pred_check_branch
        %120 = sbr.rel (%p118) target = $region16
      $region15: #{ddpm_forward.25} parent=11 // pred_region
        _
      $region16: #{ddpm_forward.25} parent=11 // pred_fallthru
        _
      // Predicated region
      $region17: #{ddpm_forward.25} parent=11 // pred_check
        %p121 = pneg %p77
      $region18: #{ddpm_forward.25} parent=11 // pred_check_branch
        %123 = sbr.rel (%p121) target = $region20
      $region19: #{ddpm_forward.25} parent=11 // pred_region
        _
      $region20: #{ddpm_forward.25} parent=11 // pred_fallthru
        _
    $region12: #{ddpm_forward.25} parent=5 // pred_fallthru
      _
    %p124 = scmp.lt.s32.totalorder %s9, 2
    // Predicated region
    $region21: #{ddpm_forward.25} parent=5 // pred_check
      %p125 = pneg %p124
    $region22: #{ddpm_forward.25} parent=5 // pred_check_branch
      %127 = sbr.rel (%p125) target = $region24
    $region23: #{ddpm_forward.25} parent=5 // pred_region
      // Predicated region
      $region25: #{ddpm_forward.25} parent=23 // pred_check
        %p128 = pneg %p29
      $region26: #{ddpm_forward.25} parent=23 // pred_check_branch
        %130 = sbr.rel (%p128) target = $region28
      $region27: #{ddpm_forward.25} parent=23 // pred_region
        %p131 = scmp.lt.s32.totalorder %s9, 1
        %s132 = scalar_select %p131, %s9, 1
        %s133 = smul.addr %s132, 8
        %s134 = smul.addr %s133, 8
        %s135 = scalar_lea.vmem %s0, %s134
      $region28: #{ddpm_forward.25} parent=23 // pred_fallthru
        _
    $region24: #{ddpm_forward.25} parent=5 // pred_fallthru
      _
    %p136 = scmp.le.s32.totalorder 1, %s9
    %p137 = scmp.lt.s32.totalorder %s9, 3
    %p138 = pnand %p136, %p137
    %p139 = pneg %p138
    // Predicated region
    $region29: #{ddpm_forward.25} parent=5 // pred_check
      _
    $region30: #{ddpm_forward.25} parent=5 // pred_check_branch
      %141 = sbr.rel (%p138) target = $region32
    $region31: #{ddpm_forward.25} parent=5 // pred_region
      %s142 = ssub.s32 %s9, 1
      %p143 = scmp.lt.s32.totalorder %s14, 1
      %s144 = scalar_select %p143, %s14, 1
      %s145 = smul.addr %s144, 8
      %s146 = smul.addr %s145, 8
      %s147 = scalar_lea.vmem %s0, %s146
      %p148 = pneg %p35
      %p149 = pneg %p32
      %p150 = pneg %p56
      %p151 = pneg %p53
      %p152 = pneg %p77
      %p153 = pneg %p74
      %p154 = pneg %p103
      %p155 = pneg %p100
      %p156 = scmp.lt.s32.totalorder %s14, 1
      %s157 = scalar_select %p156, %s14, 1
      %s158 = smul.addr %s157, 8
      %s159 = smul.addr %s158, 8
      %s160 = scalar_lea.vmem %s3, %s159
      %p161 = scmp.lt.s32.totalorder %s14, 1
      %s162 = scalar_select %p161, %s14, 1
      %s163 = smul.addr %s162, 8
      %s164 = smul.addr %s163, 8
      %s165 = scalar_lea.vmem %s0, %s164
      %p166 = scmp.lt.s32.totalorder %s14, 1
      %s167 = scalar_select %p166, %s14, 1
      %s168 = smul.addr %s167, 8
      %s169 = smul.addr %s168, 8
      %s170 = scalar_lea.vmem %s3, %s169
      %v171 = vld [vmem:[%s165] sm:$0xff]
      %v172 = vld [vmem:[%s165 + $0x8] sm:$0xff]
      %v173 = vld [vmem:[%s165 + $0x10] sm:$0xff]
      %v174 = vld [vmem:[%s165 + $0x18] sm:$0xff]
      %v175 = vld [vmem:[%s165 + $0x20] sm:$0xff]
      %v176 = vld [vmem:[%s165 + $0x28] sm:$0xff]
      %v177 = vld [vmem:[%s165 + $0x30] sm:$0xff]
      %v178 = vld [vmem:[%s165 + $0x38] sm:$0xff]
      %v179 = vld [vmem:[%s1] sm:$0x1]
      %v181 = vlaneseq
      %v182 = vshrl.u32 %v181, 7
      %v183 = vsub.s32 0, %v182
      %v184 = vrot.slane %v179, %v183
      %v186 = vmul.f32 %v171, %v184
      %v187 = vmul.f32 %v172, %v184
      %v188 = vmul.f32 %v173, %v184
      %v189 = vmul.f32 %v174, %v184
      %v190 = vmul.f32 %v175, %v184
      %v191 = vmul.f32 %v176, %v184
      %v192 = vmul.f32 %v177, %v184
      %v193 = vmul.f32 %v178, %v184
      %v194 = vld [vmem:[%s2] sm:$0x1]
      %v196 = vlaneseq
      %v197 = vshrl.u32 %v196, 7
      %v198 = vsub.s32 0, %v197
      %v199 = vrot.slane %v194, %v198
      %v201 = vadd.f32 %v186, %v199
      %v202 = vadd.f32 %v187, %v199
      %v203 = vadd.f32 %v188, %v199
      %v204 = vadd.f32 %v189, %v199
      %v205 = vadd.f32 %v190, %v199
      %v206 = vadd.f32 %v191, %v199
      %v207 = vadd.f32 %v192, %v199
      %v208 = vadd.f32 %v193, %v199
      %v209 = vmax.f32 %v201, 0.0
      %v210 = vmax.f32 %v202, 0.0
      %v211 = vmax.f32 %v203, 0.0
      %v212 = vmax.f32 %v204, 0.0
      %v213 = vmax.f32 %v205, 0.0
      %v214 = vmax.f32 %v206, 0.0
      %v215 = vmax.f32 %v207, 0.0
      %v216 = vmax.f32 %v208, 0.0
      %vm217 = vcmask 130048
      %218 = vst.msk [vmem:[%s170] sm:$0xff] %vm217, %v209
      %219 = vst.msk [vmem:[%s170 + $0x8] sm:$0xff] %vm217, %v210
      %220 = vst.msk [vmem:[%s170 + $0x10] sm:$0xff] %vm217, %v211
      %221 = vst.msk [vmem:[%s170 + $0x18] sm:$0xff] %vm217, %v212
      %222 = vst.msk [vmem:[%s170 + $0x20] sm:$0xff] %vm217, %v213
      %223 = vst.msk [vmem:[%s170 + $0x28] sm:$0xff] %vm217, %v214
      %224 = vst.msk [vmem:[%s170 + $0x30] sm:$0xff] %vm217, %v215
      %225 = vst.msk [vmem:[%s170 + $0x38] sm:$0xff] %vm217, %v216
      %p226 = scmp.lt.s32.totalorder %s14, 1
      %s227 = scalar_select %p226, %s14, 1
      %s228 = smul.addr %s227, 8
      %s229 = smul.addr %s228, 8
      %s230 = scalar_lea.vmem %s3, %s229
      // Predicated region
      $region33: #{ddpm_forward.25} parent=31 // pred_check
        %p231 = pneg %p100
      $region34: #{ddpm_forward.25} parent=31 // pred_check_branch
        %233 = sbr.rel (%p231) target = $region36
      $region35: #{ddpm_forward.25} parent=31 // pred_region
        _
      $region36: #{ddpm_forward.25} parent=31 // pred_fallthru
        _
    $region32: #{ddpm_forward.25} parent=5 // pred_fallthru
      _
    %p234 = scmp.le.s32.totalorder 2, %s9
    // Predicated region
    $region37: #{ddpm_forward.25} parent=5 // pred_check
      %p235 = pneg %p234
    $region38: #{ddpm_forward.25} parent=5 // pred_check_branch
      %237 = sbr.rel (%p235) target = $region40
    $region39: #{ddpm_forward.25} parent=5 // pred_region
      %s238 = ssub.s32 %s9, 2
      // Predicated region
      $region41: #{ddpm_forward.25} parent=39 // pred_check
        %p239 = pneg %p106
      $region42: #{ddpm_forward.25} parent=39 // pred_check_branch
        %241 = sbr.rel (%p239) target = $region44
      $region43: #{ddpm_forward.25} parent=39 // pred_region
        %p242 = scmp.lt.s32.totalorder %s15, 1
        %s243 = scalar_select %p242, %s15, 1
        %s244 = smul.addr %s243, 8
        %s245 = smul.addr %s244, 8
        %s246 = scalar_lea.vmem %s3, %s245
      $region44: #{ddpm_forward.25} parent=39 // pred_fallthru
        _
    $region40: #{ddpm_forward.25} parent=5 // pred_fallthru
      _
  $region6: #{ddpm_forward.25} parent=0 // loop_footer
    %s13 = sadd.s32 1, %s9
  $region7: #{ddpm_forward.25} parent=0 // loop_footer_branch
    %8 = sbr.rel target = $region3
  $region8: #{ddpm_forward.25} parent=0 // loop_exit
    _

// kernel: ddpm_forward.24
$region0: #{ddpm_forward.24}
  #allocation0 [shape = 'u32[]', space=smem, size = 0x4, offset = 0x4, fixed_abs, tag = 'smem constant byte address 0x4 - core index']
  #allocation1 [shape = 'u32[144,128]{1,0:T(1,128)}', space=vmem, size = 0x12000, scoped, tag = 'internal scratch']
  %s0 = inlined_call_operand.vmem [shape: bf16[2,64,576], index: 0, kind: input, shape index: {}]
  %s1 = inlined_call_operand.vmem [shape: bf16[576,16], index: 1, kind: input, shape index: {}]
  %s2 = inlined_call_operand.vmem [shape: f32[2,64,16], index: 2, kind: output, shape index: {0}]
  %s3 = inlined_call_operand.vmem [shape: f32[2,1,16], index: 3, kind: output, shape index: {1}]
  %s4 = inlined_call_operand.vmem [shape: f32[2,1,16], index: 4, kind: output, shape index: {2}]
  %5 = xla_tuple %s2, %s3, %s4
  %s6 = sld [smem:[#allocation0]]
  $region57: #{ddpm_forward.24} parent=0
    _
  %s8 = ssub.s32 1, %s6
  %s9 = scalar_select 0, %s8, %s6
  loop: start=0, step=1, limit=4
  $region2: #{ddpm_forward.24} parent=0 // loop_pre_header
    _
  $region3: #{ddpm_forward.24} parent=0 // loop_header
    %s11 = sphi 0, %s15
    %p12 = scmp.ge.s32.totalorder %s11, 4
    %s21 = sphi 0, %s23
    %s24 = sphi 0, %s21
    %s25 = sphi 0, %s24
    %s41 = sphi 0, %s25
    %s45 = sphi 0, %s45
    %s47 = sphi 0, %s45
    %s48 = sphi 0, %s47
    %s62 = sphi 0, %s48
    %s68 = sphi 0, %s70
    %s71 = sphi 0, %s68
    %s72 = sphi 0, %s71
    %s88 = sphi 0, %s72
    %s94 = sphi 0, %s96
    %s97 = sphi 0, %s94
    %s98 = sphi 0, %s97
    %s114 = sphi 0, %s98
    %s120 = sphi 0, %s122
    %s123 = sphi 0, %s120
    %s124 = sphi 0, %s123
    %s140 = sphi 0, %s124
  $region4: #{ddpm_forward.24} parent=0 // loop_header_branch
    %14 = sbr.rel (%p12) target = $region8
  $region5: #{ddpm_forward.24} parent=0 // loop_body
    %s16 = ssub.s32 %s11, 1
    %s17 = ssub.s32 %s11, 2
    %s18 = sadd.s32 %s11, 1
    %s19 = ssub.s32 %s11, %s18
    %p20 = scmp.eq.s32.totalorder %s19, 0
    %s22 = sadd.s32 %s21, 1
    %s23 = scalar_select %p20, %s21, %s22
    %p26 = pneg %p20
    %p27 = scmp.eq.s32.totalorder %s11, 1
    %p28 = por %p26, %p27
    %p29 = scmp.ne.s32.totalorder %s21, %s24
    %p30 = scmp.eq.s32.totalorder %s11, 0
    %p31 = por %p29, %p30
    %p32 = scmp.ne.s32.totalorder %s21, %s24
    %p33 = scmp.eq.s32.totalorder %s16, 1
    %p34 = por %p32, %p33
    %p35 = scmp.ne.s32.totalorder %s24, %s25
    %p36 = scmp.eq.s32.totalorder %s16, 0
    %p37 = por %p35, %p36
    %p38 = scmp.ne.s32.totalorder %s24, %s25
    %p39 = scmp.eq.s32.totalorder %s17, 1
    %p40 = por %p38, %p39
    %p42 = scmp.ne.s32.totalorder %s25, %s41
    %p43 = scmp.eq.s32.totalorder %s17, 0
    %p44 = por %p42, %p43
    %s46 = sadd.s32 %s45, 1
    %p49 = scmp.eq.s32.totalorder %s11, 1
    %p50 = scmp.ne.s32.totalorder %s45, %s47
    %p51 = scmp.eq.s32.totalorder %s11, 0
    %p52 = por %p50, %p51
    %p53 = scmp.ne.s32.totalorder %s45, %s47
    %p54 = scmp.eq.s32.totalorder %s16, 1
    %p55 = por %p53, %p54
    %p56 = scmp.ne.s32.totalorder %s47, %s48
    %p57 = scmp.eq.s32.totalorder %s16, 0
    %p58 = por %p56, %p57
    %p59 = scmp.ne.s32.totalorder %s47, %s48
    %p60 = scmp.eq.s32.totalorder %s17, 1
    %p61 = por %p59, %p60
    %p63 = scmp.ne.s32.totalorder %s48, %s62
    %p64 = scmp.eq.s32.totalorder %s17, 0
    %p65 = por %p63, %p64
    %s66 = ssub.s32 %s11, %s18
    %p67 = scmp.eq.s32.totalorder %s66, 0
    %s69 = sadd.s32 %s68, 1
    %s70 = scalar_select %p67, %s68, %s69
    %p73 = pneg %p67
    %p74 = scmp.eq.s32.totalorder %s11, 1
    %p75 = por %p73, %p74
    %p76 = scmp.ne.s32.totalorder %s68, %s71
    %p77 = scmp.eq.s32.totalorder %s11, 0
    %p78 = por %p76, %p77
    %p79 = scmp.ne.s32.totalorder %s68, %s71
    %p80 = scmp.eq.s32.totalorder %s16, 1
    %p81 = por %p79, %p80
    %p82 = scmp.ne.s32.totalorder %s71, %s72
    %p83 = scmp.eq.s32.totalorder %s16, 0
    %p84 = por %p82, %p83
    %p85 = scmp.ne.s32.totalorder %s71, %s72
    %p86 = scmp.eq.s32.totalorder %s17, 1
    %p87 = por %p85, %p86
    %p89 = scmp.ne.s32.totalorder %s72, %s88
    %p90 = scmp.eq.s32.totalorder %s17, 0
    %p91 = por %p89, %p90
    %s92 = ssub.s32 %s11, %s18
    %p93 = scmp.eq.s32.totalorder %s92, 0
    %s95 = sadd.s32 %s94, 1
    %s96 = scalar_select %p93, %s94, %s95
    %p99 = pneg %p93
    %p100 = scmp.eq.s32.totalorder %s11, 1
    %p101 = por %p99, %p100
    %p102 = scmp.ne.s32.totalorder %s94, %s97
    %p103 = scmp.eq.s32.totalorder %s11, 0
    %p104 = por %p102, %p103
    %p105 = scmp.ne.s32.totalorder %s94, %s97
    %p106 = scmp.eq.s32.totalorder %s16, 1
    %p107 = por %p105, %p106
    %p108 = scmp.ne.s32.totalorder %s97, %s98
    %p109 = scmp.eq.s32.totalorder %s16, 0
    %p110 = por %p108, %p109
    %p111 = scmp.ne.s32.totalorder %s97, %s98
    %p112 = scmp.eq.s32.totalorder %s17, 1
    %p113 = por %p111, %p112
    %p115 = scmp.ne.s32.totalorder %s98, %s114
    %p116 = scmp.eq.s32.totalorder %s17, 0
    %p117 = por %p115, %p116
    %s118 = ssub.s32 %s11, %s18
    %p119 = scmp.eq.s32.totalorder %s118, 0
    %s121 = sadd.s32 %s120, 1
    %s122 = scalar_select %p119, %s120, %s121
    %p125 = pneg %p119
    %p126 = scmp.eq.s32.totalorder %s11, 1
    %p127 = por %p125, %p126
    %p128 = scmp.ne.s32.totalorder %s120, %s123
    %p129 = scmp.eq.s32.totalorder %s11, 0
    %p130 = por %p128, %p129
    %p131 = scmp.ne.s32.totalorder %s120, %s123
    %p132 = scmp.eq.s32.totalorder %s16, 1
    %p133 = por %p131, %p132
    %p134 = scmp.ne.s32.totalorder %s123, %s124
    %p135 = scmp.eq.s32.totalorder %s16, 0
    %p136 = por %p134, %p135
    %p137 = scmp.ne.s32.totalorder %s123, %s124
    %p138 = scmp.eq.s32.totalorder %s17, 1
    %p139 = por %p137, %p138
    %p141 = scmp.ne.s32.totalorder %s124, %s140
    %p142 = scmp.eq.s32.totalorder %s17, 0
    %p143 = por %p141, %p142
    %p144 = scmp.le.s32.totalorder 1, %s11
    %p145 = scmp.lt.s32.totalorder %s11, 3
    %p146 = pnand %p144, %p145
    %p147 = pneg %p146
    // Predicated region
    $region9: #{ddpm_forward.24} parent=5 // pred_check
      _
    $region10: #{ddpm_forward.24} parent=5 // pred_check_branch
      %149 = sbr.rel (%p146) target = $region12
    $region11: #{ddpm_forward.24} parent=5 // pred_region
      %s150 = ssub.s32 %s11, 1
      // Predicated region
      $region13: #{ddpm_forward.24} parent=11 // pred_check
        %p151 = pneg %p58
      $region14: #{ddpm_forward.24} parent=11 // pred_check_branch
        %153 = sbr.rel (%p151) target = $region16
      $region15: #{ddpm_forward.24} parent=11 // pred_region
        _
      $region16: #{ddpm_forward.24} parent=11 // pred_fallthru
        _
    $region12: #{ddpm_forward.24} parent=5 // pred_fallthru
      _
    %p154 = scmp.lt.s32.totalorder %s11, 2
    // Predicated region
    $region17: #{ddpm_forward.24} parent=5 // pred_check
      %p155 = pneg %p154
    $region18: #{ddpm_forward.24} parent=5 // pred_check_branch
      %157 = sbr.rel (%p155) target = $region20
    $region19: #{ddpm_forward.24} parent=5 // pred_region
      // Predicated region
      $region21: #{ddpm_forward.24} parent=19 // pred_check
        %p158 = pneg %p31
      $region22: #{ddpm_forward.24} parent=19 // pred_check_branch
        %160 = sbr.rel (%p158) target = $region24
      $region23: #{ddpm_forward.24} parent=19 // pred_region
        %p161 = scmp.lt.s32.totalorder %s11, 1
        %s162 = scalar_select %p161, %s11, 1
        %s163 = smul.addr %s162, 40
        %s164 = smul.addr %s163, 4
        %s165 = scalar_lea.vmem %s0, %s164
      $region24: #{ddpm_forward.24} parent=19 // pred_fallthru
        _
    $region20: #{ddpm_forward.24} parent=5 // pred_fallthru
      _
    %p166 = scmp.le.s32.totalorder 1, %s11
    %p167 = scmp.lt.s32.totalorder %s11, 3
    %p168 = pnand %p166, %p167
    %p169 = pneg %p168
    // Predicated region
    $region25: #{ddpm_forward.24} parent=5 // pred_check
      _
    $region26: #{ddpm_forward.24} parent=5 // pred_check_branch
      %171 = sbr.rel (%p168) target = $region28
    $region27: #{ddpm_forward.24} parent=5 // pred_region
      %s172 = ssub.s32 %s11, 1
      %p173 = scmp.lt.s32.totalorder %s16, 1
      %s174 = scalar_select %p173, %s16, 1
      %s175 = smul.addr %s174, 40
      %s176 = smul.addr %s175, 4
      %s177 = scalar_lea.vmem %s0, %s176
      %p178 = pneg %p37
      %p179 = pneg %p34
      %p180 = pneg %p58
      %p181 = pneg %p55
      %p182 = pneg %p84
      %p183 = pneg %p81
      %p184 = scmp.lt.s32.totalorder %s16, 1
      %s185 = scalar_select %p184, %s16, 1
      %s186 = smul.addr %s185, 8
      %s187 = smul.addr %s186, 8
      %s188 = scalar_lea.vmem %s2, %s187
      %p189 = pneg %p110
      %p190 = pneg %p107
      %p191 = scmp.lt.s32.totalorder %s16, 1
      %s192 = scalar_select %p191, %s16, 1
      %s193 = scalar_lea.vmem %s3, %s192
      %p194 = pneg %p136
      %p195 = pneg %p133
      %p196 = scmp.lt.s32.totalorder %s16, 1
      %s197 = scalar_select %p196, %s16, 1
      %s198 = scalar_lea.vmem %s4, %s197
      %p199 = scmp.lt.s32.totalorder %s16, 1
      %s200 = scalar_select %p199, %s16, 1
      %s201 = smul.addr %s200, 40
      %s202 = smul.addr %s201, 4
      %s203 = scalar_lea.vmem %s0, %s202
      %p204 = scmp.lt.s32.totalorder %s16, 1
      %s205 = scalar_select %p204, %s16, 1
      %s206 = smul.addr %s205, 8
      %s207 = smul.addr %s206, 8
      %s208 = scalar_lea.vmem %s2, %s207
      %p209 = scmp.lt.s32.totalorder %s16, 1
      %s210 = scalar_select %p209, %s16, 1
      %s211 = scalar_lea.vmem %s3, %s210
      %p212 = scmp.lt.s32.totalorder %s16, 1
      %s213 = scalar_select %p212, %s16, 1
      %s214 = scalar_lea.vmem %s4, %s213
      %v216 = vld [vmem:[%s203] sm:$0xff]
      %v217 = vld [vmem:[%s203 + $0x8] sm:$0xff]
      %v218 = vld [vmem:[%s203 + $0x10] sm:$0xf]
      %v219 = vld [vmem:[%s203 + $0x14] sm:$0xff]
      %v220 = vld [vmem:[%s203 + $0x1c] sm:$0xff]
      %v221 = vld [vmem:[%s203 + $0x24] sm:$0xf]
      %v222 = vld [vmem:[%s203 + $0x28] sm:$0xff]
      %v223 = vld [vmem:[%s203 + $0x30] sm:$0xff]
      %v224 = vld [vmem:[%s203 + $0x38] sm:$0xf]
      %v225 = vld [vmem:[%s203 + $0x3c] sm:$0xff]
      %v226 = vld [vmem:[%s203 + $0x44] sm:$0xff]
      %v227 = vld [vmem:[%s203 + $0x4c] sm:$0xf]
      %v228 = vld [vmem:[%s203 + $0x50] sm:$0xff]
      %v229 = vld [vmem:[%s203 + $0x58] sm:$0xff]
      %v230 = vld [vmem:[%s203 + $0x60] sm:$0xf]
      %v231 = vld [vmem:[%s203 + $0x64] sm:$0xff]
      %v232 = vld [vmem:[%s203 + $0x6c] sm:$0xff]
      %v233 = vld [vmem:[%s203 + $0x74] sm:$0xf]
      %v234 = vld [vmem:[%s203 + $0x78] sm:$0xff]
      %v235 = vld [vmem:[%s203 + $0x80] sm:$0xff]
      %v236 = vld [vmem:[%s203 + $0x88] sm:$0xf]
      %v237 = vld [vmem:[%s203 + $0x8c] sm:$0xff]
      %v238 = vld [vmem:[%s203 + $0x94] sm:$0xff]
      %v239 = vld [vmem:[%s203 + $0x9c] sm:$0xf]
      %v240 = vld [vmem:[%s1] sm:$0xf]
      %v241 = vld [vmem:[%s1 + $0x4] sm:$0xf]
      %v242 = vld [vmem:[%s1 + $0x8] sm:$0xf]
      %v243 = vld [vmem:[%s1 + $0xc] sm:$0xf]
      %v244 = vld [vmem:[%s1 + $0x10] sm:$0xf]
      %v245 = vld [vmem:[%s1 + $0x14] sm:$0xf]
      %v246 = vld [vmem:[%s1 + $0x18] sm:$0xf]
      %v247 = vld [vmem:[%s1 + $0x1c] sm:$0xf]
      %v248 = vld [vmem:[%s1 + $0x20] sm:$0xf]
      %v249 = vld [vmem:[%s1 + $0x24] sm:$0xf]
      %v250 = vld [vmem:[%s1 + $0x28] sm:$0xf]
      %v251 = vld [vmem:[%s1 + $0x2c] sm:$0xf]
      %v252 = vld [vmem:[%s1 + $0x30] sm:$0xf]
      %v253 = vld [vmem:[%s1 + $0x34] sm:$0xf]
      %v254 = vld [vmem:[%s1 + $0x38] sm:$0xf]
      %v255 = vld [vmem:[%s1 + $0x3c] sm:$0xf]
      %v256 = vld [vmem:[%s1 + $0x40] sm:$0xf]
      %v257 = vld [vmem:[%s1 + $0x44] sm:$0xf]
      %v258 = vld [vmem:[%s1 + $0x48] sm:$0xf]
      %v259 = vld [vmem:[%s1 + $0x4c] sm:$0xf]
      %v260 = vld [vmem:[%s1 + $0x50] sm:$0xf]
      %v261 = vld [vmem:[%s1 + $0x54] sm:$0xf]
      %v262 = vld [vmem:[%s1 + $0x58] sm:$0xf]
      %v263 = vld [vmem:[%s1 + $0x5c] sm:$0xf]
      %v264 = vld [vmem:[%s1 + $0x60] sm:$0xf]
      %v265 = vld [vmem:[%s1 + $0x64] sm:$0xf]
      %v266 = vld [vmem:[%s1 + $0x68] sm:$0xf]
      %v267 = vld [vmem:[%s1 + $0x6c] sm:$0xf]
      %v268 = vld [vmem:[%s1 + $0x70] sm:$0xf]
      %v269 = vld [vmem:[%s1 + $0x74] sm:$0xf]
      %v270 = vld [vmem:[%s1 + $0x78] sm:$0xf]
      %v271 = vld [vmem:[%s1 + $0x7c] sm:$0xf]
      %v272 = vld [vmem:[%s1 + $0x80] sm:$0xf]
      %v273 = vld [vmem:[%s1 + $0x84] sm:$0xf]
      %v274 = vld [vmem:[%s1 + $0x88] sm:$0xf]
      %v275 = vld [vmem:[%s1 + $0x8c] sm:$0xf]
      %v276 = vld [vmem:[%s1 + $0x90] sm:$0xf]
      %v277 = vld [vmem:[%s1 + $0x94] sm:$0xf]
      %v278 = vld [vmem:[%s1 + $0x98] sm:$0xf]
      %v279 = vld [vmem:[%s1 + $0x9c] sm:$0xf]
      %v280 = vld [vmem:[%s1 + $0xa0] sm:$0xf]
      %v281 = vld [vmem:[%s1 + $0xa4] sm:$0xf]
      %v282 = vld [vmem:[%s1 + $0xa8] sm:$0xf]
      %v283 = vld [vmem:[%s1 + $0xac] sm:$0xf]
      %v284 = vld [vmem:[%s1 + $0xb0] sm:$0xf]
      %v285 = vld [vmem:[%s1 + $0xb4] sm:$0xf]
      %v286 = vld [vmem:[%s1 + $0xb8] sm:$0xf]
      %v287 = vld [vmem:[%s1 + $0xbc] sm:$0xf]
      %v288 = vld [vmem:[%s1 + $0xc0] sm:$0xf]
      %v289 = vld [vmem:[%s1 + $0xc4] sm:$0xf]
      %v290 = vld [vmem:[%s1 + $0xc8] sm:$0xf]
      %v291 = vld [vmem:[%s1 + $0xcc] sm:$0xf]
      %v292 = vld [vmem:[%s1 + $0xd0] sm:$0xf]
      %v293 = vld [vmem:[%s1 + $0xd4] sm:$0xf]
      %v294 = vld [vmem:[%s1 + $0xd8] sm:$0xf]
      %v295 = vld [vmem:[%s1 + $0xdc] sm:$0xf]
      %v296 = vld [vmem:[%s1 + $0xe0] sm:$0xf]
      %v297 = vld [vmem:[%s1 + $0xe4] sm:$0xf]
      %v298 = vld [vmem:[%s1 + $0xe8] sm:$0xf]
      %v299 = vld [vmem:[%s1 + $0xec] sm:$0xf]
      %v300 = vld [vmem:[%s1 + $0xf0] sm:$0xf]
      %v301 = vld [vmem:[%s1 + $0xf4] sm:$0xf]
      %v302 = vld [vmem:[%s1 + $0xf8] sm:$0xf]
      %v303 = vld [vmem:[%s1 + $0xfc] sm:$0xf]
      %v304 = vld [vmem:[%s1 + $0x100] sm:$0xf]
      %v305 = vld [vmem:[%s1 + $0x104] sm:$0xf]
      %v306 = vld [vmem:[%s1 + $0x108] sm:$0xf]
      %v307 = vld [vmem:[%s1 + $0x10c] sm:$0xf]
      %v308 = vld [vmem:[%s1 + $0x110] sm:$0xf]
      %v309 = vld [vmem:[%s1 + $0x114] sm:$0xf]
      %v310 = vld [vmem:[%s1 + $0x118] sm:$0xf]
      %v311 = vld [vmem:[%s1 + $0x11c] sm:$0xf]
      %v336 = vunpack.c.l.b16 %v216
      %v337 = vunpack.c.h.b16 %v216
      %v338 = vunpack.c.l.b16 %v217
      %v339 = vunpack.c.h.b16 %v217
      %v340 = vunpack.c.l.b16 %v218
      %v341 = vunpack.c.l.b16 %v219
      %v342 = vunpack.c.h.b16 %v219
      %v343 = vunpack.c.l.b16 %v220
      %v344 = vunpack.c.h.b16 %v220
      %v345 = vunpack.c.l.b16 %v221
      %v346 = vunpack.c.l.b16 %v222
      %v347 = vunpack.c.h.b16 %v222
      %v348 = vunpack.c.l.b16 %v223
      %v349 = vunpack.c.h.b16 %v223
      %v350 = vunpack.c.l.b16 %v224
      %v351 = vunpack.c.l.b16 %v225
      %v352 = vunpack.c.h.b16 %v225
      %v353 = vunpack.c.l.b16 %v226
      %v354 = vunpack.c.h.b16 %v226
      %v355 = vunpack.c.l.b16 %v227
      %v356 = vunpack.c.l.b16 %v228
      %v357 = vunpack.c.h.b16 %v228
      %v358 = vunpack.c.l.b16 %v229
      %v359 = vunpack.c.h.b16 %v229
      %v360 = vunpack.c.l.b16 %v230
      %v361 = vunpack.c.l.b16 %v231
      %v362 = vunpack.c.h.b16 %v231
      %v363 = vunpack.c.l.b16 %v232
      %v364 = vunpack.c.h.b16 %v232
      %v365 = vunpack.c.l.b16 %v233
      %v366 = vunpack.c.l.b16 %v234
      %v367 = vunpack.c.h.b16 %v234
      %v368 = vunpack.c.l.b16 %v235
      %v369 = vunpack.c.h.b16 %v235
      %v370 = vunpack.c.l.b16 %v236
      %v371 = vunpack.c.l.b16 %v237
      %v372 = vunpack.c.h.b16 %v237
      %v373 = vunpack.c.l.b16 %v238
      %v374 = vunpack.c.h.b16 %v238
      %v375 = vunpack.c.l.b16 %v239
      %v376 = vpack.c.b16 %v341, %v336
      %v377 = vpack.c.b16 %v342, %v337
      %v378 = vpack.c.b16 %v343, %v338
      %v379 = vpack.c.b16 %v344, %v339
      %v380 = vpack.c.b16 %v345, %v340
      %v381 = vpack.c.b16 %v351, %v346
      %v382 = vpack.c.b16 %v352, %v347
      %v383 = vpack.c.b16 %v353, %v348
      %v384 = vpack.c.b16 %v354, %v349
      %v385 = vpack.c.b16 %v355, %v350
      %v386 = vpack.c.b16 %v361, %v356
      %v387 = vpack.c.b16 %v362, %v357
      %v388 = vpack.c.b16 %v363, %v358
      %v389 = vpack.c.b16 %v364, %v359
      %v390 = vpack.c.b16 %v365, %v360
      %v391 = vpack.c.b16 %v371, %v366
      %v392 = vpack.c.b16 %v372, %v367
      %v393 = vpack.c.b16 %v373, %v368
      %v394 = vpack.c.b16 %v374, %v369
      %v395 = vpack.c.b16 %v375, %v370
      %v484 = vunpack.c.l.b16 %v240
      %v485 = vunpack.c.l.b16 %v241
      %v486 = vunpack.c.l.b16 %v242
      %v487 = vunpack.c.l.b16 %v243
      %v488 = vunpack.c.l.b16 %v244
      %v489 = vunpack.c.l.b16 %v245
      %v490 = vunpack.c.l.b16 %v246
      %v491 = vunpack.c.l.b16 %v247
      %v492 = vunpack.c.l.b16 %v248
      %v493 = vunpack.c.l.b16 %v249
      %v494 = vunpack.c.l.b16 %v250
      %v495 = vunpack.c.l.b16 %v251
      %v496 = vunpack.c.l.b16 %v252
      %v497 = vunpack.c.l.b16 %v253
      %v498 = vunpack.c.l.b16 %v254
      %v499 = vunpack.c.l.b16 %v255
      %v500 = vunpack.c.l.b16 %v256
      %v501 = vunpack.c.l.b16 %v257
      %v502 = vunpack.c.l.b16 %v258
      %v503 = vunpack.c.l.b16 %v259
      %v504 = vunpack.c.l.b16 %v260
      %v505 = vunpack.c.l.b16 %v261
      %v506 = vunpack.c.l.b16 %v262
      %v507 = vunpack.c.l.b16 %v263
      %v508 = vunpack.c.l.b16 %v264
      %v509 = vunpack.c.l.b16 %v265
      %v510 = vunpack.c.l.b16 %v266
      %v511 = vunpack.c.l.b16 %v267
      %v512 = vunpack.c.l.b16 %v268
      %v513 = vunpack.c.l.b16 %v269
      %v514 = vunpack.c.l.b16 %v270
      %v515 = vunpack.c.l.b16 %v271
      %v516 = vunpack.c.l.b16 %v272
      %v517 = vunpack.c.l.b16 %v273
      %v518 = vunpack.c.l.b16 %v274
      %v519 = vunpack.c.l.b16 %v275
      %v520 = vunpack.c.l.b16 %v276
      %v521 = vunpack.c.l.b16 %v277
      %v522 = vunpack.c.l.b16 %v278
      %v523 = vunpack.c.l.b16 %v279
      %v524 = vunpack.c.l.b16 %v280
      %v525 = vunpack.c.l.b16 %v281
      %v526 = vunpack.c.l.b16 %v282
      %v527 = vunpack.c.l.b16 %v283
      %v528 = vunpack.c.l.b16 %v284
      %v529 = vunpack.c.l.b16 %v285
      %v530 = vunpack.c.l.b16 %v286
      %v531 = vunpack.c.l.b16 %v287
      %v532 = vunpack.c.l.b16 %v288
      %v533 = vunpack.c.l.b16 %v289
      %v534 = vunpack.c.l.b16 %v290
      %v535 = vunpack.c.l.b16 %v291
      %v536 = vunpack.c.l.b16 %v292
      %v537 = vunpack.c.l.b16 %v293
      %v538 = vunpack.c.l.b16 %v294
      %v539 = vunpack.c.l.b16 %v295
      %v540 = vunpack.c.l.b16 %v296
      %v541 = vunpack.c.l.b16 %v297
      %v542 = vunpack.c.l.b16 %v298
      %v543 = vunpack.c.l.b16 %v299
      %v544 = vunpack.c.l.b16 %v300
      %v545 = vunpack.c.l.b16 %v301
      %v546 = vunpack.c.l.b16 %v302
      %v547 = vunpack.c.l.b16 %v303
      %v548 = vunpack.c.l.b16 %v304
      %v549 = vunpack.c.l.b16 %v305
      %v550 = vunpack.c.l.b16 %v306
      %v551 = vunpack.c.l.b16 %v307
      %v552 = vunpack.c.l.b16 %v308
      %v553 = vunpack.c.l.b16 %v309
      %v554 = vunpack.c.l.b16 %v310
      %v555 = vunpack.c.l.b16 %v311
      %v556 = vpack.c.b16 %v485, %v484
      %v557 = vpack.c.b16 %v487, %v486
      %v558 = vpack.c.b16 %v489, %v488
      %v559 = vpack.c.b16 %v491, %v490
      %v560 = vpack.c.b16 %v493, %v492
      %v561 = vpack.c.b16 %v495, %v494
      %v562 = vpack.c.b16 %v497, %v496
      %v563 = vpack.c.b16 %v499, %v498
      %v564 = vpack.c.b16 %v501, %v500
      %v565 = vpack.c.b16 %v503, %v502
      %v566 = vpack.c.b16 %v505, %v504
      %v567 = vpack.c.b16 %v507, %v506
      %v568 = vpack.c.b16 %v509, %v508
      %v569 = vpack.c.b16 %v511, %v510
      %v570 = vpack.c.b16 %v513, %v512
      %v571 = vpack.c.b16 %v515, %v514
      %v572 = vpack.c.b16 %v517, %v516
      %v573 = vpack.c.b16 %v519, %v518
      %v574 = vpack.c.b16 %v521, %v520
      %v575 = vpack.c.b16 %v523, %v522
      %v576 = vpack.c.b16 %v525, %v524
      %v577 = vpack.c.b16 %v527, %v526
      %v578 = vpack.c.b16 %v529, %v528
      %v579 = vpack.c.b16 %v531, %v530
      %v580 = vpack.c.b16 %v533, %v532
      %v581 = vpack.c.b16 %v535, %v534
      %v582 = vpack.c.b16 %v537, %v536
      %v583 = vpack.c.b16 %v539, %v538
      %v584 = vpack.c.b16 %v541, %v540
      %v585 = vpack.c.b16 %v543, %v542
      %v586 = vpack.c.b16 %v545, %v544
      %v587 = vpack.c.b16 %v547, %v546
      %v588 = vpack.c.b16 %v549, %v548
      %v589 = vpack.c.b16 %v551, %v550
      %v590 = vpack.c.b16 %v553, %v552
      %v591 = vpack.c.b16 %v555, %v554
      %vm628 = vcmask 523264
      %v630 = vsel %vm628, %v380, 0
      %v633 = vsel %vm628, %v385, 0
      %v636 = vsel %vm628, %v390, 0
      %v639 = vsel %vm628, %v395, 0
      %641 = vmatprep.subr.bf16.mxu0 0
      %642 = vmatpush1.bf16.msra.mxu0 %v556
      %643 = vmatprep.subr.bf16.mxu0 0
      %644 = vmatpush1.bf16.msra.mxu0 %v557
      %645 = vmatprep.subr.bf16.mxu0 0
      %646 = vmatpush1.bf16.msra.mxu0 %v558
      %647 = vmatprep.subr.bf16.mxu0 0
      %648 = vmatpush1.bf16.msra.mxu0 %v559
      %649 = vmatprep.subr.bf16.mxu0 0
      %650 = vmatpush1.bf16.msra.mxu0 %v560
      %651 = vmatprep.subr.bf16.mxu0 0
      %652 = vmatpush1.bf16.msra.mxu0 %v561
      %653 = vmatprep.subr.bf16.mxu0 0
      %654 = vmatpush1.bf16.msra.mxu0 %v562
      %655 = vmatprep.subr.bf16.mxu0 0
      %656 = vmatpush1.bf16.msra.mxu0 %v563
      %657 = vmatprep.subr.bf16.mxu0 0
      %658 = vmatpush1.bf16.msra.mxu0 %v564
      %659 = vmatprep.subr.bf16.mxu0 0
      %660 = vmatpush1.bf16.msra.mxu0 %v565
      %661 = vmatprep.subr.bf16.mxu0 0
      %662 = vmatpush1.bf16.msra.mxu0 %v566
      %663 = vmatprep.subr.bf16.mxu0 0
      %664 = vmatpush1.bf16.msra.mxu0 %v567
      %665 = vmatprep.subr.bf16.mxu0 0
      %666 = vmatpush1.bf16.msra.mxu0 %v568
      %667 = vmatprep.subr.bf16.mxu0 0
      %668 = vmatpush1.bf16.msra.mxu0 %v569
      %669 = vmatprep.subr.bf16.mxu0 0
      %670 = vmatpush1.bf16.msra.mxu0 %v570
      %671 = vmatprep.subr.bf16.mxu0 0
      %672 = vmatpush1.bf16.msra.mxu0 %v571
      %673 = vmatprep.mubr.bf16.mxu0 %v377
      %674 = vmatmul.mubr.bf16.gmra.mrb[0].mxu0 %v376
      %v675 = vpop.f32.mrb[0].mxu0
      %v676 = vadd.f32 0.0, %v675
      %v677 = vpop.f32.mrb[0].mxu0
      %v678 = vpop.f32.mrb[0].mxu0
      %v679 = vadd.f32 0.0, %v678
      %v680 = vpop.f32.mrb[0].mxu0
      %681 = vmatprep.mubr.bf16.mxu0 %v382
      %682 = vmatmul.mubr.bf16.gmra.mrb[0].mxu0 %v381
      %v683 = vpop.f32.mrb[0].mxu0
      %v684 = vadd.f32 0.0, %v683
      %v685 = vpop.f32.mrb[0].mxu0
      %v686 = vpop.f32.mrb[0].mxu0
      %v687 = vadd.f32 0.0, %v686
      %v688 = vpop.f32.mrb[0].mxu0
      %689 = vmatprep.mubr.bf16.mxu0 %v387
      %690 = vmatmul.mubr.bf16.gmra.mrb[0].mxu0 %v386
      %v691 = vpop.f32.mrb[0].mxu0
      %v692 = vadd.f32 0.0, %v691
      %v693 = vpop.f32.mrb[0].mxu0
      %v694 = vpop.f32.mrb[0].mxu0
      %v695 = vadd.f32 0.0, %v694
      %v696 = vpop.f32.mrb[0].mxu0
      %697 = vmatprep.mubr.bf16.mxu0 %v392
      %698 = vmatmul.mubr.bf16.gmra.mrb[0].mxu0 %v391
      %v699 = vpop.f32.mrb[0].mxu0
      %v700 = vadd.f32 0.0, %v699
      %v701 = vpop.f32.mrb[0].mxu0
      %v702 = vpop.f32.mrb[0].mxu0
      %v703 = vadd.f32 0.0, %v702
      %v704 = vpop.f32.mrb[0].mxu0
      %705 = vdwg.mxu0
      %706 = vmatprep.subr.bf16.mxu0 0
      %707 = vmatpush1.bf16.msra.mxu0 %v572
      %708 = vmatprep.subr.bf16.mxu0 0
      %709 = vmatpush1.bf16.msra.mxu0 %v573
      %710 = vmatprep.subr.bf16.mxu0 0
      %711 = vmatpush1.bf16.msra.mxu0 %v574
      %712 = vmatprep.subr.bf16.mxu0 0
      %713 = vmatpush1.bf16.msra.mxu0 %v575
      %714 = vmatprep.subr.bf16.mxu0 0
      %715 = vmatpush1.bf16.msra.mxu0 %v576
      %716 = vmatprep.subr.bf16.mxu0 0
      %717 = vmatpush1.bf16.msra.mxu0 %v577
      %718 = vmatprep.subr.bf16.mxu0 0
      %719 = vmatpush1.bf16.msra.mxu0 %v578
      %720 = vmatprep.subr.bf16.mxu0 0
      %721 = vmatpush1.bf16.msra.mxu0 %v579
      %722 = vmatprep.subr.bf16.mxu0 0
      %723 = vmatpush1.bf16.msra.mxu0 %v580
      %724 = vmatprep.subr.bf16.mxu0 0
      %725 = vmatpush1.bf16.msra.mxu0 %v581
      %726 = vmatprep.subr.bf16.mxu0 0
      %727 = vmatpush1.bf16.msra.mxu0 %v582
      %728 = vmatprep.subr.bf16.mxu0 0
      %729 = vmatpush1.bf16.msra.mxu0 %v583
      %730 = vmatprep.subr.bf16.mxu0 0
      %731 = vmatpush1.bf16.msra.mxu0 %v584
      %732 = vmatprep.subr.bf16.mxu0 0
      %733 = vmatpush1.bf16.msra.mxu0 %v585
      %734 = vmatprep.subr.bf16.mxu0 0
      %735 = vmatpush1.bf16.msra.mxu0 %v586
      %736 = vmatprep.subr.bf16.mxu0 0
      %737 = vmatpush1.bf16.msra.mxu0 %v587
      %738 = vmatprep.mubr.bf16.mxu0 %v379
      %739 = vmatmul.mubr.bf16.gmra.mrb[0].mxu0 %v378
      %v740 = vpop.f32.mrb[0].mxu0
      %v741 = vadd.f32 %v676, %v740
      %v742 = vpop.f32.mrb[0].mxu0
      %v743 = vpop.f32.mrb[0].mxu0
      %v744 = vadd.f32 %v679, %v743
      %v745 = vpop.f32.mrb[0].mxu0
      %746 = vmatprep.mubr.bf16.mxu0 %v384
      %747 = vmatmul.mubr.bf16.gmra.mrb[0].mxu0 %v383
      %v748 = vpop.f32.mrb[0].mxu0
      %v749 = vadd.f32 %v684, %v748
      %v750 = vpop.f32.mrb[0].mxu0
      %v751 = vpop.f32.mrb[0].mxu0
      %v752 = vadd.f32 %v687, %v751
      %v753 = vpop.f32.mrb[0].mxu0
      %754 = vmatprep.mubr.bf16.mxu0 %v389
      %755 = vmatmul.mubr.bf16.gmra.mrb[0].mxu0 %v388
      %v756 = vpop.f32.mrb[0].mxu0
      %v757 = vadd.f32 %v692, %v756
      %v758 = vpop.f32.mrb[0].mxu0
      %v759 = vpop.f32.mrb[0].mxu0
      %v760 = vadd.f32 %v695, %v759
      %v761 = vpop.f32.mrb[0].mxu0
      %762 = vmatprep.mubr.bf16.mxu0 %v394
      %763 = vmatmul.mubr.bf16.gmra.mrb[0].mxu0 %v393
      %v764 = vpop.f32.mrb[0].mxu0
      %v765 = vadd.f32 %v700, %v764
      %v766 = vpop.f32.mrb[0].mxu0
      %v767 = vpop.f32.mrb[0].mxu0
      %v768 = vadd.f32 %v703, %v767
      %v769 = vpop.f32.mrb[0].mxu0
      %770 = vdwg.mxu0
      %771 = vmatprep.subr.bf16.mxu0 0
      %772 = vmatpush1.bf16.msra.mxu0 %v588
      %773 = vmatprep.subr.bf16.mxu0 0
      %774 = vmatpush1.bf16.msra.mxu0 %v589
      %775 = vmatprep.subr.bf16.mxu0 0
      %776 = vmatpush1.bf16.msra.mxu0 %v590
      %777 = vmatprep.subr.bf16.mxu0 0
      %778 = vmatpush1.bf16.msra.mxu0 %v591
      %779 = vmatprep.subr.bf16.mxu0 0
      %780 = vmatpush1.bf16.msra.mxu0 0
      %781 = vmatprep.subr.bf16.mxu0 0
      %782 = vmatpush1.bf16.msra.mxu0 0
      %783 = vmatprep.subr.bf16.mxu0 0
      %784 = vmatpush1.bf16.msra.mxu0 0
      %785 = vmatprep.subr.bf16.mxu0 0
      %786 = vmatpush1.bf16.msra.mxu0 0
      %787 = vmatprep.subr.bf16.mxu0 0
      %788 = vmatpush1.bf16.msra.mxu0 0
      %789 = vmatprep.subr.bf16.mxu0 0
      %790 = vmatpush1.bf16.msra.mxu0 0
      %791 = vmatprep.subr.bf16.mxu0 0
      %792 = vmatpush1.bf16.msra.mxu0 0
      %793 = vmatprep.subr.bf16.mxu0 0
      %794 = vmatpush1.bf16.msra.mxu0 0
      %795 = vmatprep.subr.bf16.mxu0 0
      %796 = vmatpush1.bf16.msra.mxu0 0
      %797 = vmatprep.subr.bf16.mxu0 0
      %798 = vmatpush1.bf16.msra.mxu0 0
      %799 = vmatprep.subr.bf16.mxu0 0
      %800 = vmatpush1.bf16.msra.mxu0 0
      %801 = vmatprep.subr.bf16.mxu0 0
      %802 = vmatpush1.bf16.msra.mxu0 0
      %803 = vmatprep.mubr.bf16.mxu0 0
      %804 = vmatmul.mubr.bf16.gmra.mrb[0].mxu0 %v630
      %v805 = vpop.f32.mrb[0].mxu0
      %v806 = vadd.f32 %v741, %v805
      %v807 = vpop.f32.mrb[0].mxu0
      %v808 = vpop.f32.mrb[0].mxu0
      %v809 = vadd.f32 %v744, %v808
      %v810 = vpop.f32.mrb[0].mxu0
      %811 = vmatprep.mubr.bf16.mxu0 0
      %812 = vmatmul.mubr.bf16.gmra.mrb[0].mxu0 %v633
      %v813 = vpop.f32.mrb[0].mxu0
      %v814 = vadd.f32 %v749, %v813
      %v815 = vpop.f32.mrb[0].mxu0
      %v816 = vpop.f32.mrb[0].mxu0
      %v817 = vadd.f32 %v752, %v816
      %v818 = vpop.f32.mrb[0].mxu0
      %819 = vmatprep.mubr.bf16.mxu0 0
      %820 = vmatmul.mubr.bf16.gmra.mrb[0].mxu0 %v636
      %v821 = vpop.f32.mrb[0].mxu0
      %v822 = vadd.f32 %v757, %v821
      %v823 = vpop.f32.mrb[0].mxu0
      %v824 = vpop.f32.mrb[0].mxu0
      %v825 = vadd.f32 %v760, %v824
      %v826 = vpop.f32.mrb[0].mxu0
      %827 = vmatprep.mubr.bf16.mxu0 0
      %828 = vmatmul.mubr.bf16.gmra.mrb[0].mxu0 %v639
      %v829 = vpop.f32.mrb[0].mxu0
      %v830 = vadd.f32 %v765, %v829
      %v831 = vpop.f32.mrb[0].mxu0
      %v832 = vpop.f32.mrb[0].mxu0
      %v833 = vadd.f32 %v768, %v832
      %v834 = vpop.f32.mrb[0].mxu0
      %835 = vdwg.mxu0
      %vm836 = vcmask 130048
      %837 = vst.msk [vmem:[%s208] sm:$0xff] %vm836, %v806
      %838 = vst.msk [vmem:[%s208 + $0x8] sm:$0xff] %vm836, %v809
      %839 = vst.msk [vmem:[%s208 + $0x10] sm:$0xff] %vm836, %v814
      %840 = vst.msk [vmem:[%s208 + $0x18] sm:$0xff] %vm836, %v817
      %841 = vst.msk [vmem:[%s208 + $0x20] sm:$0xff] %vm836, %v822
      %842 = vst.msk [vmem:[%s208 + $0x28] sm:$0xff] %vm836, %v825
      %843 = vst.msk [vmem:[%s208 + $0x30] sm:$0xff] %vm836, %v830
      %844 = vst.msk [vmem:[%s208 + $0x38] sm:$0xff] %vm836, %v833
      %v845 = vsel %vm836, %v806, 0.0
      %v846 = vsel %vm836, %v809, 0.0
      %v847 = vadd.f32 %v845, %v846
      %v848 = vsel %vm836, %v814, 0.0
      %v849 = vadd.f32 %v847, %v848
      %v850 = vsel %vm836, %v817, 0.0
      %v851 = vadd.f32 %v849, %v850
      %v852 = vsel %vm836, %v822, 0.0
      %v853 = vadd.f32 %v851, %v852
      %v854 = vsel %vm836, %v825, 0.0
      %v855 = vadd.f32 %v853, %v854
      %v856 = vsel %vm836, %v830, 0.0
      %v857 = vadd.f32 %v855, %v856
      %v858 = vsel %vm836, %v833, 0.0
      %v859 = vadd.f32 %v857, %v858
      %v860 = vrot.slane %v859, 4
      %v861 = vadd.f32 %v859, %v860
      %v862 = vrot.slane %v861, 2
      %v863 = vadd.f32 %v861, %v862
      %v864 = vrot.slane %v863, 1
      %v865 = vadd.f32 %v863, %v864
      %vm866 = vcmask 122880
      %867 = vst.msk [vmem:[%s211] sm:$0x1] %vm866, %v865
      %v868 = vmul.f32 %v806, %v806
      %v869 = vmul.f32 %v809, %v809
      %v870 = vmul.f32 %v814, %v814
      %v871 = vmul.f32 %v817, %v817
      %v872 = vmul.f32 %v822, %v822
      %v873 = vmul.f32 %v825, %v825
      %v874 = vmul.f32 %v830, %v830
      %v875 = vmul.f32 %v833, %v833
      %v876 = vsel %vm836, %v868, 0.0
      %v877 = vsel %vm836, %v869, 0.0
      %v878 = vadd.f32 %v876, %v877
      %v879 = vsel %vm836, %v870, 0.0
      %v880 = vadd.f32 %v878, %v879
      %v881 = vsel %vm836, %v871, 0.0
      %v882 = vadd.f32 %v880, %v881
      %v883 = vsel %vm836, %v872, 0.0
      %v884 = vadd.f32 %v882, %v883
      %v885 = vsel %vm836, %v873, 0.0
      %v886 = vadd.f32 %v884, %v885
      %v887 = vsel %vm836, %v874, 0.0
      %v888 = vadd.f32 %v886, %v887
      %v889 = vsel %vm836, %v875, 0.0
      %v890 = vadd.f32 %v888, %v889
      %v891 = vrot.slane %v890, 4
      %v892 = vadd.f32 %v890, %v891
      %v893 = vrot.slane %v892, 2
      %v894 = vadd.f32 %v892, %v893
      %v895 = vrot.slane %v894, 1
      %v896 = vadd.f32 %v894, %v895
      %897 = vst.msk [vmem:[%s214] sm:$0x1] %vm866, %v896
      %p898 = scmp.lt.s32.totalorder %s16, 1
      %s899 = scalar_select %p898, %s16, 1
      %s900 = smul.addr %s899, 8
      %s901 = smul.addr %s900, 8
      %s902 = scalar_lea.vmem %s2, %s901
      %p903 = scmp.lt.s32.totalorder %s16, 1
      %s904 = scalar_select %p903, %s16, 1
      %s905 = scalar_lea.vmem %s3, %s904
      %p906 = scmp.lt.s32.totalorder %s16, 1
      %s907 = scalar_select %p906, %s16, 1
      %s908 = scalar_lea.vmem %s4, %s907
      // Predicated region
      $region29: #{ddpm_forward.24} parent=27 // pred_check
        %p909 = pneg %p81
      $region30: #{ddpm_forward.24} parent=27 // pred_check_branch
        %911 = sbr.rel (%p909) target = $region32
      $region31: #{ddpm_forward.24} parent=27 // pred_region
        _
      $region32: #{ddpm_forward.24} parent=27 // pred_fallthru
        _
      // Predicated region
      $region33: #{ddpm_forward.24} parent=27 // pred_check
        %p912 = pneg %p107
      $region34: #{ddpm_forward.24} parent=27 // pred_check_branch
        %914 = sbr.rel (%p912) target = $region36
      $region35: #{ddpm_forward.24} parent=27 // pred_region
        _
      $region36: #{ddpm_forward.24} parent=27 // pred_fallthru
        _
      // Predicated region
      $region37: #{ddpm_forward.24} parent=27 // pred_check
        %p915 = pneg %p133
      $region38: #{ddpm_forward.24} parent=27 // pred_check_branch
        %917 = sbr.rel (%p915) target = $region40
      $region39: #{ddpm_forward.24} parent=27 // pred_region
        _
      $region40: #{ddpm_forward.24} parent=27 // pred_fallthru
        _
    $region28: #{ddpm_forward.24} parent=5 // pred_fallthru
      _
    %p918 = scmp.le.s32.totalorder 2, %s11
    // Predicated region
    $region41: #{ddpm_forward.24} parent=5 // pred_check
      %p919 = pneg %p918
    $region42: #{ddpm_forward.24} parent=5 // pred_check_branch
      %921 = sbr.rel (%p919) target = $region44
    $region43: #{ddpm_forward.24} parent=5 // pred_region
      %s922 = ssub.s32 %s11, 2
      // Predicated region
      $region45: #{ddpm_forward.24} parent=43 // pred_check
        %p923 = pneg %p87
      $region46: #{ddpm_forward.24} parent=43 // pred_check_branch
        %925 = sbr.rel (%p923) target = $region48
      $region47: #{ddpm_forward.24} parent=43 // pred_region
        %p926 = scmp.lt.s32.totalorder %s17, 1
        %s927 = scalar_select %p926, %s17, 1
        %s928 = smul.addr %s927, 8
        %s929 = smul.addr %s928, 8
        %s930 = scalar_lea.vmem %s2, %s929
      $region48: #{ddpm_forward.24} parent=43 // pred_fallthru
        _
      // Predicated region
      $region49: #{ddpm_forward.24} parent=43 // pred_check
        %p931 = pneg %p113
      $region50: #{ddpm_forward.24} parent=43 // pred_check_branch
        %933 = sbr.rel (%p931) target = $region52
      $region51: #{ddpm_forward.24} parent=43 // pred_region
        %p934 = scmp.lt.s32.totalorder %s17, 1
        %s935 = scalar_select %p934, %s17, 1
        %s936 = scalar_lea.vmem %s3, %s935
      $region52: #{ddpm_forward.24} parent=43 // pred_fallthru
        _
      // Predicated region
      $region53: #{ddpm_forward.24} parent=43 // pred_check
        %p937 = pneg %p139
      $region54: #{ddpm_forward.24} parent=43 // pred_check_branch
        %939 = sbr.rel (%p937) target = $region56
      $region55: #{ddpm_forward.24} parent=43 // pred_region
        %p940 = scmp.lt.s32.totalorder %s17, 1
        %s941 = scalar_select %p940, %s17, 1
        %s942 = scalar_lea.vmem %s4, %s941
      $region56: #{ddpm_forward.24} parent=43 // pred_fallthru
        _
    $region44: #{ddpm_forward.24} parent=5 // pred_fallthru
      _
  $region6: #{ddpm_forward.24} parent=0 // loop_footer
    %s15 = sadd.s32 1, %s11
  $region7: #{ddpm_forward.24} parent=0 // loop_footer_branch
    %10 = sbr.rel target = $region3
  $region8: #{ddpm_forward.24} parent=0 // loop_exit
    _

// kernel: ddpm_forward.27
$region0: #{ddpm_forward.27}
  #allocation0 [shape = 'u32[]', space=smem, size = 0x4, offset = 0x4, fixed_abs, tag = 'smem constant byte address 0x4 - core index']
  #allocation1 [shape = 'u32[144,128]{1,0:T(1,128)}', space=vmem, size = 0x12000, scoped, tag = 'internal scratch']
  #allocation2 [shape = 'f32[1,1]{1,0:T(1,128)S(1)}', space=vmem, size = 0x200, scoped, tag = 'scoped memory for ddpm_forward.27']
  #allocation3 [shape = 'f32[1,1]{1,0:T(1,128)S(1)}', space=vmem, size = 0x200, scoped, tag = 'scoped memory for ddpm_forward.27']
  %s0 = inlined_call_operand.vmem [shape: f32[2,256,1], index: 0, kind: input, shape index: {}]
  %s1 = inlined_call_operand.<no memory space> [shape: f32[1,1], index: 1, kind: input, shape index: {}]
  %s2 = inlined_call_operand.<no memory space> [shape: f32[1,1], index: 2, kind: input, shape index: {}]
  %s3 = inlined_call_operand.vmem [shape: f32[2,256,1], index: 3, kind: output, shape index: {}]
  %s4 = sld [smem:[#allocation0]]
  $region45: #{ddpm_forward.27} parent=0
    _
  %s6 = ssub.s32 1, %s4
  %s7 = scalar_select 0, %s6, %s4
  %v8 = vstv %s1
  %9 = vst [vmem:[#allocation2] sm:$0x1] %v8
  %v10 = vstv %s2
  %11 = vst [vmem:[#allocation3] sm:$0x1] %v10
  loop: start=0, step=1, limit=4
  $region2: #{ddpm_forward.27} parent=0 // loop_pre_header
    _
  $region3: #{ddpm_forward.27} parent=0 // loop_header
    %s13 = sphi 0, %s17
    %p14 = scmp.ge.s32.totalorder %s13, 4
    %s23 = sphi 0, %s25
    %s26 = sphi 0, %s23
    %s27 = sphi 0, %s26
    %s43 = sphi 0, %s27
    %s47 = sphi 0, %s47
    %s49 = sphi 0, %s47
    %s50 = sphi 0, %s49
    %s64 = sphi 0, %s50
    %s68 = sphi 0, %s68
    %s70 = sphi 0, %s68
    %s71 = sphi 0, %s70
    %s85 = sphi 0, %s71
    %s91 = sphi 0, %s93
    %s94 = sphi 0, %s91
    %s95 = sphi 0, %s94
    %s111 = sphi 0, %s95
  $region4: #{ddpm_forward.27} parent=0 // loop_header_branch
    %16 = sbr.rel (%p14) target = $region8
  $region5: #{ddpm_forward.27} parent=0 // loop_body
    %s18 = ssub.s32 %s13, 1
    %s19 = ssub.s32 %s13, 2
    %s20 = sadd.s32 %s13, 1
    %s21 = ssub.s32 %s13, %s20
    %p22 = scmp.eq.s32.totalorder %s21, 0
    %s24 = sadd.s32 %s23, 1
    %s25 = scalar_select %p22, %s23, %s24
    %p28 = pneg %p22
    %p29 = scmp.eq.s32.totalorder %s13, 1
    %p30 = por %p28, %p29
    %p31 = scmp.ne.s32.totalorder %s23, %s26
    %p32 = scmp.eq.s32.totalorder %s13, 0
    %p33 = por %p31, %p32
    %p34 = scmp.ne.s32.totalorder %s23, %s26
    %p35 = scmp.eq.s32.totalorder %s18, 1
    %p36 = por %p34, %p35
    %p37 = scmp.ne.s32.totalorder %s26, %s27
    %p38 = scmp.eq.s32.totalorder %s18, 0
    %p39 = por %p37, %p38
    %p40 = scmp.ne.s32.totalorder %s26, %s27
    %p41 = scmp.eq.s32.totalorder %s19, 1
    %p42 = por %p40, %p41
    %p44 = scmp.ne.s32.totalorder %s27, %s43
    %p45 = scmp.eq.s32.totalorder %s19, 0
    %p46 = por %p44, %p45
    %s48 = sadd.s32 %s47, 1
    %p51 = scmp.eq.s32.totalorder %s13, 1
    %p52 = scmp.ne.s32.totalorder %s47, %s49
    %p53 = scmp.eq.s32.totalorder %s13, 0
    %p54 = por %p52, %p53
    %p55 = scmp.ne.s32.totalorder %s47, %s49
    %p56 = scmp.eq.s32.totalorder %s18, 1
    %p57 = por %p55, %p56
    %p58 = scmp.ne.s32.totalorder %s49, %s50
    %p59 = scmp.eq.s32.totalorder %s18, 0
    %p60 = por %p58, %p59
    %p61 = scmp.ne.s32.totalorder %s49, %s50
    %p62 = scmp.eq.s32.totalorder %s19, 1
    %p63 = por %p61, %p62
    %p65 = scmp.ne.s32.totalorder %s50, %s64
    %p66 = scmp.eq.s32.totalorder %s19, 0
    %p67 = por %p65, %p66
    %s69 = sadd.s32 %s68, 1
    %p72 = scmp.eq.s32.totalorder %s13, 1
    %p73 = scmp.ne.s32.totalorder %s68, %s70
    %p74 = scmp.eq.s32.totalorder %s13, 0
    %p75 = por %p73, %p74
    %p76 = scmp.ne.s32.totalorder %s68, %s70
    %p77 = scmp.eq.s32.totalorder %s18, 1
    %p78 = por %p76, %p77
    %p79 = scmp.ne.s32.totalorder %s70, %s71
    %p80 = scmp.eq.s32.totalorder %s18, 0
    %p81 = por %p79, %p80
    %p82 = scmp.ne.s32.totalorder %s70, %s71
    %p83 = scmp.eq.s32.totalorder %s19, 1
    %p84 = por %p82, %p83
    %p86 = scmp.ne.s32.totalorder %s71, %s85
    %p87 = scmp.eq.s32.totalorder %s19, 0
    %p88 = por %p86, %p87
    %s89 = ssub.s32 %s13, %s20
    %p90 = scmp.eq.s32.totalorder %s89, 0
    %s92 = sadd.s32 %s91, 1
    %s93 = scalar_select %p90, %s91, %s92
    %p96 = pneg %p90
    %p97 = scmp.eq.s32.totalorder %s13, 1
    %p98 = por %p96, %p97
    %p99 = scmp.ne.s32.totalorder %s91, %s94
    %p100 = scmp.eq.s32.totalorder %s13, 0
    %p101 = por %p99, %p100
    %p102 = scmp.ne.s32.totalorder %s91, %s94
    %p103 = scmp.eq.s32.totalorder %s18, 1
    %p104 = por %p102, %p103
    %p105 = scmp.ne.s32.totalorder %s94, %s95
    %p106 = scmp.eq.s32.totalorder %s18, 0
    %p107 = por %p105, %p106
    %p108 = scmp.ne.s32.totalorder %s94, %s95
    %p109 = scmp.eq.s32.totalorder %s19, 1
    %p110 = por %p108, %p109
    %p112 = scmp.ne.s32.totalorder %s95, %s111
    %p113 = scmp.eq.s32.totalorder %s19, 0
    %p114 = por %p112, %p113
    %p115 = scmp.le.s32.totalorder 1, %s13
    %p116 = scmp.lt.s32.totalorder %s13, 3
    %p117 = pnand %p115, %p116
    %p118 = pneg %p117
    // Predicated region
    $region9: #{ddpm_forward.27} parent=5 // pred_check
      _
    $region10: #{ddpm_forward.27} parent=5 // pred_check_branch
      %120 = sbr.rel (%p117) target = $region12
    $region11: #{ddpm_forward.27} parent=5 // pred_region
      %s121 = ssub.s32 %s13, 1
      // Predicated region
      $region13: #{ddpm_forward.27} parent=11 // pred_check
        %p122 = pneg %p60
      $region14: #{ddpm_forward.27} parent=11 // pred_check_branch
        %124 = sbr.rel (%p122) target = $region16
      $region15: #{ddpm_forward.27} parent=11 // pred_region
        _
      $region16: #{ddpm_forward.27} parent=11 // pred_fallthru
        _
      // Predicated region
      $region17: #{ddpm_forward.27} parent=11 // pred_check
        %p125 = pneg %p81
      $region18: #{ddpm_forward.27} parent=11 // pred_check_branch
        %127 = sbr.rel (%p125) target = $region20
      $region19: #{ddpm_forward.27} parent=11 // pred_region
        _
      $region20: #{ddpm_forward.27} parent=11 // pred_fallthru
        _
    $region12: #{ddpm_forward.27} parent=5 // pred_fallthru
      _
    %p128 = scmp.lt.s32.totalorder %s13, 2
    // Predicated region
    $region21: #{ddpm_forward.27} parent=5 // pred_check
      %p129 = pneg %p128
    $region22: #{ddpm_forward.27} parent=5 // pred_check_branch
      %131 = sbr.rel (%p129) target = $region24
    $region23: #{ddpm_forward.27} parent=5 // pred_region
      // Predicated region
      $region25: #{ddpm_forward.27} parent=23 // pred_check
        %p132 = pneg %p33
      $region26: #{ddpm_forward.27} parent=23 // pred_check_branch
        %134 = sbr.rel (%p132) target = $region28
      $region27: #{ddpm_forward.27} parent=23 // pred_region
        %p135 = scmp.lt.s32.totalorder %s13, 1
        %s136 = scalar_select %p135, %s13, 1
        %s137 = smul.addr %s136, 32
        %s138 = smul.addr %s137, 8
        %s139 = scalar_lea.vmem %s0, %s138
      $region28: #{ddpm_forward.27} parent=23 // pred_fallthru
        _
    $region24: #{ddpm_forward.27} parent=5 // pred_fallthru
      _
    %p140 = scmp.le.s32.totalorder 1, %s13
    %p141 = scmp.lt.s32.totalorder %s13, 3
    %p142 = pnand %p140, %p141
    %p143 = pneg %p142
    // Predicated region
    $region29: #{ddpm_forward.27} parent=5 // pred_check
      _
    $region30: #{ddpm_forward.27} parent=5 // pred_check_branch
      %145 = sbr.rel (%p142) target = $region32
    $region31: #{ddpm_forward.27} parent=5 // pred_region
      %s146 = ssub.s32 %s13, 1
      %p147 = scmp.lt.s32.totalorder %s18, 1
      %s148 = scalar_select %p147, %s18, 1
      %s149 = smul.addr %s148, 32
      %s150 = smul.addr %s149, 8
      %s151 = scalar_lea.vmem %s0, %s150
      %p152 = pneg %p39
      %p153 = pneg %p36
      %p154 = pneg %p60
      %p155 = pneg %p57
      %p156 = pneg %p81
      %p157 = pneg %p78
      %p158 = pneg %p107
      %p159 = pneg %p104
      %p160 = scmp.lt.s32.totalorder %s18, 1
      %s161 = scalar_select %p160, %s18, 1
      %s162 = smul.addr %s161, 32
      %s163 = smul.addr %s162, 8
      %s164 = scalar_lea.vmem %s3, %s163
      %p165 = scmp.lt.s32.totalorder %s18, 1
      %s166 = scalar_select %p165, %s18, 1
      %s167 = smul.addr %s166, 32
      %s168 = smul.addr %s167, 8
      %s169 = scalar_lea.vmem %s0, %s168
      %p170 = scmp.lt.s32.totalorder %s18, 1
      %s171 = scalar_select %p170, %s18, 1
      %s172 = smul.addr %s171, 32
      %s173 = smul.addr %s172, 8
      %s174 = scalar_lea.vmem %s3, %s173
      %v175 = vld [vmem:[%s169] sm:$0xff]
      %v176 = vld [vmem:[%s169 + $0x8] sm:$0xff]
      %v177 = vld [vmem:[%s169 + $0x10] sm:$0xff]
      %v178 = vld [vmem:[%s169 + $0x18] sm:$0xff]
      %v179 = vld [vmem:[%s169 + $0x20] sm:$0xff]
      %v180 = vld [vmem:[%s169 + $0x28] sm:$0xff]
      %v181 = vld [vmem:[%s169 + $0x30] sm:$0xff]
      %v182 = vld [vmem:[%s169 + $0x38] sm:$0xff]
      %v183 = vld [vmem:[%s169 + $0x40] sm:$0xff]
      %v184 = vld [vmem:[%s169 + $0x48] sm:$0xff]
      %v185 = vld [vmem:[%s169 + $0x50] sm:$0xff]
      %v186 = vld [vmem:[%s169 + $0x58] sm:$0xff]
      %v187 = vld [vmem:[%s169 + $0x60] sm:$0xff]
      %v188 = vld [vmem:[%s169 + $0x68] sm:$0xff]
      %v189 = vld [vmem:[%s169 + $0x70] sm:$0xff]
      %v190 = vld [vmem:[%s169 + $0x78] sm:$0xff]
      %v191 = vld [vmem:[%s169 + $0x80] sm:$0xff]
      %v192 = vld [vmem:[%s169 + $0x88] sm:$0xff]
      %v193 = vld [vmem:[%s169 + $0x90] sm:$0xff]
      %v194 = vld [vmem:[%s169 + $0x98] sm:$0xff]
      %v195 = vld [vmem:[%s169 + $0xa0] sm:$0xff]
      %v196 = vld [vmem:[%s169 + $0xa8] sm:$0xff]
      %v197 = vld [vmem:[%s169 + $0xb0] sm:$0xff]
      %v198 = vld [vmem:[%s169 + $0xb8] sm:$0xff]
      %v199 = vld [vmem:[%s169 + $0xc0] sm:$0xff]
      %v200 = vld [vmem:[%s169 + $0xc8] sm:$0xff]
      %v201 = vld [vmem:[%s169 + $0xd0] sm:$0xff]
      %v202 = vld [vmem:[%s169 + $0xd8] sm:$0xff]
      %v203 = vld [vmem:[%s169 + $0xe0] sm:$0xff]
      %v204 = vld [vmem:[%s169 + $0xe8] sm:$0xff]
      %v205 = vld [vmem:[%s169 + $0xf0] sm:$0xff]
      %v206 = vld [vmem:[%s169 + $0xf8] sm:$0xff]
      %v207 = vld [vmem:[#allocation2] sm:$0x1]
      %v209 = vlaneseq
      %v210 = vshrl.u32 %v209, 7
      %v211 = vsub.s32 0, %v210
      %v212 = vrot.slane %v207, %v211
      %v214 = vmul.f32 %v175, %v212
      %v215 = vmul.f32 %v176, %v212
      %v216 = vmul.f32 %v177, %v212
      %v217 = vmul.f32 %v178, %v212
      %v218 = vmul.f32 %v179, %v212
      %v219 = vmul.f32 %v180, %v212
      %v220 = vmul.f32 %v181, %v212
      %v221 = vmul.f32 %v182, %v212
      %v222 = vmul.f32 %v183, %v212
      %v223 = vmul.f32 %v184, %v212
      %v224 = vmul.f32 %v185, %v212
      %v225 = vmul.f32 %v186, %v212
      %v226 = vmul.f32 %v187, %v212
      %v227 = vmul.f32 %v188, %v212
      %v228 = vmul.f32 %v189, %v212
      %v229 = vmul.f32 %v190, %v212
      %v230 = vmul.f32 %v191, %v212
      %v231 = vmul.f32 %v192, %v212
      %v232 = vmul.f32 %v193, %v212
      %v233 = vmul.f32 %v194, %v212
      %v234 = vmul.f32 %v195, %v212
      %v235 = vmul.f32 %v196, %v212
      %v236 = vmul.f32 %v197, %v212
      %v237 = vmul.f32 %v198, %v212
      %v238 = vmul.f32 %v199, %v212
      %v239 = vmul.f32 %v200, %v212
      %v240 = vmul.f32 %v201, %v212
      %v241 = vmul.f32 %v202, %v212
      %v242 = vmul.f32 %v203, %v212
      %v243 = vmul.f32 %v204, %v212
      %v244 = vmul.f32 %v205, %v212
      %v245 = vmul.f32 %v206, %v212
      %v246 = vld [vmem:[#allocation3] sm:$0x1]
      %v248 = vlaneseq
      %v249 = vshrl.u32 %v248, 7
      %v250 = vsub.s32 0, %v249
      %v251 = vrot.slane %v246, %v250
      %v253 = vadd.f32 %v214, %v251
      %v254 = vadd.f32 %v215, %v251
      %v255 = vadd.f32 %v216, %v251
      %v256 = vadd.f32 %v217, %v251
      %v257 = vadd.f32 %v218, %v251
      %v258 = vadd.f32 %v219, %v251
      %v259 = vadd.f32 %v220, %v251
      %v260 = vadd.f32 %v221, %v251
      %v261 = vadd.f32 %v222, %v251
      %v262 = vadd.f32 %v223, %v251
      %v263 = vadd.f32 %v224, %v251
      %v264 = vadd.f32 %v225, %v251
      %v265 = vadd.f32 %v226, %v251
      %v266 = vadd.f32 %v227, %v251
      %v267 = vadd.f32 %v228, %v251
      %v268 = vadd.f32 %v229, %v251
      %v269 = vadd.f32 %v230, %v251
      %v270 = vadd.f32 %v231, %v251
      %v271 = vadd.f32 %v232, %v251
      %v272 = vadd.f32 %v233, %v251
      %v273 = vadd.f32 %v234, %v251
      %v274 = vadd.f32 %v235, %v251
      %v275 = vadd.f32 %v236, %v251
      %v276 = vadd.f32 %v237, %v251
      %v277 = vadd.f32 %v238, %v251
      %v278 = vadd.f32 %v239, %v251
      %v279 = vadd.f32 %v240, %v251
      %v280 = vadd.f32 %v241, %v251
      %v281 = vadd.f32 %v242, %v251
      %v282 = vadd.f32 %v243, %v251
      %v283 = vadd.f32 %v244, %v251
      %v284 = vadd.f32 %v245, %v251
      %v285 = vmax.f32 %v253, 0.0
      %v286 = vmax.f32 %v254, 0.0
      %v287 = vmax.f32 %v255, 0.0
      %v288 = vmax.f32 %v256, 0.0
      %v289 = vmax.f32 %v257, 0.0
      %v290 = vmax.f32 %v258, 0.0
      %v291 = vmax.f32 %v259, 0.0
      %v292 = vmax.f32 %v260, 0.0
      %v293 = vmax.f32 %v261, 0.0
      %v294 = vmax.f32 %v262, 0.0
      %v295 = vmax.f32 %v263, 0.0
      %v296 = vmax.f32 %v264, 0.0
      %v297 = vmax.f32 %v265, 0.0
      %v298 = vmax.f32 %v266, 0.0
      %v299 = vmax.f32 %v267, 0.0
      %v300 = vmax.f32 %v268, 0.0
      %v301 = vmax.f32 %v269, 0.0
      %v302 = vmax.f32 %v270, 0.0
      %v303 = vmax.f32 %v271, 0.0
      %v304 = vmax.f32 %v272, 0.0
      %v305 = vmax.f32 %v273, 0.0
      %v306 = vmax.f32 %v274, 0.0
      %v307 = vmax.f32 %v275, 0.0
      %v308 = vmax.f32 %v276, 0.0
      %v309 = vmax.f32 %v277, 0.0
      %v310 = vmax.f32 %v278, 0.0
      %v311 = vmax.f32 %v279, 0.0
      %v312 = vmax.f32 %v280, 0.0
      %v313 = vmax.f32 %v281, 0.0
      %v314 = vmax.f32 %v282, 0.0
      %v315 = vmax.f32 %v283, 0.0
      %v316 = vmax.f32 %v284, 0.0
      %vm317 = vcmask 7168
      %318 = vst.msk [vmem:[%s174] sm:$0xff] %vm317, %v285
      %319 = vst.msk [vmem:[%s174 + $0x8] sm:$0xff] %vm317, %v286
      %320 = vst.msk [vmem:[%s174 + $0x10] sm:$0xff] %vm317, %v287
      %321 = vst.msk [vmem:[%s174 + $0x18] sm:$0xff] %vm317, %v288
      %322 = vst.msk [vmem:[%s174 + $0x20] sm:$0xff] %vm317, %v289
      %323 = vst.msk [vmem:[%s174 + $0x28] sm:$0xff] %vm317, %v290
      %324 = vst.msk [vmem:[%s174 + $0x30] sm:$0xff] %vm317, %v291
      %325 = vst.msk [vmem:[%s174 + $0x38] sm:$0xff] %vm317, %v292
      %326 = vst.msk [vmem:[%s174 + $0x40] sm:$0xff] %vm317, %v293
      %327 = vst.msk [vmem:[%s174 + $0x48] sm:$0xff] %vm317, %v294
      %328 = vst.msk [vmem:[%s174 + $0x50] sm:$0xff] %vm317, %v295
      %329 = vst.msk [vmem:[%s174 + $0x58] sm:$0xff] %vm317, %v296
      %330 = vst.msk [vmem:[%s174 + $0x60] sm:$0xff] %vm317, %v297
      %331 = vst.msk [vmem:[%s174 + $0x68] sm:$0xff] %vm317, %v298
      %332 = vst.msk [vmem:[%s174 + $0x70] sm:$0xff] %vm317, %v299
      %333 = vst.msk [vmem:[%s174 + $0x78] sm:$0xff] %vm317, %v300
      %334 = vst.msk [vmem:[%s174 + $0x80] sm:$0xff] %vm317, %v301
      %335 = vst.msk [vmem:[%s174 + $0x88] sm:$0xff] %vm317, %v302
      %336 = vst.msk [vmem:[%s174 + $0x90] sm:$0xff] %vm317, %v303
      %337 = vst.msk [vmem:[%s174 + $0x98] sm:$0xff] %vm317, %v304
      %338 = vst.msk [vmem:[%s174 + $0xa0] sm:$0xff] %vm317, %v305
      %339 = vst.msk [vmem:[%s174 + $0xa8] sm:$0xff] %vm317, %v306
      %340 = vst.msk [vmem:[%s174 + $0xb0] sm:$0xff] %vm317, %v307
      %341 = vst.msk [vmem:[%s174 + $0xb8] sm:$0xff] %vm317, %v308
      %342 = vst.msk [vmem:[%s174 + $0xc0] sm:$0xff] %vm317, %v309
      %343 = vst.msk [vmem:[%s174 + $0xc8] sm:$0xff] %vm317, %v310
      %344 = vst.msk [vmem:[%s174 + $0xd0] sm:$0xff] %vm317, %v311
      %345 = vst.msk [vmem:[%s174 + $0xd8] sm:$0xff] %vm317, %v312
      %346 = vst.msk [vmem:[%s174 + $0xe0] sm:$0xff] %vm317, %v313
      %347 = vst.msk [vmem:[%s174 + $0xe8] sm:$0xff] %vm317, %v314
      %348 = vst.msk [vmem:[%s174 + $0xf0] sm:$0xff] %vm317, %v315
      %349 = vst.msk [vmem:[%s174 + $0xf8] sm:$0xff] %vm317, %v316
      %p350 = scmp.lt.s32.totalorder %s18, 1
      %s351 = scalar_select %p350, %s18, 1
      %s352 = smul.addr %s351, 32
      %s353 = smul.addr %s352, 8
      %s354 = scalar_lea.vmem %s3, %s353
      // Predicated region
      $region33: #{ddpm_forward.27} parent=31 // pred_check
        %p355 = pneg %p104
      $region34: #{ddpm_forward.27} parent=31 // pred_check_branch
        %357 = sbr.rel (%p355) target = $region36
      $region35: #{ddpm_forward.27} parent=31 // pred_region
        _
      $region36: #{ddpm_forward.27} parent=31 // pred_fallthru
        _
    $region32: #{ddpm_forward.27} parent=5 // pred_fallthru
      _
    %p358 = scmp.le.s32.totalorder 2, %s13
    // Predicated region
    $region37: #{ddpm_forward.27} parent=5 // pred_check
      %p359 = pneg %p358
    $region38: #{ddpm_forward.27} parent=5 // pred_check_branch
      %361 = sbr.rel (%p359) target = $region40
    $region39: #{ddpm_forward.27} parent=5 // pred_region
      %s362 = ssub.s32 %s13, 2
      // Predicated region
      $region41: #{ddpm_forward.27} parent=39 // pred_check
        %p363 = pneg %p110
      $region42: #{ddpm_forward.27} parent=39 // pred_check_branch
        %365 = sbr.rel (%p363) target = $region44
      $region43: #{ddpm_forward.27} parent=39 // pred_region
        %p366 = scmp.lt.s32.totalorder %s19, 1
        %s367 = scalar_select %p366, %s19, 1
        %s368 = smul.addr %s367, 32
        %s369 = smul.addr %s368, 8
        %s370 = scalar_lea.vmem %s3, %s369
      $region44: #{ddpm_forward.27} parent=39 // pred_fallthru
        _
    $region40: #{ddpm_forward.27} parent=5 // pred_fallthru
      _
  $region6: #{ddpm_forward.27} parent=0 // loop_footer
    %s17 = sadd.s32 1, %s13
  $region7: #{ddpm_forward.27} parent=0 // loop_footer_branch
    %12 = sbr.rel target = $region3
  $region8: #{ddpm_forward.27} parent=0 // loop_exit
    _

// kernel: ddpm_forward.26
$region0: #{ddpm_forward.26}
  #allocation0 [shape = 'u32[]', space=smem, size = 0x4, offset = 0x4, fixed_abs, tag = 'smem constant byte address 0x4 - core index']
  #allocation1 [shape = 'u32[144,128]{1,0:T(1,128)}', space=vmem, size = 0x12000, scoped, tag = 'internal scratch']
  %s0 = inlined_call_operand.vmem [shape: bf16[2,256,288], index: 0, kind: input, shape index: {}]
  %s1 = inlined_call_operand.vmem [shape: bf16[288,1], index: 1, kind: input, shape index: {}]
  %s2 = inlined_call_operand.vmem [shape: f32[2,256,1], index: 2, kind: output, shape index: {0}]
  %s3 = inlined_call_operand.vmem [shape: f32[2,1,1], index: 3, kind: output, shape index: {1}]
  %s4 = inlined_call_operand.vmem [shape: f32[2,1,1], index: 4, kind: output, shape index: {2}]
  %5 = xla_tuple %s2, %s3, %s4
  %s6 = sld [smem:[#allocation0]]
  $region57: #{ddpm_forward.26} parent=0
    _
  %s8 = ssub.s32 1, %s6
  %s9 = scalar_select 0, %s8, %s6
  loop: start=0, step=1, limit=4
  $region2: #{ddpm_forward.26} parent=0 // loop_pre_header
    _
  $region3: #{ddpm_forward.26} parent=0 // loop_header
    %s11 = sphi 0, %s15
    %p12 = scmp.ge.s32.totalorder %s11, 4
    %s21 = sphi 0, %s23
    %s24 = sphi 0, %s21
    %s25 = sphi 0, %s24
    %s41 = sphi 0, %s25
    %s45 = sphi 0, %s45
    %s47 = sphi 0, %s45
    %s48 = sphi 0, %s47
    %s62 = sphi 0, %s48
    %s68 = sphi 0, %s70
    %s71 = sphi 0, %s68
    %s72 = sphi 0, %s71
    %s88 = sphi 0, %s72
    %s94 = sphi 0, %s96
    %s97 = sphi 0, %s94
    %s98 = sphi 0, %s97
    %s114 = sphi 0, %s98
    %s120 = sphi 0, %s122
    %s123 = sphi 0, %s120
    %s124 = sphi 0, %s123
    %s140 = sphi 0, %s124
  $region4: #{ddpm_forward.26} parent=0 // loop_header_branch
    %14 = sbr.rel (%p12) target = $region8
  $region5: #{ddpm_forward.26} parent=0 // loop_body
    %s16 = ssub.s32 %s11, 1
    %s17 = ssub.s32 %s11, 2
    %s18 = sadd.s32 %s11, 1
    %s19 = ssub.s32 %s11, %s18
    %p20 = scmp.eq.s32.totalorder %s19, 0
    %s22 = sadd.s32 %s21, 1
    %s23 = scalar_select %p20, %s21, %s22
    %p26 = pneg %p20
    %p27 = scmp.eq.s32.totalorder %s11, 1
    %p28 = por %p26, %p27
    %p29 = scmp.ne.s32.totalorder %s21, %s24
    %p30 = scmp.eq.s32.totalorder %s11, 0
    %p31 = por %p29, %p30
    %p32 = scmp.ne.s32.totalorder %s21, %s24
    %p33 = scmp.eq.s32.totalorder %s16, 1
    %p34 = por %p32, %p33
    %p35 = scmp.ne.s32.totalorder %s24, %s25
    %p36 = scmp.eq.s32.totalorder %s16, 0
    %p37 = por %p35, %p36
    %p38 = scmp.ne.s32.totalorder %s24, %s25
    %p39 = scmp.eq.s32.totalorder %s17, 1
    %p40 = por %p38, %p39
    %p42 = scmp.ne.s32.totalorder %s25, %s41
    %p43 = scmp.eq.s32.totalorder %s17, 0
    %p44 = por %p42, %p43
    %s46 = sadd.s32 %s45, 1
    %p49 = scmp.eq.s32.totalorder %s11, 1
    %p50 = scmp.ne.s32.totalorder %s45, %s47
    %p51 = scmp.eq.s32.totalorder %s11, 0
    %p52 = por %p50, %p51
    %p53 = scmp.ne.s32.totalorder %s45, %s47
    %p54 = scmp.eq.s32.totalorder %s16, 1
    %p55 = por %p53, %p54
    %p56 = scmp.ne.s32.totalorder %s47, %s48
    %p57 = scmp.eq.s32.totalorder %s16, 0
    %p58 = por %p56, %p57
    %p59 = scmp.ne.s32.totalorder %s47, %s48
    %p60 = scmp.eq.s32.totalorder %s17, 1
    %p61 = por %p59, %p60
    %p63 = scmp.ne.s32.totalorder %s48, %s62
    %p64 = scmp.eq.s32.totalorder %s17, 0
    %p65 = por %p63, %p64
    %s66 = ssub.s32 %s11, %s18
    %p67 = scmp.eq.s32.totalorder %s66, 0
    %s69 = sadd.s32 %s68, 1
    %s70 = scalar_select %p67, %s68, %s69
    %p73 = pneg %p67
    %p74 = scmp.eq.s32.totalorder %s11, 1
    %p75 = por %p73, %p74
    %p76 = scmp.ne.s32.totalorder %s68, %s71
    %p77 = scmp.eq.s32.totalorder %s11, 0
    %p78 = por %p76, %p77
    %p79 = scmp.ne.s32.totalorder %s68, %s71
    %p80 = scmp.eq.s32.totalorder %s16, 1
    %p81 = por %p79, %p80
    %p82 = scmp.ne.s32.totalorder %s71, %s72
    %p83 = scmp.eq.s32.totalorder %s16, 0
    %p84 = por %p82, %p83
    %p85 = scmp.ne.s32.totalorder %s71, %s72
    %p86 = scmp.eq.s32.totalorder %s17, 1
    %p87 = por %p85, %p86
    %p89 = scmp.ne.s32.totalorder %s72, %s88
    %p90 = scmp.eq.s32.totalorder %s17, 0
    %p91 = por %p89, %p90
    %s92 = ssub.s32 %s11, %s18
    %p93 = scmp.eq.s32.totalorder %s92, 0
    %s95 = sadd.s32 %s94, 1
    %s96 = scalar_select %p93, %s94, %s95
    %p99 = pneg %p93
    %p100 = scmp.eq.s32.totalorder %s11, 1
    %p101 = por %p99, %p100
    %p102 = scmp.ne.s32.totalorder %s94, %s97
    %p103 = scmp.eq.s32.totalorder %s11, 0
    %p104 = por %p102, %p103
    %p105 = scmp.ne.s32.totalorder %s94, %s97
    %p106 = scmp.eq.s32.totalorder %s16, 1
    %p107 = por %p105, %p106
    %p108 = scmp.ne.s32.totalorder %s97, %s98
    %p109 = scmp.eq.s32.totalorder %s16, 0
    %p110 = por %p108, %p109
    %p111 = scmp.ne.s32.totalorder %s97, %s98
    %p112 = scmp.eq.s32.totalorder %s17, 1
    %p113 = por %p111, %p112
    %p115 = scmp.ne.s32.totalorder %s98, %s114
    %p116 = scmp.eq.s32.totalorder %s17, 0
    %p117 = por %p115, %p116
    %s118 = ssub.s32 %s11, %s18
    %p119 = scmp.eq.s32.totalorder %s118, 0
    %s121 = sadd.s32 %s120, 1
    %s122 = scalar_select %p119, %s120, %s121
    %p125 = pneg %p119
    %p126 = scmp.eq.s32.totalorder %s11, 1
    %p127 = por %p125, %p126
    %p128 = scmp.ne.s32.totalorder %s120, %s123
    %p129 = scmp.eq.s32.totalorder %s11, 0
    %p130 = por %p128, %p129
    %p131 = scmp.ne.s32.totalorder %s120, %s123
    %p132 = scmp.eq.s32.totalorder %s16, 1
    %p133 = por %p131, %p132
    %p134 = scmp.ne.s32.totalorder %s123, %s124
    %p135 = scmp.eq.s32.totalorder %s16, 0
    %p136 = por %p134, %p135
    %p137 = scmp.ne.s32.totalorder %s123, %s124
    %p138 = scmp.eq.s32.totalorder %s17, 1
    %p139 = por %p137, %p138
    %p141 = scmp.ne.s32.totalorder %s124, %s140
    %p142 = scmp.eq.s32.totalorder %s17, 0
    %p143 = por %p141, %p142
    %p144 = scmp.le.s32.totalorder 1, %s11
    %p145 = scmp.lt.s32.totalorder %s11, 3
    %p146 = pnand %p144, %p145
    %p147 = pneg %p146
    // Predicated region
    $region9: #{ddpm_forward.26} parent=5 // pred_check
      _
    $region10: #{ddpm_forward.26} parent=5 // pred_check_branch
      %149 = sbr.rel (%p146) target = $region12
    $region11: #{ddpm_forward.26} parent=5 // pred_region
      %s150 = ssub.s32 %s11, 1
      // Predicated region
      $region13: #{ddpm_forward.26} parent=11 // pred_check
        %p151 = pneg %p58
      $region14: #{ddpm_forward.26} parent=11 // pred_check_branch
        %153 = sbr.rel (%p151) target = $region16
      $region15: #{ddpm_forward.26} parent=11 // pred_region
        _
      $region16: #{ddpm_forward.26} parent=11 // pred_fallthru
        _
    $region12: #{ddpm_forward.26} parent=5 // pred_fallthru
      _
    %p154 = scmp.lt.s32.totalorder %s11, 2
    // Predicated region
    $region17: #{ddpm_forward.26} parent=5 // pred_check
      %p155 = pneg %p154
    $region18: #{ddpm_forward.26} parent=5 // pred_check_branch
      %157 = sbr.rel (%p155) target = $region20
    $region19: #{ddpm_forward.26} parent=5 // pred_region
      // Predicated region
      $region21: #{ddpm_forward.26} parent=19 // pred_check
        %p158 = pneg %p31
      $region22: #{ddpm_forward.26} parent=19 // pred_check_branch
        %160 = sbr.rel (%p158) target = $region24
      $region23: #{ddpm_forward.26} parent=19 // pred_region
        %p161 = scmp.lt.s32.totalorder %s11, 1
        %s162 = scalar_select %p161, %s11, 1
        %s163 = smul.addr %s162, 96
        %s164 = smul.addr %s163, 4
        %s165 = scalar_lea.vmem %s0, %s164
      $region24: #{ddpm_forward.26} parent=19 // pred_fallthru
        _
    $region20: #{ddpm_forward.26} parent=5 // pred_fallthru
      _
    %p166 = scmp.le.s32.totalorder 1, %s11
    %p167 = scmp.lt.s32.totalorder %s11, 3
    %p168 = pnand %p166, %p167
    %p169 = pneg %p168
    // Predicated region
    $region25: #{ddpm_forward.26} parent=5 // pred_check
      _
    $region26: #{ddpm_forward.26} parent=5 // pred_check_branch
      %171 = sbr.rel (%p168) target = $region28
    $region27: #{ddpm_forward.26} parent=5 // pred_region
      %s172 = ssub.s32 %s11, 1
      %p173 = scmp.lt.s32.totalorder %s16, 1
      %s174 = scalar_select %p173, %s16, 1
      %s175 = smul.addr %s174, 96
      %s176 = smul.addr %s175, 4
      %s177 = scalar_lea.vmem %s0, %s176
      %p178 = pneg %p37
      %p179 = pneg %p34
      %p180 = pneg %p58
      %p181 = pneg %p55
      %p182 = pneg %p84
      %p183 = pneg %p81
      %p184 = scmp.lt.s32.totalorder %s16, 1
      %s185 = scalar_select %p184, %s16, 1
      %s186 = smul.addr %s185, 32
      %s187 = smul.addr %s186, 8
      %s188 = scalar_lea.vmem %s2, %s187
      %p189 = pneg %p110
      %p190 = pneg %p107
      %p191 = scmp.lt.s32.totalorder %s16, 1
      %s192 = scalar_select %p191, %s16, 1
      %s193 = scalar_lea.vmem %s3, %s192
      %p194 = pneg %p136
      %p195 = pneg %p133
      %p196 = scmp.lt.s32.totalorder %s16, 1
      %s197 = scalar_select %p196, %s16, 1
      %s198 = scalar_lea.vmem %s4, %s197
      %p199 = scmp.lt.s32.totalorder %s16, 1
      %s200 = scalar_select %p199, %s16, 1
      %s201 = smul.addr %s200, 96
      %s202 = smul.addr %s201, 4
      %s203 = scalar_lea.vmem %s0, %s202
      %p204 = scmp.lt.s32.totalorder %s16, 1
      %s205 = scalar_select %p204, %s16, 1
      %s206 = smul.addr %s205, 32
      %s207 = smul.addr %s206, 8
      %s208 = scalar_lea.vmem %s2, %s207
      %p209 = scmp.lt.s32.totalorder %s16, 1
      %s210 = scalar_select %p209, %s16, 1
      %s211 = scalar_lea.vmem %s3, %s210
      %p212 = scmp.lt.s32.totalorder %s16, 1
      %s213 = scalar_select %p212, %s16, 1
      %s214 = scalar_lea.vmem %s4, %s213
      %v216 = vld [vmem:[%s203] sm:$0xff]
      %v217 = vld [vmem:[%s203 + $0x8] sm:$0xf]
      %v218 = vld [vmem:[%s203 + $0xc] sm:$0xff]
      %v219 = vld [vmem:[%s203 + $0x14] sm:$0xf]
      %v220 = vld [vmem:[%s203 + $0x18] sm:$0xff]
      %v221 = vld [vmem:[%s203 + $0x20] sm:$0xf]
      %v222 = vld [vmem:[%s203 + $0x24] sm:$0xff]
      %v223 = vld [vmem:[%s203 + $0x2c] sm:$0xf]
      %v224 = vld [vmem:[%s203 + $0x30] sm:$0xff]
      %v225 = vld [vmem:[%s203 + $0x38] sm:$0xf]
      %v226 = vld [vmem:[%s203 + $0x3c] sm:$0xff]
      %v227 = vld [vmem:[%s203 + $0x44] sm:$0xf]
      %v228 = vld [vmem:[%s203 + $0x48] sm:$0xff]
      %v229 = vld [vmem:[%s203 + $0x50] sm:$0xf]
      %v230 = vld [vmem:[%s203 + $0x54] sm:$0xff]
      %v231 = vld [vmem:[%s203 + $0x5c] sm:$0xf]
      %v232 = vld [vmem:[%s203 + $0x60] sm:$0xff]
      %v233 = vld [vmem:[%s203 + $0x68] sm:$0xf]
      %v234 = vld [vmem:[%s203 + $0x6c] sm:$0xff]
      %v235 = vld [vmem:[%s203 + $0x74] sm:$0xf]
      %v236 = vld [vmem:[%s203 + $0x78] sm:$0xff]
      %v237 = vld [vmem:[%s203 + $0x80] sm:$0xf]
      %v238 = vld [vmem:[%s203 + $0x84] sm:$0xff]
      %v239 = vld [vmem:[%s203 + $0x8c] sm:$0xf]
      %v240 = vld [vmem:[%s203 + $0x90] sm:$0xff]
      %v241 = vld [vmem:[%s203 + $0x98] sm:$0xf]
      %v242 = vld [vmem:[%s203 + $0x9c] sm:$0xff]
      %v243 = vld [vmem:[%s203 + $0xa4] sm:$0xf]
      %v244 = vld [vmem:[%s203 + $0xa8] sm:$0xff]
      %v245 = vld [vmem:[%s203 + $0xb0] sm:$0xf]
      %v246 = vld [vmem:[%s203 + $0xb4] sm:$0xff]
      %v247 = vld [vmem:[%s203 + $0xbc] sm:$0xf]
      %v248 = vld [vmem:[%s203 + $0xc0] sm:$0xff]
      %v249 = vld [vmem:[%s203 + $0xc8] sm:$0xf]
      %v250 = vld [vmem:[%s203 + $0xcc] sm:$0xff]
      %v251 = vld [vmem:[%s203 + $0xd4] sm:$0xf]
      %v252 = vld [vmem:[%s203 + $0xd8] sm:$0xff]
      %v253 = vld [vmem:[%s203 + $0xe0] sm:$0xf]
      %v254 = vld [vmem:[%s203 + $0xe4] sm:$0xff]
      %v255 = vld [vmem:[%s203 + $0xec] sm:$0xf]
      %v256 = vld [vmem:[%s203 + $0xf0] sm:$0xff]
      %v257 = vld [vmem:[%s203 + $0xf8] sm:$0xf]
      %v258 = vld [vmem:[%s203 + $0xfc] sm:$0xff]
      %v259 = vld [vmem:[%s203 + $0x104] sm:$0xf]
      %v260 = vld [vmem:[%s203 + $0x108] sm:$0xff]
      %v261 = vld [vmem:[%s203 + $0x110] sm:$0xf]
      %v262 = vld [vmem:[%s203 + $0x114] sm:$0xff]
      %v263 = vld [vmem:[%s203 + $0x11c] sm:$0xf]
      %v264 = vld [vmem:[%s203 + $0x120] sm:$0xff]
      %v265 = vld [vmem:[%s203 + $0x128] sm:$0xf]
      %v266 = vld [vmem:[%s203 + $0x12c] sm:$0xff]
      %v267 = vld [vmem:[%s203 + $0x134] sm:$0xf]
      %v268 = vld [vmem:[%s203 + $0x138] sm:$0xff]
      %v269 = vld [vmem:[%s203 + $0x140] sm:$0xf]
      %v270 = vld [vmem:[%s203 + $0x144] sm:$0xff]
      %v271 = vld [vmem:[%s203 + $0x14c] sm:$0xf]
      %v272 = vld [vmem:[%s203 + $0x150] sm:$0xff]
      %v273 = vld [vmem:[%s203 + $0x158] sm:$0xf]
      %v274 = vld [vmem:[%s203 + $0x15c] sm:$0xff]
      %v275 = vld [vmem:[%s203 + $0x164] sm:$0xf]
      %v276 = vld [vmem:[%s203 + $0x168] sm:$0xff]
      %v277 = vld [vmem:[%s203 + $0x170] sm:$0xf]
      %v278 = vld [vmem:[%s203 + $0x174] sm:$0xff]
      %v279 = vld [vmem:[%s203 + $0x17c] sm:$0xf]
      %v280 = vld [vmem:[%s1] sm:$0xf]
      %v281 = vld [vmem:[%s1 + $0x4] sm:$0xf]
      %v282 = vld [vmem:[%s1 + $0x8] sm:$0xf]
      %v283 = vld [vmem:[%s1 + $0xc] sm:$0xf]
      %v284 = vld [vmem:[%s1 + $0x10] sm:$0xf]
      %v285 = vld [vmem:[%s1 + $0x14] sm:$0xf]
      %v286 = vld [vmem:[%s1 + $0x18] sm:$0xf]
      %v287 = vld [vmem:[%s1 + $0x1c] sm:$0xf]
      %v288 = vld [vmem:[%s1 + $0x20] sm:$0xf]
      %v289 = vld [vmem:[%s1 + $0x24] sm:$0xf]
      %v290 = vld [vmem:[%s1 + $0x28] sm:$0xf]
      %v291 = vld [vmem:[%s1 + $0x2c] sm:$0xf]
      %v292 = vld [vmem:[%s1 + $0x30] sm:$0xf]
      %v293 = vld [vmem:[%s1 + $0x34] sm:$0xf]
      %v294 = vld [vmem:[%s1 + $0x38] sm:$0xf]
      %v295 = vld [vmem:[%s1 + $0x3c] sm:$0xf]
      %v296 = vld [vmem:[%s1 + $0x40] sm:$0xf]
      %v297 = vld [vmem:[%s1 + $0x44] sm:$0xf]
      %v298 = vld [vmem:[%s1 + $0x48] sm:$0xf]
      %v299 = vld [vmem:[%s1 + $0x4c] sm:$0xf]
      %v300 = vld [vmem:[%s1 + $0x50] sm:$0xf]
      %v301 = vld [vmem:[%s1 + $0x54] sm:$0xf]
      %v302 = vld [vmem:[%s1 + $0x58] sm:$0xf]
      %v303 = vld [vmem:[%s1 + $0x5c] sm:$0xf]
      %v304 = vld [vmem:[%s1 + $0x60] sm:$0xf]
      %v305 = vld [vmem:[%s1 + $0x64] sm:$0xf]
      %v306 = vld [vmem:[%s1 + $0x68] sm:$0xf]
      %v307 = vld [vmem:[%s1 + $0x6c] sm:$0xf]
      %v308 = vld [vmem:[%s1 + $0x70] sm:$0xf]
      %v309 = vld [vmem:[%s1 + $0x74] sm:$0xf]
      %v310 = vld [vmem:[%s1 + $0x78] sm:$0xf]
      %v311 = vld [vmem:[%s1 + $0x7c] sm:$0xf]
      %v312 = vld [vmem:[%s1 + $0x80] sm:$0xf]
      %v313 = vld [vmem:[%s1 + $0x84] sm:$0xf]
      %v314 = vld [vmem:[%s1 + $0x88] sm:$0xf]
      %v315 = vld [vmem:[%s1 + $0x8c] sm:$0xf]
      %v380 = vunpack.c.l.b16 %v216
      %v381 = vunpack.c.h.b16 %v216
      %v382 = vunpack.c.l.b16 %v217
      %v383 = vunpack.c.l.b16 %v218
      %v384 = vunpack.c.h.b16 %v218
      %v385 = vunpack.c.l.b16 %v219
      %v386 = vunpack.c.l.b16 %v220
      %v387 = vunpack.c.h.b16 %v220
      %v388 = vunpack.c.l.b16 %v221
      %v389 = vunpack.c.l.b16 %v222
      %v390 = vunpack.c.h.b16 %v222
      %v391 = vunpack.c.l.b16 %v223
      %v392 = vunpack.c.l.b16 %v224
      %v393 = vunpack.c.h.b16 %v224
      %v394 = vunpack.c.l.b16 %v225
      %v395 = vunpack.c.l.b16 %v226
      %v396 = vunpack.c.h.b16 %v226
      %v397 = vunpack.c.l.b16 %v227
      %v398 = vunpack.c.l.b16 %v228
      %v399 = vunpack.c.h.b16 %v228
      %v400 = vunpack.c.l.b16 %v229
      %v401 = vunpack.c.l.b16 %v230
      %v402 = vunpack.c.h.b16 %v230
      %v403 = vunpack.c.l.b16 %v231
      %v404 = vunpack.c.l.b16 %v232
      %v405 = vunpack.c.h.b16 %v232
      %v406 = vunpack.c.l.b16 %v233
      %v407 = vunpack.c.l.b16 %v234
      %v408 = vunpack.c.h.b16 %v234
      %v409 = vunpack.c.l.b16 %v235
      %v410 = vunpack.c.l.b16 %v236
      %v411 = vunpack.c.h.b16 %v236
      %v412 = vunpack.c.l.b16 %v237
      %v413 = vunpack.c.l.b16 %v238
      %v414 = vunpack.c.h.b16 %v238
      %v415 = vunpack.c.l.b16 %v239
      %v416 = vunpack.c.l.b16 %v240
      %v417 = vunpack.c.h.b16 %v240
      %v418 = vunpack.c.l.b16 %v241
      %v419 = vunpack.c.l.b16 %v242
      %v420 = vunpack.c.h.b16 %v242
      %v421 = vunpack.c.l.b16 %v243
      %v422 = vunpack.c.l.b16 %v244
      %v423 = vunpack.c.h.b16 %v244
      %v424 = vunpack.c.l.b16 %v245
      %v425 = vunpack.c.l.b16 %v246
      %v426 = vunpack.c.h.b16 %v246
      %v427 = vunpack.c.l.b16 %v247
      %v428 = vunpack.c.l.b16 %v248
      %v429 = vunpack.c.h.b16 %v248
      %v430 = vunpack.c.l.b16 %v249
      %v431 = vunpack.c.l.b16 %v250
      %v432 = vunpack.c.h.b16 %v250
      %v433 = vunpack.c.l.b16 %v251
      %v434 = vunpack.c.l.b16 %v252
      %v435 = vunpack.c.h.b16 %v252
      %v436 = vunpack.c.l.b16 %v253
      %v437 = vunpack.c.l.b16 %v254
      %v438 = vunpack.c.h.b16 %v254
      %v439 = vunpack.c.l.b16 %v255
      %v440 = vunpack.c.l.b16 %v256
      %v441 = vunpack.c.h.b16 %v256
      %v442 = vunpack.c.l.b16 %v257
      %v443 = vunpack.c.l.b16 %v258
      %v444 = vunpack.c.h.b16 %v258
      %v445 = vunpack.c.l.b16 %v259
      %v446 = vunpack.c.l.b16 %v260
      %v447 = vunpack.c.h.b16 %v260
      %v448 = vunpack.c.l.b16 %v261
      %v449 = vunpack.c.l.b16 %v262
      %v450 = vunpack.c.h.b16 %v262
      %v451 = vunpack.c.l.b16 %v263
      %v452 = vunpack.c.l.b16 %v264
      %v453 = vunpack.c.h.b16 %v264
      %v454 = vunpack.c.l.b16 %v265
      %v455 = vunpack.c.l.b16 %v266
      %v456 = vunpack.c.h.b16 %v266
      %v457 = vunpack.c.l.b16 %v267
      %v458 = vunpack.c.l.b16 %v268
      %v459 = vunpack.c.h.b16 %v268
      %v460 = vunpack.c.l.b16 %v269
      %v461 = vunpack.c.l.b16 %v270
      %v462 = vunpack.c.h.b16 %v270
      %v463 = vunpack.c.l.b16 %v271
      %v464 = vunpack.c.l.b16 %v272
      %v465 = vunpack.c.h.b16 %v272
      %v466 = vunpack.c.l.b16 %v273
      %v467 = vunpack.c.l.b16 %v274
      %v468 = vunpack.c.h.b16 %v274
      %v469 = vunpack.c.l.b16 %v275
      %v470 = vunpack.c.l.b16 %v276
      %v471 = vunpack.c.h.b16 %v276
      %v472 = vunpack.c.l.b16 %v277
      %v473 = vunpack.c.l.b16 %v278
      %v474 = vunpack.c.h.b16 %v278
      %v475 = vunpack.c.l.b16 %v279
      %v476 = vpack.c.b16 %v383, %v380
      %v477 = vpack.c.b16 %v384, %v381
      %v478 = vpack.c.b16 %v385, %v382
      %v479 = vpack.c.b16 %v389, %v386
      %v480 = vpack.c.b16 %v390, %v387
      %v481 = vpack.c.b16 %v391, %v388
      %v482 = vpack.c.b16 %v395, %v392
      %v483 = vpack.c.b16 %v396, %v393
      %v484 = vpack.c.b16 %v397, %v394
      %v485 = vpack.c.b16 %v401, %v398
      %v486 = vpack.c.b16 %v402, %v399
      %v487 = vpack.c.b16 %v403, %v400
      %v488 = vpack.c.b16 %v407, %v404
      %v489 = vpack.c.b16 %v408, %v405
      %v490 = vpack.c.b16 %v409, %v406
      %v491 = vpack.c.b16 %v413, %v410
      %v492 = vpack.c.b16 %v414, %v411
      %v493 = vpack.c.b16 %v415, %v412
      %v494 = vpack.c.b16 %v419, %v416
      %v495 = vpack.c.b16 %v420, %v417
      %v496 = vpack.c.b16 %v421, %v418
      %v497 = vpack.c.b16 %v425, %v422
      %v498 = vpack.c.b16 %v426, %v423
      %v499 = vpack.c.b16 %v427, %v424
      %v500 = vpack.c.b16 %v431, %v428
      %v501 = vpack.c.b16 %v432, %v429
      %v502 = vpack.c.b16 %v433, %v430
      %v503 = vpack.c.b16 %v437, %v434
      %v504 = vpack.c.b16 %v438, %v435
      %v505 = vpack.c.b16 %v439, %v436
      %v506 = vpack.c.b16 %v443, %v440
      %v507 = vpack.c.b16 %v444, %v441
      %v508 = vpack.c.b16 %v445, %v442
      %v509 = vpack.c.b16 %v449, %v446
      %v510 = vpack.c.b16 %v450, %v447
      %v511 = vpack.c.b16 %v451, %v448
      %v512 = vpack.c.b16 %v455, %v452
      %v513 = vpack.c.b16 %v456, %v453
      %v514 = vpack.c.b16 %v457, %v454
      %v515 = vpack.c.b16 %v461, %v458
      %v516 = vpack.c.b16 %v462, %v459
      %v517 = vpack.c.b16 %v463, %v460
      %v518 = vpack.c.b16 %v467, %v464
      %v519 = vpack.c.b16 %v468, %v465
      %v520 = vpack.c.b16 %v469, %v466
      %v521 = vpack.c.b16 %v473, %v470
      %v522 = vpack.c.b16 %v474, %v471
      %v523 = vpack.c.b16 %v475, %v472
      %v592 = vunpack.c.l.b16 %v280
      %v593 = vunpack.c.l.b16 %v281
      %v594 = vunpack.c.l.b16 %v282
      %v595 = vunpack.c.l.b16 %v283
      %v596 = vunpack.c.l.b16 %v284
      %v597 = vunpack.c.l.b16 %v285
      %v598 = vunpack.c.l.b16 %v286
      %v599 = vunpack.c.l.b16 %v287
      %v600 = vunpack.c.l.b16 %v288
      %v601 = vunpack.c.l.b16 %v289
      %v602 = vunpack.c.l.b16 %v290
      %v603 = vunpack.c.l.b16 %v291
      %v604 = vunpack.c.l.b16 %v292
      %v605 = vunpack.c.l.b16 %v293
      %v606 = vunpack.c.l.b16 %v294
      %v607 = vunpack.c.l.b16 %v295
      %v608 = vunpack.c.l.b16 %v296
      %v609 = vunpack.c.l.b16 %v297
      %v610 = vunpack.c.l.b16 %v298
      %v611 = vunpack.c.l.b16 %v299
      %v612 = vunpack.c.l.b16 %v300
      %v613 = vunpack.c.l.b16 %v301
      %v614 = vunpack.c.l.b16 %v302
      %v615 = vunpack.c.l.b16 %v303
      %v616 = vunpack.c.l.b16 %v304
      %v617 = vunpack.c.l.b16 %v305
      %v618 = vunpack.c.l.b16 %v306
      %v619 = vunpack.c.l.b16 %v307
      %v620 = vunpack.c.l.b16 %v308
      %v621 = vunpack.c.l.b16 %v309
      %v622 = vunpack.c.l.b16 %v310
      %v623 = vunpack.c.l.b16 %v311
      %v624 = vunpack.c.l.b16 %v312
      %v625 = vunpack.c.l.b16 %v313
      %v626 = vunpack.c.l.b16 %v314
      %v627 = vunpack.c.l.b16 %v315
      %v628 = vpack.c.b16 %v593, %v592
      %v629 = vpack.c.b16 %v595, %v594
      %v630 = vpack.c.b16 %v597, %v596
      %v631 = vpack.c.b16 %v599, %v598
      %v632 = vpack.c.b16 %v601, %v600
      %v633 = vpack.c.b16 %v603, %v602
      %v634 = vpack.c.b16 %v605, %v604
      %v635 = vpack.c.b16 %v607, %v606
      %v636 = vpack.c.b16 %v609, %v608
      %v637 = vpack.c.b16 %v611, %v610
      %v638 = vpack.c.b16 %v613, %v612
      %v639 = vpack.c.b16 %v615, %v614
      %v640 = vpack.c.b16 %v617, %v616
      %v641 = vpack.c.b16 %v619, %v618
      %v642 = vpack.c.b16 %v621, %v620
      %v643 = vpack.c.b16 %v623, %v622
      %v644 = vpack.c.b16 %v625, %v624
      %v645 = vpack.c.b16 %v627, %v626
      %vm664 = vcmask 261120
      %v666 = vsel %vm664, %v478, 0
      %v669 = vsel %vm664, %v481, 0
      %v672 = vsel %vm664, %v484, 0
      %v675 = vsel %vm664, %v487, 0
      %v678 = vsel %vm664, %v490, 0
      %v681 = vsel %vm664, %v493, 0
      %v684 = vsel %vm664, %v496, 0
      %v687 = vsel %vm664, %v499, 0
      %v690 = vsel %vm664, %v502, 0
      %v693 = vsel %vm664, %v505, 0
      %v696 = vsel %vm664, %v508, 0
      %v699 = vsel %vm664, %v511, 0
      %v702 = vsel %vm664, %v514, 0
      %v705 = vsel %vm664, %v517, 0
      %v708 = vsel %vm664, %v520, 0
      %v711 = vsel %vm664, %v523, 0
      %713 = vmatprep.subr.bf16.mxu0 0
      %714 = vmatpush1.bf16.msra.mxu0 %v628
      %715 = vmatprep.subr.bf16.mxu0 0
      %716 = vmatpush1.bf16.msra.mxu0 %v629
      %717 = vmatprep.subr.bf16.mxu0 0
      %718 = vmatpush1.bf16.msra.mxu0 %v630
      %719 = vmatprep.subr.bf16.mxu0 0
      %720 = vmatpush1.bf16.msra.mxu0 %v631
      %721 = vmatprep.subr.bf16.mxu0 0
      %722 = vmatpush1.bf16.msra.mxu0 %v632
      %723 = vmatprep.subr.bf16.mxu0 0
      %724 = vmatpush1.bf16.msra.mxu0 %v633
      %725 = vmatprep.subr.bf16.mxu0 0
      %726 = vmatpush1.bf16.msra.mxu0 %v634
      %727 = vmatprep.subr.bf16.mxu0 0
      %728 = vmatpush1.bf16.msra.mxu0 %v635
      %729 = vmatprep.subr.bf16.mxu0 0
      %730 = vmatpush1.bf16.msra.mxu0 %v636
      %731 = vmatprep.subr.bf16.mxu0 0
      %732 = vmatpush1.bf16.msra.mxu0 %v637
      %733 = vmatprep.subr.bf16.mxu0 0
      %734 = vmatpush1.bf16.msra.mxu0 %v638
      %735 = vmatprep.subr.bf16.mxu0 0
      %736 = vmatpush1.bf16.msra.mxu0 %v639
      %737 = vmatprep.subr.bf16.mxu0 0
      %738 = vmatpush1.bf16.msra.mxu0 %v640
      %739 = vmatprep.subr.bf16.mxu0 0
      %740 = vmatpush1.bf16.msra.mxu0 %v641
      %741 = vmatprep.subr.bf16.mxu0 0
      %742 = vmatpush1.bf16.msra.mxu0 %v642
      %743 = vmatprep.subr.bf16.mxu0 0
      %744 = vmatpush1.bf16.msra.mxu0 %v643
      %745 = vmatprep.mubr.bf16.mxu0 %v477
      %746 = vmatmul.mubr.bf16.gmra.mrb[0].mxu0 %v476
      %v747 = vpop.f32.mrb[0].mxu0
      %v748 = vadd.f32 0.0, %v747
      %v749 = vpop.f32.mrb[0].mxu0
      %v750 = vpop.f32.mrb[0].mxu0
      %v751 = vadd.f32 0.0, %v750
      %v752 = vpop.f32.mrb[0].mxu0
      %753 = vmatprep.mubr.bf16.mxu0 %v480
      %754 = vmatmul.mubr.bf16.gmra.mrb[0].mxu0 %v479
      %v755 = vpop.f32.mrb[0].mxu0
      %v756 = vadd.f32 0.0, %v755
      %v757 = vpop.f32.mrb[0].mxu0
      %v758 = vpop.f32.mrb[0].mxu0
      %v759 = vadd.f32 0.0, %v758
      %v760 = vpop.f32.mrb[0].mxu0
      %761 = vmatprep.mubr.bf16.mxu0 %v483
      %762 = vmatmul.mubr.bf16.gmra.mrb[0].mxu0 %v482
      %v763 = vpop.f32.mrb[0].mxu0
      %v764 = vadd.f32 0.0, %v763
      %v765 = vpop.f32.mrb[0].mxu0
      %v766 = vpop.f32.mrb[0].mxu0
      %v767 = vadd.f32 0.0, %v766
      %v768 = vpop.f32.mrb[0].mxu0
      %769 = vmatprep.mubr.bf16.mxu0 %v486
      %770 = vmatmul.mubr.bf16.gmra.mrb[0].mxu0 %v485
      %v771 = vpop.f32.mrb[0].mxu0
      %v772 = vadd.f32 0.0, %v771
      %v773 = vpop.f32.mrb[0].mxu0
      %v774 = vpop.f32.mrb[0].mxu0
      %v775 = vadd.f32 0.0, %v774
      %v776 = vpop.f32.mrb[0].mxu0
      %777 = vmatprep.mubr.bf16.mxu0 %v489
      %778 = vmatmul.mubr.bf16.gmra.mrb[0].mxu0 %v488
      %v779 = vpop.f32.mrb[0].mxu0
      %v780 = vadd.f32 0.0, %v779
      %v781 = vpop.f32.mrb[0].mxu0
      %v782 = vpop.f32.mrb[0].mxu0
      %v783 = vadd.f32 0.0, %v782
      %v784 = vpop.f32.mrb[0].mxu0
      %785 = vmatprep.mubr.bf16.mxu0 %v492
      %786 = vmatmul.mubr.bf16.gmra.mrb[0].mxu0 %v491
      %v787 = vpop.f32.mrb[0].mxu0
      %v788 = vadd.f32 0.0, %v787
      %v789 = vpop.f32.mrb[0].mxu0
      %v790 = vpop.f32.mrb[0].mxu0
      %v791 = vadd.f32 0.0, %v790
      %v792 = vpop.f32.mrb[0].mxu0
      %793 = vmatprep.mubr.bf16.mxu0 %v495
      %794 = vmatmul.mubr.bf16.gmra.mrb[0].mxu0 %v494
      %v795 = vpop.f32.mrb[0].mxu0
      %v796 = vadd.f32 0.0, %v795
      %v797 = vpop.f32.mrb[0].mxu0
      %v798 = vpop.f32.mrb[0].mxu0
      %v799 = vadd.f32 0.0, %v798
      %v800 = vpop.f32.mrb[0].mxu0
      %801 = vmatprep.mubr.bf16.mxu0 %v498
      %802 = vmatmul.mubr.bf16.gmra.mrb[0].mxu0 %v497
      %v803 = vpop.f32.mrb[0].mxu0
      %v804 = vadd.f32 0.0, %v803
      %v805 = vpop.f32.mrb[0].mxu0
      %v806 = vpop.f32.mrb[0].mxu0
      %v807 = vadd.f32 0.0, %v806
      %v808 = vpop.f32.mrb[0].mxu0
      %809 = vmatprep.mubr.bf16.mxu0 %v501
      %810 = vmatmul.mubr.bf16.gmra.mrb[0].mxu0 %v500
      %v811 = vpop.f32.mrb[0].mxu0
      %v812 = vadd.f32 0.0, %v811
      %v813 = vpop.f32.mrb[0].mxu0
      %v814 = vpop.f32.mrb[0].mxu0
      %v815 = vadd.f32 0.0, %v814
      %v816 = vpop.f32.mrb[0].mxu0
      %817 = vmatprep.mubr.bf16.mxu0 %v504
      %818 = vmatmul.mubr.bf16.gmra.mrb[0].mxu0 %v503
      %v819 = vpop.f32.mrb[0].mxu0
      %v820 = vadd.f32 0.0, %v819
      %v821 = vpop.f32.mrb[0].mxu0
      %v822 = vpop.f32.mrb[0].mxu0
      %v823 = vadd.f32 0.0, %v822
      %v824 = vpop.f32.mrb[0].mxu0
      %825 = vmatprep.mubr.bf16.mxu0 %v507
      %826 = vmatmul.mubr.bf16.gmra.mrb[0].mxu0 %v506
      %v827 = vpop.f32.mrb[0].mxu0
      %v828 = vadd.f32 0.0, %v827
      %v829 = vpop.f32.mrb[0].mxu0
      %v830 = vpop.f32.mrb[0].mxu0
      %v831 = vadd.f32 0.0, %v830
      %v832 = vpop.f32.mrb[0].mxu0
      %833 = vmatprep.mubr.bf16.mxu0 %v510
      %834 = vmatmul.mubr.bf16.gmra.mrb[0].mxu0 %v509
      %v835 = vpop.f32.mrb[0].mxu0
      %v836 = vadd.f32 0.0, %v835
      %v837 = vpop.f32.mrb[0].mxu0
      %v838 = vpop.f32.mrb[0].mxu0
      %v839 = vadd.f32 0.0, %v838
      %v840 = vpop.f32.mrb[0].mxu0
      %841 = vmatprep.mubr.bf16.mxu0 %v513
      %842 = vmatmul.mubr.bf16.gmra.mrb[0].mxu0 %v512
      %v843 = vpop.f32.mrb[0].mxu0
      %v844 = vadd.f32 0.0, %v843
      %v845 = vpop.f32.mrb[0].mxu0
      %v846 = vpop.f32.mrb[0].mxu0
      %v847 = vadd.f32 0.0, %v846
      %v848 = vpop.f32.mrb[0].mxu0
      %849 = vmatprep.mubr.bf16.mxu0 %v516
      %850 = vmatmul.mubr.bf16.gmra.mrb[0].mxu0 %v515
      %v851 = vpop.f32.mrb[0].mxu0
      %v852 = vadd.f32 0.0, %v851
      %v853 = vpop.f32.mrb[0].mxu0
      %v854 = vpop.f32.mrb[0].mxu0
      %v855 = vadd.f32 0.0, %v854
      %v856 = vpop.f32.mrb[0].mxu0
      %857 = vmatprep.mubr.bf16.mxu0 %v519
      %858 = vmatmul.mubr.bf16.gmra.mrb[0].mxu0 %v518
      %v859 = vpop.f32.mrb[0].mxu0
      %v860 = vadd.f32 0.0, %v859
      %v861 = vpop.f32.mrb[0].mxu0
      %v862 = vpop.f32.mrb[0].mxu0
      %v863 = vadd.f32 0.0, %v862
      %v864 = vpop.f32.mrb[0].mxu0
      %865 = vmatprep.mubr.bf16.mxu0 %v522
      %866 = vmatmul.mubr.bf16.gmra.mrb[0].mxu0 %v521
      %v867 = vpop.f32.mrb[0].mxu0
      %v868 = vadd.f32 0.0, %v867
      %v869 = vpop.f32.mrb[0].mxu0
      %v870 = vpop.f32.mrb[0].mxu0
      %v871 = vadd.f32 0.0, %v870
      %v872 = vpop.f32.mrb[0].mxu0
      %873 = vdwg.mxu0
      %874 = vmatprep.subr.bf16.mxu0 0
      %875 = vmatpush1.bf16.msra.mxu0 %v644
      %876 = vmatprep.subr.bf16.mxu0 0
      %877 = vmatpush1.bf16.msra.mxu0 %v645
      %878 = vmatprep.subr.bf16.mxu0 0
      %879 = vmatpush1.bf16.msra.mxu0 0
      %880 = vmatprep.subr.bf16.mxu0 0
      %881 = vmatpush1.bf16.msra.mxu0 0
      %882 = vmatprep.subr.bf16.mxu0 0
      %883 = vmatpush1.bf16.msra.mxu0 0
      %884 = vmatprep.subr.bf16.mxu0 0
      %885 = vmatpush1.bf16.msra.mxu0 0
      %886 = vmatprep.subr.bf16.mxu0 0
      %887 = vmatpush1.bf16.msra.mxu0 0
      %888 = vmatprep.subr.bf16.mxu0 0
      %889 = vmatpush1.bf16.msra.mxu0 0
      %890 = vmatprep.subr.bf16.mxu0 0
      %891 = vmatpush1.bf16.msra.mxu0 0
      %892 = vmatprep.subr.bf16.mxu0 0
      %893 = vmatpush1.bf16.msra.mxu0 0
      %894 = vmatprep.subr.bf16.mxu0 0
      %895 = vmatpush1.bf16.msra.mxu0 0
      %896 = vmatprep.subr.bf16.mxu0 0
      %897 = vmatpush1.bf16.msra.mxu0 0
      %898 = vmatprep.subr.bf16.mxu0 0
      %899 = vmatpush1.bf16.msra.mxu0 0
      %900 = vmatprep.subr.bf16.mxu0 0
      %901 = vmatpush1.bf16.msra.mxu0 0
      %902 = vmatprep.subr.bf16.mxu0 0
      %903 = vmatpush1.bf16.msra.mxu0 0
      %904 = vmatprep.subr.bf16.mxu0 0
      %905 = vmatpush1.bf16.msra.mxu0 0
      %906 = vmatprep.mubr.bf16.mxu0 0
      %907 = vmatmul.mubr.bf16.gmra.mrb[0].mxu0 %v666
      %v908 = vpop.f32.mrb[0].mxu0
      %v909 = vadd.f32 %v748, %v908
      %v910 = vpop.f32.mrb[0].mxu0
      %v911 = vpop.f32.mrb[0].mxu0
      %v912 = vadd.f32 %v751, %v911
      %v913 = vpop.f32.mrb[0].mxu0
      %914 = vmatprep.mubr.bf16.mxu0 0
      %915 = vmatmul.mubr.bf16.gmra.mrb[0].mxu0 %v669
      %v916 = vpop.f32.mrb[0].mxu0
      %v917 = vadd.f32 %v756, %v916
      %v918 = vpop.f32.mrb[0].mxu0
      %v919 = vpop.f32.mrb[0].mxu0
      %v920 = vadd.f32 %v759, %v919
      %v921 = vpop.f32.mrb[0].mxu0
      %922 = vmatprep.mubr.bf16.mxu0 0
      %923 = vmatmul.mubr.bf16.gmra.mrb[0].mxu0 %v672
      %v924 = vpop.f32.mrb[0].mxu0
      %v925 = vadd.f32 %v764, %v924
      %v926 = vpop.f32.mrb[0].mxu0
      %v927 = vpop.f32.mrb[0].mxu0
      %v928 = vadd.f32 %v767, %v927
      %v929 = vpop.f32.mrb[0].mxu0
      %930 = vmatprep.mubr.bf16.mxu0 0
      %931 = vmatmul.mubr.bf16.gmra.mrb[0].mxu0 %v675
      %v932 = vpop.f32.mrb[0].mxu0
      %v933 = vadd.f32 %v772, %v932
      %v934 = vpop.f32.mrb[0].mxu0
      %v935 = vpop.f32.mrb[0].mxu0
      %v936 = vadd.f32 %v775, %v935
      %v937 = vpop.f32.mrb[0].mxu0
      %938 = vmatprep.mubr.bf16.mxu0 0
      %939 = vmatmul.mubr.bf16.gmra.mrb[0].mxu0 %v678
      %v940 = vpop.f32.mrb[0].mxu0
      %v941 = vadd.f32 %v780, %v940
      %v942 = vpop.f32.mrb[0].mxu0
      %v943 = vpop.f32.mrb[0].mxu0
      %v944 = vadd.f32 %v783, %v943
      %v945 = vpop.f32.mrb[0].mxu0
      %946 = vmatprep.mubr.bf16.mxu0 0
      %947 = vmatmul.mubr.bf16.gmra.mrb[0].mxu0 %v681
      %v948 = vpop.f32.mrb[0].mxu0
      %v949 = vadd.f32 %v788, %v948
      %v950 = vpop.f32.mrb[0].mxu0
      %v951 = vpop.f32.mrb[0].mxu0
      %v952 = vadd.f32 %v791, %v951
      %v953 = vpop.f32.mrb[0].mxu0
      %954 = vmatprep.mubr.bf16.mxu0 0
      %955 = vmatmul.mubr.bf16.gmra.mrb[0].mxu0 %v684
      %v956 = vpop.f32.mrb[0].mxu0
      %v957 = vadd.f32 %v796, %v956
      %v958 = vpop.f32.mrb[0].mxu0
      %v959 = vpop.f32.mrb[0].mxu0
      %v960 = vadd.f32 %v799, %v959
      %v961 = vpop.f32.mrb[0].mxu0
      %962 = vmatprep.mubr.bf16.mxu0 0
      %963 = vmatmul.mubr.bf16.gmra.mrb[0].mxu0 %v687
      %v964 = vpop.f32.mrb[0].mxu0
      %v965 = vadd.f32 %v804, %v964
      %v966 = vpop.f32.mrb[0].mxu0
      %v967 = vpop.f32.mrb[0].mxu0
      %v968 = vadd.f32 %v807, %v967
      %v969 = vpop.f32.mrb[0].mxu0
      %970 = vmatprep.mubr.bf16.mxu0 0
      %971 = vmatmul.mubr.bf16.gmra.mrb[0].mxu0 %v690
      %v972 = vpop.f32.mrb[0].mxu0
      %v973 = vadd.f32 %v812, %v972
      %v974 = vpop.f32.mrb[0].mxu0
      %v975 = vpop.f32.mrb[0].mxu0
      %v976 = vadd.f32 %v815, %v975
      %v977 = vpop.f32.mrb[0].mxu0
      %978 = vmatprep.mubr.bf16.mxu0 0
      %979 = vmatmul.mubr.bf16.gmra.mrb[0].mxu0 %v693
      %v980 = vpop.f32.mrb[0].mxu0
      %v981 = vadd.f32 %v820, %v980
      %v982 = vpop.f32.mrb[0].mxu0
      %v983 = vpop.f32.mrb[0].mxu0
      %v984 = vadd.f32 %v823, %v983
      %v985 = vpop.f32.mrb[0].mxu0
      %986 = vmatprep.mubr.bf16.mxu0 0
      %987 = vmatmul.mubr.bf16.gmra.mrb[0].mxu0 %v696
      %v988 = vpop.f32.mrb[0].mxu0
      %v989 = vadd.f32 %v828, %v988
      %v990 = vpop.f32.mrb[0].mxu0
      %v991 = vpop.f32.mrb[0].mxu0
      %v992 = vadd.f32 %v831, %v991
      %v993 = vpop.f32.mrb[0].mxu0
      %994 = vmatprep.mubr.bf16.mxu0 0
      %995 = vmatmul.mubr.bf16.gmra.mrb[0].mxu0 %v699
      %v996 = vpop.f32.mrb[0].mxu0
      %v997 = vadd.f32 %v836, %v996
      %v998 = vpop.f32.mrb[0].mxu0
      %v999 = vpop.f32.mrb[0].mxu0
      %v1000 = vadd.f32 %v839, %v999
      %v1001 = vpop.f32.mrb[0].mxu0
      %1002 = vmatprep.mubr.bf16.mxu0 0
      %1003 = vmatmul.mubr.bf16.gmra.mrb[0].mxu0 %v702
      %v1004 = vpop.f32.mrb[0].mxu0
      %v1005 = vadd.f32 %v844, %v1004
      %v1006 = vpop.f32.mrb[0].mxu0
      %v1007 = vpop.f32.mrb[0].mxu0
      %v1008 = vadd.f32 %v847, %v1007
      %v1009 = vpop.f32.mrb[0].mxu0
      %1010 = vmatprep.mubr.bf16.mxu0 0
      %1011 = vmatmul.mubr.bf16.gmra.mrb[0].mxu0 %v705
      %v1012 = vpop.f32.mrb[0].mxu0
      %v1013 = vadd.f32 %v852, %v1012
      %v1014 = vpop.f32.mrb[0].mxu0
      %v1015 = vpop.f32.mrb[0].mxu0
      %v1016 = vadd.f32 %v855, %v1015
      %v1017 = vpop.f32.mrb[0].mxu0
      %1018 = vmatprep.mubr.bf16.mxu0 0
      %1019 = vmatmul.mubr.bf16.gmra.mrb[0].mxu0 %v708
      %v1020 = vpop.f32.mrb[0].mxu0
      %v1021 = vadd.f32 %v860, %v1020
      %v1022 = vpop.f32.mrb[0].mxu0
      %v1023 = vpop.f32.mrb[0].mxu0
      %v1024 = vadd.f32 %v863, %v1023
      %v1025 = vpop.f32.mrb[0].mxu0
      %1026 = vmatprep.mubr.bf16.mxu0 0
      %1027 = vmatmul.mubr.bf16.gmra.mrb[0].mxu0 %v711
      %v1028 = vpop.f32.mrb[0].mxu0
      %v1029 = vadd.f32 %v868, %v1028
      %v1030 = vpop.f32.mrb[0].mxu0
      %v1031 = vpop.f32.mrb[0].mxu0
      %v1032 = vadd.f32 %v871, %v1031
      %v1033 = vpop.f32.mrb[0].mxu0
      %1034 = vdwg.mxu0
      %vm1035 = vcmask 7168
      %1036 = vst.msk [vmem:[%s208] sm:$0xff] %vm1035, %v909
      %1037 = vst.msk [vmem:[%s208 + $0x8] sm:$0xff] %vm1035, %v912
      %1038 = vst.msk [vmem:[%s208 + $0x10] sm:$0xff] %vm1035, %v917
      %1039 = vst.msk [vmem:[%s208 + $0x18] sm:$0xff] %vm1035, %v920
      %1040 = vst.msk [vmem:[%s208 + $0x20] sm:$0xff] %vm1035, %v925
      %1041 = vst.msk [vmem:[%s208 + $0x28] sm:$0xff] %vm1035, %v928
      %1042 = vst.msk [vmem:[%s208 + $0x30] sm:$0xff] %vm1035, %v933
      %1043 = vst.msk [vmem:[%s208 + $0x38] sm:$0xff] %vm1035, %v936
      %1044 = vst.msk [vmem:[%s208 + $0x40] sm:$0xff] %vm1035, %v941
      %1045 = vst.msk [vmem:[%s208 + $0x48] sm:$0xff] %vm1035, %v944
      %1046 = vst.msk [vmem:[%s208 + $0x50] sm:$0xff] %vm1035, %v949
      %1047 = vst.msk [vmem:[%s208 + $0x58] sm:$0xff] %vm1035, %v952
      %1048 = vst.msk [vmem:[%s208 + $0x60] sm:$0xff] %vm1035, %v957
      %1049 = vst.msk [vmem:[%s208 + $0x68] sm:$0xff] %vm1035, %v960
      %1050 = vst.msk [vmem:[%s208 + $0x70] sm:$0xff] %vm1035, %v965
      %1051 = vst.msk [vmem:[%s208 + $0x78] sm:$0xff] %vm1035, %v968
      %1052 = vst.msk [vmem:[%s208 + $0x80] sm:$0xff] %vm1035, %v973
      %1053 = vst.msk [vmem:[%s208 + $0x88] sm:$0xff] %vm1035, %v976
      %1054 = vst.msk [vmem:[%s208 + $0x90] sm:$0xff] %vm1035, %v981
      %1055 = vst.msk [vmem:[%s208 + $0x98] sm:$0xff] %vm1035, %v984
      %1056 = vst.msk [vmem:[%s208 + $0xa0] sm:$0xff] %vm1035, %v989
      %1057 = vst.msk [vmem:[%s208 + $0xa8] sm:$0xff] %vm1035, %v992
      %1058 = vst.msk [vmem:[%s208 + $0xb0] sm:$0xff] %vm1035, %v997
      %1059 = vst.msk [vmem:[%s208 + $0xb8] sm:$0xff] %vm1035, %v1000
      %1060 = vst.msk [vmem:[%s208 + $0xc0] sm:$0xff] %vm1035, %v1005
      %1061 = vst.msk [vmem:[%s208 + $0xc8] sm:$0xff] %vm1035, %v1008
      %1062 = vst.msk [vmem:[%s208 + $0xd0] sm:$0xff] %vm1035, %v1013
      %1063 = vst.msk [vmem:[%s208 + $0xd8] sm:$0xff] %vm1035, %v1016
      %1064 = vst.msk [vmem:[%s208 + $0xe0] sm:$0xff] %vm1035, %v1021
      %1065 = vst.msk [vmem:[%s208 + $0xe8] sm:$0xff] %vm1035, %v1024
      %1066 = vst.msk [vmem:[%s208 + $0xf0] sm:$0xff] %vm1035, %v1029
      %1067 = vst.msk [vmem:[%s208 + $0xf8] sm:$0xff] %vm1035, %v1032
      %v1068 = vsel %vm1035, %v909, 0.0
      %v1069 = vsel %vm1035, %v912, 0.0
      %v1070 = vadd.f32 %v1068, %v1069
      %v1071 = vsel %vm1035, %v917, 0.0
      %v1072 = vadd.f32 %v1070, %v1071
      %v1073 = vsel %vm1035, %v920, 0.0
      %v1074 = vadd.f32 %v1072, %v1073
      %v1075 = vsel %vm1035, %v925, 0.0
      %v1076 = vadd.f32 %v1074, %v1075
      %v1077 = vsel %vm1035, %v928, 0.0
      %v1078 = vadd.f32 %v1076, %v1077
      %v1079 = vsel %vm1035, %v933, 0.0
      %v1080 = vadd.f32 %v1078, %v1079
      %v1081 = vsel %vm1035, %v936, 0.0
      %v1082 = vadd.f32 %v1080, %v1081
      %v1083 = vsel %vm1035, %v941, 0.0
      %v1084 = vadd.f32 %v1082, %v1083
      %v1085 = vsel %vm1035, %v944, 0.0
      %v1086 = vadd.f32 %v1084, %v1085
      %v1087 = vsel %vm1035, %v949, 0.0
      %v1088 = vadd.f32 %v1086, %v1087
      %v1089 = vsel %vm1035, %v952, 0.0
      %v1090 = vadd.f32 %v1088, %v1089
      %v1091 = vsel %vm1035, %v957, 0.0
      %v1092 = vadd.f32 %v1090, %v1091
      %v1093 = vsel %vm1035, %v960, 0.0
      %v1094 = vadd.f32 %v1092, %v1093
      %v1095 = vsel %vm1035, %v965, 0.0
      %v1096 = vadd.f32 %v1094, %v1095
      %v1097 = vsel %vm1035, %v968, 0.0
      %v1098 = vadd.f32 %v1096, %v1097
      %v1099 = vsel %vm1035, %v973, 0.0
      %v1100 = vadd.f32 %v1098, %v1099
      %v1101 = vsel %vm1035, %v976, 0.0
      %v1102 = vadd.f32 %v1100, %v1101
      %v1103 = vsel %vm1035, %v981, 0.0
      %v1104 = vadd.f32 %v1102, %v1103
      %v1105 = vsel %vm1035, %v984, 0.0
      %v1106 = vadd.f32 %v1104, %v1105
      %v1107 = vsel %vm1035, %v989, 0.0
      %v1108 = vadd.f32 %v1106, %v1107
      %v1109 = vsel %vm1035, %v992, 0.0
      %v1110 = vadd.f32 %v1108, %v1109
      %v1111 = vsel %vm1035, %v997, 0.0
      %v1112 = vadd.f32 %v1110, %v1111
      %v1113 = vsel %vm1035, %v1000, 0.0
      %v1114 = vadd.f32 %v1112, %v1113
      %v1115 = vsel %vm1035, %v1005, 0.0
      %v1116 = vadd.f32 %v1114, %v1115
      %v1117 = vsel %vm1035, %v1008, 0.0
      %v1118 = vadd.f32 %v1116, %v1117
      %v1119 = vsel %vm1035, %v1013, 0.0
      %v1120 = vadd.f32 %v1118, %v1119
      %v1121 = vsel %vm1035, %v1016, 0.0
      %v1122 = vadd.f32 %v1120, %v1121
      %v1123 = vsel %vm1035, %v1021, 0.0
      %v1124 = vadd.f32 %v1122, %v1123
      %v1125 = vsel %vm1035, %v1024, 0.0
      %v1126 = vadd.f32 %v1124, %v1125
      %v1127 = vsel %vm1035, %v1029, 0.0
      %v1128 = vadd.f32 %v1126, %v1127
      %v1129 = vsel %vm1035, %v1032, 0.0
      %v1130 = vadd.f32 %v1128, %v1129
      %v1131 = vrot.slane %v1130, 4
      %v1132 = vadd.f32 %v1130, %v1131
      %v1133 = vrot.slane %v1132, 2
      %v1134 = vadd.f32 %v1132, %v1133
      %v1135 = vrot.slane %v1134, 1
      %v1136 = vadd.f32 %v1134, %v1135
      %vm1137 = vcmask 0
      %1138 = vst.msk [vmem:[%s211] sm:$0x1] %vm1137, %v1136
      %v1139 = vmul.f32 %v909, %v909
      %v1140 = vmul.f32 %v912, %v912
      %v1141 = vmul.f32 %v917, %v917
      %v1142 = vmul.f32 %v920, %v920
      %v1143 = vmul.f32 %v925, %v925
      %v1144 = vmul.f32 %v928, %v928
      %v1145 = vmul.f32 %v933, %v933
      %v1146 = vmul.f32 %v936, %v936
      %v1147 = vmul.f32 %v941, %v941
      %v1148 = vmul.f32 %v944, %v944
      %v1149 = vmul.f32 %v949, %v949
      %v1150 = vmul.f32 %v952, %v952
      %v1151 = vmul.f32 %v957, %v957
      %v1152 = vmul.f32 %v960, %v960
      %v1153 = vmul.f32 %v965, %v965
      %v1154 = vmul.f32 %v968, %v968
      %v1155 = vmul.f32 %v973, %v973
      %v1156 = vmul.f32 %v976, %v976
      %v1157 = vmul.f32 %v981, %v981
      %v1158 = vmul.f32 %v984, %v984
      %v1159 = vmul.f32 %v989, %v989
      %v1160 = vmul.f32 %v992, %v992
      %v1161 = vmul.f32 %v997, %v997
      %v1162 = vmul.f32 %v1000, %v1000
      %v1163 = vmul.f32 %v1005, %v1005
      %v1164 = vmul.f32 %v1008, %v1008
      %v1165 = vmul.f32 %v1013, %v1013
      %v1166 = vmul.f32 %v1016, %v1016
      %v1167 = vmul.f32 %v1021, %v1021
      %v1168 = vmul.f32 %v1024, %v1024
      %v1169 = vmul.f32 %v1029, %v1029
      %v1170 = vmul.f32 %v1032, %v1032
      %v1171 = vsel %vm1035, %v1139, 0.0
      %v1172 = vsel %vm1035, %v1140, 0.0
      %v1173 = vadd.f32 %v1171, %v1172
      %v1174 = vsel %vm1035, %v1141, 0.0
      %v1175 = vadd.f32 %v1173, %v1174
      %v1176 = vsel %vm1035, %v1142, 0.0
      %v1177 = vadd.f32 %v1175, %v1176
      %v1178 = vsel %vm1035, %v1143, 0.0
      %v1179 = vadd.f32 %v1177, %v1178
      %v1180 = vsel %vm1035, %v1144, 0.0
      %v1181 = vadd.f32 %v1179, %v1180
      %v1182 = vsel %vm1035, %v1145, 0.0
      %v1183 = vadd.f32 %v1181, %v1182
      %v1184 = vsel %vm1035, %v1146, 0.0
      %v1185 = vadd.f32 %v1183, %v1184
      %v1186 = vsel %vm1035, %v1147, 0.0
      %v1187 = vadd.f32 %v1185, %v1186
      %v1188 = vsel %vm1035, %v1148, 0.0
      %v1189 = vadd.f32 %v1187, %v1188
      %v1190 = vsel %vm1035, %v1149, 0.0
      %v1191 = vadd.f32 %v1189, %v1190
      %v1192 = vsel %vm1035, %v1150, 0.0
      %v1193 = vadd.f32 %v1191, %v1192
      %v1194 = vsel %vm1035, %v1151, 0.0
      %v1195 = vadd.f32 %v1193, %v1194
      %v1196 = vsel %vm1035, %v1152, 0.0
      %v1197 = vadd.f32 %v1195, %v1196
      %v1198 = vsel %vm1035, %v1153, 0.0
      %v1199 = vadd.f32 %v1197, %v1198
      %v1200 = vsel %vm1035, %v1154, 0.0
      %v1201 = vadd.f32 %v1199, %v1200
      %v1202 = vsel %vm1035, %v1155, 0.0
      %v1203 = vadd.f32 %v1201, %v1202
      %v1204 = vsel %vm1035, %v1156, 0.0
      %v1205 = vadd.f32 %v1203, %v1204
      %v1206 = vsel %vm1035, %v1157, 0.0
      %v1207 = vadd.f32 %v1205, %v1206
      %v1208 = vsel %vm1035, %v1158, 0.0
      %v1209 = vadd.f32 %v1207, %v1208
      %v1210 = vsel %vm1035, %v1159, 0.0
      %v1211 = vadd.f32 %v1209, %v1210
      %v1212 = vsel %vm1035, %v1160, 0.0
      %v1213 = vadd.f32 %v1211, %v1212
      %v1214 = vsel %vm1035, %v1161, 0.0
      %v1215 = vadd.f32 %v1213, %v1214
      %v1216 = vsel %vm1035, %v1162, 0.0
      %v1217 = vadd.f32 %v1215, %v1216
      %v1218 = vsel %vm1035, %v1163, 0.0
      %v1219 = vadd.f32 %v1217, %v1218
      %v1220 = vsel %vm1035, %v1164, 0.0
      %v1221 = vadd.f32 %v1219, %v1220
      %v1222 = vsel %vm1035, %v1165, 0.0
      %v1223 = vadd.f32 %v1221, %v1222
      %v1224 = vsel %vm1035, %v1166, 0.0
      %v1225 = vadd.f32 %v1223, %v1224
      %v1226 = vsel %vm1035, %v1167, 0.0
      %v1227 = vadd.f32 %v1225, %v1226
      %v1228 = vsel %vm1035, %v1168, 0.0
      %v1229 = vadd.f32 %v1227, %v1228
      %v1230 = vsel %vm1035, %v1169, 0.0
      %v1231 = vadd.f32 %v1229, %v1230
      %v1232 = vsel %vm1035, %v1170, 0.0
      %v1233 = vadd.f32 %v1231, %v1232
      %v1234 = vrot.slane %v1233, 4
      %v1235 = vadd.f32 %v1233, %v1234
      %v1236 = vrot.slane %v1235, 2
      %v1237 = vadd.f32 %v1235, %v1236
      %v1238 = vrot.slane %v1237, 1
      %v1239 = vadd.f32 %v1237, %v1238
      %1240 = vst.msk [vmem:[%s214] sm:$0x1] %vm1137, %v1239
      %p1241 = scmp.lt.s32.totalorder %s16, 1
      %s1242 = scalar_select %p1241, %s16, 1
      %s1243 = smul.addr %s1242, 32
      %s1244 = smul.addr %s1243, 8
      %s1245 = scalar_lea.vmem %s2, %s1244
      %p1246 = scmp.lt.s32.totalorder %s16, 1
      %s1247 = scalar_select %p1246, %s16, 1
      %s1248 = scalar_lea.vmem %s3, %s1247
      %p1249 = scmp.lt.s32.totalorder %s16, 1
      %s1250 = scalar_select %p1249, %s16, 1
      %s1251 = scalar_lea.vmem %s4, %s1250
      // Predicated region
      $region29: #{ddpm_forward.26} parent=27 // pred_check
        %p1252 = pneg %p81
      $region30: #{ddpm_forward.26} parent=27 // pred_check_branch
        %1254 = sbr.rel (%p1252) target = $region32
      $region31: #{ddpm_forward.26} parent=27 // pred_region
        _
      $region32: #{ddpm_forward.26} parent=27 // pred_fallthru
        _
      // Predicated region
      $region33: #{ddpm_forward.26} parent=27 // pred_check
        %p1255 = pneg %p107
      $region34: #{ddpm_forward.26} parent=27 // pred_check_branch
        %1257 = sbr.rel (%p1255) target = $region36
      $region35: #{ddpm_forward.26} parent=27 // pred_region
        _
      $region36: #{ddpm_forward.26} parent=27 // pred_fallthru
        _
      // Predicated region
      $region37: #{ddpm_forward.26} parent=27 // pred_check
        %p1258 = pneg %p133
      $region38: #{ddpm_forward.26} parent=27 // pred_check_branch
        %1260 = sbr.rel (%p1258) target = $region40
      $region39: #{ddpm_forward.26} parent=27 // pred_region
        _
      $region40: #{ddpm_forward.26} parent=27 // pred_fallthru
        _
    $region28: #{ddpm_forward.26} parent=5 // pred_fallthru
      _
    %p1261 = scmp.le.s32.totalorder 2, %s11
    // Predicated region
    $region41: #{ddpm_forward.26} parent=5 // pred_check
      %p1262 = pneg %p1261
    $region42: #{ddpm_forward.26} parent=5 // pred_check_branch
      %1264 = sbr.rel (%p1262) target = $region44
    $region43: #{ddpm_forward.26} parent=5 // pred_region
      %s1265 = ssub.s32 %s11, 2
      // Predicated region
      $region45: #{ddpm_forward.26} parent=43 // pred_check
        %p1266 = pneg %p87
      $region46: #{ddpm_forward.26} parent=43 // pred_check_branch
        %1268 = sbr.rel (%p1266) target = $region48
      $region47: #{ddpm_forward.26} parent=43 // pred_region
        %p1269 = scmp.lt.s32.totalorder %s17, 1
        %s1270 = scalar_select %p1269, %s17, 1
        %s1271 = smul.addr %s1270, 32
        %s1272 = smul.addr %s1271, 8
        %s1273 = scalar_lea.vmem %s2, %s1272
      $region48: #{ddpm_forward.26} parent=43 // pred_fallthru
        _
      // Predicated region
      $region49: #{ddpm_forward.26} parent=43 // pred_check
        %p1274 = pneg %p113
      $region50: #{ddpm_forward.26} parent=43 // pred_check_branch
        %1276 = sbr.rel (%p1274) target = $region52
      $region51: #{ddpm_forward.26} parent=43 // pred_region
        %p1277 = scmp.lt.s32.totalorder %s17, 1
        %s1278 = scalar_select %p1277, %s17, 1
        %s1279 = scalar_lea.vmem %s3, %s1278
      $region52: #{ddpm_forward.26} parent=43 // pred_fallthru
        _
      // Predicated region
      $region53: #{ddpm_forward.26} parent=43 // pred_check
        %p1280 = pneg %p139
      $region54: #{ddpm_forward.26} parent=43 // pred_check_branch
        %1282 = sbr.rel (%p1280) target = $region56
      $region55: #{ddpm_forward.26} parent=43 // pred_region
        %p1283 = scmp.lt.s32.totalorder %s17, 1
        %s1284 = scalar_select %p1283, %s17, 1
        %s1285 = scalar_lea.vmem %s4, %s1284
      $region56: #{ddpm_forward.26} parent=43 // pred_fallthru
        _
    $region44: #{ddpm_forward.26} parent=5 // pred_fallthru
      _
  $region6: #{ddpm_forward.26} parent=0 // loop_footer
    %s15 = sadd.s32 1, %s11
  $region7: #{ddpm_forward.26} parent=0 // loop_footer_branch
    %10 = sbr.rel target = $region3
  $region8: #{ddpm_forward.26} parent=0 // loop_exit
    _

</llo_original>
